<compile_context>
chip_gen: v7x
topology: tpu7x:2x2x1
jax: 0.10.0
libtpu: 0.0.40
codegen_flags: <defaults>
</compile_context>

<pallas_src>
import functools
import math

import jax
import jax.numpy as jnp
from jax.experimental import pallas as pl
from jax.experimental.pallas import tpu as pltpu

# ----------------------------- configuration -------------------------------
INPUT_DIM = 8
MODEL_DIM = 32
NUM_HEADS = 4
NUM_LAYERS = 2
OUTPUT_DIM = 8
FFN_DIM = 2048          # nn.TransformerEncoderLayer default dim_feedforward
MAX_LEN = 1000          # positional_encoding buffer length
LN_EPS = 1e-5

BATCH = 2
SEQ = 8


# ------------------------------- kernel -------------------------------------
def _layer_norm_2d(x, gamma, beta):
    mu = jnp.mean(x, axis=-1, keepdims=True)
    xc = x - mu
    var = jnp.mean(xc * xc, axis=-1, keepdims=True)
    return xc * jax.lax.rsqrt(var + LN_EPS) * gamma + beta


def fused_forward_kernel(
    # ------ inputs ------
    x_ref,        # (T, INPUT_DIM)   token rows, (s, b)-ordered
    ew_ref,       # (INPUT_DIM, D)   embedding weight, pre-transposed
    eb_ref,       # (1, D)
    pos_ref,      # (S, D)
    wqkv_ref,     # (D, 3D)          per-layer (leading layer axis squeezed)
    bqkv_ref,     # (1, 3D)
    wo_ref,       # (D, D)
    bo_ref,       # (1, D)
    w1_ref,       # (D, F)
    b1_ref,       # (1, F)
    w2_ref,       # (F, D)
    b2_ref,       # (1, D)
    g1_ref, be1_ref, g2_ref, be2_ref,   # (1, D) each
    fcw_ref,      # (D, OUTPUT_DIM)
    fcb_ref,      # (1, OUTPUT_DIM)
    # ------ outputs ------
    o_ref,        # (B, OUTPUT_DIM)
    # ------ scratch ------
    act_ref,      # (T, D) f32 — activation carried across grid steps
    *, num_heads, batch, seq,
):
    layer = pl.program_id(0)
    T, D = act_ref.shape
    hd = D // num_heads
    scale = 1.0 / math.sqrt(hd)

    # ---- embedding + positional encoding (first grid step only) ----
    @pl.when(layer == 0)
    def _embed():
        emb = (jnp.dot(x_ref[...], ew_ref[...],
                       preferred_element_type=jnp.float32) + eb_ref[...])
        # rows are (s, b)-ordered: row s*batch + b gets pos[s]
        emb3 = emb.reshape(seq, batch, D) + pos_ref[...][:, None, :]
        act_ref[...] = emb3.reshape(T, D)

    # ---- encoder layer `layer` ----
    x = act_ref[...]                                            # (T, D)

    # fused QKV projection (weights pre-transposed to (D, 3D))
    qkv = (jnp.dot(x, wqkv_ref[...], preferred_element_type=jnp.float32)
           + bqkv_ref[...])                                     # (T, 3D)
    q2 = qkv[:, 0 * D:1 * D]                                    # (T, D) slabs
    k2 = qkv[:, 1 * D:2 * D]
    v2 = qkv[:, 2 * D:3 * D]

    def split_heads(a):
        # (T, D) -> (num_heads*seq, batch, hd); batch axis = attended axis
        return jnp.concatenate(
            [a[:, h * hd:(h + 1) * hd].reshape(seq, batch, hd)
             for h in range(num_heads)], axis=0)

    qh = split_heads(q2)
    kh = split_heads(k2)
    vh = split_heads(v2)

    # one batched score matmul + softmax + one batched AV matmul
    s = jnp.einsum("nqd,nkd->nqk", qh, kh,
                   preferred_element_type=jnp.float32) * scale  # (H*S, B, B)
    s = s - jnp.max(s, axis=-1, keepdims=True)
    p = jnp.exp(s)
    p = p / jnp.sum(p, axis=-1, keepdims=True)
    oh = jnp.einsum("nqk,nkd->nqd", p, vh,
                    preferred_element_type=jnp.float32)         # (H*S, B, hd)

    # regroup heads back onto the feature axis -> single out-projection
    o2d = jnp.concatenate(
        [oh[h * seq:(h + 1) * seq].reshape(T, hd) for h in range(num_heads)],
        axis=1)                                                 # (T, D)
    attn = (jnp.dot(o2d, wo_ref[...], preferred_element_type=jnp.float32)
            + bo_ref[...])

    # TODO(synk): dropout (p=0.1) omitted — inference semantics (identity).
    x1 = _layer_norm_2d(x + attn, g1_ref[...], be1_ref[...])

    # feed-forward block (relu, PyTorch default)
    h1 = jnp.dot(x1, w1_ref[...], preferred_element_type=jnp.float32) + b1_ref[...]
    h1 = jnp.maximum(h1, 0.0)
    h2 = jnp.dot(h1, w2_ref[...], preferred_element_type=jnp.float32) + b2_ref[...]

    x2 = _layer_norm_2d(x1 + h2, g2_ref[...], be2_ref[...])
    act_ref[...] = x2

    # ---- final fc_out on the last sequence position (last grid step only) ----
    @pl.when(layer == pl.num_programs(0) - 1)
    def _head():
        last = x2[T - batch:, :]          # rows (S-1, b) for b = 0..B-1
        o_ref[...] = (jnp.dot(last, fcw_ref[...],
                              preferred_element_type=jnp.float32)
                      + fcb_ref[...])


# ------------------------------ pallas wrapper -------------------------------
def transformer_forward(x, pp):
    B, S, _ = x.shape
    D = MODEL_DIM
    F = FFN_DIM
    T = B * S

    # (s, b)-ordered token rows (matches batch_first=False attention semantics)
    x2d = jnp.transpose(x, (1, 0, 2)).reshape(T, INPUT_DIM)
    pos_s = pp["pos"][:S]                  # (S, D)

    kernel = functools.partial(fused_forward_kernel,
                               num_heads=NUM_HEADS, batch=B, seq=S)

    cm = lambda l: (0, 0)                  # resident (constant-block) inputs
    lm = lambda l: (l, 0, 0)               # per-layer stacked weights

    in_specs = [
        pl.BlockSpec((T, INPUT_DIM), cm),
        pl.BlockSpec((INPUT_DIM, D), cm),
        pl.BlockSpec((1, D), cm),
        pl.BlockSpec((S, D), cm),
        pl.BlockSpec((None, D, 3 * D), lm),
        pl.BlockSpec((None, 1, 3 * D), lm),
        pl.BlockSpec((None, D, D), lm),
        pl.BlockSpec((None, 1, D), lm),
        pl.BlockSpec((None, D, F), lm),
        pl.BlockSpec((None, 1, F), lm),
        pl.BlockSpec((None, F, D), lm),
        pl.BlockSpec((None, 1, D), lm),
        pl.BlockSpec((None, 1, D), lm),
        pl.BlockSpec((None, 1, D), lm),
        pl.BlockSpec((None, 1, D), lm),
        pl.BlockSpec((None, 1, D), lm),
        pl.BlockSpec((D, OUTPUT_DIM), cm),
        pl.BlockSpec((1, OUTPUT_DIM), cm),
    ]

    return pl.pallas_call(
        kernel,
        out_shape=jax.ShapeDtypeStruct((B, OUTPUT_DIM), jnp.float32),
        grid_spec=pltpu.PrefetchScalarGridSpec(
            num_scalar_prefetch=0,
            grid=(NUM_LAYERS,),
            in_specs=in_specs,
            out_specs=pl.BlockSpec((B, OUTPUT_DIM), cm),
            scratch_shapes=[pltpu.VMEM((T, D), jnp.float32)],
        ),
        compiler_params=pltpu.CompilerParams(
            dimension_semantics=("arbitrary",)),
    )(x2d, pp["emb_w_t"], pp["emb_b"], pos_s,
      pp["wqkv"], pp["bqkv"], pp["wo"], pp["bo"],
      pp["w1"], pp["b1"], pp["w2"], pp["b2"],
      pp["g1"], pp["be1"], pp["g2"], pp["be2"],
      pp["fc_w_t"], pp["fc_b"])


# ---------------------------- deterministic init -----------------------------
def init_params(key):
    def norm(k, shape, scale=0.05):
        return scale * jax.random.normal(k, shape, dtype=jnp.float32)

    keys = iter(jax.random.split(key, 8 + 8 * NUM_LAYERS))
    params = {
        "emb_w": norm(next(keys), (MODEL_DIM, INPUT_DIM)),
        "emb_b": norm(next(keys), (MODEL_DIM,)),
        # PyTorch inits this to zeros; small random so the add is exercised.
        "pos": norm(next(keys), (1, MAX_LEN, MODEL_DIM), scale=0.02),
        "fc_w": norm(next(keys), (OUTPUT_DIM, MODEL_DIM)),
        "fc_b": norm(next(keys), (OUTPUT_DIM,)),
        "layers": [],
    }
    for _ in range(NUM_LAYERS):
        params["layers"].append({
            "wqkv": norm(next(keys), (3 * MODEL_DIM, MODEL_DIM)),
            "bqkv": norm(next(keys), (3 * MODEL_DIM,)),
            "wo":   norm(next(keys), (MODEL_DIM, MODEL_DIM)),
            "bo":   norm(next(keys), (MODEL_DIM,)),
            "w1":   norm(next(keys), (FFN_DIM, MODEL_DIM)),
            "b1":   norm(next(keys), (FFN_DIM,)),
            "w2":   norm(next(keys), (MODEL_DIM, FFN_DIM)),
            "b2":   norm(next(keys), (MODEL_DIM,)),
            "g1":   jnp.ones((MODEL_DIM,), jnp.float32),
            "be1":  jnp.zeros((MODEL_DIM,), jnp.float32),
            "g2":   jnp.ones((MODEL_DIM,), jnp.float32),
            "be2":  jnp.zeros((MODEL_DIM,), jnp.float32),
        })
    return params


def pack_params(p):
    """One-time re-layout of parameters for the fused kernel (done outside jit)."""
    def stack(name, f):
        return jnp.stack([f(lp[name]) for lp in p["layers"]], axis=0)

    row = lambda b: b[None, :]
    return {
        "emb_w_t": p["emb_w"].T,              # (in, D)
        "emb_b":   row(p["emb_b"]),           # (1, D)
        "pos":     p["pos"][0],               # (MAX_LEN, D)
        "fc_w_t":  p["fc_w"].T,               # (D, out)
        "fc_b":    row(p["fc_b"]),            # (1, out)
        "wqkv": stack("wqkv", lambda w: w.T),  # (L, D, 3D)
        "bqkv": stack("bqkv", row),            # (L, 1, 3D)
        "wo":   stack("wo",   lambda w: w.T),  # (L, D, D)
        "bo":   stack("bo",   row),
        "w1":   stack("w1",   lambda w: w.T),  # (L, D, F)
        "b1":   stack("b1",   row),            # (L, 1, F)
        "w2":   stack("w2",   lambda w: w.T),  # (L, F, D)
        "b2":   stack("b2",   row),
        "g1":   stack("g1",   row),
        "be1":  stack("be1",  row),
        "g2":   stack("g2",   row),
        "be2":  stack("be2",  row),
    }


# ----------------------------- pure-JAX reference ----------------------------
def _ln_ref(x, g, b):
    mu = jnp.mean(x, axis=-1, keepdims=True)
    var = jnp.mean((x - mu) ** 2, axis=-1, keepdims=True)
    return (x - mu) / jnp.sqrt(var + LN_EPS) * g + b


def reference_forward(x, params):
    B, S, _ = x.shape
    D = MODEL_DIM
    hd = D // NUM_HEADS
    h = x @ params["emb_w"].T + params["emb_b"] + params["pos"][:, :S, :]
    # batch_first=False semantics: axis 0 is treated as the sequence.
    for lp in params["layers"]:
        L, N, _ = h.shape
        qkv = h @ lp["wqkv"].T + lp["bqkv"]
        q = qkv[..., :D].reshape(L, N, NUM_HEADS, hd)
        k = qkv[..., D:2 * D].reshape(L, N, NUM_HEADS, hd)
        v = qkv[..., 2 * D:].reshape(L, N, NUM_HEADS, hd)
        s = jnp.einsum("lnhd,mnhd->nhlm", q, k) / jnp.sqrt(float(hd))
        p = jax.nn.softmax(s, axis=-1)
        o = jnp.einsum("nhlm,mnhd->lnhd", p, v).reshape(L, N, D)
        o = o @ lp["wo"].T + lp["bo"]
        x1 = _ln_ref(h + o, lp["g1"], lp["be1"])
        ff = jnp.maximum(x1 @ lp["w1"].T + lp["b1"], 0.0) @ lp["w2"].T + lp["b2"]
        h = _ln_ref(x1 + ff, lp["g2"], lp["be2"])
    return h[:, -1, :] @ params["fc_w"].T + params["fc_b"]


# ----------------------------------- main ------------------------------------
if __name__ == "__main__":
    key = jax.random.PRNGKey(0)
    pkey, xkey = jax.random.split(key)
    params = init_params(pkey)
    packed = pack_params(params)      # one-time weight re-layout (outside jit)
    x = jax.random.normal(xkey, (BATCH, SEQ, INPUT_DIM), dtype=jnp.float32)

    fwd = jax.jit(transformer_forward)
    out = jax.block_until_ready(fwd(x, packed))
    assert out.shape == (BATCH, OUTPUT_DIM), out.shape

    with jax.default_matmul_precision("float32"):
        ref = reference_forward(x, params)
    err = float(jnp.max(jnp.abs(out - ref)))
    if not jnp.allclose(out, ref, atol=1e-3, rtol=1e-3):
        raise SystemExit(f"mismatch vs reference: max abs err = {err:e}")
    print("KERNEL_OK")
</pallas_src>

<mosaic_0001>
module attributes {stable_mosaic.version = 11 : i64} {
  func.func @fused_forward_kernel(%arg0: i32, %arg1: memref<16x8xf32, #tpu.memory_space<vmem>>, %arg2: memref<8x32xf32, #tpu.memory_space<vmem>>, %arg3: memref<1x32xf32, #tpu.memory_space<vmem>>, %arg4: memref<8x32xf32, #tpu.memory_space<vmem>>, %arg5: memref<1x32x96xf32, #tpu.memory_space<vmem>>, %arg6: memref<1x1x96xf32, #tpu.memory_space<vmem>>, %arg7: memref<1x32x32xf32, #tpu.memory_space<vmem>>, %arg8: memref<1x1x32xf32, #tpu.memory_space<vmem>>, %arg9: memref<1x32x2048xf32, #tpu.memory_space<vmem>>, %arg10: memref<1x1x2048xf32, #tpu.memory_space<vmem>>, %arg11: memref<1x2048x32xf32, #tpu.memory_space<vmem>>, %arg12: memref<1x1x32xf32, #tpu.memory_space<vmem>>, %arg13: memref<1x1x32xf32, #tpu.memory_space<vmem>>, %arg14: memref<1x1x32xf32, #tpu.memory_space<vmem>>, %arg15: memref<1x1x32xf32, #tpu.memory_space<vmem>>, %arg16: memref<1x1x32xf32, #tpu.memory_space<vmem>>, %arg17: memref<32x8xf32, #tpu.memory_space<vmem>>, %arg18: memref<1x8xf32, #tpu.memory_space<vmem>>, %arg19: memref<2x8xf32, #tpu.memory_space<vmem>>, %arg20: memref<16x32xf32, #tpu.memory_space<vmem>>) attributes {dimension_semantics = [#tpu.dimension_semantics<arbitrary>], iteration_bounds = array<i64: 2>, scalar_prefetch = 0 : i64, scratch_operands = 1 : i64, tpu.core_type = #tpu.core_type<tc>, window_params = [{pipeline_mode = #tpu.pipeline_mode<synchronous>, transform_indices = @transform_0, window_bounds = array<i64: 16, 8>}, {pipeline_mode = #tpu.pipeline_mode<synchronous>, transform_indices = @transform_1, window_bounds = array<i64: 8, 32>}, {pipeline_mode = #tpu.pipeline_mode<synchronous>, transform_indices = @transform_2, window_bounds = array<i64: 1, 32>}, {pipeline_mode = #tpu.pipeline_mode<synchronous>, transform_indices = @transform_3, window_bounds = array<i64: 8, 32>}, {transform_indices = @transform_4, window_bounds = array<i64: 1, 32, 96>}, {transform_indices = @transform_5, window_bounds = array<i64: 1, 1, 96>}, {transform_indices = @transform_6, window_bounds = array<i64: 1, 32, 32>}, {transform_indices = @transform_7, window_bounds = array<i64: 1, 1, 32>}, {transform_indices = @transform_8, window_bounds = array<i64: 1, 32, 2048>}, {transform_indices = @transform_9, window_bounds = array<i64: 1, 1, 2048>}, {transform_indices = @transform_10, window_bounds = array<i64: 1, 2048, 32>}, {transform_indices = @transform_11, window_bounds = array<i64: 1, 1, 32>}, {transform_indices = @transform_12, window_bounds = array<i64: 1, 1, 32>}, {transform_indices = @transform_13, window_bounds = array<i64: 1, 1, 32>}, {transform_indices = @transform_14, window_bounds = array<i64: 1, 1, 32>}, {transform_indices = @transform_15, window_bounds = array<i64: 1, 1, 32>}, {pipeline_mode = #tpu.pipeline_mode<synchronous>, transform_indices = @transform_16, window_bounds = array<i64: 32, 8>}, {pipeline_mode = #tpu.pipeline_mode<synchronous>, transform_indices = @transform_17, window_bounds = array<i64: 1, 8>}, {pipeline_mode = #tpu.pipeline_mode<synchronous>, transform_indices = @transform_18, window_bounds = array<i64: 2, 8>}]} {
    %c0_i32 = arith.constant 0 : i32
    %0 = arith.cmpi eq, %arg0, %c0_i32 : i32
    %1 = arith.extui %0 : i1 to i32
    %c0_i32_0 = arith.constant 0 : i32
    %2 = arith.cmpi ne, %1, %c0_i32_0 : i32
    scf.if %2 {
      %c0_60 = arith.constant 0 : index
      %c0_61 = arith.constant 0 : index
      %140 = vector.load %arg1[%c0_60, %c0_61] : memref<16x8xf32, #tpu.memory_space<vmem>>, vector<16x8xf32>
      %c0_62 = arith.constant 0 : index
      %c0_63 = arith.constant 0 : index
      %141 = vector.load %arg2[%c0_62, %c0_63] : memref<8x32xf32, #tpu.memory_space<vmem>>, vector<8x32xf32>
      %cst_64 = arith.constant dense<0.000000e+00> : vector<16x32xf32>
      %142 = tpu.matmul %140, %141, %cst_64 {dimension_numbers = #tpu.dot_dimension_numbers<[1], [0], [0], [1], [0, 0, 1, 1], [], []>} : vector<16x8xf32>, vector<8x32xf32>, vector<16x32xf32> -> vector<16x32xf32>
      %c0_65 = arith.constant 0 : index
      %c0_66 = arith.constant 0 : index
      %143 = vector.load %arg3[%c0_65, %c0_66] : memref<1x32xf32, #tpu.memory_space<vmem>>, vector<1x32xf32>
      %144 = vector.broadcast %143 : vector<1x32xf32> to vector<16x32xf32>
      %145 = arith.addf %142, %144 : vector<16x32xf32>
      %146 = vector.shape_cast %145 : vector<16x32xf32> to vector<8x2x32xf32>
      %c0_67 = arith.constant 0 : index
      %c0_68 = arith.constant 0 : index
      %147 = vector.load %arg4[%c0_67, %c0_68] : memref<8x32xf32, #tpu.memory_space<vmem>>, vector<8x32xf32>
      %148 = vector.shape_cast %147 : vector<8x32xf32> to vector<8x1x32xf32>
      %149 = vector.broadcast %148 : vector<8x1x32xf32> to vector<8x2x32xf32>
      %150 = arith.addf %146, %149 : vector<8x2x32xf32>
      %151 = vector.shape_cast %150 : vector<8x2x32xf32> to vector<16x32xf32>
      %c0_69 = arith.constant 0 : index
      %c0_70 = arith.constant 0 : index
      %152 = vector.load %arg20[%c0_69, %c0_70] : memref<16x32xf32, #tpu.memory_space<vmem>>, vector<16x32xf32>
      tpu.vector_store %arg20[%c0_69, %c0_70], %151 {strides = array<i32>} : memref<16x32xf32, #tpu.memory_space<vmem>>, vector<16x32xf32>,
    } else {
    }
    %c0 = arith.constant 0 : index
    %c0_1 = arith.constant 0 : index
    %3 = vector.load %arg20[%c0, %c0_1] : memref<16x32xf32, #tpu.memory_space<vmem>>, vector<16x32xf32>
    %c0_2 = arith.constant 0 : index
    %c0_3 = arith.constant 0 : index
    %c0_4 = arith.constant 0 : index
    %4 = vector.load %arg5[%c0_2, %c0_3, %c0_4] : memref<1x32x96xf32, #tpu.memory_space<vmem>>, vector<1x32x96xf32>
    %5 = vector.shape_cast %4 : vector<1x32x96xf32> to vector<32x96xf32>
    %cst = arith.constant dense<0.000000e+00> : vector<16x96xf32>
    %6 = tpu.matmul %3, %5, %cst {dimension_numbers = #tpu.dot_dimension_numbers<[1], [0], [0], [1], [0, 0, 1, 1], [], []>} : vector<16x32xf32>, vector<32x96xf32>, vector<16x96xf32> -> vector<16x96xf32>
    %c0_5 = arith.constant 0 : index
    %c0_6 = arith.constant 0 : index
    %c0_7 = arith.constant 0 : index
    %7 = vector.load %arg6[%c0_5, %c0_6, %c0_7] : memref<1x1x96xf32, #tpu.memory_space<vmem>>, vector<1x1x96xf32>
    %8 = vector.shape_cast %7 : vector<1x1x96xf32> to vector<1x96xf32>
    %9 = vector.broadcast %8 : vector<1x96xf32> to vector<16x96xf32>
    %10 = arith.addf %6, %9 : vector<16x96xf32>
    %11 = vector.extract_strided_slice %10 {offsets = [0, 0], sizes = [16, 32], strides = [1, 1]} : vector<16x96xf32> to vector<16x32xf32>
    %12 = vector.extract_strided_slice %10 {offsets = [0, 32], sizes = [16, 32], strides = [1, 1]} : vector<16x96xf32> to vector<16x32xf32>
    %13 = vector.extract_strided_slice %10 {offsets = [0, 64], sizes = [16, 32], strides = [1, 1]} : vector<16x96xf32> to vector<16x32xf32>
    %14 = vector.extract_strided_slice %11 {offsets = [0, 0], sizes = [16, 8], strides = [1, 1]} : vector<16x32xf32> to vector<16x8xf32>
    %15 = vector.shape_cast %14 : vector<16x8xf32> to vector<8x2x8xf32>
    %16 = vector.extract_strided_slice %11 {offsets = [0, 8], sizes = [16, 8], strides = [1, 1]} : vector<16x32xf32> to vector<16x8xf32>
    %17 = vector.shape_cast %16 : vector<16x8xf32> to vector<8x2x8xf32>
    %18 = vector.extract_strided_slice %11 {offsets = [0, 16], sizes = [16, 8], strides = [1, 1]} : vector<16x32xf32> to vector<16x8xf32>
    %19 = vector.shape_cast %18 : vector<16x8xf32> to vector<8x2x8xf32>
    %20 = vector.extract_strided_slice %11 {offsets = [0, 24], sizes = [16, 8], strides = [1, 1]} : vector<16x32xf32> to vector<16x8xf32>
    %21 = vector.shape_cast %20 : vector<16x8xf32> to vector<8x2x8xf32>
    %22 = tpu.concatenate %15, %17, %19, %21 in 0 : vector<8x2x8xf32>, vector<8x2x8xf32>, vector<8x2x8xf32>, vector<8x2x8xf32> -> vector<32x2x8xf32>
    %23 = vector.extract_strided_slice %12 {offsets = [0, 0], sizes = [16, 8], strides = [1, 1]} : vector<16x32xf32> to vector<16x8xf32>
    %24 = vector.shape_cast %23 : vector<16x8xf32> to vector<8x2x8xf32>
    %25 = vector.extract_strided_slice %12 {offsets = [0, 8], sizes = [16, 8], strides = [1, 1]} : vector<16x32xf32> to vector<16x8xf32>
    %26 = vector.shape_cast %25 : vector<16x8xf32> to vector<8x2x8xf32>
    %27 = vector.extract_strided_slice %12 {offsets = [0, 16], sizes = [16, 8], strides = [1, 1]} : vector<16x32xf32> to vector<16x8xf32>
    %28 = vector.shape_cast %27 : vector<16x8xf32> to vector<8x2x8xf32>
    %29 = vector.extract_strided_slice %12 {offsets = [0, 24], sizes = [16, 8], strides = [1, 1]} : vector<16x32xf32> to vector<16x8xf32>
    %30 = vector.shape_cast %29 : vector<16x8xf32> to vector<8x2x8xf32>
    %31 = tpu.concatenate %24, %26, %28, %30 in 0 : vector<8x2x8xf32>, vector<8x2x8xf32>, vector<8x2x8xf32>, vector<8x2x8xf32> -> vector<32x2x8xf32>
    %32 = vector.extract_strided_slice %13 {offsets = [0, 0], sizes = [16, 8], strides = [1, 1]} : vector<16x32xf32> to vector<16x8xf32>
    %33 = vector.shape_cast %32 : vector<16x8xf32> to vector<8x2x8xf32>
    %34 = vector.extract_strided_slice %13 {offsets = [0, 8], sizes = [16, 8], strides = [1, 1]} : vector<16x32xf32> to vector<16x8xf32>
    %35 = vector.shape_cast %34 : vector<16x8xf32> to vector<8x2x8xf32>
    %36 = vector.extract_strided_slice %13 {offsets = [0, 16], sizes = [16, 8], strides = [1, 1]} : vector<16x32xf32> to vector<16x8xf32>
    %37 = vector.shape_cast %36 : vector<16x8xf32> to vector<8x2x8xf32>
    %38 = vector.extract_strided_slice %13 {offsets = [0, 24], sizes = [16, 8], strides = [1, 1]} : vector<16x32xf32> to vector<16x8xf32>
    %39 = vector.shape_cast %38 : vector<16x8xf32> to vector<8x2x8xf32>
    %40 = tpu.concatenate %33, %35, %37, %39 in 0 : vector<8x2x8xf32>, vector<8x2x8xf32>, vector<8x2x8xf32>, vector<8x2x8xf32> -> vector<32x2x8xf32>
    "tpu.trace_start"() <{level = 10 : i32, message = "nqd,nkd->nqk"}> : () -> ()
    %cst_8 = arith.constant dense<0.000000e+00> : vector<32x2x2xf32>
    %41 = tpu.matmul %22, %31, %cst_8 {dimension_numbers = #tpu.dot_dimension_numbers<[2], [2], [1], [1], [0, 0, 0, 1, 1, 1], [0], [0]>} : vector<32x2x8xf32>, vector<32x2x8xf32>, vector<32x2x2xf32> -> vector<32x2x2xf32>
    "tpu.trace_stop"() : () -> ()
    %cst_9 = arith.constant 0.353553385 : f32
    %42 = vector.broadcast %cst_9 : f32 to vector<32x2x2xf32>
    %43 = arith.mulf %41, %42 : vector<32x2x2xf32>
    %cst_10 = arith.constant dense<0xFF800000> : vector<32x2xf32>
    %44 = vector.multi_reduction <maximumf>, %43, %cst_10 [2] : vector<32x2x2xf32> to vector<32x2xf32>
    %45 = vector.shape_cast %44 : vector<32x2xf32> to vector<32x2x1xf32>
    %46 = vector.broadcast %45 : vector<32x2x1xf32> to vector<32x2x2xf32>
    %47 = arith.subf %43, %46 : vector<32x2x2xf32>
    %48 = math.exp %47 : vector<32x2x2xf32>
    %cst_11 = arith.constant dense<0.000000e+00> : vector<32x2xf32>
    %49 = vector.multi_reduction <add>, %48, %cst_11 [2] : vector<32x2x2xf32> to vector<32x2xf32>
    %50 = vector.shape_cast %49 : vector<32x2xf32> to vector<32x2x1xf32>
    %51 = vector.broadcast %50 : vector<32x2x1xf32> to vector<32x2x2xf32>
    %52 = arith.divf %48, %51 : vector<32x2x2xf32>
    "tpu.trace_start"() <{level = 10 : i32, message = "nqk,nkd->nqd"}> : () -> ()
    %cst_12 = arith.constant dense<0.000000e+00> : vector<32x2x8xf32>
    %53 = tpu.matmul %52, %40, %cst_12 {dimension_numbers = #tpu.dot_dimension_numbers<[2], [1], [1], [2], [0, 0, 0, 1, 1, 2], [0], [0]>} : vector<32x2x2xf32>, vector<32x2x8xf32>, vector<32x2x8xf32> -> vector<32x2x8xf32>
    "tpu.trace_stop"() : () -> ()
    %54 = vector.extract_strided_slice %53 {offsets = [0, 0, 0], sizes = [8, 2, 8], strides = [1, 1, 1]} : vector<32x2x8xf32> to vector<8x2x8xf32>
    %55 = vector.shape_cast %54 : vector<8x2x8xf32> to vector<16x8xf32>
    %56 = vector.extract_strided_slice %53 {offsets = [8, 0, 0], sizes = [8, 2, 8], strides = [1, 1, 1]} : vector<32x2x8xf32> to vector<8x2x8xf32>
    %57 = vector.shape_cast %56 : vector<8x2x8xf32> to vector<16x8xf32>
    %58 = vector.extract_strided_slice %53 {offsets = [16, 0, 0], sizes = [8, 2, 8], strides = [1, 1, 1]} : vector<32x2x8xf32> to vector<8x2x8xf32>
    %59 = vector.shape_cast %58 : vector<8x2x8xf32> to vector<16x8xf32>
    %60 = vector.extract_strided_slice %53 {offsets = [24, 0, 0], sizes = [8, 2, 8], strides = [1, 1, 1]} : vector<32x2x8xf32> to vector<8x2x8xf32>
    %61 = vector.shape_cast %60 : vector<8x2x8xf32> to vector<16x8xf32>
    %62 = tpu.concatenate %55, %57, %59, %61 in 1 : vector<16x8xf32>, vector<16x8xf32>, vector<16x8xf32>, vector<16x8xf32> -> vector<16x32xf32>
    %c0_13 = arith.constant 0 : index
    %c0_14 = arith.constant 0 : index
    %c0_15 = arith.constant 0 : index
    %63 = vector.load %arg7[%c0_13, %c0_14, %c0_15] : memref<1x32x32xf32, #tpu.memory_space<vmem>>, vector<1x32x32xf32>
    %64 = vector.shape_cast %63 : vector<1x32x32xf32> to vector<32x32xf32>
    %cst_16 = arith.constant dense<0.000000e+00> : vector<16x32xf32>
    %65 = tpu.matmul %62, %64, %cst_16 {dimension_numbers = #tpu.dot_dimension_numbers<[1], [0], [0], [1], [0, 0, 1, 1], [], []>} : vector<16x32xf32>, vector<32x32xf32>, vector<16x32xf32> -> vector<16x32xf32>
    %c0_17 = arith.constant 0 : index
    %c0_18 = arith.constant 0 : index
    %c0_19 = arith.constant 0 : index
    %66 = vector.load %arg8[%c0_17, %c0_18, %c0_19] : memref<1x1x32xf32, #tpu.memory_space<vmem>>, vector<1x1x32xf32>
    %67 = vector.shape_cast %66 : vector<1x1x32xf32> to vector<1x32xf32>
    %68 = vector.broadcast %67 : vector<1x32xf32> to vector<16x32xf32>
    %69 = arith.addf %65, %68 : vector<16x32xf32>
    %70 = arith.addf %3, %69 : vector<16x32xf32>
    %c0_20 = arith.constant 0 : index
    %c0_21 = arith.constant 0 : index
    %c0_22 = arith.constant 0 : index
    %71 = vector.load %arg13[%c0_20, %c0_21, %c0_22] : memref<1x1x32xf32, #tpu.memory_space<vmem>>, vector<1x1x32xf32>
    %72 = vector.shape_cast %71 : vector<1x1x32xf32> to vector<1x32xf32>
    %c0_23 = arith.constant 0 : index
    %c0_24 = arith.constant 0 : index
    %c0_25 = arith.constant 0 : index
    %73 = vector.load %arg14[%c0_23, %c0_24, %c0_25] : memref<1x1x32xf32, #tpu.memory_space<vmem>>, vector<1x1x32xf32>
    %74 = vector.shape_cast %73 : vector<1x1x32xf32> to vector<1x32xf32>
    %cst_26 = arith.constant dense<0.000000e+00> : vector<16xf32>
    %75 = vector.multi_reduction <add>, %70, %cst_26 [1] : vector<16x32xf32> to vector<16xf32>
    %76 = vector.shape_cast %75 : vector<16xf32> to vector<16x1xf32>
    %cst_27 = arith.constant 3.200000e+01 : f32
    %77 = vector.broadcast %cst_27 : f32 to vector<16x1xf32>
    %78 = arith.divf %76, %77 : vector<16x1xf32>
    %79 = vector.broadcast %78 : vector<16x1xf32> to vector<16x32xf32>
    %80 = arith.subf %70, %79 : vector<16x32xf32>
    %81 = arith.mulf %80, %80 : vector<16x32xf32>
    %cst_28 = arith.constant dense<0.000000e+00> : vector<16xf32>
    %82 = vector.multi_reduction <add>, %81, %cst_28 [1] : vector<16x32xf32> to vector<16xf32>
    %83 = vector.shape_cast %82 : vector<16xf32> to vector<16x1xf32>
    %cst_29 = arith.constant 3.200000e+01 : f32
    %84 = vector.broadcast %cst_29 : f32 to vector<16x1xf32>
    %85 = arith.divf %83, %84 : vector<16x1xf32>
    %cst_30 = arith.constant 9.99999974E-6 : f32
    %86 = vector.broadcast %cst_30 : f32 to vector<16x1xf32>
    %87 = arith.addf %85, %86 : vector<16x1xf32>
    %88 = math.rsqrt %87 : vector<16x1xf32>
    %89 = vector.broadcast %88 : vector<16x1xf32> to vector<16x32xf32>
    %90 = arith.mulf %80, %89 : vector<16x32xf32>
    %91 = vector.broadcast %72 : vector<1x32xf32> to vector<16x32xf32>
    %92 = arith.mulf %90, %91 : vector<16x32xf32>
    %93 = vector.broadcast %74 : vector<1x32xf32> to vector<16x32xf32>
    %94 = arith.addf %92, %93 : vector<16x32xf32>
    %c0_31 = arith.constant 0 : index
    %c0_32 = arith.constant 0 : index
    %c0_33 = arith.constant 0 : index
    %95 = vector.load %arg9[%c0_31, %c0_32, %c0_33] : memref<1x32x2048xf32, #tpu.memory_space<vmem>>, vector<1x32x2048xf32>
    %96 = vector.shape_cast %95 : vector<1x32x2048xf32> to vector<32x2048xf32>
    %cst_34 = arith.constant dense<0.000000e+00> : vector<16x2048xf32>
    %97 = tpu.matmul %94, %96, %cst_34 {dimension_numbers = #tpu.dot_dimension_numbers<[1], [0], [0], [1], [0, 0, 1, 1], [], []>} : vector<16x32xf32>, vector<32x2048xf32>, vector<16x2048xf32> -> vector<16x2048xf32>
    %c0_35 = arith.constant 0 : index
    %c0_36 = arith.constant 0 : index
    %c0_37 = arith.constant 0 : index
    %98 = vector.load %arg10[%c0_35, %c0_36, %c0_37] : memref<1x1x2048xf32, #tpu.memory_space<vmem>>, vector<1x1x2048xf32>
    %99 = vector.shape_cast %98 : vector<1x1x2048xf32> to vector<1x2048xf32>
    %100 = vector.broadcast %99 : vector<1x2048xf32> to vector<16x2048xf32>
    %101 = arith.addf %97, %100 : vector<16x2048xf32>
    %cst_38 = arith.constant 0.000000e+00 : f32
    %102 = vector.broadcast %cst_38 : f32 to vector<16x2048xf32>
    %103 = arith.maximumf %101, %102 : vector<16x2048xf32>
    %c0_39 = arith.constant 0 : index
    %c0_40 = arith.constant 0 : index
    %c0_41 = arith.constant 0 : index
    %104 = vector.load %arg11[%c0_39, %c0_40, %c0_41] : memref<1x2048x32xf32, #tpu.memory_space<vmem>>, vector<1x2048x32xf32>
    %105 = vector.shape_cast %104 : vector<1x2048x32xf32> to vector<2048x32xf32>
    %cst_42 = arith.constant dense<0.000000e+00> : vector<16x32xf32>
    %106 = tpu.matmul %103, %105, %cst_42 {dimension_numbers = #tpu.dot_dimension_numbers<[1], [0], [0], [1], [0, 0, 1, 1], [], []>} : vector<16x2048xf32>, vector<2048x32xf32>, vector<16x32xf32> -> vector<16x32xf32>
    %c0_43 = arith.constant 0 : index
    %c0_44 = arith.constant 0 : index
    %c0_45 = arith.constant 0 : index
    %107 = vector.load %arg12[%c0_43, %c0_44, %c0_45] : memref<1x1x32xf32, #tpu.memory_space<vmem>>, vector<1x1x32xf32>
    %108 = vector.shape_cast %107 : vector<1x1x32xf32> to vector<1x32xf32>
    %109 = vector.broadcast %108 : vector<1x32xf32> to vector<16x32xf32>
    %110 = arith.addf %106, %109 : vector<16x32xf32>
    %111 = arith.addf %94, %110 : vector<16x32xf32>
    %c0_46 = arith.constant 0 : index
    %c0_47 = arith.constant 0 : index
    %c0_48 = arith.constant 0 : index
    %112 = vector.load %arg15[%c0_46, %c0_47, %c0_48] : memref<1x1x32xf32, #tpu.memory_space<vmem>>, vector<1x1x32xf32>
    %113 = vector.shape_cast %112 : vector<1x1x32xf32> to vector<1x32xf32>
    %c0_49 = arith.constant 0 : index
    %c0_50 = arith.constant 0 : index
    %c0_51 = arith.constant 0 : index
    %114 = vector.load %arg16[%c0_49, %c0_50, %c0_51] : memref<1x1x32xf32, #tpu.memory_space<vmem>>, vector<1x1x32xf32>
    %115 = vector.shape_cast %114 : vector<1x1x32xf32> to vector<1x32xf32>
    %cst_52 = arith.constant dense<0.000000e+00> : vector<16xf32>
    %116 = vector.multi_reduction <add>, %111, %cst_52 [1] : vector<16x32xf32> to vector<16xf32>
    %117 = vector.shape_cast %116 : vector<16xf32> to vector<16x1xf32>
    %cst_53 = arith.constant 3.200000e+01 : f32
    %118 = vector.broadcast %cst_53 : f32 to vector<16x1xf32>
    %119 = arith.divf %117, %118 : vector<16x1xf32>
    %120 = vector.broadcast %119 : vector<16x1xf32> to vector<16x32xf32>
    %121 = arith.subf %111, %120 : vector<16x32xf32>
    %122 = arith.mulf %121, %121 : vector<16x32xf32>
    %cst_54 = arith.constant dense<0.000000e+00> : vector<16xf32>
    %123 = vector.multi_reduction <add>, %122, %cst_54 [1] : vector<16x32xf32> to vector<16xf32>
    %124 = vector.shape_cast %123 : vector<16xf32> to vector<16x1xf32>
    %cst_55 = arith.constant 3.200000e+01 : f32
    %125 = vector.broadcast %cst_55 : f32 to vector<16x1xf32>
    %126 = arith.divf %124, %125 : vector<16x1xf32>
    %cst_56 = arith.constant 9.99999974E-6 : f32
    %127 = vector.broadcast %cst_56 : f32 to vector<16x1xf32>
    %128 = arith.addf %126, %127 : vector<16x1xf32>
    %129 = math.rsqrt %128 : vector<16x1xf32>
    %130 = vector.broadcast %129 : vector<16x1xf32> to vector<16x32xf32>
    %131 = arith.mulf %121, %130 : vector<16x32xf32>
    %132 = vector.broadcast %113 : vector<1x32xf32> to vector<16x32xf32>
    %133 = arith.mulf %131, %132 : vector<16x32xf32>
    %134 = vector.broadcast %115 : vector<1x32xf32> to vector<16x32xf32>
    %135 = arith.addf %133, %134 : vector<16x32xf32>
    %c0_57 = arith.constant 0 : index
    %c0_58 = arith.constant 0 : index
    %136 = vector.load %arg20[%c0_57, %c0_58] : memref<16x32xf32, #tpu.memory_space<vmem>>, vector<16x32xf32>
    tpu.vector_store %arg20[%c0_57, %c0_58], %135 {strides = array<i32>} : memref<16x32xf32, #tpu.memory_space<vmem>>, vector<16x32xf32>,
    %c1_i32 = arith.constant 1 : i32
    %137 = arith.cmpi eq, %arg0, %c1_i32 : i32
    %138 = arith.extui %137 : i1 to i32
    %c0_i32_59 = arith.constant 0 : i32
    %139 = arith.cmpi ne, %138, %c0_i32_59 : i32
    scf.if %139 {
      %140 = vector.extract_strided_slice %135 {offsets = [14, 0], sizes = [2, 32], strides = [1, 1]} : vector<16x32xf32> to vector<2x32xf32>
      %c0_60 = arith.constant 0 : index
      %c0_61 = arith.constant 0 : index
      %141 = vector.load %arg17[%c0_60, %c0_61] : memref<32x8xf32, #tpu.memory_space<vmem>>, vector<32x8xf32>
      %cst_62 = arith.constant dense<0.000000e+00> : vector<2x8xf32>
      %142 = tpu.matmul %140, %141, %cst_62 {dimension_numbers = #tpu.dot_dimension_numbers<[1], [0], [0], [1], [0, 0, 1, 1], [], []>} : vector<2x32xf32>, vector<32x8xf32>, vector<2x8xf32> -> vector<2x8xf32>
      %c0_63 = arith.constant 0 : index
      %c0_64 = arith.constant 0 : index
      %143 = vector.load %arg18[%c0_63, %c0_64] : memref<1x8xf32, #tpu.memory_space<vmem>>, vector<1x8xf32>
      %144 = vector.broadcast %143 : vector<1x8xf32> to vector<2x8xf32>
      %145 = arith.addf %142, %144 : vector<2x8xf32>
      %c0_65 = arith.constant 0 : index
      %c0_66 = arith.constant 0 : index
      %146 = vector.load %arg19[%c0_65, %c0_66] : memref<2x8xf32, #tpu.memory_space<vmem>>, vector<2x8xf32>
      tpu.vector_store %arg19[%c0_65, %c0_66], %145 {strides = array<i32>} : memref<2x8xf32, #tpu.memory_space<vmem>>, vector<2x8xf32>,
    } else {
    }
    return
  }
  func.func @transform_0(%arg0: i32) -> (i32, i32) {
    %c0_i32 = arith.constant 0 : i32
    %c0_i32_0 = arith.constant 0 : i32
    %c0_i32_1 = arith.constant 0 : i32
    return %c0_i32, %c0_i32_0 : i32, i32
  }
  func.func @transform_1(%arg0: i32) -> (i32, i32) {
    %c0_i32 = arith.constant 0 : i32
    %c0_i32_0 = arith.constant 0 : i32
    %c0_i32_1 = arith.constant 0 : i32
    return %c0_i32, %c0_i32_0 : i32, i32
  }
  func.func @transform_2(%arg0: i32) -> (i32, i32) {
    %c0_i32 = arith.constant 0 : i32
    %c0_i32_0 = arith.constant 0 : i32
    %c0_i32_1 = arith.constant 0 : i32
    return %c0_i32, %c0_i32_0 : i32, i32
  }
  func.func @transform_3(%arg0: i32) -> (i32, i32) {
    %c0_i32 = arith.constant 0 : i32
    %c0_i32_0 = arith.constant 0 : i32
    %c0_i32_1 = arith.constant 0 : i32
    return %c0_i32, %c0_i32_0 : i32, i32
  }
  func.func @transform_4(%arg0: i32) -> (i32, i32, i32) {
    %c0_i32 = arith.constant 0 : i32
    %c0_i32_0 = arith.constant 0 : i32
    %c0_i32_1 = arith.constant 0 : i32
    return %arg0, %c0_i32, %c0_i32_0 : i32, i32, i32
  }
  func.func @transform_5(%arg0: i32) -> (i32, i32, i32) {
    %c0_i32 = arith.constant 0 : i32
    %c0_i32_0 = arith.constant 0 : i32
    %c0_i32_1 = arith.constant 0 : i32
    return %arg0, %c0_i32, %c0_i32_0 : i32, i32, i32
  }
  func.func @transform_6(%arg0: i32) -> (i32, i32, i32) {
    %c0_i32 = arith.constant 0 : i32
    %c0_i32_0 = arith.constant 0 : i32
    %c0_i32_1 = arith.constant 0 : i32
    return %arg0, %c0_i32, %c0_i32_0 : i32, i32, i32
  }
  func.func @transform_7(%arg0: i32) -> (i32, i32, i32) {
    %c0_i32 = arith.constant 0 : i32
    %c0_i32_0 = arith.constant 0 : i32
    %c0_i32_1 = arith.constant 0 : i32
    return %arg0, %c0_i32, %c0_i32_0 : i32, i32, i32
  }
  func.func @transform_8(%arg0: i32) -> (i32, i32, i32) {
    %c0_i32 = arith.constant 0 : i32
    %c0_i32_0 = arith.constant 0 : i32
    %c0_i32_1 = arith.constant 0 : i32
    return %arg0, %c0_i32, %c0_i32_0 : i32, i32, i32
  }
  func.func @transform_9(%arg0: i32) -> (i32, i32, i32) {
    %c0_i32 = arith.constant 0 : i32
    %c0_i32_0 = arith.constant 0 : i32
    %c0_i32_1 = arith.constant 0 : i32
    return %arg0, %c0_i32, %c0_i32_0 : i32, i32, i32
  }
  func.func @transform_10(%arg0: i32) -> (i32, i32, i32) {
    %c0_i32 = arith.constant 0 : i32
    %c0_i32_0 = arith.constant 0 : i32
    %c0_i32_1 = arith.constant 0 : i32
    return %arg0, %c0_i32, %c0_i32_0 : i32, i32, i32
  }
  func.func @transform_11(%arg0: i32) -> (i32, i32, i32) {
    %c0_i32 = arith.constant 0 : i32
    %c0_i32_0 = arith.constant 0 : i32
    %c0_i32_1 = arith.constant 0 : i32
    return %arg0, %c0_i32, %c0_i32_0 : i32, i32, i32
  }
  func.func @transform_12(%arg0: i32) -> (i32, i32, i32) {
    %c0_i32 = arith.constant 0 : i32
    %c0_i32_0 = arith.constant 0 : i32
    %c0_i32_1 = arith.constant 0 : i32
    return %arg0, %c0_i32, %c0_i32_0 : i32, i32, i32
  }
  func.func @transform_13(%arg0: i32) -> (i32, i32, i32) {
    %c0_i32 = arith.constant 0 : i32
    %c0_i32_0 = arith.constant 0 : i32
    %c0_i32_1 = arith.constant 0 : i32
    return %arg0, %c0_i32, %c0_i32_0 : i32, i32, i32
  }
  func.func @transform_14(%arg0: i32) -> (i32, i32, i32) {
    %c0_i32 = arith.constant 0 : i32
    %c0_i32_0 = arith.constant 0 : i32
    %c0_i32_1 = arith.constant 0 : i32
    return %arg0, %c0_i32, %c0_i32_0 : i32, i32, i32
  }
  func.func @transform_15(%arg0: i32) -> (i32, i32, i32) {
    %c0_i32 = arith.constant 0 : i32
    %c0_i32_0 = arith.constant 0 : i32
    %c0_i32_1 = arith.constant 0 : i32
    return %arg0, %c0_i32, %c0_i32_0 : i32, i32, i32
  }
  func.func @transform_16(%arg0: i32) -> (i32, i32) {
    %c0_i32 = arith.constant 0 : i32
    %c0_i32_0 = arith.constant 0 : i32
    %c0_i32_1 = arith.constant 0 : i32
    return %c0_i32, %c0_i32_0 : i32, i32
  }
  func.func @transform_17(%arg0: i32) -> (i32, i32) {
    %c0_i32 = arith.constant 0 : i32
    %c0_i32_0 = arith.constant 0 : i32
    %c0_i32_1 = arith.constant 0 : i32
    return %c0_i32, %c0_i32_0 : i32, i32
  }
  func.func @transform_18(%arg0: i32) -> (i32, i32) {
    %c0_i32 = arith.constant 0 : i32
    %c0_i32_0 = arith.constant 0 : i32
    %c0_i32_1 = arith.constant 0 : i32
    return %c0_i32, %c0_i32_0 : i32, i32
  }
}

</mosaic_0001>

<llo_original>
// kernel: transformer_forward.1
$region0: #{transformer_forward.1}
  #allocation0 [shape = 'u32[]', space=smem, size = 0x4, offset = 0x4, fixed_abs, tag = 'smem constant byte address 0x4 - core index']
  #allocation1 [shape = 'u32[144,128]{1,0:T(1,128)}', space=vmem, size = 0x12000, scoped, tag = 'internal scratch']
  #allocation2 [shape = 'f32[16,32]{1,0:T(8,128)}', space=vmem, size = 0x2000, scoped, tag = 'scratch operand']
  %s0 = inlined_call_operand.vmem [shape: f32[16,8], index: 0, kind: input, shape index: {}]
  %s1 = inlined_call_operand.vmem [shape: f32[8,32], index: 1, kind: input, shape index: {}]
  %s2 = inlined_call_operand.vmem [shape: f32[1,32], index: 2, kind: input, shape index: {}]
  %s3 = inlined_call_operand.vmem [shape: f32[8,32], index: 3, kind: input, shape index: {}]
  %s4 = inlined_call_operand.vmem [shape: f32[2,32,96], index: 4, kind: input, shape index: {}]
  %s5 = inlined_call_operand.vmem [shape: f32[2,1,96], index: 5, kind: input, shape index: {}]
  %s6 = inlined_call_operand.vmem [shape: f32[2,32,32], index: 6, kind: input, shape index: {}]
  %s7 = inlined_call_operand.vmem [shape: f32[2,1,32], index: 7, kind: input, shape index: {}]
  %s8 = inlined_call_operand.vmem [shape: f32[2,32,2048], index: 8, kind: input, shape index: {}]
  %s9 = inlined_call_operand.vmem [shape: f32[2,1,2048], index: 9, kind: input, shape index: {}]
  %s10 = inlined_call_operand.vmem [shape: f32[2,2048,32], index: 10, kind: input, shape index: {}]
  %s11 = inlined_call_operand.vmem [shape: f32[2,1,32], index: 11, kind: input, shape index: {}]
  %s12 = inlined_call_operand.vmem [shape: f32[2,1,32], index: 12, kind: input, shape index: {}]
  %s13 = inlined_call_operand.vmem [shape: f32[2,1,32], index: 13, kind: input, shape index: {}]
  %s14 = inlined_call_operand.vmem [shape: f32[2,1,32], index: 14, kind: input, shape index: {}]
  %s15 = inlined_call_operand.vmem [shape: f32[2,1,32], index: 15, kind: input, shape index: {}]
  %s16 = inlined_call_operand.vmem [shape: f32[32,8], index: 16, kind: input, shape index: {}]
  %s17 = inlined_call_operand.vmem [shape: f32[1,8], index: 17, kind: input, shape index: {}]
  %s18 = inlined_call_operand.hbm [shape: f32[2,8], index: 18, kind: output, shape index: {}]
  %s19 = sld [smem:[#allocation0]]
  $region113: #{transformer_forward.1} parent=0
    _
  %s21 = ssub.s32 1, %s19
  %s22 = scalar_select 0, %s21, %s19
  $region1: #{transformer_forward.1} parent=0
    #allocation3 [shape = 'u8[1024]{0}', space=vmem, size = 0x400, scoped, tag = 'output window, operand 0, single buffered']
    #allocation4 [shape = 's32[2]{0}', space=sflag, size = 0x8, scoped, tag = 'scoped memory for transformer_forward.1']
    %23 = vsyncpa [#allocation4], 0
    loop: start=0, step=1, limit=4
    $region2: #{transformer_forward.1} parent=1 // loop_pre_header
      _
    $region3: #{transformer_forward.1} parent=1 // loop_header
      %s25 = sphi 0, %s29
      %p26 = scmp.ge.s32.totalorder %s25, 4
      %s33 = sphi 0, %s33
      %s35 = sphi 0, %s33
      %s36 = sphi 0, %s35
      %s50 = sphi 0, %s36
      %s54 = sphi 0, %s54
      %s56 = sphi 0, %s54
      %s57 = sphi 0, %s56
      %s71 = sphi 0, %s57
      %s75 = sphi 0, %s75
      %s77 = sphi 0, %s75
      %s78 = sphi 0, %s77
      %s92 = sphi 0, %s78
      %s96 = sphi 0, %s96
      %s98 = sphi 0, %s96
      %s99 = sphi 0, %s98
      %s113 = sphi 0, %s99
      %s119 = sphi 0, %s121
      %s122 = sphi 0, %s119
      %s123 = sphi 0, %s122
      %s139 = sphi 0, %s123
      %s145 = sphi 0, %s147
      %s148 = sphi 0, %s145
      %s149 = sphi 0, %s148
      %s165 = sphi 0, %s149
      %s171 = sphi 0, %s173
      %s174 = sphi 0, %s171
      %s175 = sphi 0, %s174
      %s191 = sphi 0, %s175
      %s197 = sphi 0, %s199
      %s200 = sphi 0, %s197
      %s201 = sphi 0, %s200
      %s217 = sphi 0, %s201
      %s223 = sphi 0, %s225
      %s226 = sphi 0, %s223
      %s227 = sphi 0, %s226
      %s243 = sphi 0, %s227
      %s249 = sphi 0, %s251
      %s252 = sphi 0, %s249
      %s253 = sphi 0, %s252
      %s269 = sphi 0, %s253
      %s275 = sphi 0, %s277
      %s278 = sphi 0, %s275
      %s279 = sphi 0, %s278
      %s295 = sphi 0, %s279
      %s301 = sphi 0, %s303
      %s304 = sphi 0, %s301
      %s305 = sphi 0, %s304
      %s321 = sphi 0, %s305
      %s327 = sphi 0, %s329
      %s330 = sphi 0, %s327
      %s331 = sphi 0, %s330
      %s347 = sphi 0, %s331
      %s353 = sphi 0, %s355
      %s356 = sphi 0, %s353
      %s357 = sphi 0, %s356
      %s373 = sphi 0, %s357
      %s379 = sphi 0, %s381
      %s382 = sphi 0, %s379
      %s383 = sphi 0, %s382
      %s399 = sphi 0, %s383
      %s405 = sphi 0, %s407
      %s408 = sphi 0, %s405
      %s409 = sphi 0, %s408
      %s425 = sphi 0, %s409
      %s429 = sphi 0, %s429
      %s431 = sphi 0, %s429
      %s432 = sphi 0, %s431
      %s446 = sphi 0, %s432
      %s450 = sphi 0, %s450
      %s452 = sphi 0, %s450
      %s453 = sphi 0, %s452
      %s467 = sphi 0, %s453
      %s471 = sphi 0, %s471
      %s473 = sphi 0, %s471
      %s474 = sphi 0, %s473
      %s488 = sphi 0, %s474
    $region4: #{transformer_forward.1} parent=1 // loop_header_branch
      %28 = sbr.rel (%p26) target = $region8
    $region5: #{transformer_forward.1} parent=1 // loop_body
      %s30 = ssub.s32 %s25, 1
      %s31 = ssub.s32 %s25, 2
      %s32 = sadd.s32 %s25, 1
      %s34 = sadd.s32 %s33, 1
      %p37 = scmp.eq.s32.totalorder %s25, 1
      %p38 = scmp.ne.s32.totalorder %s33, %s35
      %p39 = scmp.eq.s32.totalorder %s25, 0
      %p40 = por %p38, %p39
      %p41 = scmp.ne.s32.totalorder %s33, %s35
      %p42 = scmp.eq.s32.totalorder %s30, 1
      %p43 = por %p41, %p42
      %p44 = scmp.ne.s32.totalorder %s35, %s36
      %p45 = scmp.eq.s32.totalorder %s30, 0
      %p46 = por %p44, %p45
      %p47 = scmp.ne.s32.totalorder %s35, %s36
      %p48 = scmp.eq.s32.totalorder %s31, 1
      %p49 = por %p47, %p48
      %p51 = scmp.ne.s32.totalorder %s36, %s50
      %p52 = scmp.eq.s32.totalorder %s31, 0
      %p53 = por %p51, %p52
      %s55 = sadd.s32 %s54, 1
      %p58 = scmp.eq.s32.totalorder %s25, 1
      %p59 = scmp.ne.s32.totalorder %s54, %s56
      %p60 = scmp.eq.s32.totalorder %s25, 0
      %p61 = por %p59, %p60
      %p62 = scmp.ne.s32.totalorder %s54, %s56
      %p63 = scmp.eq.s32.totalorder %s30, 1
      %p64 = por %p62, %p63
      %p65 = scmp.ne.s32.totalorder %s56, %s57
      %p66 = scmp.eq.s32.totalorder %s30, 0
      %p67 = por %p65, %p66
      %p68 = scmp.ne.s32.totalorder %s56, %s57
      %p69 = scmp.eq.s32.totalorder %s31, 1
      %p70 = por %p68, %p69
      %p72 = scmp.ne.s32.totalorder %s57, %s71
      %p73 = scmp.eq.s32.totalorder %s31, 0
      %p74 = por %p72, %p73
      %s76 = sadd.s32 %s75, 1
      %p79 = scmp.eq.s32.totalorder %s25, 1
      %p80 = scmp.ne.s32.totalorder %s75, %s77
      %p81 = scmp.eq.s32.totalorder %s25, 0
      %p82 = por %p80, %p81
      %p83 = scmp.ne.s32.totalorder %s75, %s77
      %p84 = scmp.eq.s32.totalorder %s30, 1
      %p85 = por %p83, %p84
      %p86 = scmp.ne.s32.totalorder %s77, %s78
      %p87 = scmp.eq.s32.totalorder %s30, 0
      %p88 = por %p86, %p87
      %p89 = scmp.ne.s32.totalorder %s77, %s78
      %p90 = scmp.eq.s32.totalorder %s31, 1
      %p91 = por %p89, %p90
      %p93 = scmp.ne.s32.totalorder %s78, %s92
      %p94 = scmp.eq.s32.totalorder %s31, 0
      %p95 = por %p93, %p94
      %s97 = sadd.s32 %s96, 1
      %p100 = scmp.eq.s32.totalorder %s25, 1
      %p101 = scmp.ne.s32.totalorder %s96, %s98
      %p102 = scmp.eq.s32.totalorder %s25, 0
      %p103 = por %p101, %p102
      %p104 = scmp.ne.s32.totalorder %s96, %s98
      %p105 = scmp.eq.s32.totalorder %s30, 1
      %p106 = por %p104, %p105
      %p107 = scmp.ne.s32.totalorder %s98, %s99
      %p108 = scmp.eq.s32.totalorder %s30, 0
      %p109 = por %p107, %p108
      %p110 = scmp.ne.s32.totalorder %s98, %s99
      %p111 = scmp.eq.s32.totalorder %s31, 1
      %p112 = por %p110, %p111
      %p114 = scmp.ne.s32.totalorder %s99, %s113
      %p115 = scmp.eq.s32.totalorder %s31, 0
      %p116 = por %p114, %p115
      %s117 = ssub.s32 %s25, %s32
      %p118 = scmp.eq.s32.totalorder %s117, 0
      %s120 = sadd.s32 %s119, 1
      %s121 = scalar_select %p118, %s119, %s120
      %p124 = pneg %p118
      %p125 = scmp.eq.s32.totalorder %s25, 1
      %p126 = por %p124, %p125
      %p127 = scmp.ne.s32.totalorder %s119, %s122
      %p128 = scmp.eq.s32.totalorder %s25, 0
      %p129 = por %p127, %p128
      %p130 = scmp.ne.s32.totalorder %s119, %s122
      %p131 = scmp.eq.s32.totalorder %s30, 1
      %p132 = por %p130, %p131
      %p133 = scmp.ne.s32.totalorder %s122, %s123
      %p134 = scmp.eq.s32.totalorder %s30, 0
      %p135 = por %p133, %p134
      %p136 = scmp.ne.s32.totalorder %s122, %s123
      %p137 = scmp.eq.s32.totalorder %s31, 1
      %p138 = por %p136, %p137
      %p140 = scmp.ne.s32.totalorder %s123, %s139
      %p141 = scmp.eq.s32.totalorder %s31, 0
      %p142 = por %p140, %p141
      %s143 = ssub.s32 %s25, %s32
      %p144 = scmp.eq.s32.totalorder %s143, 0
      %s146 = sadd.s32 %s145, 1
      %s147 = scalar_select %p144, %s145, %s146
      %p150 = pneg %p144
      %p151 = scmp.eq.s32.totalorder %s25, 1
      %p152 = por %p150, %p151
      %p153 = scmp.ne.s32.totalorder %s145, %s148
      %p154 = scmp.eq.s32.totalorder %s25, 0
      %p155 = por %p153, %p154
      %p156 = scmp.ne.s32.totalorder %s145, %s148
      %p157 = scmp.eq.s32.totalorder %s30, 1
      %p158 = por %p156, %p157
      %p159 = scmp.ne.s32.totalorder %s148, %s149
      %p160 = scmp.eq.s32.totalorder %s30, 0
      %p161 = por %p159, %p160
      %p162 = scmp.ne.s32.totalorder %s148, %s149
      %p163 = scmp.eq.s32.totalorder %s31, 1
      %p164 = por %p162, %p163
      %p166 = scmp.ne.s32.totalorder %s149, %s165
      %p167 = scmp.eq.s32.totalorder %s31, 0
      %p168 = por %p166, %p167
      %s169 = ssub.s32 %s25, %s32
      %p170 = scmp.eq.s32.totalorder %s169, 0
      %s172 = sadd.s32 %s171, 1
      %s173 = scalar_select %p170, %s171, %s172
      %p176 = pneg %p170
      %p177 = scmp.eq.s32.totalorder %s25, 1
      %p178 = por %p176, %p177
      %p179 = scmp.ne.s32.totalorder %s171, %s174
      %p180 = scmp.eq.s32.totalorder %s25, 0
      %p181 = por %p179, %p180
      %p182 = scmp.ne.s32.totalorder %s171, %s174
      %p183 = scmp.eq.s32.totalorder %s30, 1
      %p184 = por %p182, %p183
      %p185 = scmp.ne.s32.totalorder %s174, %s175
      %p186 = scmp.eq.s32.totalorder %s30, 0
      %p187 = por %p185, %p186
      %p188 = scmp.ne.s32.totalorder %s174, %s175
      %p189 = scmp.eq.s32.totalorder %s31, 1
      %p190 = por %p188, %p189
      %p192 = scmp.ne.s32.totalorder %s175, %s191
      %p193 = scmp.eq.s32.totalorder %s31, 0
      %p194 = por %p192, %p193
      %s195 = ssub.s32 %s25, %s32
      %p196 = scmp.eq.s32.totalorder %s195, 0
      %s198 = sadd.s32 %s197, 1
      %s199 = scalar_select %p196, %s197, %s198
      %p202 = pneg %p196
      %p203 = scmp.eq.s32.totalorder %s25, 1
      %p204 = por %p202, %p203
      %p205 = scmp.ne.s32.totalorder %s197, %s200
      %p206 = scmp.eq.s32.totalorder %s25, 0
      %p207 = por %p205, %p206
      %p208 = scmp.ne.s32.totalorder %s197, %s200
      %p209 = scmp.eq.s32.totalorder %s30, 1
      %p210 = por %p208, %p209
      %p211 = scmp.ne.s32.totalorder %s200, %s201
      %p212 = scmp.eq.s32.totalorder %s30, 0
      %p213 = por %p211, %p212
      %p214 = scmp.ne.s32.totalorder %s200, %s201
      %p215 = scmp.eq.s32.totalorder %s31, 1
      %p216 = por %p214, %p215
      %p218 = scmp.ne.s32.totalorder %s201, %s217
      %p219 = scmp.eq.s32.totalorder %s31, 0
      %p220 = por %p218, %p219
      %s221 = ssub.s32 %s25, %s32
      %p222 = scmp.eq.s32.totalorder %s221, 0
      %s224 = sadd.s32 %s223, 1
      %s225 = scalar_select %p222, %s223, %s224
      %p228 = pneg %p222
      %p229 = scmp.eq.s32.totalorder %s25, 1
      %p230 = por %p228, %p229
      %p231 = scmp.ne.s32.totalorder %s223, %s226
      %p232 = scmp.eq.s32.totalorder %s25, 0
      %p233 = por %p231, %p232
      %p234 = scmp.ne.s32.totalorder %s223, %s226
      %p235 = scmp.eq.s32.totalorder %s30, 1
      %p236 = por %p234, %p235
      %p237 = scmp.ne.s32.totalorder %s226, %s227
      %p238 = scmp.eq.s32.totalorder %s30, 0
      %p239 = por %p237, %p238
      %p240 = scmp.ne.s32.totalorder %s226, %s227
      %p241 = scmp.eq.s32.totalorder %s31, 1
      %p242 = por %p240, %p241
      %p244 = scmp.ne.s32.totalorder %s227, %s243
      %p245 = scmp.eq.s32.totalorder %s31, 0
      %p246 = por %p244, %p245
      %s247 = ssub.s32 %s25, %s32
      %p248 = scmp.eq.s32.totalorder %s247, 0
      %s250 = sadd.s32 %s249, 1
      %s251 = scalar_select %p248, %s249, %s250
      %p254 = pneg %p248
      %p255 = scmp.eq.s32.totalorder %s25, 1
      %p256 = por %p254, %p255
      %p257 = scmp.ne.s32.totalorder %s249, %s252
      %p258 = scmp.eq.s32.totalorder %s25, 0
      %p259 = por %p257, %p258
      %p260 = scmp.ne.s32.totalorder %s249, %s252
      %p261 = scmp.eq.s32.totalorder %s30, 1
      %p262 = por %p260, %p261
      %p263 = scmp.ne.s32.totalorder %s252, %s253
      %p264 = scmp.eq.s32.totalorder %s30, 0
      %p265 = por %p263, %p264
      %p266 = scmp.ne.s32.totalorder %s252, %s253
      %p267 = scmp.eq.s32.totalorder %s31, 1
      %p268 = por %p266, %p267
      %p270 = scmp.ne.s32.totalorder %s253, %s269
      %p271 = scmp.eq.s32.totalorder %s31, 0
      %p272 = por %p270, %p271
      %s273 = ssub.s32 %s25, %s32
      %p274 = scmp.eq.s32.totalorder %s273, 0
      %s276 = sadd.s32 %s275, 1
      %s277 = scalar_select %p274, %s275, %s276
      %p280 = pneg %p274
      %p281 = scmp.eq.s32.totalorder %s25, 1
      %p282 = por %p280, %p281
      %p283 = scmp.ne.s32.totalorder %s275, %s278
      %p284 = scmp.eq.s32.totalorder %s25, 0
      %p285 = por %p283, %p284
      %p286 = scmp.ne.s32.totalorder %s275, %s278
      %p287 = scmp.eq.s32.totalorder %s30, 1
      %p288 = por %p286, %p287
      %p289 = scmp.ne.s32.totalorder %s278, %s279
      %p290 = scmp.eq.s32.totalorder %s30, 0
      %p291 = por %p289, %p290
      %p292 = scmp.ne.s32.totalorder %s278, %s279
      %p293 = scmp.eq.s32.totalorder %s31, 1
      %p294 = por %p292, %p293
      %p296 = scmp.ne.s32.totalorder %s279, %s295
      %p297 = scmp.eq.s32.totalorder %s31, 0
      %p298 = por %p296, %p297
      %s299 = ssub.s32 %s25, %s32
      %p300 = scmp.eq.s32.totalorder %s299, 0
      %s302 = sadd.s32 %s301, 1
      %s303 = scalar_select %p300, %s301, %s302
      %p306 = pneg %p300
      %p307 = scmp.eq.s32.totalorder %s25, 1
      %p308 = por %p306, %p307
      %p309 = scmp.ne.s32.totalorder %s301, %s304
      %p310 = scmp.eq.s32.totalorder %s25, 0
      %p311 = por %p309, %p310
      %p312 = scmp.ne.s32.totalorder %s301, %s304
      %p313 = scmp.eq.s32.totalorder %s30, 1
      %p314 = por %p312, %p313
      %p315 = scmp.ne.s32.totalorder %s304, %s305
      %p316 = scmp.eq.s32.totalorder %s30, 0
      %p317 = por %p315, %p316
      %p318 = scmp.ne.s32.totalorder %s304, %s305
      %p319 = scmp.eq.s32.totalorder %s31, 1
      %p320 = por %p318, %p319
      %p322 = scmp.ne.s32.totalorder %s305, %s321
      %p323 = scmp.eq.s32.totalorder %s31, 0
      %p324 = por %p322, %p323
      %s325 = ssub.s32 %s25, %s32
      %p326 = scmp.eq.s32.totalorder %s325, 0
      %s328 = sadd.s32 %s327, 1
      %s329 = scalar_select %p326, %s327, %s328
      %p332 = pneg %p326
      %p333 = scmp.eq.s32.totalorder %s25, 1
      %p334 = por %p332, %p333
      %p335 = scmp.ne.s32.totalorder %s327, %s330
      %p336 = scmp.eq.s32.totalorder %s25, 0
      %p337 = por %p335, %p336
      %p338 = scmp.ne.s32.totalorder %s327, %s330
      %p339 = scmp.eq.s32.totalorder %s30, 1
      %p340 = por %p338, %p339
      %p341 = scmp.ne.s32.totalorder %s330, %s331
      %p342 = scmp.eq.s32.totalorder %s30, 0
      %p343 = por %p341, %p342
      %p344 = scmp.ne.s32.totalorder %s330, %s331
      %p345 = scmp.eq.s32.totalorder %s31, 1
      %p346 = por %p344, %p345
      %p348 = scmp.ne.s32.totalorder %s331, %s347
      %p349 = scmp.eq.s32.totalorder %s31, 0
      %p350 = por %p348, %p349
      %s351 = ssub.s32 %s25, %s32
      %p352 = scmp.eq.s32.totalorder %s351, 0
      %s354 = sadd.s32 %s353, 1
      %s355 = scalar_select %p352, %s353, %s354
      %p358 = pneg %p352
      %p359 = scmp.eq.s32.totalorder %s25, 1
      %p360 = por %p358, %p359
      %p361 = scmp.ne.s32.totalorder %s353, %s356
      %p362 = scmp.eq.s32.totalorder %s25, 0
      %p363 = por %p361, %p362
      %p364 = scmp.ne.s32.totalorder %s353, %s356
      %p365 = scmp.eq.s32.totalorder %s30, 1
      %p366 = por %p364, %p365
      %p367 = scmp.ne.s32.totalorder %s356, %s357
      %p368 = scmp.eq.s32.totalorder %s30, 0
      %p369 = por %p367, %p368
      %p370 = scmp.ne.s32.totalorder %s356, %s357
      %p371 = scmp.eq.s32.totalorder %s31, 1
      %p372 = por %p370, %p371
      %p374 = scmp.ne.s32.totalorder %s357, %s373
      %p375 = scmp.eq.s32.totalorder %s31, 0
      %p376 = por %p374, %p375
      %s377 = ssub.s32 %s25, %s32
      %p378 = scmp.eq.s32.totalorder %s377, 0
      %s380 = sadd.s32 %s379, 1
      %s381 = scalar_select %p378, %s379, %s380
      %p384 = pneg %p378
      %p385 = scmp.eq.s32.totalorder %s25, 1
      %p386 = por %p384, %p385
      %p387 = scmp.ne.s32.totalorder %s379, %s382
      %p388 = scmp.eq.s32.totalorder %s25, 0
      %p389 = por %p387, %p388
      %p390 = scmp.ne.s32.totalorder %s379, %s382
      %p391 = scmp.eq.s32.totalorder %s30, 1
      %p392 = por %p390, %p391
      %p393 = scmp.ne.s32.totalorder %s382, %s383
      %p394 = scmp.eq.s32.totalorder %s30, 0
      %p395 = por %p393, %p394
      %p396 = scmp.ne.s32.totalorder %s382, %s383
      %p397 = scmp.eq.s32.totalorder %s31, 1
      %p398 = por %p396, %p397
      %p400 = scmp.ne.s32.totalorder %s383, %s399
      %p401 = scmp.eq.s32.totalorder %s31, 0
      %p402 = por %p400, %p401
      %s403 = ssub.s32 %s25, %s32
      %p404 = scmp.eq.s32.totalorder %s403, 0
      %s406 = sadd.s32 %s405, 1
      %s407 = scalar_select %p404, %s405, %s406
      %p410 = pneg %p404
      %p411 = scmp.eq.s32.totalorder %s25, 1
      %p412 = por %p410, %p411
      %p413 = scmp.ne.s32.totalorder %s405, %s408
      %p414 = scmp.eq.s32.totalorder %s25, 0
      %p415 = por %p413, %p414
      %p416 = scmp.ne.s32.totalorder %s405, %s408
      %p417 = scmp.eq.s32.totalorder %s30, 1
      %p418 = por %p416, %p417
      %p419 = scmp.ne.s32.totalorder %s408, %s409
      %p420 = scmp.eq.s32.totalorder %s30, 0
      %p421 = por %p419, %p420
      %p422 = scmp.ne.s32.totalorder %s408, %s409
      %p423 = scmp.eq.s32.totalorder %s31, 1
      %p424 = por %p422, %p423
      %p426 = scmp.ne.s32.totalorder %s409, %s425
      %p427 = scmp.eq.s32.totalorder %s31, 0
      %p428 = por %p426, %p427
      %s430 = sadd.s32 %s429, 1
      %p433 = scmp.eq.s32.totalorder %s25, 1
      %p434 = scmp.ne.s32.totalorder %s429, %s431
      %p435 = scmp.eq.s32.totalorder %s25, 0
      %p436 = por %p434, %p435
      %p437 = scmp.ne.s32.totalorder %s429, %s431
      %p438 = scmp.eq.s32.totalorder %s30, 1
      %p439 = por %p437, %p438
      %p440 = scmp.ne.s32.totalorder %s431, %s432
      %p441 = scmp.eq.s32.totalorder %s30, 0
      %p442 = por %p440, %p441
      %p443 = scmp.ne.s32.totalorder %s431, %s432
      %p444 = scmp.eq.s32.totalorder %s31, 1
      %p445 = por %p443, %p444
      %p447 = scmp.ne.s32.totalorder %s432, %s446
      %p448 = scmp.eq.s32.totalorder %s31, 0
      %p449 = por %p447, %p448
      %s451 = sadd.s32 %s450, 1
      %p454 = scmp.eq.s32.totalorder %s25, 1
      %p455 = scmp.ne.s32.totalorder %s450, %s452
      %p456 = scmp.eq.s32.totalorder %s25, 0
      %p457 = por %p455, %p456
      %p458 = scmp.ne.s32.totalorder %s450, %s452
      %p459 = scmp.eq.s32.totalorder %s30, 1
      %p460 = por %p458, %p459
      %p461 = scmp.ne.s32.totalorder %s452, %s453
      %p462 = scmp.eq.s32.totalorder %s30, 0
      %p463 = por %p461, %p462
      %p464 = scmp.ne.s32.totalorder %s452, %s453
      %p465 = scmp.eq.s32.totalorder %s31, 1
      %p466 = por %p464, %p465
      %p468 = scmp.ne.s32.totalorder %s453, %s467
      %p469 = scmp.eq.s32.totalorder %s31, 0
      %p470 = por %p468, %p469
      %s472 = sadd.s32 %s471, 1
      %p475 = scmp.eq.s32.totalorder %s25, 1
      %p476 = scmp.ne.s32.totalorder %s471, %s473
      %p477 = scmp.eq.s32.totalorder %s25, 0
      %p478 = por %p476, %p477
      %p479 = scmp.ne.s32.totalorder %s471, %s473
      %p480 = scmp.eq.s32.totalorder %s30, 1
      %p481 = por %p479, %p480
      %p482 = scmp.ne.s32.totalorder %s473, %s474
      %p483 = scmp.eq.s32.totalorder %s30, 0
      %p484 = por %p482, %p483
      %p485 = scmp.ne.s32.totalorder %s473, %s474
      %p486 = scmp.eq.s32.totalorder %s31, 1
      %p487 = por %p485, %p486
      %p489 = scmp.ne.s32.totalorder %s474, %s488
      %p490 = scmp.eq.s32.totalorder %s31, 0
      %p491 = por %p489, %p490
      %p492 = scmp.le.s32.totalorder 1, %s25
      %p493 = scmp.lt.s32.totalorder %s25, 3
      %p494 = pnand %p492, %p493
      %p495 = pneg %p494
      // Predicated region
      $region9: #{transformer_forward.1} parent=5 // pred_check
        _
      $region10: #{transformer_forward.1} parent=5 // pred_check_branch
        %497 = sbr.rel (%p494) target = $region12
      $region11: #{transformer_forward.1} parent=5 // pred_region
        %s498 = ssub.s32 %s25, 1
        // Predicated region
        $region13: #{transformer_forward.1} parent=11 // pred_check
          %p499 = pneg %p46
        $region14: #{transformer_forward.1} parent=11 // pred_check_branch
          %501 = sbr.rel (%p499) target = $region16
        $region15: #{transformer_forward.1} parent=11 // pred_region
          _
        $region16: #{transformer_forward.1} parent=11 // pred_fallthru
          _
        // Predicated region
        $region17: #{transformer_forward.1} parent=11 // pred_check
          %p502 = pneg %p67
        $region18: #{transformer_forward.1} parent=11 // pred_check_branch
          %504 = sbr.rel (%p502) target = $region20
        $region19: #{transformer_forward.1} parent=11 // pred_region
          _
        $region20: #{transformer_forward.1} parent=11 // pred_fallthru
          _
        // Predicated region
        $region21: #{transformer_forward.1} parent=11 // pred_check
          %p505 = pneg %p88
        $region22: #{transformer_forward.1} parent=11 // pred_check_branch
          %507 = sbr.rel (%p505) target = $region24
        $region23: #{transformer_forward.1} parent=11 // pred_region
          _
        $region24: #{transformer_forward.1} parent=11 // pred_fallthru
          _
        // Predicated region
        $region25: #{transformer_forward.1} parent=11 // pred_check
          %p508 = pneg %p109
        $region26: #{transformer_forward.1} parent=11 // pred_check_branch
          %510 = sbr.rel (%p508) target = $region28
        $region27: #{transformer_forward.1} parent=11 // pred_region
          _
        $region28: #{transformer_forward.1} parent=11 // pred_fallthru
          _
        // Predicated region
        $region29: #{transformer_forward.1} parent=11 // pred_check
          %p511 = pneg %p442
        $region30: #{transformer_forward.1} parent=11 // pred_check_branch
          %513 = sbr.rel (%p511) target = $region32
        $region31: #{transformer_forward.1} parent=11 // pred_region
          _
        $region32: #{transformer_forward.1} parent=11 // pred_fallthru
          _
        // Predicated region
        $region33: #{transformer_forward.1} parent=11 // pred_check
          %p514 = pneg %p463
        $region34: #{transformer_forward.1} parent=11 // pred_check_branch
          %516 = sbr.rel (%p514) target = $region36
        $region35: #{transformer_forward.1} parent=11 // pred_region
          _
        $region36: #{transformer_forward.1} parent=11 // pred_fallthru
          _
      $region12: #{transformer_forward.1} parent=5 // pred_fallthru
        _
      %p517 = scmp.lt.s32.totalorder %s25, 2
      // Predicated region
      $region37: #{transformer_forward.1} parent=5 // pred_check
        %p518 = pneg %p517
      $region38: #{transformer_forward.1} parent=5 // pred_check_branch
        %520 = sbr.rel (%p518) target = $region40
      $region39: #{transformer_forward.1} parent=5 // pred_region
        // Predicated region
        $region41: #{transformer_forward.1} parent=39 // pred_check
          %p521 = pneg %p129
        $region42: #{transformer_forward.1} parent=39 // pred_check_branch
          %523 = sbr.rel (%p521) target = $region44
        $region43: #{transformer_forward.1} parent=39 // pred_region
          %p524 = scmp.lt.s32.totalorder %s25, 1
          %s525 = scalar_select %p524, %s25, 1
          %s526 = smul.addr %s525, 4
          %s527 = smul.addr %s526, 8
          %s528 = scalar_lea.vmem %s4, %s527
        $region44: #{transformer_forward.1} parent=39 // pred_fallthru
          _
        // Predicated region
        $region45: #{transformer_forward.1} parent=39 // pred_check
          %p529 = pneg %p155
        $region46: #{transformer_forward.1} parent=39 // pred_check_branch
          %531 = sbr.rel (%p529) target = $region48
        $region47: #{transformer_forward.1} parent=39 // pred_region
          %p532 = scmp.lt.s32.totalorder %s25, 1
          %s533 = scalar_select %p532, %s25, 1
          %s534 = scalar_lea.vmem %s5, %s533
        $region48: #{transformer_forward.1} parent=39 // pred_fallthru
          _
        // Predicated region
        $region49: #{transformer_forward.1} parent=39 // pred_check
          %p535 = pneg %p181
        $region50: #{transformer_forward.1} parent=39 // pred_check_branch
          %537 = sbr.rel (%p535) target = $region52
        $region51: #{transformer_forward.1} parent=39 // pred_region
          %p538 = scmp.lt.s32.totalorder %s25, 1
          %s539 = scalar_select %p538, %s25, 1
          %s540 = smul.addr %s539, 4
          %s541 = smul.addr %s540, 8
          %s542 = scalar_lea.vmem %s6, %s541
        $region52: #{transformer_forward.1} parent=39 // pred_fallthru
          _
        // Predicated region
        $region53: #{transformer_forward.1} parent=39 // pred_check
          %p543 = pneg %p207
        $region54: #{transformer_forward.1} parent=39 // pred_check_branch
          %545 = sbr.rel (%p543) target = $region56
        $region55: #{transformer_forward.1} parent=39 // pred_region
          %p546 = scmp.lt.s32.totalorder %s25, 1
          %s547 = scalar_select %p546, %s25, 1
          %s548 = scalar_lea.vmem %s7, %s547
        $region56: #{transformer_forward.1} parent=39 // pred_fallthru
          _
        // Predicated region
        $region57: #{transformer_forward.1} parent=39 // pred_check
          %p549 = pneg %p233
        $region58: #{transformer_forward.1} parent=39 // pred_check_branch
          %551 = sbr.rel (%p549) target = $region60
        $region59: #{transformer_forward.1} parent=39 // pred_region
          %p552 = scmp.lt.s32.totalorder %s25, 1
          %s553 = scalar_select %p552, %s25, 1
          %s554 = smul.addr %s553, 64
          %s555 = smul.addr %s554, 8
          %s556 = scalar_lea.vmem %s8, %s555
        $region60: #{transformer_forward.1} parent=39 // pred_fallthru
          _
        // Predicated region
        $region61: #{transformer_forward.1} parent=39 // pred_check
          %p557 = pneg %p259
        $region62: #{transformer_forward.1} parent=39 // pred_check_branch
          %559 = sbr.rel (%p557) target = $region64
        $region63: #{transformer_forward.1} parent=39 // pred_region
          %p560 = scmp.lt.s32.totalorder %s25, 1
          %s561 = scalar_select %p560, %s25, 1
          %s562 = smul.addr %s561, 16
          %s563 = scalar_lea.vmem %s9, %s562
        $region64: #{transformer_forward.1} parent=39 // pred_fallthru
          _
        // Predicated region
        $region65: #{transformer_forward.1} parent=39 // pred_check
          %p564 = pneg %p285
        $region66: #{transformer_forward.1} parent=39 // pred_check_branch
          %566 = sbr.rel (%p564) target = $region68
        $region67: #{transformer_forward.1} parent=39 // pred_region
          %p567 = scmp.lt.s32.totalorder %s25, 1
          %s568 = scalar_select %p567, %s25, 1
          %s569 = smul.addr %s568, 256
          %s570 = smul.addr %s569, 8
          %s571 = scalar_lea.vmem %s10, %s570
        $region68: #{transformer_forward.1} parent=39 // pred_fallthru
          _
        // Predicated region
        $region69: #{transformer_forward.1} parent=39 // pred_check
          %p572 = pneg %p311
        $region70: #{transformer_forward.1} parent=39 // pred_check_branch
          %574 = sbr.rel (%p572) target = $region72
        $region71: #{transformer_forward.1} parent=39 // pred_region
          %p575 = scmp.lt.s32.totalorder %s25, 1
          %s576 = scalar_select %p575, %s25, 1
          %s577 = scalar_lea.vmem %s11, %s576
        $region72: #{transformer_forward.1} parent=39 // pred_fallthru
          _
        // Predicated region
        $region73: #{transformer_forward.1} parent=39 // pred_check
          %p578 = pneg %p337
        $region74: #{transformer_forward.1} parent=39 // pred_check_branch
          %580 = sbr.rel (%p578) target = $region76
        $region75: #{transformer_forward.1} parent=39 // pred_region
          %p581 = scmp.lt.s32.totalorder %s25, 1
          %s582 = scalar_select %p581, %s25, 1
          %s583 = scalar_lea.vmem %s12, %s582
        $region76: #{transformer_forward.1} parent=39 // pred_fallthru
          _
        // Predicated region
        $region77: #{transformer_forward.1} parent=39 // pred_check
          %p584 = pneg %p363
        $region78: #{transformer_forward.1} parent=39 // pred_check_branch
          %586 = sbr.rel (%p584) target = $region80
        $region79: #{transformer_forward.1} parent=39 // pred_region
          %p587 = scmp.lt.s32.totalorder %s25, 1
          %s588 = scalar_select %p587, %s25, 1
          %s589 = scalar_lea.vmem %s13, %s588
        $region80: #{transformer_forward.1} parent=39 // pred_fallthru
          _
        // Predicated region
        $region81: #{transformer_forward.1} parent=39 // pred_check
          %p590 = pneg %p389
        $region82: #{transformer_forward.1} parent=39 // pred_check_branch
          %592 = sbr.rel (%p590) target = $region84
        $region83: #{transformer_forward.1} parent=39 // pred_region
          %p593 = scmp.lt.s32.totalorder %s25, 1
          %s594 = scalar_select %p593, %s25, 1
          %s595 = scalar_lea.vmem %s14, %s594
        $region84: #{transformer_forward.1} parent=39 // pred_fallthru
          _
        // Predicated region
        $region85: #{transformer_forward.1} parent=39 // pred_check
          %p596 = pneg %p415
        $region86: #{transformer_forward.1} parent=39 // pred_check_branch
          %598 = sbr.rel (%p596) target = $region88
        $region87: #{transformer_forward.1} parent=39 // pred_region
          %p599 = scmp.lt.s32.totalorder %s25, 1
          %s600 = scalar_select %p599, %s25, 1
          %s601 = scalar_lea.vmem %s15, %s600
        $region88: #{transformer_forward.1} parent=39 // pred_fallthru
          _
      $region40: #{transformer_forward.1} parent=5 // pred_fallthru
        _
      %p602 = scmp.le.s32.totalorder 1, %s25
      %p603 = scmp.lt.s32.totalorder %s25, 3
      %p604 = pnand %p602, %p603
      %p605 = pneg %p604
      // Predicated region
      $region89: #{transformer_forward.1} parent=5 // pred_check
        _
      $region90: #{transformer_forward.1} parent=5 // pred_check_branch
        %607 = sbr.rel (%p604) target = $region92
      $region91: #{transformer_forward.1} parent=5 // pred_region
        %s608 = ssub.s32 %s25, 1
        %p609 = pneg %p46
        %p610 = pneg %p43
        %p611 = pneg %p67
        %p612 = pneg %p64
        %p613 = pneg %p88
        %p614 = pneg %p85
        %p615 = pneg %p109
        %p616 = pneg %p106
        %p617 = scmp.lt.s32.totalorder %s30, 1
        %s618 = scalar_select %p617, %s30, 1
        %s619 = smul.addr %s618, 4
        %s620 = smul.addr %s619, 8
        %s621 = scalar_lea.vmem %s4, %s620
        %p622 = pneg %p135
        %p623 = pneg %p132
        %p624 = scmp.lt.s32.totalorder %s30, 1
        %s625 = scalar_select %p624, %s30, 1
        %s626 = scalar_lea.vmem %s5, %s625
        %p627 = pneg %p161
        %p628 = pneg %p158
        %p629 = scmp.lt.s32.totalorder %s30, 1
        %s630 = scalar_select %p629, %s30, 1
        %s631 = smul.addr %s630, 4
        %s632 = smul.addr %s631, 8
        %s633 = scalar_lea.vmem %s6, %s632
        %p634 = pneg %p187
        %p635 = pneg %p184
        %p636 = scmp.lt.s32.totalorder %s30, 1
        %s637 = scalar_select %p636, %s30, 1
        %s638 = scalar_lea.vmem %s7, %s637
        %p639 = pneg %p213
        %p640 = pneg %p210
        %p641 = scmp.lt.s32.totalorder %s30, 1
        %s642 = scalar_select %p641, %s30, 1
        %s643 = smul.addr %s642, 64
        %s644 = smul.addr %s643, 8
        %s645 = scalar_lea.vmem %s8, %s644
        %p646 = pneg %p239
        %p647 = pneg %p236
        %p648 = scmp.lt.s32.totalorder %s30, 1
        %s649 = scalar_select %p648, %s30, 1
        %s650 = smul.addr %s649, 16
        %s651 = scalar_lea.vmem %s9, %s650
        %p652 = pneg %p265
        %p653 = pneg %p262
        %p654 = scmp.lt.s32.totalorder %s30, 1
        %s655 = scalar_select %p654, %s30, 1
        %s656 = smul.addr %s655, 256
        %s657 = smul.addr %s656, 8
        %s658 = scalar_lea.vmem %s10, %s657
        %p659 = pneg %p291
        %p660 = pneg %p288
        %p661 = scmp.lt.s32.totalorder %s30, 1
        %s662 = scalar_select %p661, %s30, 1
        %s663 = scalar_lea.vmem %s11, %s662
        %p664 = pneg %p317
        %p665 = pneg %p314
        %p666 = scmp.lt.s32.totalorder %s30, 1
        %s667 = scalar_select %p666, %s30, 1
        %s668 = scalar_lea.vmem %s12, %s667
        %p669 = pneg %p343
        %p670 = pneg %p340
        %p671 = scmp.lt.s32.totalorder %s30, 1
        %s672 = scalar_select %p671, %s30, 1
        %s673 = scalar_lea.vmem %s13, %s672
        %p674 = pneg %p369
        %p675 = pneg %p366
        %p676 = scmp.lt.s32.totalorder %s30, 1
        %s677 = scalar_select %p676, %s30, 1
        %s678 = scalar_lea.vmem %s14, %s677
        %p679 = pneg %p395
        %p680 = pneg %p392
        %p681 = scmp.lt.s32.totalorder %s30, 1
        %s682 = scalar_select %p681, %s30, 1
        %s683 = scalar_lea.vmem %s15, %s682
        %p684 = pneg %p421
        %p685 = pneg %p418
        %p686 = pneg %p442
        %p687 = pneg %p439
        %p688 = pneg %p463
        %p689 = pneg %p460
        %p690 = pneg %p484
        %p691 = pneg %p481
        %p692 = scmp.lt.s32.totalorder %s30, 1
        %s693 = scalar_select %p692, %s30, 1
        %s694 = smul.addr %s693, 4
        %s695 = smul.addr %s694, 8
        %s696 = scalar_lea.vmem %s4, %s695
        %p697 = scmp.lt.s32.totalorder %s30, 1
        %s698 = scalar_select %p697, %s30, 1
        %s699 = scalar_lea.vmem %s5, %s698
        %p700 = scmp.lt.s32.totalorder %s30, 1
        %s701 = scalar_select %p700, %s30, 1
        %s702 = smul.addr %s701, 4
        %s703 = smul.addr %s702, 8
        %s704 = scalar_lea.vmem %s6, %s703
        %p705 = scmp.lt.s32.totalorder %s30, 1
        %s706 = scalar_select %p705, %s30, 1
        %s707 = scalar_lea.vmem %s7, %s706
        %p708 = scmp.lt.s32.totalorder %s30, 1
        %s709 = scalar_select %p708, %s30, 1
        %s710 = smul.addr %s709, 64
        %s711 = smul.addr %s710, 8
        %s712 = scalar_lea.vmem %s8, %s711
        %p713 = scmp.lt.s32.totalorder %s30, 1
        %s714 = scalar_select %p713, %s30, 1
        %s715 = smul.addr %s714, 16
        %s716 = scalar_lea.vmem %s9, %s715
        %p717 = scmp.lt.s32.totalorder %s30, 1
        %s718 = scalar_select %p717, %s30, 1
        %s719 = smul.addr %s718, 256
        %s720 = smul.addr %s719, 8
        %s721 = scalar_lea.vmem %s10, %s720
        %p722 = scmp.lt.s32.totalorder %s30, 1
        %s723 = scalar_select %p722, %s30, 1
        %s724 = scalar_lea.vmem %s11, %s723
        %p725 = scmp.lt.s32.totalorder %s30, 1
        %s726 = scalar_select %p725, %s30, 1
        %s727 = scalar_lea.vmem %s12, %s726
        %p728 = scmp.lt.s32.totalorder %s30, 1
        %s729 = scalar_select %p728, %s30, 1
        %s730 = scalar_lea.vmem %s13, %s729
        %p731 = scmp.lt.s32.totalorder %s30, 1
        %s732 = scalar_select %p731, %s30, 1
        %s733 = scalar_lea.vmem %s14, %s732
        %p734 = scmp.lt.s32.totalorder %s30, 1
        %s735 = scalar_select %p734, %s30, 1
        %s736 = scalar_lea.vmem %s15, %s735
        %p737 = scmp.eq.s32.totalorder %s30, 0
        // Predicated region
        $region93: #{transformer_forward.1} parent=91 // pred_check
          %p738 = pneg %p737
        $region94: #{transformer_forward.1} parent=91 // pred_check_branch
          %740 = sbr.rel (%p738) target = $region96
        $region95: #{transformer_forward.1} parent=91 // pred_region
          %v741 = vld [vmem:[%s0] sm:$0xff]
          %v742 = vld [vmem:[%s0 + $0x8] sm:$0xff]
          %v743 = vld [vmem:[%s1] sm:$0xff]
          %v744 = vld [vmem:[%s2] sm:$0x1]
          %v746 = vlaneseq
          %v747 = vshrl.u32 %v746, 7
          %v748 = vsub.s32 0, %v747
          %v749 = vrot.slane %v744, %v748
          %vm751 = vcmask 64512
          %v753 = vsel %vm751, %v741, 0
          %v756 = vsel %vm751, %v742, 0
          %758 = vmatprep.subr.mxu0 0.0
          %759 = vmatpush1.msra.mxu0 %v743
          %760 = vmatprep.subr.mxu0 0.0
          %761 = vmatpush1.msra.mxu0 0.0
          %762 = vmatprep.subr.mxu0 0.0
          %763 = vmatpush1.msra.mxu0 0.0
          %764 = vmatprep.subr.mxu0 0.0
          %765 = vmatpush1.msra.mxu0 0.0
          %766 = vmatprep.subr.mxu0 0.0
          %767 = vmatpush1.msra.mxu0 0.0
          %768 = vmatprep.subr.mxu0 0.0
          %769 = vmatpush1.msra.mxu0 0.0
          %770 = vmatprep.subr.mxu0 0.0
          %771 = vmatpush1.msra.mxu0 0.0
          %772 = vmatprep.subr.mxu0 0.0
          %773 = vmatpush1.msra.mxu0 0.0
          %774 = vmatprep.subr.mxu0 0.0
          %775 = vmatpush1.msra.mxu0 0.0
          %776 = vmatprep.subr.mxu0 0.0
          %777 = vmatpush1.msra.mxu0 0.0
          %778 = vmatprep.subr.mxu0 0.0
          %779 = vmatpush1.msra.mxu0 0.0
          %780 = vmatprep.subr.mxu0 0.0
          %781 = vmatpush1.msra.mxu0 0.0
          %782 = vmatprep.subr.mxu0 0.0
          %783 = vmatpush1.msra.mxu0 0.0
          %784 = vmatprep.subr.mxu0 0.0
          %785 = vmatpush1.msra.mxu0 0.0
          %786 = vmatprep.subr.mxu0 0.0
          %787 = vmatpush1.msra.mxu0 0.0
          %788 = vmatprep.subr.mxu0 0.0
          %789 = vmatpush1.msra.mxu0 0.0
          %790 = vmatprep.subr.mxu0 0.0
          %791 = vmatpush1.msra.mxu0 0.0
          %792 = vmatprep.subr.mxu0 0.0
          %793 = vmatpush1.msra.mxu0 0.0
          %794 = vmatprep.subr.mxu0 0.0
          %795 = vmatpush1.msra.mxu0 0.0
          %796 = vmatprep.subr.mxu0 0.0
          %797 = vmatpush1.msra.mxu0 0.0
          %798 = vmatprep.subr.mxu0 0.0
          %799 = vmatpush1.msra.mxu0 0.0
          %800 = vmatprep.subr.mxu0 0.0
          %801 = vmatpush1.msra.mxu0 0.0
          %802 = vmatprep.subr.mxu0 0.0
          %803 = vmatpush1.msra.mxu0 0.0
          %804 = vmatprep.subr.mxu0 0.0
          %805 = vmatpush1.msra.mxu0 0.0
          %806 = vmatprep.subr.mxu0 0.0
          %807 = vmatpush1.msra.mxu0 0.0
          %808 = vmatprep.subr.mxu0 0.0
          %809 = vmatpush1.msra.mxu0 0.0
          %810 = vmatprep.subr.mxu0 0.0
          %811 = vmatpush1.msra.mxu0 0.0
          %812 = vmatprep.subr.mxu0 0.0
          %813 = vmatpush1.msra.mxu0 0.0
          %814 = vmatprep.subr.mxu0 0.0
          %815 = vmatpush1.msra.mxu0 0.0
          %816 = vmatprep.subr.mxu0 0.0
          %817 = vmatpush1.msra.mxu0 0.0
          %818 = vmatprep.subr.mxu0 0.0
          %819 = vmatpush1.msra.mxu0 0.0
          %820 = vmatprep.subr.mxu0 0.0
          %821 = vmatpush1.msra.mxu0 0.0
          %822 = vmatprep.mubr.f32.mxu0 0.0
          %823 = vmatmul.mubr.f32.gmra.mrb[0].mxu0 %v753
          %v824 = vpop.f32.mrb[0].mxu0
          %v825 = vadd.f32 %v749, %v824
          %v826 = vpop.f32.mrb[0].mxu0
          %827 = vmatprep.mubr.f32.mxu0 0.0
          %828 = vmatmul.mubr.f32.gmra.mrb[0].mxu0 %v756
          %v829 = vpop.f32.mrb[0].mxu0
          %v830 = vadd.f32 %v749, %v829
          %v831 = vpop.f32.mrb[0].mxu0
          %832 = vdwg.mxu0
          %v835 = vcombine.high %v825, %v825
          %v837 = vunpack.c.l.s4 1983009808
          %v838 = vunpack.c.0.s8 %v837
          %v839 = vlaneseq
          %v840 = vshrl.u32 %v839, 7
          %v841 = vsub.s32 %v838, %v840
          %v842 = vrot.slane %v825, %v841
          %v844 = vunpack.c.l.s4 1983009808
          %v845 = vunpack.c.0.s8 %v844
          %v846 = vlaneseq
          %v847 = vshrl.u32 %v846, 7
          %v848 = vsub.s32 %v845, %v847
          %v849 = vrot.slane %v835, %v848
          %v850 = vcombine.high %v842, %v842
          %v851 = vcombine.high %v849, %v849
          %v852 = vcombine.high %v830, %v830
          %v854 = vunpack.c.l.s4 1983009808
          %v855 = vunpack.c.0.s8 %v854
          %v856 = vlaneseq
          %v857 = vshrl.u32 %v856, 7
          %v858 = vsub.s32 %v855, %v857
          %v859 = vrot.slane %v830, %v858
          %v861 = vunpack.c.l.s4 1983009808
          %v862 = vunpack.c.0.s8 %v861
          %v863 = vlaneseq
          %v864 = vshrl.u32 %v863, 7
          %v865 = vsub.s32 %v862, %v864
          %v866 = vrot.slane %v852, %v865
          %v867 = vcombine.high %v859, %v859
          %v868 = vcombine.high %v866, %v866
          %v877 = vld [vmem:[%s3] sm:$0xff]
          %v879 = vcombine.high %v877, %v877
          %v881 = vunpack.c.l.s4 1966171168
          %v882 = vunpack.c.0.s8 %v881
          %v883 = vlaneseq
          %v884 = vshrl.u32 %v883, 7
          %v885 = vsub.s32 %v882, %v884
          %v886 = vrot.slane %v877, %v885
          %v888 = vunpack.c.l.s4 1966171168
          %v889 = vunpack.c.0.s8 %v888
          %v890 = vlaneseq
          %v891 = vshrl.u32 %v890, 7
          %v892 = vsub.s32 %v889, %v891
          %v893 = vrot.slane %v879, %v892
          %v894 = vcombine.high %v886, %v886
          %v895 = vcombine.high %v893, %v893
          %v897 = vunpack.c.l.s4 1966171168
          %v898 = vunpack.c.0.s8 %v897
          %v899 = vlaneseq
          %v900 = vshrl.u32 %v899, 7
          %v901 = vsub.s32 %v898, %v900
          %v902 = vrot.slane %v886, %v901
          %v904 = vunpack.c.l.s4 1966171168
          %v905 = vunpack.c.0.s8 %v904
          %v906 = vlaneseq
          %v907 = vshrl.u32 %v906, 7
          %v908 = vsub.s32 %v905, %v907
          %v909 = vrot.slane %v893, %v908
          %v911 = vunpack.c.l.s4 1966171168
          %v912 = vunpack.c.0.s8 %v911
          %v913 = vlaneseq
          %v914 = vshrl.u32 %v913, 7
          %v915 = vsub.s32 %v912, %v914
          %v916 = vrot.slane %v894, %v915
          %v918 = vunpack.c.l.s4 1966171168
          %v919 = vunpack.c.0.s8 %v918
          %v920 = vlaneseq
          %v921 = vshrl.u32 %v920, 7
          %v922 = vsub.s32 %v919, %v921
          %v923 = vrot.slane %v895, %v922
          %v924 = vcombine.high %v902, %v902
          %v925 = vcombine.high %v909, %v909
          %v926 = vcombine.high %v916, %v916
          %v927 = vcombine.high %v923, %v923
          %v928 = vlaneseq
          %v929 = vshrl.u32 %v928, 7
          %v930 = vsub.s32 0, %v929
          %v931 = vrot.slane %v902, %v930
          %v932 = vlaneseq
          %v933 = vshrl.u32 %v932, 7
          %v934 = vsub.s32 0, %v933
          %v935 = vrot.slane %v916, %v934
          %v936 = vlaneseq
          %v937 = vshrl.u32 %v936, 7
          %v938 = vsub.s32 0, %v937
          %v939 = vrot.slane %v924, %v938
          %v940 = vlaneseq
          %v941 = vshrl.u32 %v940, 7
          %v942 = vsub.s32 0, %v941
          %v943 = vrot.slane %v926, %v942
          %v944 = vlaneseq
          %v945 = vshrl.u32 %v944, 7
          %v946 = vsub.s32 0, %v945
          %v947 = vrot.slane %v909, %v946
          %v948 = vlaneseq
          %v949 = vshrl.u32 %v948, 7
          %v950 = vsub.s32 0, %v949
          %v951 = vrot.slane %v923, %v950
          %v952 = vlaneseq
          %v953 = vshrl.u32 %v952, 7
          %v954 = vsub.s32 0, %v953
          %v955 = vrot.slane %v925, %v954
          %v956 = vlaneseq
          %v957 = vshrl.u32 %v956, 7
          %v958 = vsub.s32 0, %v957
          %v959 = vrot.slane %v927, %v958
          %v968 = vadd.f32 %v842, %v931
          %v969 = vadd.f32 %v850, %v935
          %v970 = vadd.f32 %v849, %v939
          %v971 = vadd.f32 %v851, %v943
          %v972 = vadd.f32 %v859, %v947
          %v973 = vadd.f32 %v867, %v951
          %v974 = vadd.f32 %v866, %v955
          %v975 = vadd.f32 %v868, %v959
          %v984 = vcombine.low %v968, %v969
          %v985 = vcombine.low %v970, %v971
          %v987 = vunpack.c.l.s4 1983009808
          %v988 = vunpack.c.0.s8 %v987
          %v989 = vlaneseq
          %v990 = vshrl.u32 %v989, 7
          %v991 = vsub.s32 %v988, %v990
          %v992 = vrot.slane %v984, %v991
          %v994 = vunpack.c.l.s4 1983009808
          %v995 = vunpack.c.0.s8 %v994
          %v996 = vlaneseq
          %v997 = vshrl.u32 %v996, 7
          %v998 = vsub.s32 %v995, %v997
          %v999 = vrot.slane %v985, %v998
          %v1000 = vcombine.low %v992, %v999
          %v1001 = vcombine.low %v972, %v973
          %v1002 = vcombine.low %v974, %v975
          %v1004 = vunpack.c.l.s4 1983009808
          %v1005 = vunpack.c.0.s8 %v1004
          %v1006 = vlaneseq
          %v1007 = vshrl.u32 %v1006, 7
          %v1008 = vsub.s32 %v1005, %v1007
          %v1009 = vrot.slane %v1001, %v1008
          %v1011 = vunpack.c.l.s4 1983009808
          %v1012 = vunpack.c.0.s8 %v1011
          %v1013 = vlaneseq
          %v1014 = vshrl.u32 %v1013, 7
          %v1015 = vsub.s32 %v1012, %v1014
          %v1016 = vrot.slane %v1002, %v1015
          %v1017 = vcombine.low %v1009, %v1016
          %vm1020 = vcmask 261120
          %1021 = vst.msk [vmem:[#allocation2] sm:$0xff] %vm1020, %v1000
          %1022 = vst.msk [vmem:[#allocation2 + $0x8] sm:$0xff] %vm1020, %v1017
        $region96: #{transformer_forward.1} parent=91 // pred_fallthru
          _
        %v1023 = vld [vmem:[#allocation2] sm:$0xff]
        %v1024 = vld [vmem:[#allocation2 + $0x8] sm:$0xff]
        %v1025 = vld [vmem:[%s696] sm:$0xff]
        %v1026 = vld [vmem:[%s696 + $0x8] sm:$0xff]
        %v1027 = vld [vmem:[%s696 + $0x10] sm:$0xff]
        %v1028 = vld [vmem:[%s696 + $0x18] sm:$0xff]
        %v1029 = vld [vmem:[%s699] sm:$0x1]
        %v1031 = vlaneseq
        %v1032 = vshrl.u32 %v1031, 7
        %v1033 = vsub.s32 0, %v1032
        %v1034 = vrot.slane %v1029, %v1033
        %vm1036 = vcmask 261120
        %v1038 = vsel %vm1036, %v1023, 0
        %v1041 = vsel %vm1036, %v1024, 0
        %1043 = vmatprep.subr.mxu0 0.0
        %1044 = vmatpush1.msra.mxu0 %v1025
        %1045 = vmatprep.subr.mxu0 0.0
        %1046 = vmatpush1.msra.mxu0 %v1026
        %1047 = vmatprep.subr.mxu0 0.0
        %1048 = vmatpush1.msra.mxu0 %v1027
        %1049 = vmatprep.subr.mxu0 0.0
        %1050 = vmatpush1.msra.mxu0 %v1028
        %1051 = vmatprep.subr.mxu0 0.0
        %1052 = vmatpush1.msra.mxu0 0.0
        %1053 = vmatprep.subr.mxu0 0.0
        %1054 = vmatpush1.msra.mxu0 0.0
        %1055 = vmatprep.subr.mxu0 0.0
        %1056 = vmatpush1.msra.mxu0 0.0
        %1057 = vmatprep.subr.mxu0 0.0
        %1058 = vmatpush1.msra.mxu0 0.0
        %1059 = vmatprep.subr.mxu0 0.0
        %1060 = vmatpush1.msra.mxu0 0.0
        %1061 = vmatprep.subr.mxu0 0.0
        %1062 = vmatpush1.msra.mxu0 0.0
        %1063 = vmatprep.subr.mxu0 0.0
        %1064 = vmatpush1.msra.mxu0 0.0
        %1065 = vmatprep.subr.mxu0 0.0
        %1066 = vmatpush1.msra.mxu0 0.0
        %1067 = vmatprep.subr.mxu0 0.0
        %1068 = vmatpush1.msra.mxu0 0.0
        %1069 = vmatprep.subr.mxu0 0.0
        %1070 = vmatpush1.msra.mxu0 0.0
        %1071 = vmatprep.subr.mxu0 0.0
        %1072 = vmatpush1.msra.mxu0 0.0
        %1073 = vmatprep.subr.mxu0 0.0
        %1074 = vmatpush1.msra.mxu0 0.0
        %1075 = vmatprep.subr.mxu0 0.0
        %1076 = vmatpush1.msra.mxu0 0.0
        %1077 = vmatprep.subr.mxu0 0.0
        %1078 = vmatpush1.msra.mxu0 0.0
        %1079 = vmatprep.subr.mxu0 0.0
        %1080 = vmatpush1.msra.mxu0 0.0
        %1081 = vmatprep.subr.mxu0 0.0
        %1082 = vmatpush1.msra.mxu0 0.0
        %1083 = vmatprep.subr.mxu0 0.0
        %1084 = vmatpush1.msra.mxu0 0.0
        %1085 = vmatprep.subr.mxu0 0.0
        %1086 = vmatpush1.msra.mxu0 0.0
        %1087 = vmatprep.subr.mxu0 0.0
        %1088 = vmatpush1.msra.mxu0 0.0
        %1089 = vmatprep.subr.mxu0 0.0
        %1090 = vmatpush1.msra.mxu0 0.0
        %1091 = vmatprep.subr.mxu0 0.0
        %1092 = vmatpush1.msra.mxu0 0.0
        %1093 = vmatprep.subr.mxu0 0.0
        %1094 = vmatpush1.msra.mxu0 0.0
        %1095 = vmatprep.subr.mxu0 0.0
        %1096 = vmatpush1.msra.mxu0 0.0
        %1097 = vmatprep.subr.mxu0 0.0
        %1098 = vmatpush1.msra.mxu0 0.0
        %1099 = vmatprep.subr.mxu0 0.0
        %1100 = vmatpush1.msra.mxu0 0.0
        %1101 = vmatprep.subr.mxu0 0.0
        %1102 = vmatpush1.msra.mxu0 0.0
        %1103 = vmatprep.subr.mxu0 0.0
        %1104 = vmatpush1.msra.mxu0 0.0
        %1105 = vmatprep.subr.mxu0 0.0
        %1106 = vmatpush1.msra.mxu0 0.0
        %1107 = vmatprep.mubr.f32.mxu0 0.0
        %1108 = vmatmul.mubr.f32.gmra.mrb[0].mxu0 %v1038
        %v1109 = vpop.f32.mrb[0].mxu0
        %v1110 = vadd.f32 %v1034, %v1109
        %v1111 = vpop.f32.mrb[0].mxu0
        %1112 = vmatprep.mubr.f32.mxu0 0.0
        %1113 = vmatmul.mubr.f32.gmra.mrb[0].mxu0 %v1041
        %v1114 = vpop.f32.mrb[0].mxu0
        %v1115 = vadd.f32 %v1034, %v1114
        %v1116 = vpop.f32.mrb[0].mxu0
        %1117 = vdwg.mxu0
        %v1120 = vcombine.high %v1110, %v1110
        %v1122 = vunpack.c.l.s4 1983009808
        %v1123 = vunpack.c.0.s8 %v1122
        %v1124 = vlaneseq
        %v1125 = vshrl.u32 %v1124, 7
        %v1126 = vsub.s32 %v1123, %v1125
        %v1127 = vrot.slane %v1110, %v1126
        %v1129 = vunpack.c.l.s4 1983009808
        %v1130 = vunpack.c.0.s8 %v1129
        %v1131 = vlaneseq
        %v1132 = vshrl.u32 %v1131, 7
        %v1133 = vsub.s32 %v1130, %v1132
        %v1134 = vrot.slane %v1120, %v1133
        %v1135 = vcombine.high %v1127, %v1127
        %v1136 = vcombine.high %v1134, %v1134
        %v1137 = vcombine.high %v1115, %v1115
        %v1139 = vunpack.c.l.s4 1983009808
        %v1140 = vunpack.c.0.s8 %v1139
        %v1141 = vlaneseq
        %v1142 = vshrl.u32 %v1141, 7
        %v1143 = vsub.s32 %v1140, %v1142
        %v1144 = vrot.slane %v1115, %v1143
        %v1146 = vunpack.c.l.s4 1983009808
        %v1147 = vunpack.c.0.s8 %v1146
        %v1148 = vlaneseq
        %v1149 = vshrl.u32 %v1148, 7
        %v1150 = vsub.s32 %v1147, %v1149
        %v1151 = vrot.slane %v1137, %v1150
        %v1152 = vcombine.high %v1144, %v1144
        %v1153 = vcombine.high %v1151, %v1151
        %1154 = vrot.lane.b32.xlu0 %v1127, 120
        %v1155 = vpop.permute.xlu0 %1154
        %1156 = vrot.lane.b32.xlu0 %v1135, 120
        %v1157 = vpop.permute.xlu0 %1156
        %1158 = vrot.lane.b32.xlu0 %v1134, 120
        %v1159 = vpop.permute.xlu0 %1158
        %1160 = vrot.lane.b32.xlu0 %v1136, 120
        %v1161 = vpop.permute.xlu0 %1160
        %1162 = vrot.lane.b32.xlu0 %v1144, 120
        %v1163 = vpop.permute.xlu0 %1162
        %1164 = vrot.lane.b32.xlu0 %v1152, 120
        %v1165 = vpop.permute.xlu0 %1164
        %1166 = vrot.lane.b32.xlu0 %v1151, 120
        %v1167 = vpop.permute.xlu0 %1166
        %1168 = vrot.lane.b32.xlu0 %v1153, 120
        %v1169 = vpop.permute.xlu0 %1168
        %1170 = vrot.lane.b32.xlu0 %v1127, 112
        %v1171 = vpop.permute.xlu0 %1170
        %1172 = vrot.lane.b32.xlu0 %v1135, 112
        %v1173 = vpop.permute.xlu0 %1172
        %1174 = vrot.lane.b32.xlu0 %v1134, 112
        %v1175 = vpop.permute.xlu0 %1174
        %1176 = vrot.lane.b32.xlu0 %v1136, 112
        %v1177 = vpop.permute.xlu0 %1176
        %1178 = vrot.lane.b32.xlu0 %v1144, 112
        %v1179 = vpop.permute.xlu0 %1178
        %1180 = vrot.lane.b32.xlu0 %v1152, 112
        %v1181 = vpop.permute.xlu0 %1180
        %1182 = vrot.lane.b32.xlu0 %v1151, 112
        %v1183 = vpop.permute.xlu0 %1182
        %1184 = vrot.lane.b32.xlu0 %v1153, 112
        %v1185 = vpop.permute.xlu0 %1184
        %1186 = vrot.lane.b32.xlu0 %v1127, 104
        %v1187 = vpop.permute.xlu0 %1186
        %1188 = vrot.lane.b32.xlu0 %v1135, 104
        %v1189 = vpop.permute.xlu0 %1188
        %1190 = vrot.lane.b32.xlu0 %v1134, 104
        %v1191 = vpop.permute.xlu0 %1190
        %1192 = vrot.lane.b32.xlu0 %v1136, 104
        %v1193 = vpop.permute.xlu0 %1192
        %1194 = vrot.lane.b32.xlu0 %v1144, 104
        %v1195 = vpop.permute.xlu0 %1194
        %1196 = vrot.lane.b32.xlu0 %v1152, 104
        %v1197 = vpop.permute.xlu0 %1196
        %1198 = vrot.lane.b32.xlu0 %v1151, 104
        %v1199 = vpop.permute.xlu0 %1198
        %1200 = vrot.lane.b32.xlu0 %v1153, 104
        %v1201 = vpop.permute.xlu0 %1200
        %v1203 = vunpack.c.l.s4 1983009808
        %v1204 = vunpack.c.0.s8 %v1203
        %v1205 = vlaneseq
        %v1206 = vshrl.u32 %v1205, 7
        %v1207 = vsub.s32 %v1204, %v1206
        %v1208 = vrot.slane %v1127, %v1207
        %1209 = vrot.lane.b32.xlu0 %v1208, 96
        %v1210 = vpop.permute.xlu0 %1209
        %vm1211 = vcmask 64512
        %v1212 = vsel %vm1211, %v1127, 0
        %v1214 = vsel %vm1211, %v1210, 0
        %1216 = vmatprep.subr.mxu0 0.0
        %1217 = vmatpush1.xpose.msra.mxu0 %v1214
        %1218 = vmatprep.subr.mxu0 0.0
        %1219 = vmatpush1.xpose.msra.mxu0 0.0
        %1220 = vmatprep.subr.mxu0 0.0
        %1221 = vmatpush1.xpose.msra.mxu0 0.0
        %1222 = vmatprep.subr.mxu0 0.0
        %1223 = vmatpush1.xpose.msra.mxu0 0.0
        %1224 = vmatprep.subr.mxu0 0.0
        %1225 = vmatpush1.xpose.msra.mxu0 0.0
        %1226 = vmatprep.subr.mxu0 0.0
        %1227 = vmatpush1.xpose.msra.mxu0 0.0
        %1228 = vmatprep.subr.mxu0 0.0
        %1229 = vmatpush1.xpose.msra.mxu0 0.0
        %1230 = vmatprep.subr.mxu0 0.0
        %1231 = vmatpush1.xpose.msra.mxu0 0.0
        %1232 = vmatprep.subr.mxu0 0.0
        %1233 = vmatpush1.xpose.msra.mxu0 0.0
        %1234 = vmatprep.subr.mxu0 0.0
        %1235 = vmatpush1.xpose.msra.mxu0 0.0
        %1236 = vmatprep.subr.mxu0 0.0
        %1237 = vmatpush1.xpose.msra.mxu0 0.0
        %1238 = vmatprep.subr.mxu0 0.0
        %1239 = vmatpush1.xpose.msra.mxu0 0.0
        %1240 = vmatprep.subr.mxu0 0.0
        %1241 = vmatpush1.xpose.msra.mxu0 0.0
        %1242 = vmatprep.subr.mxu0 0.0
        %1243 = vmatpush1.xpose.msra.mxu0 0.0
        %1244 = vmatprep.subr.mxu0 0.0
        %1245 = vmatpush1.xpose.msra.mxu0 0.0
        %1246 = vmatprep.subr.mxu0 0.0
        %1247 = vmatpush1.xpose.msra.mxu0 0.0
        %1248 = vmatprep.subr.mxu0 0.0
        %1249 = vmatpush1.xpose.msra.mxu0 0.0
        %1250 = vmatprep.subr.mxu0 0.0
        %1251 = vmatpush1.xpose.msra.mxu0 0.0
        %1252 = vmatprep.subr.mxu0 0.0
        %1253 = vmatpush1.xpose.msra.mxu0 0.0
        %1254 = vmatprep.subr.mxu0 0.0
        %1255 = vmatpush1.xpose.msra.mxu0 0.0
        %1256 = vmatprep.subr.mxu0 0.0
        %1257 = vmatpush1.xpose.msra.mxu0 0.0
        %1258 = vmatprep.subr.mxu0 0.0
        %1259 = vmatpush1.xpose.msra.mxu0 0.0
        %1260 = vmatprep.subr.mxu0 0.0
        %1261 = vmatpush1.xpose.msra.mxu0 0.0
        %1262 = vmatprep.subr.mxu0 0.0
        %1263 = vmatpush1.xpose.msra.mxu0 0.0
        %1264 = vmatprep.subr.mxu0 0.0
        %1265 = vmatpush1.xpose.msra.mxu0 0.0
        %1266 = vmatprep.subr.mxu0 0.0
        %1267 = vmatpush1.xpose.msra.mxu0 0.0
        %1268 = vmatprep.subr.mxu0 0.0
        %1269 = vmatpush1.xpose.msra.mxu0 0.0
        %1270 = vmatprep.subr.mxu0 0.0
        %1271 = vmatpush1.xpose.msra.mxu0 0.0
        %1272 = vmatprep.subr.mxu0 0.0
        %1273 = vmatpush1.xpose.msra.mxu0 0.0
        %1274 = vmatprep.subr.mxu0 0.0
        %1275 = vmatpush1.xpose.msra.mxu0 0.0
        %1276 = vmatprep.subr.mxu0 0.0
        %1277 = vmatpush1.xpose.msra.mxu0 0.0
        %1278 = vmatprep.subr.mxu0 0.0
        %1279 = vmatpush1.xpose.msra.mxu0 0.0
        %1280 = vmatprep.mubr.f32.mxu0 0.0
        %1281 = vmatmul.mubr.f32.gmra.mrb[0].mxu0 %v1212
        %v1282 = vpop.f32.mrb[0].mxu0
        %v1283 = vadd.f32 0.0, %v1282
        %v1284 = vpop.f32.mrb[0].mxu0
        %1285 = vdwg.mxu0
        %v1287 = vunpack.c.l.s4 1983009808
        %v1288 = vunpack.c.0.s8 %v1287
        %v1289 = vlaneseq
        %v1290 = vshrl.u32 %v1289, 7
        %v1291 = vsub.s32 %v1288, %v1290
        %v1292 = vrot.slane %v1135, %v1291
        %1293 = vrot.lane.b32.xlu0 %v1292, 96
        %v1294 = vpop.permute.xlu0 %1293
        %v1295 = vsel %vm1211, %v1135, 0
        %v1297 = vsel %vm1211, %v1294, 0
        %1299 = vmatprep.subr.mxu0 0.0
        %1300 = vmatpush1.xpose.msra.mxu0 %v1297
        %1301 = vmatprep.subr.mxu0 0.0
        %1302 = vmatpush1.xpose.msra.mxu0 0.0
        %1303 = vmatprep.subr.mxu0 0.0
        %1304 = vmatpush1.xpose.msra.mxu0 0.0
        %1305 = vmatprep.subr.mxu0 0.0
        %1306 = vmatpush1.xpose.msra.mxu0 0.0
        %1307 = vmatprep.subr.mxu0 0.0
        %1308 = vmatpush1.xpose.msra.mxu0 0.0
        %1309 = vmatprep.subr.mxu0 0.0
        %1310 = vmatpush1.xpose.msra.mxu0 0.0
        %1311 = vmatprep.subr.mxu0 0.0
        %1312 = vmatpush1.xpose.msra.mxu0 0.0
        %1313 = vmatprep.subr.mxu0 0.0
        %1314 = vmatpush1.xpose.msra.mxu0 0.0
        %1315 = vmatprep.subr.mxu0 0.0
        %1316 = vmatpush1.xpose.msra.mxu0 0.0
        %1317 = vmatprep.subr.mxu0 0.0
        %1318 = vmatpush1.xpose.msra.mxu0 0.0
        %1319 = vmatprep.subr.mxu0 0.0
        %1320 = vmatpush1.xpose.msra.mxu0 0.0
        %1321 = vmatprep.subr.mxu0 0.0
        %1322 = vmatpush1.xpose.msra.mxu0 0.0
        %1323 = vmatprep.subr.mxu0 0.0
        %1324 = vmatpush1.xpose.msra.mxu0 0.0
        %1325 = vmatprep.subr.mxu0 0.0
        %1326 = vmatpush1.xpose.msra.mxu0 0.0
        %1327 = vmatprep.subr.mxu0 0.0
        %1328 = vmatpush1.xpose.msra.mxu0 0.0
        %1329 = vmatprep.subr.mxu0 0.0
        %1330 = vmatpush1.xpose.msra.mxu0 0.0
        %1331 = vmatprep.subr.mxu0 0.0
        %1332 = vmatpush1.xpose.msra.mxu0 0.0
        %1333 = vmatprep.subr.mxu0 0.0
        %1334 = vmatpush1.xpose.msra.mxu0 0.0
        %1335 = vmatprep.subr.mxu0 0.0
        %1336 = vmatpush1.xpose.msra.mxu0 0.0
        %1337 = vmatprep.subr.mxu0 0.0
        %1338 = vmatpush1.xpose.msra.mxu0 0.0
        %1339 = vmatprep.subr.mxu0 0.0
        %1340 = vmatpush1.xpose.msra.mxu0 0.0
        %1341 = vmatprep.subr.mxu0 0.0
        %1342 = vmatpush1.xpose.msra.mxu0 0.0
        %1343 = vmatprep.subr.mxu0 0.0
        %1344 = vmatpush1.xpose.msra.mxu0 0.0
        %1345 = vmatprep.subr.mxu0 0.0
        %1346 = vmatpush1.xpose.msra.mxu0 0.0
        %1347 = vmatprep.subr.mxu0 0.0
        %1348 = vmatpush1.xpose.msra.mxu0 0.0
        %1349 = vmatprep.subr.mxu0 0.0
        %1350 = vmatpush1.xpose.msra.mxu0 0.0
        %1351 = vmatprep.subr.mxu0 0.0
        %1352 = vmatpush1.xpose.msra.mxu0 0.0
        %1353 = vmatprep.subr.mxu0 0.0
        %1354 = vmatpush1.xpose.msra.mxu0 0.0
        %1355 = vmatprep.subr.mxu0 0.0
        %1356 = vmatpush1.xpose.msra.mxu0 0.0
        %1357 = vmatprep.subr.mxu0 0.0
        %1358 = vmatpush1.xpose.msra.mxu0 0.0
        %1359 = vmatprep.subr.mxu0 0.0
        %1360 = vmatpush1.xpose.msra.mxu0 0.0
        %1361 = vmatprep.subr.mxu0 0.0
        %1362 = vmatpush1.xpose.msra.mxu0 0.0
        %1363 = vmatprep.mubr.f32.mxu0 0.0
        %1364 = vmatmul.mubr.f32.gmra.mrb[0].mxu0 %v1295
        %v1365 = vpop.f32.mrb[0].mxu0
        %v1366 = vadd.f32 0.0, %v1365
        %v1367 = vpop.f32.mrb[0].mxu0
        %1368 = vdwg.mxu0
        %v1370 = vunpack.c.l.s4 1983009808
        %v1371 = vunpack.c.0.s8 %v1370
        %v1372 = vlaneseq
        %v1373 = vshrl.u32 %v1372, 7
        %v1374 = vsub.s32 %v1371, %v1373
        %v1375 = vrot.slane %v1134, %v1374
        %1376 = vrot.lane.b32.xlu0 %v1375, 96
        %v1377 = vpop.permute.xlu0 %1376
        %v1378 = vsel %vm1211, %v1134, 0
        %v1380 = vsel %vm1211, %v1377, 0
        %1382 = vmatprep.subr.mxu0 0.0
        %1383 = vmatpush1.xpose.msra.mxu0 %v1380
        %1384 = vmatprep.subr.mxu0 0.0
        %1385 = vmatpush1.xpose.msra.mxu0 0.0
        %1386 = vmatprep.subr.mxu0 0.0
        %1387 = vmatpush1.xpose.msra.mxu0 0.0
        %1388 = vmatprep.subr.mxu0 0.0
        %1389 = vmatpush1.xpose.msra.mxu0 0.0
        %1390 = vmatprep.subr.mxu0 0.0
        %1391 = vmatpush1.xpose.msra.mxu0 0.0
        %1392 = vmatprep.subr.mxu0 0.0
        %1393 = vmatpush1.xpose.msra.mxu0 0.0
        %1394 = vmatprep.subr.mxu0 0.0
        %1395 = vmatpush1.xpose.msra.mxu0 0.0
        %1396 = vmatprep.subr.mxu0 0.0
        %1397 = vmatpush1.xpose.msra.mxu0 0.0
        %1398 = vmatprep.subr.mxu0 0.0
        %1399 = vmatpush1.xpose.msra.mxu0 0.0
        %1400 = vmatprep.subr.mxu0 0.0
        %1401 = vmatpush1.xpose.msra.mxu0 0.0
        %1402 = vmatprep.subr.mxu0 0.0
        %1403 = vmatpush1.xpose.msra.mxu0 0.0
        %1404 = vmatprep.subr.mxu0 0.0
        %1405 = vmatpush1.xpose.msra.mxu0 0.0
        %1406 = vmatprep.subr.mxu0 0.0
        %1407 = vmatpush1.xpose.msra.mxu0 0.0
        %1408 = vmatprep.subr.mxu0 0.0
        %1409 = vmatpush1.xpose.msra.mxu0 0.0
        %1410 = vmatprep.subr.mxu0 0.0
        %1411 = vmatpush1.xpose.msra.mxu0 0.0
        %1412 = vmatprep.subr.mxu0 0.0
        %1413 = vmatpush1.xpose.msra.mxu0 0.0
        %1414 = vmatprep.subr.mxu0 0.0
        %1415 = vmatpush1.xpose.msra.mxu0 0.0
        %1416 = vmatprep.subr.mxu0 0.0
        %1417 = vmatpush1.xpose.msra.mxu0 0.0
        %1418 = vmatprep.subr.mxu0 0.0
        %1419 = vmatpush1.xpose.msra.mxu0 0.0
        %1420 = vmatprep.subr.mxu0 0.0
        %1421 = vmatpush1.xpose.msra.mxu0 0.0
        %1422 = vmatprep.subr.mxu0 0.0
        %1423 = vmatpush1.xpose.msra.mxu0 0.0
        %1424 = vmatprep.subr.mxu0 0.0
        %1425 = vmatpush1.xpose.msra.mxu0 0.0
        %1426 = vmatprep.subr.mxu0 0.0
        %1427 = vmatpush1.xpose.msra.mxu0 0.0
        %1428 = vmatprep.subr.mxu0 0.0
        %1429 = vmatpush1.xpose.msra.mxu0 0.0
        %1430 = vmatprep.subr.mxu0 0.0
        %1431 = vmatpush1.xpose.msra.mxu0 0.0
        %1432 = vmatprep.subr.mxu0 0.0
        %1433 = vmatpush1.xpose.msra.mxu0 0.0
        %1434 = vmatprep.subr.mxu0 0.0
        %1435 = vmatpush1.xpose.msra.mxu0 0.0
        %1436 = vmatprep.subr.mxu0 0.0
        %1437 = vmatpush1.xpose.msra.mxu0 0.0
        %1438 = vmatprep.subr.mxu0 0.0
        %1439 = vmatpush1.xpose.msra.mxu0 0.0
        %1440 = vmatprep.subr.mxu0 0.0
        %1441 = vmatpush1.xpose.msra.mxu0 0.0
        %1442 = vmatprep.subr.mxu0 0.0
        %1443 = vmatpush1.xpose.msra.mxu0 0.0
        %1444 = vmatprep.subr.mxu0 0.0
        %1445 = vmatpush1.xpose.msra.mxu0 0.0
        %1446 = vmatprep.mubr.f32.mxu0 0.0
        %1447 = vmatmul.mubr.f32.gmra.mrb[0].mxu0 %v1378
        %v1448 = vpop.f32.mrb[0].mxu0
        %v1449 = vadd.f32 0.0, %v1448
        %v1450 = vpop.f32.mrb[0].mxu0
        %1451 = vdwg.mxu0
        %v1453 = vunpack.c.l.s4 1983009808
        %v1454 = vunpack.c.0.s8 %v1453
        %v1455 = vlaneseq
        %v1456 = vshrl.u32 %v1455, 7
        %v1457 = vsub.s32 %v1454, %v1456
        %v1458 = vrot.slane %v1136, %v1457
        %1459 = vrot.lane.b32.xlu0 %v1458, 96
        %v1460 = vpop.permute.xlu0 %1459
        %v1461 = vsel %vm1211, %v1136, 0
        %v1463 = vsel %vm1211, %v1460, 0
        %1465 = vmatprep.subr.mxu0 0.0
        %1466 = vmatpush1.xpose.msra.mxu0 %v1463
        %1467 = vmatprep.subr.mxu0 0.0
        %1468 = vmatpush1.xpose.msra.mxu0 0.0
        %1469 = vmatprep.subr.mxu0 0.0
        %1470 = vmatpush1.xpose.msra.mxu0 0.0
        %1471 = vmatprep.subr.mxu0 0.0
        %1472 = vmatpush1.xpose.msra.mxu0 0.0
        %1473 = vmatprep.subr.mxu0 0.0
        %1474 = vmatpush1.xpose.msra.mxu0 0.0
        %1475 = vmatprep.subr.mxu0 0.0
        %1476 = vmatpush1.xpose.msra.mxu0 0.0
        %1477 = vmatprep.subr.mxu0 0.0
        %1478 = vmatpush1.xpose.msra.mxu0 0.0
        %1479 = vmatprep.subr.mxu0 0.0
        %1480 = vmatpush1.xpose.msra.mxu0 0.0
        %1481 = vmatprep.subr.mxu0 0.0
        %1482 = vmatpush1.xpose.msra.mxu0 0.0
        %1483 = vmatprep.subr.mxu0 0.0
        %1484 = vmatpush1.xpose.msra.mxu0 0.0
        %1485 = vmatprep.subr.mxu0 0.0
        %1486 = vmatpush1.xpose.msra.mxu0 0.0
        %1487 = vmatprep.subr.mxu0 0.0
        %1488 = vmatpush1.xpose.msra.mxu0 0.0
        %1489 = vmatprep.subr.mxu0 0.0
        %1490 = vmatpush1.xpose.msra.mxu0 0.0
        %1491 = vmatprep.subr.mxu0 0.0
        %1492 = vmatpush1.xpose.msra.mxu0 0.0
        %1493 = vmatprep.subr.mxu0 0.0
        %1494 = vmatpush1.xpose.msra.mxu0 0.0
        %1495 = vmatprep.subr.mxu0 0.0
        %1496 = vmatpush1.xpose.msra.mxu0 0.0
        %1497 = vmatprep.subr.mxu0 0.0
        %1498 = vmatpush1.xpose.msra.mxu0 0.0
        %1499 = vmatprep.subr.mxu0 0.0
        %1500 = vmatpush1.xpose.msra.mxu0 0.0
        %1501 = vmatprep.subr.mxu0 0.0
        %1502 = vmatpush1.xpose.msra.mxu0 0.0
        %1503 = vmatprep.subr.mxu0 0.0
        %1504 = vmatpush1.xpose.msra.mxu0 0.0
        %1505 = vmatprep.subr.mxu0 0.0
        %1506 = vmatpush1.xpose.msra.mxu0 0.0
        %1507 = vmatprep.subr.mxu0 0.0
        %1508 = vmatpush1.xpose.msra.mxu0 0.0
        %1509 = vmatprep.subr.mxu0 0.0
        %1510 = vmatpush1.xpose.msra.mxu0 0.0
        %1511 = vmatprep.subr.mxu0 0.0
        %1512 = vmatpush1.xpose.msra.mxu0 0.0
        %1513 = vmatprep.subr.mxu0 0.0
        %1514 = vmatpush1.xpose.msra.mxu0 0.0
        %1515 = vmatprep.subr.mxu0 0.0
        %1516 = vmatpush1.xpose.msra.mxu0 0.0
        %1517 = vmatprep.subr.mxu0 0.0
        %1518 = vmatpush1.xpose.msra.mxu0 0.0
        %1519 = vmatprep.subr.mxu0 0.0
        %1520 = vmatpush1.xpose.msra.mxu0 0.0
        %1521 = vmatprep.subr.mxu0 0.0
        %1522 = vmatpush1.xpose.msra.mxu0 0.0
        %1523 = vmatprep.subr.mxu0 0.0
        %1524 = vmatpush1.xpose.msra.mxu0 0.0
        %1525 = vmatprep.subr.mxu0 0.0
        %1526 = vmatpush1.xpose.msra.mxu0 0.0
        %1527 = vmatprep.subr.mxu0 0.0
        %1528 = vmatpush1.xpose.msra.mxu0 0.0
        %1529 = vmatprep.mubr.f32.mxu0 0.0
        %1530 = vmatmul.mubr.f32.gmra.mrb[0].mxu0 %v1461
        %v1531 = vpop.f32.mrb[0].mxu0
        %v1532 = vadd.f32 0.0, %v1531
        %v1533 = vpop.f32.mrb[0].mxu0
        %1534 = vdwg.mxu0
        %v1536 = vunpack.c.l.s4 1983009808
        %v1537 = vunpack.c.0.s8 %v1536
        %v1538 = vlaneseq
        %v1539 = vshrl.u32 %v1538, 7
        %v1540 = vsub.s32 %v1537, %v1539
        %v1541 = vrot.slane %v1144, %v1540
        %1542 = vrot.lane.b32.xlu0 %v1541, 96
        %v1543 = vpop.permute.xlu0 %1542
        %v1544 = vsel %vm1211, %v1144, 0
        %v1546 = vsel %vm1211, %v1543, 0
        %1548 = vmatprep.subr.mxu0 0.0
        %1549 = vmatpush1.xpose.msra.mxu0 %v1546
        %1550 = vmatprep.subr.mxu0 0.0
        %1551 = vmatpush1.xpose.msra.mxu0 0.0
        %1552 = vmatprep.subr.mxu0 0.0
        %1553 = vmatpush1.xpose.msra.mxu0 0.0
        %1554 = vmatprep.subr.mxu0 0.0
        %1555 = vmatpush1.xpose.msra.mxu0 0.0
        %1556 = vmatprep.subr.mxu0 0.0
        %1557 = vmatpush1.xpose.msra.mxu0 0.0
        %1558 = vmatprep.subr.mxu0 0.0
        %1559 = vmatpush1.xpose.msra.mxu0 0.0
        %1560 = vmatprep.subr.mxu0 0.0
        %1561 = vmatpush1.xpose.msra.mxu0 0.0
        %1562 = vmatprep.subr.mxu0 0.0
        %1563 = vmatpush1.xpose.msra.mxu0 0.0
        %1564 = vmatprep.subr.mxu0 0.0
        %1565 = vmatpush1.xpose.msra.mxu0 0.0
        %1566 = vmatprep.subr.mxu0 0.0
        %1567 = vmatpush1.xpose.msra.mxu0 0.0
        %1568 = vmatprep.subr.mxu0 0.0
        %1569 = vmatpush1.xpose.msra.mxu0 0.0
        %1570 = vmatprep.subr.mxu0 0.0
        %1571 = vmatpush1.xpose.msra.mxu0 0.0
        %1572 = vmatprep.subr.mxu0 0.0
        %1573 = vmatpush1.xpose.msra.mxu0 0.0
        %1574 = vmatprep.subr.mxu0 0.0
        %1575 = vmatpush1.xpose.msra.mxu0 0.0
        %1576 = vmatprep.subr.mxu0 0.0
        %1577 = vmatpush1.xpose.msra.mxu0 0.0
        %1578 = vmatprep.subr.mxu0 0.0
        %1579 = vmatpush1.xpose.msra.mxu0 0.0
        %1580 = vmatprep.subr.mxu0 0.0
        %1581 = vmatpush1.xpose.msra.mxu0 0.0
        %1582 = vmatprep.subr.mxu0 0.0
        %1583 = vmatpush1.xpose.msra.mxu0 0.0
        %1584 = vmatprep.subr.mxu0 0.0
        %1585 = vmatpush1.xpose.msra.mxu0 0.0
        %1586 = vmatprep.subr.mxu0 0.0
        %1587 = vmatpush1.xpose.msra.mxu0 0.0
        %1588 = vmatprep.subr.mxu0 0.0
        %1589 = vmatpush1.xpose.msra.mxu0 0.0
        %1590 = vmatprep.subr.mxu0 0.0
        %1591 = vmatpush1.xpose.msra.mxu0 0.0
        %1592 = vmatprep.subr.mxu0 0.0
        %1593 = vmatpush1.xpose.msra.mxu0 0.0
        %1594 = vmatprep.subr.mxu0 0.0
        %1595 = vmatpush1.xpose.msra.mxu0 0.0
        %1596 = vmatprep.subr.mxu0 0.0
        %1597 = vmatpush1.xpose.msra.mxu0 0.0
        %1598 = vmatprep.subr.mxu0 0.0
        %1599 = vmatpush1.xpose.msra.mxu0 0.0
        %1600 = vmatprep.subr.mxu0 0.0
        %1601 = vmatpush1.xpose.msra.mxu0 0.0
        %1602 = vmatprep.subr.mxu0 0.0
        %1603 = vmatpush1.xpose.msra.mxu0 0.0
        %1604 = vmatprep.subr.mxu0 0.0
        %1605 = vmatpush1.xpose.msra.mxu0 0.0
        %1606 = vmatprep.subr.mxu0 0.0
        %1607 = vmatpush1.xpose.msra.mxu0 0.0
        %1608 = vmatprep.subr.mxu0 0.0
        %1609 = vmatpush1.xpose.msra.mxu0 0.0
        %1610 = vmatprep.subr.mxu0 0.0
        %1611 = vmatpush1.xpose.msra.mxu0 0.0
        %1612 = vmatprep.mubr.f32.mxu0 0.0
        %1613 = vmatmul.mubr.f32.gmra.mrb[0].mxu0 %v1544
        %v1614 = vpop.f32.mrb[0].mxu0
        %v1615 = vadd.f32 0.0, %v1614
        %v1616 = vpop.f32.mrb[0].mxu0
        %1617 = vdwg.mxu0
        %v1619 = vunpack.c.l.s4 1983009808
        %v1620 = vunpack.c.0.s8 %v1619
        %v1621 = vlaneseq
        %v1622 = vshrl.u32 %v1621, 7
        %v1623 = vsub.s32 %v1620, %v1622
        %v1624 = vrot.slane %v1152, %v1623
        %1625 = vrot.lane.b32.xlu0 %v1624, 96
        %v1626 = vpop.permute.xlu0 %1625
        %v1627 = vsel %vm1211, %v1152, 0
        %v1629 = vsel %vm1211, %v1626, 0
        %1631 = vmatprep.subr.mxu0 0.0
        %1632 = vmatpush1.xpose.msra.mxu0 %v1629
        %1633 = vmatprep.subr.mxu0 0.0
        %1634 = vmatpush1.xpose.msra.mxu0 0.0
        %1635 = vmatprep.subr.mxu0 0.0
        %1636 = vmatpush1.xpose.msra.mxu0 0.0
        %1637 = vmatprep.subr.mxu0 0.0
        %1638 = vmatpush1.xpose.msra.mxu0 0.0
        %1639 = vmatprep.subr.mxu0 0.0
        %1640 = vmatpush1.xpose.msra.mxu0 0.0
        %1641 = vmatprep.subr.mxu0 0.0
        %1642 = vmatpush1.xpose.msra.mxu0 0.0
        %1643 = vmatprep.subr.mxu0 0.0
        %1644 = vmatpush1.xpose.msra.mxu0 0.0
        %1645 = vmatprep.subr.mxu0 0.0
        %1646 = vmatpush1.xpose.msra.mxu0 0.0
        %1647 = vmatprep.subr.mxu0 0.0
        %1648 = vmatpush1.xpose.msra.mxu0 0.0
        %1649 = vmatprep.subr.mxu0 0.0
        %1650 = vmatpush1.xpose.msra.mxu0 0.0
        %1651 = vmatprep.subr.mxu0 0.0
        %1652 = vmatpush1.xpose.msra.mxu0 0.0
        %1653 = vmatprep.subr.mxu0 0.0
        %1654 = vmatpush1.xpose.msra.mxu0 0.0
        %1655 = vmatprep.subr.mxu0 0.0
        %1656 = vmatpush1.xpose.msra.mxu0 0.0
        %1657 = vmatprep.subr.mxu0 0.0
        %1658 = vmatpush1.xpose.msra.mxu0 0.0
        %1659 = vmatprep.subr.mxu0 0.0
        %1660 = vmatpush1.xpose.msra.mxu0 0.0
        %1661 = vmatprep.subr.mxu0 0.0
        %1662 = vmatpush1.xpose.msra.mxu0 0.0
        %1663 = vmatprep.subr.mxu0 0.0
        %1664 = vmatpush1.xpose.msra.mxu0 0.0
        %1665 = vmatprep.subr.mxu0 0.0
        %1666 = vmatpush1.xpose.msra.mxu0 0.0
        %1667 = vmatprep.subr.mxu0 0.0
        %1668 = vmatpush1.xpose.msra.mxu0 0.0
        %1669 = vmatprep.subr.mxu0 0.0
        %1670 = vmatpush1.xpose.msra.mxu0 0.0
        %1671 = vmatprep.subr.mxu0 0.0
        %1672 = vmatpush1.xpose.msra.mxu0 0.0
        %1673 = vmatprep.subr.mxu0 0.0
        %1674 = vmatpush1.xpose.msra.mxu0 0.0
        %1675 = vmatprep.subr.mxu0 0.0
        %1676 = vmatpush1.xpose.msra.mxu0 0.0
        %1677 = vmatprep.subr.mxu0 0.0
        %1678 = vmatpush1.xpose.msra.mxu0 0.0
        %1679 = vmatprep.subr.mxu0 0.0
        %1680 = vmatpush1.xpose.msra.mxu0 0.0
        %1681 = vmatprep.subr.mxu0 0.0
        %1682 = vmatpush1.xpose.msra.mxu0 0.0
        %1683 = vmatprep.subr.mxu0 0.0
        %1684 = vmatpush1.xpose.msra.mxu0 0.0
        %1685 = vmatprep.subr.mxu0 0.0
        %1686 = vmatpush1.xpose.msra.mxu0 0.0
        %1687 = vmatprep.subr.mxu0 0.0
        %1688 = vmatpush1.xpose.msra.mxu0 0.0
        %1689 = vmatprep.subr.mxu0 0.0
        %1690 = vmatpush1.xpose.msra.mxu0 0.0
        %1691 = vmatprep.subr.mxu0 0.0
        %1692 = vmatpush1.xpose.msra.mxu0 0.0
        %1693 = vmatprep.subr.mxu0 0.0
        %1694 = vmatpush1.xpose.msra.mxu0 0.0
        %1695 = vmatprep.mubr.f32.mxu0 0.0
        %1696 = vmatmul.mubr.f32.gmra.mrb[0].mxu0 %v1627
        %v1697 = vpop.f32.mrb[0].mxu0
        %v1698 = vadd.f32 0.0, %v1697
        %v1699 = vpop.f32.mrb[0].mxu0
        %1700 = vdwg.mxu0
        %v1702 = vunpack.c.l.s4 1983009808
        %v1703 = vunpack.c.0.s8 %v1702
        %v1704 = vlaneseq
        %v1705 = vshrl.u32 %v1704, 7
        %v1706 = vsub.s32 %v1703, %v1705
        %v1707 = vrot.slane %v1151, %v1706
        %1708 = vrot.lane.b32.xlu0 %v1707, 96
        %v1709 = vpop.permute.xlu0 %1708
        %v1710 = vsel %vm1211, %v1151, 0
        %v1712 = vsel %vm1211, %v1709, 0
        %1714 = vmatprep.subr.mxu0 0.0
        %1715 = vmatpush1.xpose.msra.mxu0 %v1712
        %1716 = vmatprep.subr.mxu0 0.0
        %1717 = vmatpush1.xpose.msra.mxu0 0.0
        %1718 = vmatprep.subr.mxu0 0.0
        %1719 = vmatpush1.xpose.msra.mxu0 0.0
        %1720 = vmatprep.subr.mxu0 0.0
        %1721 = vmatpush1.xpose.msra.mxu0 0.0
        %1722 = vmatprep.subr.mxu0 0.0
        %1723 = vmatpush1.xpose.msra.mxu0 0.0
        %1724 = vmatprep.subr.mxu0 0.0
        %1725 = vmatpush1.xpose.msra.mxu0 0.0
        %1726 = vmatprep.subr.mxu0 0.0
        %1727 = vmatpush1.xpose.msra.mxu0 0.0
        %1728 = vmatprep.subr.mxu0 0.0
        %1729 = vmatpush1.xpose.msra.mxu0 0.0
        %1730 = vmatprep.subr.mxu0 0.0
        %1731 = vmatpush1.xpose.msra.mxu0 0.0
        %1732 = vmatprep.subr.mxu0 0.0
        %1733 = vmatpush1.xpose.msra.mxu0 0.0
        %1734 = vmatprep.subr.mxu0 0.0
        %1735 = vmatpush1.xpose.msra.mxu0 0.0
        %1736 = vmatprep.subr.mxu0 0.0
        %1737 = vmatpush1.xpose.msra.mxu0 0.0
        %1738 = vmatprep.subr.mxu0 0.0
        %1739 = vmatpush1.xpose.msra.mxu0 0.0
        %1740 = vmatprep.subr.mxu0 0.0
        %1741 = vmatpush1.xpose.msra.mxu0 0.0
        %1742 = vmatprep.subr.mxu0 0.0
        %1743 = vmatpush1.xpose.msra.mxu0 0.0
        %1744 = vmatprep.subr.mxu0 0.0
        %1745 = vmatpush1.xpose.msra.mxu0 0.0
        %1746 = vmatprep.subr.mxu0 0.0
        %1747 = vmatpush1.xpose.msra.mxu0 0.0
        %1748 = vmatprep.subr.mxu0 0.0
        %1749 = vmatpush1.xpose.msra.mxu0 0.0
        %1750 = vmatprep.subr.mxu0 0.0
        %1751 = vmatpush1.xpose.msra.mxu0 0.0
        %1752 = vmatprep.subr.mxu0 0.0
        %1753 = vmatpush1.xpose.msra.mxu0 0.0
        %1754 = vmatprep.subr.mxu0 0.0
        %1755 = vmatpush1.xpose.msra.mxu0 0.0
        %1756 = vmatprep.subr.mxu0 0.0
        %1757 = vmatpush1.xpose.msra.mxu0 0.0
        %1758 = vmatprep.subr.mxu0 0.0
        %1759 = vmatpush1.xpose.msra.mxu0 0.0
        %1760 = vmatprep.subr.mxu0 0.0
        %1761 = vmatpush1.xpose.msra.mxu0 0.0
        %1762 = vmatprep.subr.mxu0 0.0
        %1763 = vmatpush1.xpose.msra.mxu0 0.0
        %1764 = vmatprep.subr.mxu0 0.0
        %1765 = vmatpush1.xpose.msra.mxu0 0.0
        %1766 = vmatprep.subr.mxu0 0.0
        %1767 = vmatpush1.xpose.msra.mxu0 0.0
        %1768 = vmatprep.subr.mxu0 0.0
        %1769 = vmatpush1.xpose.msra.mxu0 0.0
        %1770 = vmatprep.subr.mxu0 0.0
        %1771 = vmatpush1.xpose.msra.mxu0 0.0
        %1772 = vmatprep.subr.mxu0 0.0
        %1773 = vmatpush1.xpose.msra.mxu0 0.0
        %1774 = vmatprep.subr.mxu0 0.0
        %1775 = vmatpush1.xpose.msra.mxu0 0.0
        %1776 = vmatprep.subr.mxu0 0.0
        %1777 = vmatpush1.xpose.msra.mxu0 0.0
        %1778 = vmatprep.mubr.f32.mxu0 0.0
        %1779 = vmatmul.mubr.f32.gmra.mrb[0].mxu0 %v1710
        %v1780 = vpop.f32.mrb[0].mxu0
        %v1781 = vadd.f32 0.0, %v1780
        %v1782 = vpop.f32.mrb[0].mxu0
        %1783 = vdwg.mxu0
        %v1785 = vunpack.c.l.s4 1983009808
        %v1786 = vunpack.c.0.s8 %v1785
        %v1787 = vlaneseq
        %v1788 = vshrl.u32 %v1787, 7
        %v1789 = vsub.s32 %v1786, %v1788
        %v1790 = vrot.slane %v1153, %v1789
        %1791 = vrot.lane.b32.xlu0 %v1790, 96
        %v1792 = vpop.permute.xlu0 %1791
        %v1793 = vsel %vm1211, %v1153, 0
        %v1795 = vsel %vm1211, %v1792, 0
        %1797 = vmatprep.subr.mxu0 0.0
        %1798 = vmatpush1.xpose.msra.mxu0 %v1795
        %1799 = vmatprep.subr.mxu0 0.0
        %1800 = vmatpush1.xpose.msra.mxu0 0.0
        %1801 = vmatprep.subr.mxu0 0.0
        %1802 = vmatpush1.xpose.msra.mxu0 0.0
        %1803 = vmatprep.subr.mxu0 0.0
        %1804 = vmatpush1.xpose.msra.mxu0 0.0
        %1805 = vmatprep.subr.mxu0 0.0
        %1806 = vmatpush1.xpose.msra.mxu0 0.0
        %1807 = vmatprep.subr.mxu0 0.0
        %1808 = vmatpush1.xpose.msra.mxu0 0.0
        %1809 = vmatprep.subr.mxu0 0.0
        %1810 = vmatpush1.xpose.msra.mxu0 0.0
        %1811 = vmatprep.subr.mxu0 0.0
        %1812 = vmatpush1.xpose.msra.mxu0 0.0
        %1813 = vmatprep.subr.mxu0 0.0
        %1814 = vmatpush1.xpose.msra.mxu0 0.0
        %1815 = vmatprep.subr.mxu0 0.0
        %1816 = vmatpush1.xpose.msra.mxu0 0.0
        %1817 = vmatprep.subr.mxu0 0.0
        %1818 = vmatpush1.xpose.msra.mxu0 0.0
        %1819 = vmatprep.subr.mxu0 0.0
        %1820 = vmatpush1.xpose.msra.mxu0 0.0
        %1821 = vmatprep.subr.mxu0 0.0
        %1822 = vmatpush1.xpose.msra.mxu0 0.0
        %1823 = vmatprep.subr.mxu0 0.0
        %1824 = vmatpush1.xpose.msra.mxu0 0.0
        %1825 = vmatprep.subr.mxu0 0.0
        %1826 = vmatpush1.xpose.msra.mxu0 0.0
        %1827 = vmatprep.subr.mxu0 0.0
        %1828 = vmatpush1.xpose.msra.mxu0 0.0
        %1829 = vmatprep.subr.mxu0 0.0
        %1830 = vmatpush1.xpose.msra.mxu0 0.0
        %1831 = vmatprep.subr.mxu0 0.0
        %1832 = vmatpush1.xpose.msra.mxu0 0.0
        %1833 = vmatprep.subr.mxu0 0.0
        %1834 = vmatpush1.xpose.msra.mxu0 0.0
        %1835 = vmatprep.subr.mxu0 0.0
        %1836 = vmatpush1.xpose.msra.mxu0 0.0
        %1837 = vmatprep.subr.mxu0 0.0
        %1838 = vmatpush1.xpose.msra.mxu0 0.0
        %1839 = vmatprep.subr.mxu0 0.0
        %1840 = vmatpush1.xpose.msra.mxu0 0.0
        %1841 = vmatprep.subr.mxu0 0.0
        %1842 = vmatpush1.xpose.msra.mxu0 0.0
        %1843 = vmatprep.subr.mxu0 0.0
        %1844 = vmatpush1.xpose.msra.mxu0 0.0
        %1845 = vmatprep.subr.mxu0 0.0
        %1846 = vmatpush1.xpose.msra.mxu0 0.0
        %1847 = vmatprep.subr.mxu0 0.0
        %1848 = vmatpush1.xpose.msra.mxu0 0.0
        %1849 = vmatprep.subr.mxu0 0.0
        %1850 = vmatpush1.xpose.msra.mxu0 0.0
        %1851 = vmatprep.subr.mxu0 0.0
        %1852 = vmatpush1.xpose.msra.mxu0 0.0
        %1853 = vmatprep.subr.mxu0 0.0
        %1854 = vmatpush1.xpose.msra.mxu0 0.0
        %1855 = vmatprep.subr.mxu0 0.0
        %1856 = vmatpush1.xpose.msra.mxu0 0.0
        %1857 = vmatprep.subr.mxu0 0.0
        %1858 = vmatpush1.xpose.msra.mxu0 0.0
        %1859 = vmatprep.subr.mxu0 0.0
        %1860 = vmatpush1.xpose.msra.mxu0 0.0
        %1861 = vmatprep.mubr.f32.mxu0 0.0
        %1862 = vmatmul.mubr.f32.gmra.mrb[0].mxu0 %v1793
        %v1863 = vpop.f32.mrb[0].mxu0
        %v1864 = vadd.f32 0.0, %v1863
        %v1865 = vpop.f32.mrb[0].mxu0
        %1866 = vdwg.mxu0
        %v1868 = vunpack.c.l.s4 1983009808
        %v1869 = vunpack.c.0.s8 %v1868
        %v1870 = vlaneseq
        %v1871 = vshrl.u32 %v1870, 7
        %v1872 = vsub.s32 %v1869, %v1871
        %v1873 = vrot.slane %v1155, %v1872
        %1874 = vrot.lane.b32.xlu0 %v1873, 96
        %v1875 = vpop.permute.xlu0 %1874
        %v1876 = vsel %vm1211, %v1155, 0
        %v1878 = vsel %vm1211, %v1875, 0
        %1880 = vmatprep.subr.mxu0 0.0
        %1881 = vmatpush1.xpose.msra.mxu0 %v1878
        %1882 = vmatprep.subr.mxu0 0.0
        %1883 = vmatpush1.xpose.msra.mxu0 0.0
        %1884 = vmatprep.subr.mxu0 0.0
        %1885 = vmatpush1.xpose.msra.mxu0 0.0
        %1886 = vmatprep.subr.mxu0 0.0
        %1887 = vmatpush1.xpose.msra.mxu0 0.0
        %1888 = vmatprep.subr.mxu0 0.0
        %1889 = vmatpush1.xpose.msra.mxu0 0.0
        %1890 = vmatprep.subr.mxu0 0.0
        %1891 = vmatpush1.xpose.msra.mxu0 0.0
        %1892 = vmatprep.subr.mxu0 0.0
        %1893 = vmatpush1.xpose.msra.mxu0 0.0
        %1894 = vmatprep.subr.mxu0 0.0
        %1895 = vmatpush1.xpose.msra.mxu0 0.0
        %1896 = vmatprep.subr.mxu0 0.0
        %1897 = vmatpush1.xpose.msra.mxu0 0.0
        %1898 = vmatprep.subr.mxu0 0.0
        %1899 = vmatpush1.xpose.msra.mxu0 0.0
        %1900 = vmatprep.subr.mxu0 0.0
        %1901 = vmatpush1.xpose.msra.mxu0 0.0
        %1902 = vmatprep.subr.mxu0 0.0
        %1903 = vmatpush1.xpose.msra.mxu0 0.0
        %1904 = vmatprep.subr.mxu0 0.0
        %1905 = vmatpush1.xpose.msra.mxu0 0.0
        %1906 = vmatprep.subr.mxu0 0.0
        %1907 = vmatpush1.xpose.msra.mxu0 0.0
        %1908 = vmatprep.subr.mxu0 0.0
        %1909 = vmatpush1.xpose.msra.mxu0 0.0
        %1910 = vmatprep.subr.mxu0 0.0
        %1911 = vmatpush1.xpose.msra.mxu0 0.0
        %1912 = vmatprep.subr.mxu0 0.0
        %1913 = vmatpush1.xpose.msra.mxu0 0.0
        %1914 = vmatprep.subr.mxu0 0.0
        %1915 = vmatpush1.xpose.msra.mxu0 0.0
        %1916 = vmatprep.subr.mxu0 0.0
        %1917 = vmatpush1.xpose.msra.mxu0 0.0
        %1918 = vmatprep.subr.mxu0 0.0
        %1919 = vmatpush1.xpose.msra.mxu0 0.0
        %1920 = vmatprep.subr.mxu0 0.0
        %1921 = vmatpush1.xpose.msra.mxu0 0.0
        %1922 = vmatprep.subr.mxu0 0.0
        %1923 = vmatpush1.xpose.msra.mxu0 0.0
        %1924 = vmatprep.subr.mxu0 0.0
        %1925 = vmatpush1.xpose.msra.mxu0 0.0
        %1926 = vmatprep.subr.mxu0 0.0
        %1927 = vmatpush1.xpose.msra.mxu0 0.0
        %1928 = vmatprep.subr.mxu0 0.0
        %1929 = vmatpush1.xpose.msra.mxu0 0.0
        %1930 = vmatprep.subr.mxu0 0.0
        %1931 = vmatpush1.xpose.msra.mxu0 0.0
        %1932 = vmatprep.subr.mxu0 0.0
        %1933 = vmatpush1.xpose.msra.mxu0 0.0
        %1934 = vmatprep.subr.mxu0 0.0
        %1935 = vmatpush1.xpose.msra.mxu0 0.0
        %1936 = vmatprep.subr.mxu0 0.0
        %1937 = vmatpush1.xpose.msra.mxu0 0.0
        %1938 = vmatprep.subr.mxu0 0.0
        %1939 = vmatpush1.xpose.msra.mxu0 0.0
        %1940 = vmatprep.subr.mxu0 0.0
        %1941 = vmatpush1.xpose.msra.mxu0 0.0
        %1942 = vmatprep.subr.mxu0 0.0
        %1943 = vmatpush1.xpose.msra.mxu0 0.0
        %1944 = vmatprep.mubr.f32.mxu0 0.0
        %1945 = vmatmul.mubr.f32.gmra.mrb[0].mxu0 %v1876
        %v1946 = vpop.f32.mrb[0].mxu0
        %v1947 = vadd.f32 0.0, %v1946
        %v1948 = vpop.f32.mrb[0].mxu0
        %1949 = vdwg.mxu0
        %v1951 = vunpack.c.l.s4 1983009808
        %v1952 = vunpack.c.0.s8 %v1951
        %v1953 = vlaneseq
        %v1954 = vshrl.u32 %v1953, 7
        %v1955 = vsub.s32 %v1952, %v1954
        %v1956 = vrot.slane %v1157, %v1955
        %1957 = vrot.lane.b32.xlu0 %v1956, 96
        %v1958 = vpop.permute.xlu0 %1957
        %v1959 = vsel %vm1211, %v1157, 0
        %v1961 = vsel %vm1211, %v1958, 0
        %1963 = vmatprep.subr.mxu0 0.0
        %1964 = vmatpush1.xpose.msra.mxu0 %v1961
        %1965 = vmatprep.subr.mxu0 0.0
        %1966 = vmatpush1.xpose.msra.mxu0 0.0
        %1967 = vmatprep.subr.mxu0 0.0
        %1968 = vmatpush1.xpose.msra.mxu0 0.0
        %1969 = vmatprep.subr.mxu0 0.0
        %1970 = vmatpush1.xpose.msra.mxu0 0.0
        %1971 = vmatprep.subr.mxu0 0.0
        %1972 = vmatpush1.xpose.msra.mxu0 0.0
        %1973 = vmatprep.subr.mxu0 0.0
        %1974 = vmatpush1.xpose.msra.mxu0 0.0
        %1975 = vmatprep.subr.mxu0 0.0
        %1976 = vmatpush1.xpose.msra.mxu0 0.0
        %1977 = vmatprep.subr.mxu0 0.0
        %1978 = vmatpush1.xpose.msra.mxu0 0.0
        %1979 = vmatprep.subr.mxu0 0.0
        %1980 = vmatpush1.xpose.msra.mxu0 0.0
        %1981 = vmatprep.subr.mxu0 0.0
        %1982 = vmatpush1.xpose.msra.mxu0 0.0
        %1983 = vmatprep.subr.mxu0 0.0
        %1984 = vmatpush1.xpose.msra.mxu0 0.0
        %1985 = vmatprep.subr.mxu0 0.0
        %1986 = vmatpush1.xpose.msra.mxu0 0.0
        %1987 = vmatprep.subr.mxu0 0.0
        %1988 = vmatpush1.xpose.msra.mxu0 0.0
        %1989 = vmatprep.subr.mxu0 0.0
        %1990 = vmatpush1.xpose.msra.mxu0 0.0
        %1991 = vmatprep.subr.mxu0 0.0
        %1992 = vmatpush1.xpose.msra.mxu0 0.0
        %1993 = vmatprep.subr.mxu0 0.0
        %1994 = vmatpush1.xpose.msra.mxu0 0.0
        %1995 = vmatprep.subr.mxu0 0.0
        %1996 = vmatpush1.xpose.msra.mxu0 0.0
        %1997 = vmatprep.subr.mxu0 0.0
        %1998 = vmatpush1.xpose.msra.mxu0 0.0
        %1999 = vmatprep.subr.mxu0 0.0
        %2000 = vmatpush1.xpose.msra.mxu0 0.0
        %2001 = vmatprep.subr.mxu0 0.0
        %2002 = vmatpush1.xpose.msra.mxu0 0.0
        %2003 = vmatprep.subr.mxu0 0.0
        %2004 = vmatpush1.xpose.msra.mxu0 0.0
        %2005 = vmatprep.subr.mxu0 0.0
        %2006 = vmatpush1.xpose.msra.mxu0 0.0
        %2007 = vmatprep.subr.mxu0 0.0
        %2008 = vmatpush1.xpose.msra.mxu0 0.0
        %2009 = vmatprep.subr.mxu0 0.0
        %2010 = vmatpush1.xpose.msra.mxu0 0.0
        %2011 = vmatprep.subr.mxu0 0.0
        %2012 = vmatpush1.xpose.msra.mxu0 0.0
        %2013 = vmatprep.subr.mxu0 0.0
        %2014 = vmatpush1.xpose.msra.mxu0 0.0
        %2015 = vmatprep.subr.mxu0 0.0
        %2016 = vmatpush1.xpose.msra.mxu0 0.0
        %2017 = vmatprep.subr.mxu0 0.0
        %2018 = vmatpush1.xpose.msra.mxu0 0.0
        %2019 = vmatprep.subr.mxu0 0.0
        %2020 = vmatpush1.xpose.msra.mxu0 0.0
        %2021 = vmatprep.subr.mxu0 0.0
        %2022 = vmatpush1.xpose.msra.mxu0 0.0
        %2023 = vmatprep.subr.mxu0 0.0
        %2024 = vmatpush1.xpose.msra.mxu0 0.0
        %2025 = vmatprep.subr.mxu0 0.0
        %2026 = vmatpush1.xpose.msra.mxu0 0.0
        %2027 = vmatprep.mubr.f32.mxu0 0.0
        %2028 = vmatmul.mubr.f32.gmra.mrb[0].mxu0 %v1959
        %v2029 = vpop.f32.mrb[0].mxu0
        %v2030 = vadd.f32 0.0, %v2029
        %v2031 = vpop.f32.mrb[0].mxu0
        %2032 = vdwg.mxu0
        %v2034 = vunpack.c.l.s4 1983009808
        %v2035 = vunpack.c.0.s8 %v2034
        %v2036 = vlaneseq
        %v2037 = vshrl.u32 %v2036, 7
        %v2038 = vsub.s32 %v2035, %v2037
        %v2039 = vrot.slane %v1159, %v2038
        %2040 = vrot.lane.b32.xlu0 %v2039, 96
        %v2041 = vpop.permute.xlu0 %2040
        %v2042 = vsel %vm1211, %v1159, 0
        %v2044 = vsel %vm1211, %v2041, 0
        %2046 = vmatprep.subr.mxu0 0.0
        %2047 = vmatpush1.xpose.msra.mxu0 %v2044
        %2048 = vmatprep.subr.mxu0 0.0
        %2049 = vmatpush1.xpose.msra.mxu0 0.0
        %2050 = vmatprep.subr.mxu0 0.0
        %2051 = vmatpush1.xpose.msra.mxu0 0.0
        %2052 = vmatprep.subr.mxu0 0.0
        %2053 = vmatpush1.xpose.msra.mxu0 0.0
        %2054 = vmatprep.subr.mxu0 0.0
        %2055 = vmatpush1.xpose.msra.mxu0 0.0
        %2056 = vmatprep.subr.mxu0 0.0
        %2057 = vmatpush1.xpose.msra.mxu0 0.0
        %2058 = vmatprep.subr.mxu0 0.0
        %2059 = vmatpush1.xpose.msra.mxu0 0.0
        %2060 = vmatprep.subr.mxu0 0.0
        %2061 = vmatpush1.xpose.msra.mxu0 0.0
        %2062 = vmatprep.subr.mxu0 0.0
        %2063 = vmatpush1.xpose.msra.mxu0 0.0
        %2064 = vmatprep.subr.mxu0 0.0
        %2065 = vmatpush1.xpose.msra.mxu0 0.0
        %2066 = vmatprep.subr.mxu0 0.0
        %2067 = vmatpush1.xpose.msra.mxu0 0.0
        %2068 = vmatprep.subr.mxu0 0.0
        %2069 = vmatpush1.xpose.msra.mxu0 0.0
        %2070 = vmatprep.subr.mxu0 0.0
        %2071 = vmatpush1.xpose.msra.mxu0 0.0
        %2072 = vmatprep.subr.mxu0 0.0
        %2073 = vmatpush1.xpose.msra.mxu0 0.0
        %2074 = vmatprep.subr.mxu0 0.0
        %2075 = vmatpush1.xpose.msra.mxu0 0.0
        %2076 = vmatprep.subr.mxu0 0.0
        %2077 = vmatpush1.xpose.msra.mxu0 0.0
        %2078 = vmatprep.subr.mxu0 0.0
        %2079 = vmatpush1.xpose.msra.mxu0 0.0
        %2080 = vmatprep.subr.mxu0 0.0
        %2081 = vmatpush1.xpose.msra.mxu0 0.0
        %2082 = vmatprep.subr.mxu0 0.0
        %2083 = vmatpush1.xpose.msra.mxu0 0.0
        %2084 = vmatprep.subr.mxu0 0.0
        %2085 = vmatpush1.xpose.msra.mxu0 0.0
        %2086 = vmatprep.subr.mxu0 0.0
        %2087 = vmatpush1.xpose.msra.mxu0 0.0
        %2088 = vmatprep.subr.mxu0 0.0
        %2089 = vmatpush1.xpose.msra.mxu0 0.0
        %2090 = vmatprep.subr.mxu0 0.0
        %2091 = vmatpush1.xpose.msra.mxu0 0.0
        %2092 = vmatprep.subr.mxu0 0.0
        %2093 = vmatpush1.xpose.msra.mxu0 0.0
        %2094 = vmatprep.subr.mxu0 0.0
        %2095 = vmatpush1.xpose.msra.mxu0 0.0
        %2096 = vmatprep.subr.mxu0 0.0
        %2097 = vmatpush1.xpose.msra.mxu0 0.0
        %2098 = vmatprep.subr.mxu0 0.0
        %2099 = vmatpush1.xpose.msra.mxu0 0.0
        %2100 = vmatprep.subr.mxu0 0.0
        %2101 = vmatpush1.xpose.msra.mxu0 0.0
        %2102 = vmatprep.subr.mxu0 0.0
        %2103 = vmatpush1.xpose.msra.mxu0 0.0
        %2104 = vmatprep.subr.mxu0 0.0
        %2105 = vmatpush1.xpose.msra.mxu0 0.0
        %2106 = vmatprep.subr.mxu0 0.0
        %2107 = vmatpush1.xpose.msra.mxu0 0.0
        %2108 = vmatprep.subr.mxu0 0.0
        %2109 = vmatpush1.xpose.msra.mxu0 0.0
        %2110 = vmatprep.mubr.f32.mxu0 0.0
        %2111 = vmatmul.mubr.f32.gmra.mrb[0].mxu0 %v2042
        %v2112 = vpop.f32.mrb[0].mxu0
        %v2113 = vadd.f32 0.0, %v2112
        %v2114 = vpop.f32.mrb[0].mxu0
        %2115 = vdwg.mxu0
        %v2117 = vunpack.c.l.s4 1983009808
        %v2118 = vunpack.c.0.s8 %v2117
        %v2119 = vlaneseq
        %v2120 = vshrl.u32 %v2119, 7
        %v2121 = vsub.s32 %v2118, %v2120
        %v2122 = vrot.slane %v1161, %v2121
        %2123 = vrot.lane.b32.xlu0 %v2122, 96
        %v2124 = vpop.permute.xlu0 %2123
        %v2125 = vsel %vm1211, %v1161, 0
        %v2127 = vsel %vm1211, %v2124, 0
        %2129 = vmatprep.subr.mxu0 0.0
        %2130 = vmatpush1.xpose.msra.mxu0 %v2127
        %2131 = vmatprep.subr.mxu0 0.0
        %2132 = vmatpush1.xpose.msra.mxu0 0.0
        %2133 = vmatprep.subr.mxu0 0.0
        %2134 = vmatpush1.xpose.msra.mxu0 0.0
        %2135 = vmatprep.subr.mxu0 0.0
        %2136 = vmatpush1.xpose.msra.mxu0 0.0
        %2137 = vmatprep.subr.mxu0 0.0
        %2138 = vmatpush1.xpose.msra.mxu0 0.0
        %2139 = vmatprep.subr.mxu0 0.0
        %2140 = vmatpush1.xpose.msra.mxu0 0.0
        %2141 = vmatprep.subr.mxu0 0.0
        %2142 = vmatpush1.xpose.msra.mxu0 0.0
        %2143 = vmatprep.subr.mxu0 0.0
        %2144 = vmatpush1.xpose.msra.mxu0 0.0
        %2145 = vmatprep.subr.mxu0 0.0
        %2146 = vmatpush1.xpose.msra.mxu0 0.0
        %2147 = vmatprep.subr.mxu0 0.0
        %2148 = vmatpush1.xpose.msra.mxu0 0.0
        %2149 = vmatprep.subr.mxu0 0.0
        %2150 = vmatpush1.xpose.msra.mxu0 0.0
        %2151 = vmatprep.subr.mxu0 0.0
        %2152 = vmatpush1.xpose.msra.mxu0 0.0
        %2153 = vmatprep.subr.mxu0 0.0
        %2154 = vmatpush1.xpose.msra.mxu0 0.0
        %2155 = vmatprep.subr.mxu0 0.0
        %2156 = vmatpush1.xpose.msra.mxu0 0.0
        %2157 = vmatprep.subr.mxu0 0.0
        %2158 = vmatpush1.xpose.msra.mxu0 0.0
        %2159 = vmatprep.subr.mxu0 0.0
        %2160 = vmatpush1.xpose.msra.mxu0 0.0
        %2161 = vmatprep.subr.mxu0 0.0
        %2162 = vmatpush1.xpose.msra.mxu0 0.0
        %2163 = vmatprep.subr.mxu0 0.0
        %2164 = vmatpush1.xpose.msra.mxu0 0.0
        %2165 = vmatprep.subr.mxu0 0.0
        %2166 = vmatpush1.xpose.msra.mxu0 0.0
        %2167 = vmatprep.subr.mxu0 0.0
        %2168 = vmatpush1.xpose.msra.mxu0 0.0
        %2169 = vmatprep.subr.mxu0 0.0
        %2170 = vmatpush1.xpose.msra.mxu0 0.0
        %2171 = vmatprep.subr.mxu0 0.0
        %2172 = vmatpush1.xpose.msra.mxu0 0.0
        %2173 = vmatprep.subr.mxu0 0.0
        %2174 = vmatpush1.xpose.msra.mxu0 0.0
        %2175 = vmatprep.subr.mxu0 0.0
        %2176 = vmatpush1.xpose.msra.mxu0 0.0
        %2177 = vmatprep.subr.mxu0 0.0
        %2178 = vmatpush1.xpose.msra.mxu0 0.0
        %2179 = vmatprep.subr.mxu0 0.0
        %2180 = vmatpush1.xpose.msra.mxu0 0.0
        %2181 = vmatprep.subr.mxu0 0.0
        %2182 = vmatpush1.xpose.msra.mxu0 0.0
        %2183 = vmatprep.subr.mxu0 0.0
        %2184 = vmatpush1.xpose.msra.mxu0 0.0
        %2185 = vmatprep.subr.mxu0 0.0
        %2186 = vmatpush1.xpose.msra.mxu0 0.0
        %2187 = vmatprep.subr.mxu0 0.0
        %2188 = vmatpush1.xpose.msra.mxu0 0.0
        %2189 = vmatprep.subr.mxu0 0.0
        %2190 = vmatpush1.xpose.msra.mxu0 0.0
        %2191 = vmatprep.subr.mxu0 0.0
        %2192 = vmatpush1.xpose.msra.mxu0 0.0
        %2193 = vmatprep.mubr.f32.mxu0 0.0
        %2194 = vmatmul.mubr.f32.gmra.mrb[0].mxu0 %v2125
        %v2195 = vpop.f32.mrb[0].mxu0
        %v2196 = vadd.f32 0.0, %v2195
        %v2197 = vpop.f32.mrb[0].mxu0
        %2198 = vdwg.mxu0
        %v2200 = vunpack.c.l.s4 1983009808
        %v2201 = vunpack.c.0.s8 %v2200
        %v2202 = vlaneseq
        %v2203 = vshrl.u32 %v2202, 7
        %v2204 = vsub.s32 %v2201, %v2203
        %v2205 = vrot.slane %v1163, %v2204
        %2206 = vrot.lane.b32.xlu0 %v2205, 96
        %v2207 = vpop.permute.xlu0 %2206
        %v2208 = vsel %vm1211, %v1163, 0
        %v2210 = vsel %vm1211, %v2207, 0
        %2212 = vmatprep.subr.mxu0 0.0
        %2213 = vmatpush1.xpose.msra.mxu0 %v2210
        %2214 = vmatprep.subr.mxu0 0.0
        %2215 = vmatpush1.xpose.msra.mxu0 0.0
        %2216 = vmatprep.subr.mxu0 0.0
        %2217 = vmatpush1.xpose.msra.mxu0 0.0
        %2218 = vmatprep.subr.mxu0 0.0
        %2219 = vmatpush1.xpose.msra.mxu0 0.0
        %2220 = vmatprep.subr.mxu0 0.0
        %2221 = vmatpush1.xpose.msra.mxu0 0.0
        %2222 = vmatprep.subr.mxu0 0.0
        %2223 = vmatpush1.xpose.msra.mxu0 0.0
        %2224 = vmatprep.subr.mxu0 0.0
        %2225 = vmatpush1.xpose.msra.mxu0 0.0
        %2226 = vmatprep.subr.mxu0 0.0
        %2227 = vmatpush1.xpose.msra.mxu0 0.0
        %2228 = vmatprep.subr.mxu0 0.0
        %2229 = vmatpush1.xpose.msra.mxu0 0.0
        %2230 = vmatprep.subr.mxu0 0.0
        %2231 = vmatpush1.xpose.msra.mxu0 0.0
        %2232 = vmatprep.subr.mxu0 0.0
        %2233 = vmatpush1.xpose.msra.mxu0 0.0
        %2234 = vmatprep.subr.mxu0 0.0
        %2235 = vmatpush1.xpose.msra.mxu0 0.0
        %2236 = vmatprep.subr.mxu0 0.0
        %2237 = vmatpush1.xpose.msra.mxu0 0.0
        %2238 = vmatprep.subr.mxu0 0.0
        %2239 = vmatpush1.xpose.msra.mxu0 0.0
        %2240 = vmatprep.subr.mxu0 0.0
        %2241 = vmatpush1.xpose.msra.mxu0 0.0
        %2242 = vmatprep.subr.mxu0 0.0
        %2243 = vmatpush1.xpose.msra.mxu0 0.0
        %2244 = vmatprep.subr.mxu0 0.0
        %2245 = vmatpush1.xpose.msra.mxu0 0.0
        %2246 = vmatprep.subr.mxu0 0.0
        %2247 = vmatpush1.xpose.msra.mxu0 0.0
        %2248 = vmatprep.subr.mxu0 0.0
        %2249 = vmatpush1.xpose.msra.mxu0 0.0
        %2250 = vmatprep.subr.mxu0 0.0
        %2251 = vmatpush1.xpose.msra.mxu0 0.0
        %2252 = vmatprep.subr.mxu0 0.0
        %2253 = vmatpush1.xpose.msra.mxu0 0.0
        %2254 = vmatprep.subr.mxu0 0.0
        %2255 = vmatpush1.xpose.msra.mxu0 0.0
        %2256 = vmatprep.subr.mxu0 0.0
        %2257 = vmatpush1.xpose.msra.mxu0 0.0
        %2258 = vmatprep.subr.mxu0 0.0
        %2259 = vmatpush1.xpose.msra.mxu0 0.0
        %2260 = vmatprep.subr.mxu0 0.0
        %2261 = vmatpush1.xpose.msra.mxu0 0.0
        %2262 = vmatprep.subr.mxu0 0.0
        %2263 = vmatpush1.xpose.msra.mxu0 0.0
        %2264 = vmatprep.subr.mxu0 0.0
        %2265 = vmatpush1.xpose.msra.mxu0 0.0
        %2266 = vmatprep.subr.mxu0 0.0
        %2267 = vmatpush1.xpose.msra.mxu0 0.0
        %2268 = vmatprep.subr.mxu0 0.0
        %2269 = vmatpush1.xpose.msra.mxu0 0.0
        %2270 = vmatprep.subr.mxu0 0.0
        %2271 = vmatpush1.xpose.msra.mxu0 0.0
        %2272 = vmatprep.subr.mxu0 0.0
        %2273 = vmatpush1.xpose.msra.mxu0 0.0
        %2274 = vmatprep.subr.mxu0 0.0
        %2275 = vmatpush1.xpose.msra.mxu0 0.0
        %2276 = vmatprep.mubr.f32.mxu0 0.0
        %2277 = vmatmul.mubr.f32.gmra.mrb[0].mxu0 %v2208
        %v2278 = vpop.f32.mrb[0].mxu0
        %v2279 = vadd.f32 0.0, %v2278
        %v2280 = vpop.f32.mrb[0].mxu0
        %2281 = vdwg.mxu0
        %v2283 = vunpack.c.l.s4 1983009808
        %v2284 = vunpack.c.0.s8 %v2283
        %v2285 = vlaneseq
        %v2286 = vshrl.u32 %v2285, 7
        %v2287 = vsub.s32 %v2284, %v2286
        %v2288 = vrot.slane %v1165, %v2287
        %2289 = vrot.lane.b32.xlu0 %v2288, 96
        %v2290 = vpop.permute.xlu0 %2289
        %v2291 = vsel %vm1211, %v1165, 0
        %v2293 = vsel %vm1211, %v2290, 0
        %2295 = vmatprep.subr.mxu0 0.0
        %2296 = vmatpush1.xpose.msra.mxu0 %v2293
        %2297 = vmatprep.subr.mxu0 0.0
        %2298 = vmatpush1.xpose.msra.mxu0 0.0
        %2299 = vmatprep.subr.mxu0 0.0
        %2300 = vmatpush1.xpose.msra.mxu0 0.0
        %2301 = vmatprep.subr.mxu0 0.0
        %2302 = vmatpush1.xpose.msra.mxu0 0.0
        %2303 = vmatprep.subr.mxu0 0.0
        %2304 = vmatpush1.xpose.msra.mxu0 0.0
        %2305 = vmatprep.subr.mxu0 0.0
        %2306 = vmatpush1.xpose.msra.mxu0 0.0
        %2307 = vmatprep.subr.mxu0 0.0
        %2308 = vmatpush1.xpose.msra.mxu0 0.0
        %2309 = vmatprep.subr.mxu0 0.0
        %2310 = vmatpush1.xpose.msra.mxu0 0.0
        %2311 = vmatprep.subr.mxu0 0.0
        %2312 = vmatpush1.xpose.msra.mxu0 0.0
        %2313 = vmatprep.subr.mxu0 0.0
        %2314 = vmatpush1.xpose.msra.mxu0 0.0
        %2315 = vmatprep.subr.mxu0 0.0
        %2316 = vmatpush1.xpose.msra.mxu0 0.0
        %2317 = vmatprep.subr.mxu0 0.0
        %2318 = vmatpush1.xpose.msra.mxu0 0.0
        %2319 = vmatprep.subr.mxu0 0.0
        %2320 = vmatpush1.xpose.msra.mxu0 0.0
        %2321 = vmatprep.subr.mxu0 0.0
        %2322 = vmatpush1.xpose.msra.mxu0 0.0
        %2323 = vmatprep.subr.mxu0 0.0
        %2324 = vmatpush1.xpose.msra.mxu0 0.0
        %2325 = vmatprep.subr.mxu0 0.0
        %2326 = vmatpush1.xpose.msra.mxu0 0.0
        %2327 = vmatprep.subr.mxu0 0.0
        %2328 = vmatpush1.xpose.msra.mxu0 0.0
        %2329 = vmatprep.subr.mxu0 0.0
        %2330 = vmatpush1.xpose.msra.mxu0 0.0
        %2331 = vmatprep.subr.mxu0 0.0
        %2332 = vmatpush1.xpose.msra.mxu0 0.0
        %2333 = vmatprep.subr.mxu0 0.0
        %2334 = vmatpush1.xpose.msra.mxu0 0.0
        %2335 = vmatprep.subr.mxu0 0.0
        %2336 = vmatpush1.xpose.msra.mxu0 0.0
        %2337 = vmatprep.subr.mxu0 0.0
        %2338 = vmatpush1.xpose.msra.mxu0 0.0
        %2339 = vmatprep.subr.mxu0 0.0
        %2340 = vmatpush1.xpose.msra.mxu0 0.0
        %2341 = vmatprep.subr.mxu0 0.0
        %2342 = vmatpush1.xpose.msra.mxu0 0.0
        %2343 = vmatprep.subr.mxu0 0.0
        %2344 = vmatpush1.xpose.msra.mxu0 0.0
        %2345 = vmatprep.subr.mxu0 0.0
        %2346 = vmatpush1.xpose.msra.mxu0 0.0
        %2347 = vmatprep.subr.mxu0 0.0
        %2348 = vmatpush1.xpose.msra.mxu0 0.0
        %2349 = vmatprep.subr.mxu0 0.0
        %2350 = vmatpush1.xpose.msra.mxu0 0.0
        %2351 = vmatprep.subr.mxu0 0.0
        %2352 = vmatpush1.xpose.msra.mxu0 0.0
        %2353 = vmatprep.subr.mxu0 0.0
        %2354 = vmatpush1.xpose.msra.mxu0 0.0
        %2355 = vmatprep.subr.mxu0 0.0
        %2356 = vmatpush1.xpose.msra.mxu0 0.0
        %2357 = vmatprep.subr.mxu0 0.0
        %2358 = vmatpush1.xpose.msra.mxu0 0.0
        %2359 = vmatprep.mubr.f32.mxu0 0.0
        %2360 = vmatmul.mubr.f32.gmra.mrb[0].mxu0 %v2291
        %v2361 = vpop.f32.mrb[0].mxu0
        %v2362 = vadd.f32 0.0, %v2361
        %v2363 = vpop.f32.mrb[0].mxu0
        %2364 = vdwg.mxu0
        %v2366 = vunpack.c.l.s4 1983009808
        %v2367 = vunpack.c.0.s8 %v2366
        %v2368 = vlaneseq
        %v2369 = vshrl.u32 %v2368, 7
        %v2370 = vsub.s32 %v2367, %v2369
        %v2371 = vrot.slane %v1167, %v2370
        %2372 = vrot.lane.b32.xlu0 %v2371, 96
        %v2373 = vpop.permute.xlu0 %2372
        %v2374 = vsel %vm1211, %v1167, 0
        %v2376 = vsel %vm1211, %v2373, 0
        %2378 = vmatprep.subr.mxu0 0.0
        %2379 = vmatpush1.xpose.msra.mxu0 %v2376
        %2380 = vmatprep.subr.mxu0 0.0
        %2381 = vmatpush1.xpose.msra.mxu0 0.0
        %2382 = vmatprep.subr.mxu0 0.0
        %2383 = vmatpush1.xpose.msra.mxu0 0.0
        %2384 = vmatprep.subr.mxu0 0.0
        %2385 = vmatpush1.xpose.msra.mxu0 0.0
        %2386 = vmatprep.subr.mxu0 0.0
        %2387 = vmatpush1.xpose.msra.mxu0 0.0
        %2388 = vmatprep.subr.mxu0 0.0
        %2389 = vmatpush1.xpose.msra.mxu0 0.0
        %2390 = vmatprep.subr.mxu0 0.0
        %2391 = vmatpush1.xpose.msra.mxu0 0.0
        %2392 = vmatprep.subr.mxu0 0.0
        %2393 = vmatpush1.xpose.msra.mxu0 0.0
        %2394 = vmatprep.subr.mxu0 0.0
        %2395 = vmatpush1.xpose.msra.mxu0 0.0
        %2396 = vmatprep.subr.mxu0 0.0
        %2397 = vmatpush1.xpose.msra.mxu0 0.0
        %2398 = vmatprep.subr.mxu0 0.0
        %2399 = vmatpush1.xpose.msra.mxu0 0.0
        %2400 = vmatprep.subr.mxu0 0.0
        %2401 = vmatpush1.xpose.msra.mxu0 0.0
        %2402 = vmatprep.subr.mxu0 0.0
        %2403 = vmatpush1.xpose.msra.mxu0 0.0
        %2404 = vmatprep.subr.mxu0 0.0
        %2405 = vmatpush1.xpose.msra.mxu0 0.0
        %2406 = vmatprep.subr.mxu0 0.0
        %2407 = vmatpush1.xpose.msra.mxu0 0.0
        %2408 = vmatprep.subr.mxu0 0.0
        %2409 = vmatpush1.xpose.msra.mxu0 0.0
        %2410 = vmatprep.subr.mxu0 0.0
        %2411 = vmatpush1.xpose.msra.mxu0 0.0
        %2412 = vmatprep.subr.mxu0 0.0
        %2413 = vmatpush1.xpose.msra.mxu0 0.0
        %2414 = vmatprep.subr.mxu0 0.0
        %2415 = vmatpush1.xpose.msra.mxu0 0.0
        %2416 = vmatprep.subr.mxu0 0.0
        %2417 = vmatpush1.xpose.msra.mxu0 0.0
        %2418 = vmatprep.subr.mxu0 0.0
        %2419 = vmatpush1.xpose.msra.mxu0 0.0
        %2420 = vmatprep.subr.mxu0 0.0
        %2421 = vmatpush1.xpose.msra.mxu0 0.0
        %2422 = vmatprep.subr.mxu0 0.0
        %2423 = vmatpush1.xpose.msra.mxu0 0.0
        %2424 = vmatprep.subr.mxu0 0.0
        %2425 = vmatpush1.xpose.msra.mxu0 0.0
        %2426 = vmatprep.subr.mxu0 0.0
        %2427 = vmatpush1.xpose.msra.mxu0 0.0
        %2428 = vmatprep.subr.mxu0 0.0
        %2429 = vmatpush1.xpose.msra.mxu0 0.0
        %2430 = vmatprep.subr.mxu0 0.0
        %2431 = vmatpush1.xpose.msra.mxu0 0.0
        %2432 = vmatprep.subr.mxu0 0.0
        %2433 = vmatpush1.xpose.msra.mxu0 0.0
        %2434 = vmatprep.subr.mxu0 0.0
        %2435 = vmatpush1.xpose.msra.mxu0 0.0
        %2436 = vmatprep.subr.mxu0 0.0
        %2437 = vmatpush1.xpose.msra.mxu0 0.0
        %2438 = vmatprep.subr.mxu0 0.0
        %2439 = vmatpush1.xpose.msra.mxu0 0.0
        %2440 = vmatprep.subr.mxu0 0.0
        %2441 = vmatpush1.xpose.msra.mxu0 0.0
        %2442 = vmatprep.mubr.f32.mxu0 0.0
        %2443 = vmatmul.mubr.f32.gmra.mrb[0].mxu0 %v2374
        %v2444 = vpop.f32.mrb[0].mxu0
        %v2445 = vadd.f32 0.0, %v2444
        %v2446 = vpop.f32.mrb[0].mxu0
        %2447 = vdwg.mxu0
        %v2449 = vunpack.c.l.s4 1983009808
        %v2450 = vunpack.c.0.s8 %v2449
        %v2451 = vlaneseq
        %v2452 = vshrl.u32 %v2451, 7
        %v2453 = vsub.s32 %v2450, %v2452
        %v2454 = vrot.slane %v1169, %v2453
        %2455 = vrot.lane.b32.xlu0 %v2454, 96
        %v2456 = vpop.permute.xlu0 %2455
        %v2457 = vsel %vm1211, %v1169, 0
        %v2459 = vsel %vm1211, %v2456, 0
        %2461 = vmatprep.subr.mxu0 0.0
        %2462 = vmatpush1.xpose.msra.mxu0 %v2459
        %2463 = vmatprep.subr.mxu0 0.0
        %2464 = vmatpush1.xpose.msra.mxu0 0.0
        %2465 = vmatprep.subr.mxu0 0.0
        %2466 = vmatpush1.xpose.msra.mxu0 0.0
        %2467 = vmatprep.subr.mxu0 0.0
        %2468 = vmatpush1.xpose.msra.mxu0 0.0
        %2469 = vmatprep.subr.mxu0 0.0
        %2470 = vmatpush1.xpose.msra.mxu0 0.0
        %2471 = vmatprep.subr.mxu0 0.0
        %2472 = vmatpush1.xpose.msra.mxu0 0.0
        %2473 = vmatprep.subr.mxu0 0.0
        %2474 = vmatpush1.xpose.msra.mxu0 0.0
        %2475 = vmatprep.subr.mxu0 0.0
        %2476 = vmatpush1.xpose.msra.mxu0 0.0
        %2477 = vmatprep.subr.mxu0 0.0
        %2478 = vmatpush1.xpose.msra.mxu0 0.0
        %2479 = vmatprep.subr.mxu0 0.0
        %2480 = vmatpush1.xpose.msra.mxu0 0.0
        %2481 = vmatprep.subr.mxu0 0.0
        %2482 = vmatpush1.xpose.msra.mxu0 0.0
        %2483 = vmatprep.subr.mxu0 0.0
        %2484 = vmatpush1.xpose.msra.mxu0 0.0
        %2485 = vmatprep.subr.mxu0 0.0
        %2486 = vmatpush1.xpose.msra.mxu0 0.0
        %2487 = vmatprep.subr.mxu0 0.0
        %2488 = vmatpush1.xpose.msra.mxu0 0.0
        %2489 = vmatprep.subr.mxu0 0.0
        %2490 = vmatpush1.xpose.msra.mxu0 0.0
        %2491 = vmatprep.subr.mxu0 0.0
        %2492 = vmatpush1.xpose.msra.mxu0 0.0
        %2493 = vmatprep.subr.mxu0 0.0
        %2494 = vmatpush1.xpose.msra.mxu0 0.0
        %2495 = vmatprep.subr.mxu0 0.0
        %2496 = vmatpush1.xpose.msra.mxu0 0.0
        %2497 = vmatprep.subr.mxu0 0.0
        %2498 = vmatpush1.xpose.msra.mxu0 0.0
        %2499 = vmatprep.subr.mxu0 0.0
        %2500 = vmatpush1.xpose.msra.mxu0 0.0
        %2501 = vmatprep.subr.mxu0 0.0
        %2502 = vmatpush1.xpose.msra.mxu0 0.0
        %2503 = vmatprep.subr.mxu0 0.0
        %2504 = vmatpush1.xpose.msra.mxu0 0.0
        %2505 = vmatprep.subr.mxu0 0.0
        %2506 = vmatpush1.xpose.msra.mxu0 0.0
        %2507 = vmatprep.subr.mxu0 0.0
        %2508 = vmatpush1.xpose.msra.mxu0 0.0
        %2509 = vmatprep.subr.mxu0 0.0
        %2510 = vmatpush1.xpose.msra.mxu0 0.0
        %2511 = vmatprep.subr.mxu0 0.0
        %2512 = vmatpush1.xpose.msra.mxu0 0.0
        %2513 = vmatprep.subr.mxu0 0.0
        %2514 = vmatpush1.xpose.msra.mxu0 0.0
        %2515 = vmatprep.subr.mxu0 0.0
        %2516 = vmatpush1.xpose.msra.mxu0 0.0
        %2517 = vmatprep.subr.mxu0 0.0
        %2518 = vmatpush1.xpose.msra.mxu0 0.0
        %2519 = vmatprep.subr.mxu0 0.0
        %2520 = vmatpush1.xpose.msra.mxu0 0.0
        %2521 = vmatprep.subr.mxu0 0.0
        %2522 = vmatpush1.xpose.msra.mxu0 0.0
        %2523 = vmatprep.subr.mxu0 0.0
        %2524 = vmatpush1.xpose.msra.mxu0 0.0
        %2525 = vmatprep.mubr.f32.mxu0 0.0
        %2526 = vmatmul.mubr.f32.gmra.mrb[0].mxu0 %v2457
        %v2527 = vpop.f32.mrb[0].mxu0
        %v2528 = vadd.f32 0.0, %v2527
        %v2529 = vpop.f32.mrb[0].mxu0
        %2530 = vdwg.mxu0
        %v2532 = vunpack.c.l.s4 1983009808
        %v2533 = vunpack.c.0.s8 %v2532
        %v2534 = vlaneseq
        %v2535 = vshrl.u32 %v2534, 7
        %v2536 = vsub.s32 %v2533, %v2535
        %v2537 = vrot.slane %v1171, %v2536
        %2538 = vrot.lane.b32.xlu0 %v2537, 96
        %v2539 = vpop.permute.xlu0 %2538
        %v2540 = vsel %vm1211, %v1171, 0
        %v2542 = vsel %vm1211, %v2539, 0
        %2544 = vmatprep.subr.mxu0 0.0
        %2545 = vmatpush1.xpose.msra.mxu0 %v2542
        %2546 = vmatprep.subr.mxu0 0.0
        %2547 = vmatpush1.xpose.msra.mxu0 0.0
        %2548 = vmatprep.subr.mxu0 0.0
        %2549 = vmatpush1.xpose.msra.mxu0 0.0
        %2550 = vmatprep.subr.mxu0 0.0
        %2551 = vmatpush1.xpose.msra.mxu0 0.0
        %2552 = vmatprep.subr.mxu0 0.0
        %2553 = vmatpush1.xpose.msra.mxu0 0.0
        %2554 = vmatprep.subr.mxu0 0.0
        %2555 = vmatpush1.xpose.msra.mxu0 0.0
        %2556 = vmatprep.subr.mxu0 0.0
        %2557 = vmatpush1.xpose.msra.mxu0 0.0
        %2558 = vmatprep.subr.mxu0 0.0
        %2559 = vmatpush1.xpose.msra.mxu0 0.0
        %2560 = vmatprep.subr.mxu0 0.0
        %2561 = vmatpush1.xpose.msra.mxu0 0.0
        %2562 = vmatprep.subr.mxu0 0.0
        %2563 = vmatpush1.xpose.msra.mxu0 0.0
        %2564 = vmatprep.subr.mxu0 0.0
        %2565 = vmatpush1.xpose.msra.mxu0 0.0
        %2566 = vmatprep.subr.mxu0 0.0
        %2567 = vmatpush1.xpose.msra.mxu0 0.0
        %2568 = vmatprep.subr.mxu0 0.0
        %2569 = vmatpush1.xpose.msra.mxu0 0.0
        %2570 = vmatprep.subr.mxu0 0.0
        %2571 = vmatpush1.xpose.msra.mxu0 0.0
        %2572 = vmatprep.subr.mxu0 0.0
        %2573 = vmatpush1.xpose.msra.mxu0 0.0
        %2574 = vmatprep.subr.mxu0 0.0
        %2575 = vmatpush1.xpose.msra.mxu0 0.0
        %2576 = vmatprep.subr.mxu0 0.0
        %2577 = vmatpush1.xpose.msra.mxu0 0.0
        %2578 = vmatprep.subr.mxu0 0.0
        %2579 = vmatpush1.xpose.msra.mxu0 0.0
        %2580 = vmatprep.subr.mxu0 0.0
        %2581 = vmatpush1.xpose.msra.mxu0 0.0
        %2582 = vmatprep.subr.mxu0 0.0
        %2583 = vmatpush1.xpose.msra.mxu0 0.0
        %2584 = vmatprep.subr.mxu0 0.0
        %2585 = vmatpush1.xpose.msra.mxu0 0.0
        %2586 = vmatprep.subr.mxu0 0.0
        %2587 = vmatpush1.xpose.msra.mxu0 0.0
        %2588 = vmatprep.subr.mxu0 0.0
        %2589 = vmatpush1.xpose.msra.mxu0 0.0
        %2590 = vmatprep.subr.mxu0 0.0
        %2591 = vmatpush1.xpose.msra.mxu0 0.0
        %2592 = vmatprep.subr.mxu0 0.0
        %2593 = vmatpush1.xpose.msra.mxu0 0.0
        %2594 = vmatprep.subr.mxu0 0.0
        %2595 = vmatpush1.xpose.msra.mxu0 0.0
        %2596 = vmatprep.subr.mxu0 0.0
        %2597 = vmatpush1.xpose.msra.mxu0 0.0
        %2598 = vmatprep.subr.mxu0 0.0
        %2599 = vmatpush1.xpose.msra.mxu0 0.0
        %2600 = vmatprep.subr.mxu0 0.0
        %2601 = vmatpush1.xpose.msra.mxu0 0.0
        %2602 = vmatprep.subr.mxu0 0.0
        %2603 = vmatpush1.xpose.msra.mxu0 0.0
        %2604 = vmatprep.subr.mxu0 0.0
        %2605 = vmatpush1.xpose.msra.mxu0 0.0
        %2606 = vmatprep.subr.mxu0 0.0
        %2607 = vmatpush1.xpose.msra.mxu0 0.0
        %2608 = vmatprep.mubr.f32.mxu0 0.0
        %2609 = vmatmul.mubr.f32.gmra.mrb[0].mxu0 %v2540
        %v2610 = vpop.f32.mrb[0].mxu0
        %v2611 = vadd.f32 0.0, %v2610
        %v2612 = vpop.f32.mrb[0].mxu0
        %2613 = vdwg.mxu0
        %v2615 = vunpack.c.l.s4 1983009808
        %v2616 = vunpack.c.0.s8 %v2615
        %v2617 = vlaneseq
        %v2618 = vshrl.u32 %v2617, 7
        %v2619 = vsub.s32 %v2616, %v2618
        %v2620 = vrot.slane %v1173, %v2619
        %2621 = vrot.lane.b32.xlu0 %v2620, 96
        %v2622 = vpop.permute.xlu0 %2621
        %v2623 = vsel %vm1211, %v1173, 0
        %v2625 = vsel %vm1211, %v2622, 0
        %2627 = vmatprep.subr.mxu0 0.0
        %2628 = vmatpush1.xpose.msra.mxu0 %v2625
        %2629 = vmatprep.subr.mxu0 0.0
        %2630 = vmatpush1.xpose.msra.mxu0 0.0
        %2631 = vmatprep.subr.mxu0 0.0
        %2632 = vmatpush1.xpose.msra.mxu0 0.0
        %2633 = vmatprep.subr.mxu0 0.0
        %2634 = vmatpush1.xpose.msra.mxu0 0.0
        %2635 = vmatprep.subr.mxu0 0.0
        %2636 = vmatpush1.xpose.msra.mxu0 0.0
        %2637 = vmatprep.subr.mxu0 0.0
        %2638 = vmatpush1.xpose.msra.mxu0 0.0
        %2639 = vmatprep.subr.mxu0 0.0
        %2640 = vmatpush1.xpose.msra.mxu0 0.0
        %2641 = vmatprep.subr.mxu0 0.0
        %2642 = vmatpush1.xpose.msra.mxu0 0.0
        %2643 = vmatprep.subr.mxu0 0.0
        %2644 = vmatpush1.xpose.msra.mxu0 0.0
        %2645 = vmatprep.subr.mxu0 0.0
        %2646 = vmatpush1.xpose.msra.mxu0 0.0
        %2647 = vmatprep.subr.mxu0 0.0
        %2648 = vmatpush1.xpose.msra.mxu0 0.0
        %2649 = vmatprep.subr.mxu0 0.0
        %2650 = vmatpush1.xpose.msra.mxu0 0.0
        %2651 = vmatprep.subr.mxu0 0.0
        %2652 = vmatpush1.xpose.msra.mxu0 0.0
        %2653 = vmatprep.subr.mxu0 0.0
        %2654 = vmatpush1.xpose.msra.mxu0 0.0
        %2655 = vmatprep.subr.mxu0 0.0
        %2656 = vmatpush1.xpose.msra.mxu0 0.0
        %2657 = vmatprep.subr.mxu0 0.0
        %2658 = vmatpush1.xpose.msra.mxu0 0.0
        %2659 = vmatprep.subr.mxu0 0.0
        %2660 = vmatpush1.xpose.msra.mxu0 0.0
        %2661 = vmatprep.subr.mxu0 0.0
        %2662 = vmatpush1.xpose.msra.mxu0 0.0
        %2663 = vmatprep.subr.mxu0 0.0
        %2664 = vmatpush1.xpose.msra.mxu0 0.0
        %2665 = vmatprep.subr.mxu0 0.0
        %2666 = vmatpush1.xpose.msra.mxu0 0.0
        %2667 = vmatprep.subr.mxu0 0.0
        %2668 = vmatpush1.xpose.msra.mxu0 0.0
        %2669 = vmatprep.subr.mxu0 0.0
        %2670 = vmatpush1.xpose.msra.mxu0 0.0
        %2671 = vmatprep.subr.mxu0 0.0
        %2672 = vmatpush1.xpose.msra.mxu0 0.0
        %2673 = vmatprep.subr.mxu0 0.0
        %2674 = vmatpush1.xpose.msra.mxu0 0.0
        %2675 = vmatprep.subr.mxu0 0.0
        %2676 = vmatpush1.xpose.msra.mxu0 0.0
        %2677 = vmatprep.subr.mxu0 0.0
        %2678 = vmatpush1.xpose.msra.mxu0 0.0
        %2679 = vmatprep.subr.mxu0 0.0
        %2680 = vmatpush1.xpose.msra.mxu0 0.0
        %2681 = vmatprep.subr.mxu0 0.0
        %2682 = vmatpush1.xpose.msra.mxu0 0.0
        %2683 = vmatprep.subr.mxu0 0.0
        %2684 = vmatpush1.xpose.msra.mxu0 0.0
        %2685 = vmatprep.subr.mxu0 0.0
        %2686 = vmatpush1.xpose.msra.mxu0 0.0
        %2687 = vmatprep.subr.mxu0 0.0
        %2688 = vmatpush1.xpose.msra.mxu0 0.0
        %2689 = vmatprep.subr.mxu0 0.0
        %2690 = vmatpush1.xpose.msra.mxu0 0.0
        %2691 = vmatprep.mubr.f32.mxu0 0.0
        %2692 = vmatmul.mubr.f32.gmra.mrb[0].mxu0 %v2623
        %v2693 = vpop.f32.mrb[0].mxu0
        %v2694 = vadd.f32 0.0, %v2693
        %v2695 = vpop.f32.mrb[0].mxu0
        %2696 = vdwg.mxu0
        %v2698 = vunpack.c.l.s4 1983009808
        %v2699 = vunpack.c.0.s8 %v2698
        %v2700 = vlaneseq
        %v2701 = vshrl.u32 %v2700, 7
        %v2702 = vsub.s32 %v2699, %v2701
        %v2703 = vrot.slane %v1175, %v2702
        %2704 = vrot.lane.b32.xlu0 %v2703, 96
        %v2705 = vpop.permute.xlu0 %2704
        %v2706 = vsel %vm1211, %v1175, 0
        %v2708 = vsel %vm1211, %v2705, 0
        %2710 = vmatprep.subr.mxu0 0.0
        %2711 = vmatpush1.xpose.msra.mxu0 %v2708
        %2712 = vmatprep.subr.mxu0 0.0
        %2713 = vmatpush1.xpose.msra.mxu0 0.0
        %2714 = vmatprep.subr.mxu0 0.0
        %2715 = vmatpush1.xpose.msra.mxu0 0.0
        %2716 = vmatprep.subr.mxu0 0.0
        %2717 = vmatpush1.xpose.msra.mxu0 0.0
        %2718 = vmatprep.subr.mxu0 0.0
        %2719 = vmatpush1.xpose.msra.mxu0 0.0
        %2720 = vmatprep.subr.mxu0 0.0
        %2721 = vmatpush1.xpose.msra.mxu0 0.0
        %2722 = vmatprep.subr.mxu0 0.0
        %2723 = vmatpush1.xpose.msra.mxu0 0.0
        %2724 = vmatprep.subr.mxu0 0.0
        %2725 = vmatpush1.xpose.msra.mxu0 0.0
        %2726 = vmatprep.subr.mxu0 0.0
        %2727 = vmatpush1.xpose.msra.mxu0 0.0
        %2728 = vmatprep.subr.mxu0 0.0
        %2729 = vmatpush1.xpose.msra.mxu0 0.0
        %2730 = vmatprep.subr.mxu0 0.0
        %2731 = vmatpush1.xpose.msra.mxu0 0.0
        %2732 = vmatprep.subr.mxu0 0.0
        %2733 = vmatpush1.xpose.msra.mxu0 0.0
        %2734 = vmatprep.subr.mxu0 0.0
        %2735 = vmatpush1.xpose.msra.mxu0 0.0
        %2736 = vmatprep.subr.mxu0 0.0
        %2737 = vmatpush1.xpose.msra.mxu0 0.0
        %2738 = vmatprep.subr.mxu0 0.0
        %2739 = vmatpush1.xpose.msra.mxu0 0.0
        %2740 = vmatprep.subr.mxu0 0.0
        %2741 = vmatpush1.xpose.msra.mxu0 0.0
        %2742 = vmatprep.subr.mxu0 0.0
        %2743 = vmatpush1.xpose.msra.mxu0 0.0
        %2744 = vmatprep.subr.mxu0 0.0
        %2745 = vmatpush1.xpose.msra.mxu0 0.0
        %2746 = vmatprep.subr.mxu0 0.0
        %2747 = vmatpush1.xpose.msra.mxu0 0.0
        %2748 = vmatprep.subr.mxu0 0.0
        %2749 = vmatpush1.xpose.msra.mxu0 0.0
        %2750 = vmatprep.subr.mxu0 0.0
        %2751 = vmatpush1.xpose.msra.mxu0 0.0
        %2752 = vmatprep.subr.mxu0 0.0
        %2753 = vmatpush1.xpose.msra.mxu0 0.0
        %2754 = vmatprep.subr.mxu0 0.0
        %2755 = vmatpush1.xpose.msra.mxu0 0.0
        %2756 = vmatprep.subr.mxu0 0.0
        %2757 = vmatpush1.xpose.msra.mxu0 0.0
        %2758 = vmatprep.subr.mxu0 0.0
        %2759 = vmatpush1.xpose.msra.mxu0 0.0
        %2760 = vmatprep.subr.mxu0 0.0
        %2761 = vmatpush1.xpose.msra.mxu0 0.0
        %2762 = vmatprep.subr.mxu0 0.0
        %2763 = vmatpush1.xpose.msra.mxu0 0.0
        %2764 = vmatprep.subr.mxu0 0.0
        %2765 = vmatpush1.xpose.msra.mxu0 0.0
        %2766 = vmatprep.subr.mxu0 0.0
        %2767 = vmatpush1.xpose.msra.mxu0 0.0
        %2768 = vmatprep.subr.mxu0 0.0
        %2769 = vmatpush1.xpose.msra.mxu0 0.0
        %2770 = vmatprep.subr.mxu0 0.0
        %2771 = vmatpush1.xpose.msra.mxu0 0.0
        %2772 = vmatprep.subr.mxu0 0.0
        %2773 = vmatpush1.xpose.msra.mxu0 0.0
        %2774 = vmatprep.mubr.f32.mxu0 0.0
        %2775 = vmatmul.mubr.f32.gmra.mrb[0].mxu0 %v2706
        %v2776 = vpop.f32.mrb[0].mxu0
        %v2777 = vadd.f32 0.0, %v2776
        %v2778 = vpop.f32.mrb[0].mxu0
        %2779 = vdwg.mxu0
        %v2781 = vunpack.c.l.s4 1983009808
        %v2782 = vunpack.c.0.s8 %v2781
        %v2783 = vlaneseq
        %v2784 = vshrl.u32 %v2783, 7
        %v2785 = vsub.s32 %v2782, %v2784
        %v2786 = vrot.slane %v1177, %v2785
        %2787 = vrot.lane.b32.xlu0 %v2786, 96
        %v2788 = vpop.permute.xlu0 %2787
        %v2789 = vsel %vm1211, %v1177, 0
        %v2791 = vsel %vm1211, %v2788, 0
        %2793 = vmatprep.subr.mxu0 0.0
        %2794 = vmatpush1.xpose.msra.mxu0 %v2791
        %2795 = vmatprep.subr.mxu0 0.0
        %2796 = vmatpush1.xpose.msra.mxu0 0.0
        %2797 = vmatprep.subr.mxu0 0.0
        %2798 = vmatpush1.xpose.msra.mxu0 0.0
        %2799 = vmatprep.subr.mxu0 0.0
        %2800 = vmatpush1.xpose.msra.mxu0 0.0
        %2801 = vmatprep.subr.mxu0 0.0
        %2802 = vmatpush1.xpose.msra.mxu0 0.0
        %2803 = vmatprep.subr.mxu0 0.0
        %2804 = vmatpush1.xpose.msra.mxu0 0.0
        %2805 = vmatprep.subr.mxu0 0.0
        %2806 = vmatpush1.xpose.msra.mxu0 0.0
        %2807 = vmatprep.subr.mxu0 0.0
        %2808 = vmatpush1.xpose.msra.mxu0 0.0
        %2809 = vmatprep.subr.mxu0 0.0
        %2810 = vmatpush1.xpose.msra.mxu0 0.0
        %2811 = vmatprep.subr.mxu0 0.0
        %2812 = vmatpush1.xpose.msra.mxu0 0.0
        %2813 = vmatprep.subr.mxu0 0.0
        %2814 = vmatpush1.xpose.msra.mxu0 0.0
        %2815 = vmatprep.subr.mxu0 0.0
        %2816 = vmatpush1.xpose.msra.mxu0 0.0
        %2817 = vmatprep.subr.mxu0 0.0
        %2818 = vmatpush1.xpose.msra.mxu0 0.0
        %2819 = vmatprep.subr.mxu0 0.0
        %2820 = vmatpush1.xpose.msra.mxu0 0.0
        %2821 = vmatprep.subr.mxu0 0.0
        %2822 = vmatpush1.xpose.msra.mxu0 0.0
        %2823 = vmatprep.subr.mxu0 0.0
        %2824 = vmatpush1.xpose.msra.mxu0 0.0
        %2825 = vmatprep.subr.mxu0 0.0
        %2826 = vmatpush1.xpose.msra.mxu0 0.0
        %2827 = vmatprep.subr.mxu0 0.0
        %2828 = vmatpush1.xpose.msra.mxu0 0.0
        %2829 = vmatprep.subr.mxu0 0.0
        %2830 = vmatpush1.xpose.msra.mxu0 0.0
        %2831 = vmatprep.subr.mxu0 0.0
        %2832 = vmatpush1.xpose.msra.mxu0 0.0
        %2833 = vmatprep.subr.mxu0 0.0
        %2834 = vmatpush1.xpose.msra.mxu0 0.0
        %2835 = vmatprep.subr.mxu0 0.0
        %2836 = vmatpush1.xpose.msra.mxu0 0.0
        %2837 = vmatprep.subr.mxu0 0.0
        %2838 = vmatpush1.xpose.msra.mxu0 0.0
        %2839 = vmatprep.subr.mxu0 0.0
        %2840 = vmatpush1.xpose.msra.mxu0 0.0
        %2841 = vmatprep.subr.mxu0 0.0
        %2842 = vmatpush1.xpose.msra.mxu0 0.0
        %2843 = vmatprep.subr.mxu0 0.0
        %2844 = vmatpush1.xpose.msra.mxu0 0.0
        %2845 = vmatprep.subr.mxu0 0.0
        %2846 = vmatpush1.xpose.msra.mxu0 0.0
        %2847 = vmatprep.subr.mxu0 0.0
        %2848 = vmatpush1.xpose.msra.mxu0 0.0
        %2849 = vmatprep.subr.mxu0 0.0
        %2850 = vmatpush1.xpose.msra.mxu0 0.0
        %2851 = vmatprep.subr.mxu0 0.0
        %2852 = vmatpush1.xpose.msra.mxu0 0.0
        %2853 = vmatprep.subr.mxu0 0.0
        %2854 = vmatpush1.xpose.msra.mxu0 0.0
        %2855 = vmatprep.subr.mxu0 0.0
        %2856 = vmatpush1.xpose.msra.mxu0 0.0
        %2857 = vmatprep.mubr.f32.mxu0 0.0
        %2858 = vmatmul.mubr.f32.gmra.mrb[0].mxu0 %v2789
        %v2859 = vpop.f32.mrb[0].mxu0
        %v2860 = vadd.f32 0.0, %v2859
        %v2861 = vpop.f32.mrb[0].mxu0
        %2862 = vdwg.mxu0
        %v2864 = vunpack.c.l.s4 1983009808
        %v2865 = vunpack.c.0.s8 %v2864
        %v2866 = vlaneseq
        %v2867 = vshrl.u32 %v2866, 7
        %v2868 = vsub.s32 %v2865, %v2867
        %v2869 = vrot.slane %v1179, %v2868
        %2870 = vrot.lane.b32.xlu0 %v2869, 96
        %v2871 = vpop.permute.xlu0 %2870
        %v2872 = vsel %vm1211, %v1179, 0
        %v2874 = vsel %vm1211, %v2871, 0
        %2876 = vmatprep.subr.mxu0 0.0
        %2877 = vmatpush1.xpose.msra.mxu0 %v2874
        %2878 = vmatprep.subr.mxu0 0.0
        %2879 = vmatpush1.xpose.msra.mxu0 0.0
        %2880 = vmatprep.subr.mxu0 0.0
        %2881 = vmatpush1.xpose.msra.mxu0 0.0
        %2882 = vmatprep.subr.mxu0 0.0
        %2883 = vmatpush1.xpose.msra.mxu0 0.0
        %2884 = vmatprep.subr.mxu0 0.0
        %2885 = vmatpush1.xpose.msra.mxu0 0.0
        %2886 = vmatprep.subr.mxu0 0.0
        %2887 = vmatpush1.xpose.msra.mxu0 0.0
        %2888 = vmatprep.subr.mxu0 0.0
        %2889 = vmatpush1.xpose.msra.mxu0 0.0
        %2890 = vmatprep.subr.mxu0 0.0
        %2891 = vmatpush1.xpose.msra.mxu0 0.0
        %2892 = vmatprep.subr.mxu0 0.0
        %2893 = vmatpush1.xpose.msra.mxu0 0.0
        %2894 = vmatprep.subr.mxu0 0.0
        %2895 = vmatpush1.xpose.msra.mxu0 0.0
        %2896 = vmatprep.subr.mxu0 0.0
        %2897 = vmatpush1.xpose.msra.mxu0 0.0
        %2898 = vmatprep.subr.mxu0 0.0
        %2899 = vmatpush1.xpose.msra.mxu0 0.0
        %2900 = vmatprep.subr.mxu0 0.0
        %2901 = vmatpush1.xpose.msra.mxu0 0.0
        %2902 = vmatprep.subr.mxu0 0.0
        %2903 = vmatpush1.xpose.msra.mxu0 0.0
        %2904 = vmatprep.subr.mxu0 0.0
        %2905 = vmatpush1.xpose.msra.mxu0 0.0
        %2906 = vmatprep.subr.mxu0 0.0
        %2907 = vmatpush1.xpose.msra.mxu0 0.0
        %2908 = vmatprep.subr.mxu0 0.0
        %2909 = vmatpush1.xpose.msra.mxu0 0.0
        %2910 = vmatprep.subr.mxu0 0.0
        %2911 = vmatpush1.xpose.msra.mxu0 0.0
        %2912 = vmatprep.subr.mxu0 0.0
        %2913 = vmatpush1.xpose.msra.mxu0 0.0
        %2914 = vmatprep.subr.mxu0 0.0
        %2915 = vmatpush1.xpose.msra.mxu0 0.0
        %2916 = vmatprep.subr.mxu0 0.0
        %2917 = vmatpush1.xpose.msra.mxu0 0.0
        %2918 = vmatprep.subr.mxu0 0.0
        %2919 = vmatpush1.xpose.msra.mxu0 0.0
        %2920 = vmatprep.subr.mxu0 0.0
        %2921 = vmatpush1.xpose.msra.mxu0 0.0
        %2922 = vmatprep.subr.mxu0 0.0
        %2923 = vmatpush1.xpose.msra.mxu0 0.0
        %2924 = vmatprep.subr.mxu0 0.0
        %2925 = vmatpush1.xpose.msra.mxu0 0.0
        %2926 = vmatprep.subr.mxu0 0.0
        %2927 = vmatpush1.xpose.msra.mxu0 0.0
        %2928 = vmatprep.subr.mxu0 0.0
        %2929 = vmatpush1.xpose.msra.mxu0 0.0
        %2930 = vmatprep.subr.mxu0 0.0
        %2931 = vmatpush1.xpose.msra.mxu0 0.0
        %2932 = vmatprep.subr.mxu0 0.0
        %2933 = vmatpush1.xpose.msra.mxu0 0.0
        %2934 = vmatprep.subr.mxu0 0.0
        %2935 = vmatpush1.xpose.msra.mxu0 0.0
        %2936 = vmatprep.subr.mxu0 0.0
        %2937 = vmatpush1.xpose.msra.mxu0 0.0
        %2938 = vmatprep.subr.mxu0 0.0
        %2939 = vmatpush1.xpose.msra.mxu0 0.0
        %2940 = vmatprep.mubr.f32.mxu0 0.0
        %2941 = vmatmul.mubr.f32.gmra.mrb[0].mxu0 %v2872
        %v2942 = vpop.f32.mrb[0].mxu0
        %v2943 = vadd.f32 0.0, %v2942
        %v2944 = vpop.f32.mrb[0].mxu0
        %2945 = vdwg.mxu0
        %v2947 = vunpack.c.l.s4 1983009808
        %v2948 = vunpack.c.0.s8 %v2947
        %v2949 = vlaneseq
        %v2950 = vshrl.u32 %v2949, 7
        %v2951 = vsub.s32 %v2948, %v2950
        %v2952 = vrot.slane %v1181, %v2951
        %2953 = vrot.lane.b32.xlu0 %v2952, 96
        %v2954 = vpop.permute.xlu0 %2953
        %v2955 = vsel %vm1211, %v1181, 0
        %v2957 = vsel %vm1211, %v2954, 0
        %2959 = vmatprep.subr.mxu0 0.0
        %2960 = vmatpush1.xpose.msra.mxu0 %v2957
        %2961 = vmatprep.subr.mxu0 0.0
        %2962 = vmatpush1.xpose.msra.mxu0 0.0
        %2963 = vmatprep.subr.mxu0 0.0
        %2964 = vmatpush1.xpose.msra.mxu0 0.0
        %2965 = vmatprep.subr.mxu0 0.0
        %2966 = vmatpush1.xpose.msra.mxu0 0.0
        %2967 = vmatprep.subr.mxu0 0.0
        %2968 = vmatpush1.xpose.msra.mxu0 0.0
        %2969 = vmatprep.subr.mxu0 0.0
        %2970 = vmatpush1.xpose.msra.mxu0 0.0
        %2971 = vmatprep.subr.mxu0 0.0
        %2972 = vmatpush1.xpose.msra.mxu0 0.0
        %2973 = vmatprep.subr.mxu0 0.0
        %2974 = vmatpush1.xpose.msra.mxu0 0.0
        %2975 = vmatprep.subr.mxu0 0.0
        %2976 = vmatpush1.xpose.msra.mxu0 0.0
        %2977 = vmatprep.subr.mxu0 0.0
        %2978 = vmatpush1.xpose.msra.mxu0 0.0
        %2979 = vmatprep.subr.mxu0 0.0
        %2980 = vmatpush1.xpose.msra.mxu0 0.0
        %2981 = vmatprep.subr.mxu0 0.0
        %2982 = vmatpush1.xpose.msra.mxu0 0.0
        %2983 = vmatprep.subr.mxu0 0.0
        %2984 = vmatpush1.xpose.msra.mxu0 0.0
        %2985 = vmatprep.subr.mxu0 0.0
        %2986 = vmatpush1.xpose.msra.mxu0 0.0
        %2987 = vmatprep.subr.mxu0 0.0
        %2988 = vmatpush1.xpose.msra.mxu0 0.0
        %2989 = vmatprep.subr.mxu0 0.0
        %2990 = vmatpush1.xpose.msra.mxu0 0.0
        %2991 = vmatprep.subr.mxu0 0.0
        %2992 = vmatpush1.xpose.msra.mxu0 0.0
        %2993 = vmatprep.subr.mxu0 0.0
        %2994 = vmatpush1.xpose.msra.mxu0 0.0
        %2995 = vmatprep.subr.mxu0 0.0
        %2996 = vmatpush1.xpose.msra.mxu0 0.0
        %2997 = vmatprep.subr.mxu0 0.0
        %2998 = vmatpush1.xpose.msra.mxu0 0.0
        %2999 = vmatprep.subr.mxu0 0.0
        %3000 = vmatpush1.xpose.msra.mxu0 0.0
        %3001 = vmatprep.subr.mxu0 0.0
        %3002 = vmatpush1.xpose.msra.mxu0 0.0
        %3003 = vmatprep.subr.mxu0 0.0
        %3004 = vmatpush1.xpose.msra.mxu0 0.0
        %3005 = vmatprep.subr.mxu0 0.0
        %3006 = vmatpush1.xpose.msra.mxu0 0.0
        %3007 = vmatprep.subr.mxu0 0.0
        %3008 = vmatpush1.xpose.msra.mxu0 0.0
        %3009 = vmatprep.subr.mxu0 0.0
        %3010 = vmatpush1.xpose.msra.mxu0 0.0
        %3011 = vmatprep.subr.mxu0 0.0
        %3012 = vmatpush1.xpose.msra.mxu0 0.0
        %3013 = vmatprep.subr.mxu0 0.0
        %3014 = vmatpush1.xpose.msra.mxu0 0.0
        %3015 = vmatprep.subr.mxu0 0.0
        %3016 = vmatpush1.xpose.msra.mxu0 0.0
        %3017 = vmatprep.subr.mxu0 0.0
        %3018 = vmatpush1.xpose.msra.mxu0 0.0
        %3019 = vmatprep.subr.mxu0 0.0
        %3020 = vmatpush1.xpose.msra.mxu0 0.0
        %3021 = vmatprep.subr.mxu0 0.0
        %3022 = vmatpush1.xpose.msra.mxu0 0.0
        %3023 = vmatprep.mubr.f32.mxu0 0.0
        %3024 = vmatmul.mubr.f32.gmra.mrb[0].mxu0 %v2955
        %v3025 = vpop.f32.mrb[0].mxu0
        %v3026 = vadd.f32 0.0, %v3025
        %v3027 = vpop.f32.mrb[0].mxu0
        %3028 = vdwg.mxu0
        %v3030 = vunpack.c.l.s4 1983009808
        %v3031 = vunpack.c.0.s8 %v3030
        %v3032 = vlaneseq
        %v3033 = vshrl.u32 %v3032, 7
        %v3034 = vsub.s32 %v3031, %v3033
        %v3035 = vrot.slane %v1183, %v3034
        %3036 = vrot.lane.b32.xlu0 %v3035, 96
        %v3037 = vpop.permute.xlu0 %3036
        %v3038 = vsel %vm1211, %v1183, 0
        %v3040 = vsel %vm1211, %v3037, 0
        %3042 = vmatprep.subr.mxu0 0.0
        %3043 = vmatpush1.xpose.msra.mxu0 %v3040
        %3044 = vmatprep.subr.mxu0 0.0
        %3045 = vmatpush1.xpose.msra.mxu0 0.0
        %3046 = vmatprep.subr.mxu0 0.0
        %3047 = vmatpush1.xpose.msra.mxu0 0.0
        %3048 = vmatprep.subr.mxu0 0.0
        %3049 = vmatpush1.xpose.msra.mxu0 0.0
        %3050 = vmatprep.subr.mxu0 0.0
        %3051 = vmatpush1.xpose.msra.mxu0 0.0
        %3052 = vmatprep.subr.mxu0 0.0
        %3053 = vmatpush1.xpose.msra.mxu0 0.0
        %3054 = vmatprep.subr.mxu0 0.0
        %3055 = vmatpush1.xpose.msra.mxu0 0.0
        %3056 = vmatprep.subr.mxu0 0.0
        %3057 = vmatpush1.xpose.msra.mxu0 0.0
        %3058 = vmatprep.subr.mxu0 0.0
        %3059 = vmatpush1.xpose.msra.mxu0 0.0
        %3060 = vmatprep.subr.mxu0 0.0
        %3061 = vmatpush1.xpose.msra.mxu0 0.0
        %3062 = vmatprep.subr.mxu0 0.0
        %3063 = vmatpush1.xpose.msra.mxu0 0.0
        %3064 = vmatprep.subr.mxu0 0.0
        %3065 = vmatpush1.xpose.msra.mxu0 0.0
        %3066 = vmatprep.subr.mxu0 0.0
        %3067 = vmatpush1.xpose.msra.mxu0 0.0
        %3068 = vmatprep.subr.mxu0 0.0
        %3069 = vmatpush1.xpose.msra.mxu0 0.0
        %3070 = vmatprep.subr.mxu0 0.0
        %3071 = vmatpush1.xpose.msra.mxu0 0.0
        %3072 = vmatprep.subr.mxu0 0.0
        %3073 = vmatpush1.xpose.msra.mxu0 0.0
        %3074 = vmatprep.subr.mxu0 0.0
        %3075 = vmatpush1.xpose.msra.mxu0 0.0
        %3076 = vmatprep.subr.mxu0 0.0
        %3077 = vmatpush1.xpose.msra.mxu0 0.0
        %3078 = vmatprep.subr.mxu0 0.0
        %3079 = vmatpush1.xpose.msra.mxu0 0.0
        %3080 = vmatprep.subr.mxu0 0.0
        %3081 = vmatpush1.xpose.msra.mxu0 0.0
        %3082 = vmatprep.subr.mxu0 0.0
        %3083 = vmatpush1.xpose.msra.mxu0 0.0
        %3084 = vmatprep.subr.mxu0 0.0
        %3085 = vmatpush1.xpose.msra.mxu0 0.0
        %3086 = vmatprep.subr.mxu0 0.0
        %3087 = vmatpush1.xpose.msra.mxu0 0.0
        %3088 = vmatprep.subr.mxu0 0.0
        %3089 = vmatpush1.xpose.msra.mxu0 0.0
        %3090 = vmatprep.subr.mxu0 0.0
        %3091 = vmatpush1.xpose.msra.mxu0 0.0
        %3092 = vmatprep.subr.mxu0 0.0
        %3093 = vmatpush1.xpose.msra.mxu0 0.0
        %3094 = vmatprep.subr.mxu0 0.0
        %3095 = vmatpush1.xpose.msra.mxu0 0.0
        %3096 = vmatprep.subr.mxu0 0.0
        %3097 = vmatpush1.xpose.msra.mxu0 0.0
        %3098 = vmatprep.subr.mxu0 0.0
        %3099 = vmatpush1.xpose.msra.mxu0 0.0
        %3100 = vmatprep.subr.mxu0 0.0
        %3101 = vmatpush1.xpose.msra.mxu0 0.0
        %3102 = vmatprep.subr.mxu0 0.0
        %3103 = vmatpush1.xpose.msra.mxu0 0.0
        %3104 = vmatprep.subr.mxu0 0.0
        %3105 = vmatpush1.xpose.msra.mxu0 0.0
        %3106 = vmatprep.mubr.f32.mxu0 0.0
        %3107 = vmatmul.mubr.f32.gmra.mrb[0].mxu0 %v3038
        %v3108 = vpop.f32.mrb[0].mxu0
        %v3109 = vadd.f32 0.0, %v3108
        %v3110 = vpop.f32.mrb[0].mxu0
        %3111 = vdwg.mxu0
        %v3113 = vunpack.c.l.s4 1983009808
        %v3114 = vunpack.c.0.s8 %v3113
        %v3115 = vlaneseq
        %v3116 = vshrl.u32 %v3115, 7
        %v3117 = vsub.s32 %v3114, %v3116
        %v3118 = vrot.slane %v1185, %v3117
        %3119 = vrot.lane.b32.xlu0 %v3118, 96
        %v3120 = vpop.permute.xlu0 %3119
        %v3121 = vsel %vm1211, %v1185, 0
        %v3123 = vsel %vm1211, %v3120, 0
        %3125 = vmatprep.subr.mxu0 0.0
        %3126 = vmatpush1.xpose.msra.mxu0 %v3123
        %3127 = vmatprep.subr.mxu0 0.0
        %3128 = vmatpush1.xpose.msra.mxu0 0.0
        %3129 = vmatprep.subr.mxu0 0.0
        %3130 = vmatpush1.xpose.msra.mxu0 0.0
        %3131 = vmatprep.subr.mxu0 0.0
        %3132 = vmatpush1.xpose.msra.mxu0 0.0
        %3133 = vmatprep.subr.mxu0 0.0
        %3134 = vmatpush1.xpose.msra.mxu0 0.0
        %3135 = vmatprep.subr.mxu0 0.0
        %3136 = vmatpush1.xpose.msra.mxu0 0.0
        %3137 = vmatprep.subr.mxu0 0.0
        %3138 = vmatpush1.xpose.msra.mxu0 0.0
        %3139 = vmatprep.subr.mxu0 0.0
        %3140 = vmatpush1.xpose.msra.mxu0 0.0
        %3141 = vmatprep.subr.mxu0 0.0
        %3142 = vmatpush1.xpose.msra.mxu0 0.0
        %3143 = vmatprep.subr.mxu0 0.0
        %3144 = vmatpush1.xpose.msra.mxu0 0.0
        %3145 = vmatprep.subr.mxu0 0.0
        %3146 = vmatpush1.xpose.msra.mxu0 0.0
        %3147 = vmatprep.subr.mxu0 0.0
        %3148 = vmatpush1.xpose.msra.mxu0 0.0
        %3149 = vmatprep.subr.mxu0 0.0
        %3150 = vmatpush1.xpose.msra.mxu0 0.0
        %3151 = vmatprep.subr.mxu0 0.0
        %3152 = vmatpush1.xpose.msra.mxu0 0.0
        %3153 = vmatprep.subr.mxu0 0.0
        %3154 = vmatpush1.xpose.msra.mxu0 0.0
        %3155 = vmatprep.subr.mxu0 0.0
        %3156 = vmatpush1.xpose.msra.mxu0 0.0
        %3157 = vmatprep.subr.mxu0 0.0
        %3158 = vmatpush1.xpose.msra.mxu0 0.0
        %3159 = vmatprep.subr.mxu0 0.0
        %3160 = vmatpush1.xpose.msra.mxu0 0.0
        %3161 = vmatprep.subr.mxu0 0.0
        %3162 = vmatpush1.xpose.msra.mxu0 0.0
        %3163 = vmatprep.subr.mxu0 0.0
        %3164 = vmatpush1.xpose.msra.mxu0 0.0
        %3165 = vmatprep.subr.mxu0 0.0
        %3166 = vmatpush1.xpose.msra.mxu0 0.0
        %3167 = vmatprep.subr.mxu0 0.0
        %3168 = vmatpush1.xpose.msra.mxu0 0.0
        %3169 = vmatprep.subr.mxu0 0.0
        %3170 = vmatpush1.xpose.msra.mxu0 0.0
        %3171 = vmatprep.subr.mxu0 0.0
        %3172 = vmatpush1.xpose.msra.mxu0 0.0
        %3173 = vmatprep.subr.mxu0 0.0
        %3174 = vmatpush1.xpose.msra.mxu0 0.0
        %3175 = vmatprep.subr.mxu0 0.0
        %3176 = vmatpush1.xpose.msra.mxu0 0.0
        %3177 = vmatprep.subr.mxu0 0.0
        %3178 = vmatpush1.xpose.msra.mxu0 0.0
        %3179 = vmatprep.subr.mxu0 0.0
        %3180 = vmatpush1.xpose.msra.mxu0 0.0
        %3181 = vmatprep.subr.mxu0 0.0
        %3182 = vmatpush1.xpose.msra.mxu0 0.0
        %3183 = vmatprep.subr.mxu0 0.0
        %3184 = vmatpush1.xpose.msra.mxu0 0.0
        %3185 = vmatprep.subr.mxu0 0.0
        %3186 = vmatpush1.xpose.msra.mxu0 0.0
        %3187 = vmatprep.subr.mxu0 0.0
        %3188 = vmatpush1.xpose.msra.mxu0 0.0
        %3189 = vmatprep.mubr.f32.mxu0 0.0
        %3190 = vmatmul.mubr.f32.gmra.mrb[0].mxu0 %v3121
        %v3191 = vpop.f32.mrb[0].mxu0
        %v3192 = vadd.f32 0.0, %v3191
        %v3193 = vpop.f32.mrb[0].mxu0
        %3194 = vdwg.mxu0
        %v3196 = vunpack.c.l.s4 1983009808
        %v3197 = vunpack.c.0.s8 %v3196
        %v3198 = vlaneseq
        %v3199 = vshrl.u32 %v3198, 7
        %v3200 = vsub.s32 %v3197, %v3199
        %v3201 = vrot.slane %v1187, %v3200
        %3202 = vrot.lane.b32.xlu0 %v3201, 96
        %v3203 = vpop.permute.xlu0 %3202
        %v3204 = vsel %vm1211, %v1187, 0
        %v3206 = vsel %vm1211, %v3203, 0
        %3208 = vmatprep.subr.mxu0 0.0
        %3209 = vmatpush1.xpose.msra.mxu0 %v3206
        %3210 = vmatprep.subr.mxu0 0.0
        %3211 = vmatpush1.xpose.msra.mxu0 0.0
        %3212 = vmatprep.subr.mxu0 0.0
        %3213 = vmatpush1.xpose.msra.mxu0 0.0
        %3214 = vmatprep.subr.mxu0 0.0
        %3215 = vmatpush1.xpose.msra.mxu0 0.0
        %3216 = vmatprep.subr.mxu0 0.0
        %3217 = vmatpush1.xpose.msra.mxu0 0.0
        %3218 = vmatprep.subr.mxu0 0.0
        %3219 = vmatpush1.xpose.msra.mxu0 0.0
        %3220 = vmatprep.subr.mxu0 0.0
        %3221 = vmatpush1.xpose.msra.mxu0 0.0
        %3222 = vmatprep.subr.mxu0 0.0
        %3223 = vmatpush1.xpose.msra.mxu0 0.0
        %3224 = vmatprep.subr.mxu0 0.0
        %3225 = vmatpush1.xpose.msra.mxu0 0.0
        %3226 = vmatprep.subr.mxu0 0.0
        %3227 = vmatpush1.xpose.msra.mxu0 0.0
        %3228 = vmatprep.subr.mxu0 0.0
        %3229 = vmatpush1.xpose.msra.mxu0 0.0
        %3230 = vmatprep.subr.mxu0 0.0
        %3231 = vmatpush1.xpose.msra.mxu0 0.0
        %3232 = vmatprep.subr.mxu0 0.0
        %3233 = vmatpush1.xpose.msra.mxu0 0.0
        %3234 = vmatprep.subr.mxu0 0.0
        %3235 = vmatpush1.xpose.msra.mxu0 0.0
        %3236 = vmatprep.subr.mxu0 0.0
        %3237 = vmatpush1.xpose.msra.mxu0 0.0
        %3238 = vmatprep.subr.mxu0 0.0
        %3239 = vmatpush1.xpose.msra.mxu0 0.0
        %3240 = vmatprep.subr.mxu0 0.0
        %3241 = vmatpush1.xpose.msra.mxu0 0.0
        %3242 = vmatprep.subr.mxu0 0.0
        %3243 = vmatpush1.xpose.msra.mxu0 0.0
        %3244 = vmatprep.subr.mxu0 0.0
        %3245 = vmatpush1.xpose.msra.mxu0 0.0
        %3246 = vmatprep.subr.mxu0 0.0
        %3247 = vmatpush1.xpose.msra.mxu0 0.0
        %3248 = vmatprep.subr.mxu0 0.0
        %3249 = vmatpush1.xpose.msra.mxu0 0.0
        %3250 = vmatprep.subr.mxu0 0.0
        %3251 = vmatpush1.xpose.msra.mxu0 0.0
        %3252 = vmatprep.subr.mxu0 0.0
        %3253 = vmatpush1.xpose.msra.mxu0 0.0
        %3254 = vmatprep.subr.mxu0 0.0
        %3255 = vmatpush1.xpose.msra.mxu0 0.0
        %3256 = vmatprep.subr.mxu0 0.0
        %3257 = vmatpush1.xpose.msra.mxu0 0.0
        %3258 = vmatprep.subr.mxu0 0.0
        %3259 = vmatpush1.xpose.msra.mxu0 0.0
        %3260 = vmatprep.subr.mxu0 0.0
        %3261 = vmatpush1.xpose.msra.mxu0 0.0
        %3262 = vmatprep.subr.mxu0 0.0
        %3263 = vmatpush1.xpose.msra.mxu0 0.0
        %3264 = vmatprep.subr.mxu0 0.0
        %3265 = vmatpush1.xpose.msra.mxu0 0.0
        %3266 = vmatprep.subr.mxu0 0.0
        %3267 = vmatpush1.xpose.msra.mxu0 0.0
        %3268 = vmatprep.subr.mxu0 0.0
        %3269 = vmatpush1.xpose.msra.mxu0 0.0
        %3270 = vmatprep.subr.mxu0 0.0
        %3271 = vmatpush1.xpose.msra.mxu0 0.0
        %3272 = vmatprep.mubr.f32.mxu0 0.0
        %3273 = vmatmul.mubr.f32.gmra.mrb[0].mxu0 %v3204
        %v3274 = vpop.f32.mrb[0].mxu0
        %v3275 = vadd.f32 0.0, %v3274
        %v3276 = vpop.f32.mrb[0].mxu0
        %3277 = vdwg.mxu0
        %v3279 = vunpack.c.l.s4 1983009808
        %v3280 = vunpack.c.0.s8 %v3279
        %v3281 = vlaneseq
        %v3282 = vshrl.u32 %v3281, 7
        %v3283 = vsub.s32 %v3280, %v3282
        %v3284 = vrot.slane %v1189, %v3283
        %3285 = vrot.lane.b32.xlu0 %v3284, 96
        %v3286 = vpop.permute.xlu0 %3285
        %v3287 = vsel %vm1211, %v1189, 0
        %v3289 = vsel %vm1211, %v3286, 0
        %3291 = vmatprep.subr.mxu0 0.0
        %3292 = vmatpush1.xpose.msra.mxu0 %v3289
        %3293 = vmatprep.subr.mxu0 0.0
        %3294 = vmatpush1.xpose.msra.mxu0 0.0
        %3295 = vmatprep.subr.mxu0 0.0
        %3296 = vmatpush1.xpose.msra.mxu0 0.0
        %3297 = vmatprep.subr.mxu0 0.0
        %3298 = vmatpush1.xpose.msra.mxu0 0.0
        %3299 = vmatprep.subr.mxu0 0.0
        %3300 = vmatpush1.xpose.msra.mxu0 0.0
        %3301 = vmatprep.subr.mxu0 0.0
        %3302 = vmatpush1.xpose.msra.mxu0 0.0
        %3303 = vmatprep.subr.mxu0 0.0
        %3304 = vmatpush1.xpose.msra.mxu0 0.0
        %3305 = vmatprep.subr.mxu0 0.0
        %3306 = vmatpush1.xpose.msra.mxu0 0.0
        %3307 = vmatprep.subr.mxu0 0.0
        %3308 = vmatpush1.xpose.msra.mxu0 0.0
        %3309 = vmatprep.subr.mxu0 0.0
        %3310 = vmatpush1.xpose.msra.mxu0 0.0
        %3311 = vmatprep.subr.mxu0 0.0
        %3312 = vmatpush1.xpose.msra.mxu0 0.0
        %3313 = vmatprep.subr.mxu0 0.0
        %3314 = vmatpush1.xpose.msra.mxu0 0.0
        %3315 = vmatprep.subr.mxu0 0.0
        %3316 = vmatpush1.xpose.msra.mxu0 0.0
        %3317 = vmatprep.subr.mxu0 0.0
        %3318 = vmatpush1.xpose.msra.mxu0 0.0
        %3319 = vmatprep.subr.mxu0 0.0
        %3320 = vmatpush1.xpose.msra.mxu0 0.0
        %3321 = vmatprep.subr.mxu0 0.0
        %3322 = vmatpush1.xpose.msra.mxu0 0.0
        %3323 = vmatprep.subr.mxu0 0.0
        %3324 = vmatpush1.xpose.msra.mxu0 0.0
        %3325 = vmatprep.subr.mxu0 0.0
        %3326 = vmatpush1.xpose.msra.mxu0 0.0
        %3327 = vmatprep.subr.mxu0 0.0
        %3328 = vmatpush1.xpose.msra.mxu0 0.0
        %3329 = vmatprep.subr.mxu0 0.0
        %3330 = vmatpush1.xpose.msra.mxu0 0.0
        %3331 = vmatprep.subr.mxu0 0.0
        %3332 = vmatpush1.xpose.msra.mxu0 0.0
        %3333 = vmatprep.subr.mxu0 0.0
        %3334 = vmatpush1.xpose.msra.mxu0 0.0
        %3335 = vmatprep.subr.mxu0 0.0
        %3336 = vmatpush1.xpose.msra.mxu0 0.0
        %3337 = vmatprep.subr.mxu0 0.0
        %3338 = vmatpush1.xpose.msra.mxu0 0.0
        %3339 = vmatprep.subr.mxu0 0.0
        %3340 = vmatpush1.xpose.msra.mxu0 0.0
        %3341 = vmatprep.subr.mxu0 0.0
        %3342 = vmatpush1.xpose.msra.mxu0 0.0
        %3343 = vmatprep.subr.mxu0 0.0
        %3344 = vmatpush1.xpose.msra.mxu0 0.0
        %3345 = vmatprep.subr.mxu0 0.0
        %3346 = vmatpush1.xpose.msra.mxu0 0.0
        %3347 = vmatprep.subr.mxu0 0.0
        %3348 = vmatpush1.xpose.msra.mxu0 0.0
        %3349 = vmatprep.subr.mxu0 0.0
        %3350 = vmatpush1.xpose.msra.mxu0 0.0
        %3351 = vmatprep.subr.mxu0 0.0
        %3352 = vmatpush1.xpose.msra.mxu0 0.0
        %3353 = vmatprep.subr.mxu0 0.0
        %3354 = vmatpush1.xpose.msra.mxu0 0.0
        %3355 = vmatprep.mubr.f32.mxu0 0.0
        %3356 = vmatmul.mubr.f32.gmra.mrb[0].mxu0 %v3287
        %v3357 = vpop.f32.mrb[0].mxu0
        %v3358 = vadd.f32 0.0, %v3357
        %v3359 = vpop.f32.mrb[0].mxu0
        %3360 = vdwg.mxu0
        %v3362 = vunpack.c.l.s4 1983009808
        %v3363 = vunpack.c.0.s8 %v3362
        %v3364 = vlaneseq
        %v3365 = vshrl.u32 %v3364, 7
        %v3366 = vsub.s32 %v3363, %v3365
        %v3367 = vrot.slane %v1191, %v3366
        %3368 = vrot.lane.b32.xlu0 %v3367, 96
        %v3369 = vpop.permute.xlu0 %3368
        %v3370 = vsel %vm1211, %v1191, 0
        %v3372 = vsel %vm1211, %v3369, 0
        %3374 = vmatprep.subr.mxu0 0.0
        %3375 = vmatpush1.xpose.msra.mxu0 %v3372
        %3376 = vmatprep.subr.mxu0 0.0
        %3377 = vmatpush1.xpose.msra.mxu0 0.0
        %3378 = vmatprep.subr.mxu0 0.0
        %3379 = vmatpush1.xpose.msra.mxu0 0.0
        %3380 = vmatprep.subr.mxu0 0.0
        %3381 = vmatpush1.xpose.msra.mxu0 0.0
        %3382 = vmatprep.subr.mxu0 0.0
        %3383 = vmatpush1.xpose.msra.mxu0 0.0
        %3384 = vmatprep.subr.mxu0 0.0
        %3385 = vmatpush1.xpose.msra.mxu0 0.0
        %3386 = vmatprep.subr.mxu0 0.0
        %3387 = vmatpush1.xpose.msra.mxu0 0.0
        %3388 = vmatprep.subr.mxu0 0.0
        %3389 = vmatpush1.xpose.msra.mxu0 0.0
        %3390 = vmatprep.subr.mxu0 0.0
        %3391 = vmatpush1.xpose.msra.mxu0 0.0
        %3392 = vmatprep.subr.mxu0 0.0
        %3393 = vmatpush1.xpose.msra.mxu0 0.0
        %3394 = vmatprep.subr.mxu0 0.0
        %3395 = vmatpush1.xpose.msra.mxu0 0.0
        %3396 = vmatprep.subr.mxu0 0.0
        %3397 = vmatpush1.xpose.msra.mxu0 0.0
        %3398 = vmatprep.subr.mxu0 0.0
        %3399 = vmatpush1.xpose.msra.mxu0 0.0
        %3400 = vmatprep.subr.mxu0 0.0
        %3401 = vmatpush1.xpose.msra.mxu0 0.0
        %3402 = vmatprep.subr.mxu0 0.0
        %3403 = vmatpush1.xpose.msra.mxu0 0.0
        %3404 = vmatprep.subr.mxu0 0.0
        %3405 = vmatpush1.xpose.msra.mxu0 0.0
        %3406 = vmatprep.subr.mxu0 0.0
        %3407 = vmatpush1.xpose.msra.mxu0 0.0
        %3408 = vmatprep.subr.mxu0 0.0
        %3409 = vmatpush1.xpose.msra.mxu0 0.0
        %3410 = vmatprep.subr.mxu0 0.0
        %3411 = vmatpush1.xpose.msra.mxu0 0.0
        %3412 = vmatprep.subr.mxu0 0.0
        %3413 = vmatpush1.xpose.msra.mxu0 0.0
        %3414 = vmatprep.subr.mxu0 0.0
        %3415 = vmatpush1.xpose.msra.mxu0 0.0
        %3416 = vmatprep.subr.mxu0 0.0
        %3417 = vmatpush1.xpose.msra.mxu0 0.0
        %3418 = vmatprep.subr.mxu0 0.0
        %3419 = vmatpush1.xpose.msra.mxu0 0.0
        %3420 = vmatprep.subr.mxu0 0.0
        %3421 = vmatpush1.xpose.msra.mxu0 0.0
        %3422 = vmatprep.subr.mxu0 0.0
        %3423 = vmatpush1.xpose.msra.mxu0 0.0
        %3424 = vmatprep.subr.mxu0 0.0
        %3425 = vmatpush1.xpose.msra.mxu0 0.0
        %3426 = vmatprep.subr.mxu0 0.0
        %3427 = vmatpush1.xpose.msra.mxu0 0.0
        %3428 = vmatprep.subr.mxu0 0.0
        %3429 = vmatpush1.xpose.msra.mxu0 0.0
        %3430 = vmatprep.subr.mxu0 0.0
        %3431 = vmatpush1.xpose.msra.mxu0 0.0
        %3432 = vmatprep.subr.mxu0 0.0
        %3433 = vmatpush1.xpose.msra.mxu0 0.0
        %3434 = vmatprep.subr.mxu0 0.0
        %3435 = vmatpush1.xpose.msra.mxu0 0.0
        %3436 = vmatprep.subr.mxu0 0.0
        %3437 = vmatpush1.xpose.msra.mxu0 0.0
        %3438 = vmatprep.mubr.f32.mxu0 0.0
        %3439 = vmatmul.mubr.f32.gmra.mrb[0].mxu0 %v3370
        %v3440 = vpop.f32.mrb[0].mxu0
        %v3441 = vadd.f32 0.0, %v3440
        %v3442 = vpop.f32.mrb[0].mxu0
        %3443 = vdwg.mxu0
        %v3445 = vunpack.c.l.s4 1983009808
        %v3446 = vunpack.c.0.s8 %v3445
        %v3447 = vlaneseq
        %v3448 = vshrl.u32 %v3447, 7
        %v3449 = vsub.s32 %v3446, %v3448
        %v3450 = vrot.slane %v1193, %v3449
        %3451 = vrot.lane.b32.xlu0 %v3450, 96
        %v3452 = vpop.permute.xlu0 %3451
        %v3453 = vsel %vm1211, %v1193, 0
        %v3455 = vsel %vm1211, %v3452, 0
        %3457 = vmatprep.subr.mxu0 0.0
        %3458 = vmatpush1.xpose.msra.mxu0 %v3455
        %3459 = vmatprep.subr.mxu0 0.0
        %3460 = vmatpush1.xpose.msra.mxu0 0.0
        %3461 = vmatprep.subr.mxu0 0.0
        %3462 = vmatpush1.xpose.msra.mxu0 0.0
        %3463 = vmatprep.subr.mxu0 0.0
        %3464 = vmatpush1.xpose.msra.mxu0 0.0
        %3465 = vmatprep.subr.mxu0 0.0
        %3466 = vmatpush1.xpose.msra.mxu0 0.0
        %3467 = vmatprep.subr.mxu0 0.0
        %3468 = vmatpush1.xpose.msra.mxu0 0.0
        %3469 = vmatprep.subr.mxu0 0.0
        %3470 = vmatpush1.xpose.msra.mxu0 0.0
        %3471 = vmatprep.subr.mxu0 0.0
        %3472 = vmatpush1.xpose.msra.mxu0 0.0
        %3473 = vmatprep.subr.mxu0 0.0
        %3474 = vmatpush1.xpose.msra.mxu0 0.0
        %3475 = vmatprep.subr.mxu0 0.0
        %3476 = vmatpush1.xpose.msra.mxu0 0.0
        %3477 = vmatprep.subr.mxu0 0.0
        %3478 = vmatpush1.xpose.msra.mxu0 0.0
        %3479 = vmatprep.subr.mxu0 0.0
        %3480 = vmatpush1.xpose.msra.mxu0 0.0
        %3481 = vmatprep.subr.mxu0 0.0
        %3482 = vmatpush1.xpose.msra.mxu0 0.0
        %3483 = vmatprep.subr.mxu0 0.0
        %3484 = vmatpush1.xpose.msra.mxu0 0.0
        %3485 = vmatprep.subr.mxu0 0.0
        %3486 = vmatpush1.xpose.msra.mxu0 0.0
        %3487 = vmatprep.subr.mxu0 0.0
        %3488 = vmatpush1.xpose.msra.mxu0 0.0
        %3489 = vmatprep.subr.mxu0 0.0
        %3490 = vmatpush1.xpose.msra.mxu0 0.0
        %3491 = vmatprep.subr.mxu0 0.0
        %3492 = vmatpush1.xpose.msra.mxu0 0.0
        %3493 = vmatprep.subr.mxu0 0.0
        %3494 = vmatpush1.xpose.msra.mxu0 0.0
        %3495 = vmatprep.subr.mxu0 0.0
        %3496 = vmatpush1.xpose.msra.mxu0 0.0
        %3497 = vmatprep.subr.mxu0 0.0
        %3498 = vmatpush1.xpose.msra.mxu0 0.0
        %3499 = vmatprep.subr.mxu0 0.0
        %3500 = vmatpush1.xpose.msra.mxu0 0.0
        %3501 = vmatprep.subr.mxu0 0.0
        %3502 = vmatpush1.xpose.msra.mxu0 0.0
        %3503 = vmatprep.subr.mxu0 0.0
        %3504 = vmatpush1.xpose.msra.mxu0 0.0
        %3505 = vmatprep.subr.mxu0 0.0
        %3506 = vmatpush1.xpose.msra.mxu0 0.0
        %3507 = vmatprep.subr.mxu0 0.0
        %3508 = vmatpush1.xpose.msra.mxu0 0.0
        %3509 = vmatprep.subr.mxu0 0.0
        %3510 = vmatpush1.xpose.msra.mxu0 0.0
        %3511 = vmatprep.subr.mxu0 0.0
        %3512 = vmatpush1.xpose.msra.mxu0 0.0
        %3513 = vmatprep.subr.mxu0 0.0
        %3514 = vmatpush1.xpose.msra.mxu0 0.0
        %3515 = vmatprep.subr.mxu0 0.0
        %3516 = vmatpush1.xpose.msra.mxu0 0.0
        %3517 = vmatprep.subr.mxu0 0.0
        %3518 = vmatpush1.xpose.msra.mxu0 0.0
        %3519 = vmatprep.subr.mxu0 0.0
        %3520 = vmatpush1.xpose.msra.mxu0 0.0
        %3521 = vmatprep.mubr.f32.mxu0 0.0
        %3522 = vmatmul.mubr.f32.gmra.mrb[0].mxu0 %v3453
        %v3523 = vpop.f32.mrb[0].mxu0
        %v3524 = vadd.f32 0.0, %v3523
        %v3525 = vpop.f32.mrb[0].mxu0
        %3526 = vdwg.mxu0
        %v3528 = vunpack.c.l.s4 1983009808
        %v3529 = vunpack.c.0.s8 %v3528
        %v3530 = vlaneseq
        %v3531 = vshrl.u32 %v3530, 7
        %v3532 = vsub.s32 %v3529, %v3531
        %v3533 = vrot.slane %v1195, %v3532
        %3534 = vrot.lane.b32.xlu0 %v3533, 96
        %v3535 = vpop.permute.xlu0 %3534
        %v3536 = vsel %vm1211, %v1195, 0
        %v3538 = vsel %vm1211, %v3535, 0
        %3540 = vmatprep.subr.mxu0 0.0
        %3541 = vmatpush1.xpose.msra.mxu0 %v3538
        %3542 = vmatprep.subr.mxu0 0.0
        %3543 = vmatpush1.xpose.msra.mxu0 0.0
        %3544 = vmatprep.subr.mxu0 0.0
        %3545 = vmatpush1.xpose.msra.mxu0 0.0
        %3546 = vmatprep.subr.mxu0 0.0
        %3547 = vmatpush1.xpose.msra.mxu0 0.0
        %3548 = vmatprep.subr.mxu0 0.0
        %3549 = vmatpush1.xpose.msra.mxu0 0.0
        %3550 = vmatprep.subr.mxu0 0.0
        %3551 = vmatpush1.xpose.msra.mxu0 0.0
        %3552 = vmatprep.subr.mxu0 0.0
        %3553 = vmatpush1.xpose.msra.mxu0 0.0
        %3554 = vmatprep.subr.mxu0 0.0
        %3555 = vmatpush1.xpose.msra.mxu0 0.0
        %3556 = vmatprep.subr.mxu0 0.0
        %3557 = vmatpush1.xpose.msra.mxu0 0.0
        %3558 = vmatprep.subr.mxu0 0.0
        %3559 = vmatpush1.xpose.msra.mxu0 0.0
        %3560 = vmatprep.subr.mxu0 0.0
        %3561 = vmatpush1.xpose.msra.mxu0 0.0
        %3562 = vmatprep.subr.mxu0 0.0
        %3563 = vmatpush1.xpose.msra.mxu0 0.0
        %3564 = vmatprep.subr.mxu0 0.0
        %3565 = vmatpush1.xpose.msra.mxu0 0.0
        %3566 = vmatprep.subr.mxu0 0.0
        %3567 = vmatpush1.xpose.msra.mxu0 0.0
        %3568 = vmatprep.subr.mxu0 0.0
        %3569 = vmatpush1.xpose.msra.mxu0 0.0
        %3570 = vmatprep.subr.mxu0 0.0
        %3571 = vmatpush1.xpose.msra.mxu0 0.0
        %3572 = vmatprep.subr.mxu0 0.0
        %3573 = vmatpush1.xpose.msra.mxu0 0.0
        %3574 = vmatprep.subr.mxu0 0.0
        %3575 = vmatpush1.xpose.msra.mxu0 0.0
        %3576 = vmatprep.subr.mxu0 0.0
        %3577 = vmatpush1.xpose.msra.mxu0 0.0
        %3578 = vmatprep.subr.mxu0 0.0
        %3579 = vmatpush1.xpose.msra.mxu0 0.0
        %3580 = vmatprep.subr.mxu0 0.0
        %3581 = vmatpush1.xpose.msra.mxu0 0.0
        %3582 = vmatprep.subr.mxu0 0.0
        %3583 = vmatpush1.xpose.msra.mxu0 0.0
        %3584 = vmatprep.subr.mxu0 0.0
        %3585 = vmatpush1.xpose.msra.mxu0 0.0
        %3586 = vmatprep.subr.mxu0 0.0
        %3587 = vmatpush1.xpose.msra.mxu0 0.0
        %3588 = vmatprep.subr.mxu0 0.0
        %3589 = vmatpush1.xpose.msra.mxu0 0.0
        %3590 = vmatprep.subr.mxu0 0.0
        %3591 = vmatpush1.xpose.msra.mxu0 0.0
        %3592 = vmatprep.subr.mxu0 0.0
        %3593 = vmatpush1.xpose.msra.mxu0 0.0
        %3594 = vmatprep.subr.mxu0 0.0
        %3595 = vmatpush1.xpose.msra.mxu0 0.0
        %3596 = vmatprep.subr.mxu0 0.0
        %3597 = vmatpush1.xpose.msra.mxu0 0.0
        %3598 = vmatprep.subr.mxu0 0.0
        %3599 = vmatpush1.xpose.msra.mxu0 0.0
        %3600 = vmatprep.subr.mxu0 0.0
        %3601 = vmatpush1.xpose.msra.mxu0 0.0
        %3602 = vmatprep.subr.mxu0 0.0
        %3603 = vmatpush1.xpose.msra.mxu0 0.0
        %3604 = vmatprep.mubr.f32.mxu0 0.0
        %3605 = vmatmul.mubr.f32.gmra.mrb[0].mxu0 %v3536
        %v3606 = vpop.f32.mrb[0].mxu0
        %v3607 = vadd.f32 0.0, %v3606
        %v3608 = vpop.f32.mrb[0].mxu0
        %3609 = vdwg.mxu0
        %v3611 = vunpack.c.l.s4 1983009808
        %v3612 = vunpack.c.0.s8 %v3611
        %v3613 = vlaneseq
        %v3614 = vshrl.u32 %v3613, 7
        %v3615 = vsub.s32 %v3612, %v3614
        %v3616 = vrot.slane %v1197, %v3615
        %3617 = vrot.lane.b32.xlu0 %v3616, 96
        %v3618 = vpop.permute.xlu0 %3617
        %v3619 = vsel %vm1211, %v1197, 0
        %v3621 = vsel %vm1211, %v3618, 0
        %3623 = vmatprep.subr.mxu0 0.0
        %3624 = vmatpush1.xpose.msra.mxu0 %v3621
        %3625 = vmatprep.subr.mxu0 0.0
        %3626 = vmatpush1.xpose.msra.mxu0 0.0
        %3627 = vmatprep.subr.mxu0 0.0
        %3628 = vmatpush1.xpose.msra.mxu0 0.0
        %3629 = vmatprep.subr.mxu0 0.0
        %3630 = vmatpush1.xpose.msra.mxu0 0.0
        %3631 = vmatprep.subr.mxu0 0.0
        %3632 = vmatpush1.xpose.msra.mxu0 0.0
        %3633 = vmatprep.subr.mxu0 0.0
        %3634 = vmatpush1.xpose.msra.mxu0 0.0
        %3635 = vmatprep.subr.mxu0 0.0
        %3636 = vmatpush1.xpose.msra.mxu0 0.0
        %3637 = vmatprep.subr.mxu0 0.0
        %3638 = vmatpush1.xpose.msra.mxu0 0.0
        %3639 = vmatprep.subr.mxu0 0.0
        %3640 = vmatpush1.xpose.msra.mxu0 0.0
        %3641 = vmatprep.subr.mxu0 0.0
        %3642 = vmatpush1.xpose.msra.mxu0 0.0
        %3643 = vmatprep.subr.mxu0 0.0
        %3644 = vmatpush1.xpose.msra.mxu0 0.0
        %3645 = vmatprep.subr.mxu0 0.0
        %3646 = vmatpush1.xpose.msra.mxu0 0.0
        %3647 = vmatprep.subr.mxu0 0.0
        %3648 = vmatpush1.xpose.msra.mxu0 0.0
        %3649 = vmatprep.subr.mxu0 0.0
        %3650 = vmatpush1.xpose.msra.mxu0 0.0
        %3651 = vmatprep.subr.mxu0 0.0
        %3652 = vmatpush1.xpose.msra.mxu0 0.0
        %3653 = vmatprep.subr.mxu0 0.0
        %3654 = vmatpush1.xpose.msra.mxu0 0.0
        %3655 = vmatprep.subr.mxu0 0.0
        %3656 = vmatpush1.xpose.msra.mxu0 0.0
        %3657 = vmatprep.subr.mxu0 0.0
        %3658 = vmatpush1.xpose.msra.mxu0 0.0
        %3659 = vmatprep.subr.mxu0 0.0
        %3660 = vmatpush1.xpose.msra.mxu0 0.0
        %3661 = vmatprep.subr.mxu0 0.0
        %3662 = vmatpush1.xpose.msra.mxu0 0.0
        %3663 = vmatprep.subr.mxu0 0.0
        %3664 = vmatpush1.xpose.msra.mxu0 0.0
        %3665 = vmatprep.subr.mxu0 0.0
        %3666 = vmatpush1.xpose.msra.mxu0 0.0
        %3667 = vmatprep.subr.mxu0 0.0
        %3668 = vmatpush1.xpose.msra.mxu0 0.0
        %3669 = vmatprep.subr.mxu0 0.0
        %3670 = vmatpush1.xpose.msra.mxu0 0.0
        %3671 = vmatprep.subr.mxu0 0.0
        %3672 = vmatpush1.xpose.msra.mxu0 0.0
        %3673 = vmatprep.subr.mxu0 0.0
        %3674 = vmatpush1.xpose.msra.mxu0 0.0
        %3675 = vmatprep.subr.mxu0 0.0
        %3676 = vmatpush1.xpose.msra.mxu0 0.0
        %3677 = vmatprep.subr.mxu0 0.0
        %3678 = vmatpush1.xpose.msra.mxu0 0.0
        %3679 = vmatprep.subr.mxu0 0.0
        %3680 = vmatpush1.xpose.msra.mxu0 0.0
        %3681 = vmatprep.subr.mxu0 0.0
        %3682 = vmatpush1.xpose.msra.mxu0 0.0
        %3683 = vmatprep.subr.mxu0 0.0
        %3684 = vmatpush1.xpose.msra.mxu0 0.0
        %3685 = vmatprep.subr.mxu0 0.0
        %3686 = vmatpush1.xpose.msra.mxu0 0.0
        %3687 = vmatprep.mubr.f32.mxu0 0.0
        %3688 = vmatmul.mubr.f32.gmra.mrb[0].mxu0 %v3619
        %v3689 = vpop.f32.mrb[0].mxu0
        %v3690 = vadd.f32 0.0, %v3689
        %v3691 = vpop.f32.mrb[0].mxu0
        %3692 = vdwg.mxu0
        %v3694 = vunpack.c.l.s4 1983009808
        %v3695 = vunpack.c.0.s8 %v3694
        %v3696 = vlaneseq
        %v3697 = vshrl.u32 %v3696, 7
        %v3698 = vsub.s32 %v3695, %v3697
        %v3699 = vrot.slane %v1199, %v3698
        %3700 = vrot.lane.b32.xlu0 %v3699, 96
        %v3701 = vpop.permute.xlu0 %3700
        %v3702 = vsel %vm1211, %v1199, 0
        %v3704 = vsel %vm1211, %v3701, 0
        %3706 = vmatprep.subr.mxu0 0.0
        %3707 = vmatpush1.xpose.msra.mxu0 %v3704
        %3708 = vmatprep.subr.mxu0 0.0
        %3709 = vmatpush1.xpose.msra.mxu0 0.0
        %3710 = vmatprep.subr.mxu0 0.0
        %3711 = vmatpush1.xpose.msra.mxu0 0.0
        %3712 = vmatprep.subr.mxu0 0.0
        %3713 = vmatpush1.xpose.msra.mxu0 0.0
        %3714 = vmatprep.subr.mxu0 0.0
        %3715 = vmatpush1.xpose.msra.mxu0 0.0
        %3716 = vmatprep.subr.mxu0 0.0
        %3717 = vmatpush1.xpose.msra.mxu0 0.0
        %3718 = vmatprep.subr.mxu0 0.0
        %3719 = vmatpush1.xpose.msra.mxu0 0.0
        %3720 = vmatprep.subr.mxu0 0.0
        %3721 = vmatpush1.xpose.msra.mxu0 0.0
        %3722 = vmatprep.subr.mxu0 0.0
        %3723 = vmatpush1.xpose.msra.mxu0 0.0
        %3724 = vmatprep.subr.mxu0 0.0
        %3725 = vmatpush1.xpose.msra.mxu0 0.0
        %3726 = vmatprep.subr.mxu0 0.0
        %3727 = vmatpush1.xpose.msra.mxu0 0.0
        %3728 = vmatprep.subr.mxu0 0.0
        %3729 = vmatpush1.xpose.msra.mxu0 0.0
        %3730 = vmatprep.subr.mxu0 0.0
        %3731 = vmatpush1.xpose.msra.mxu0 0.0
        %3732 = vmatprep.subr.mxu0 0.0
        %3733 = vmatpush1.xpose.msra.mxu0 0.0
        %3734 = vmatprep.subr.mxu0 0.0
        %3735 = vmatpush1.xpose.msra.mxu0 0.0
        %3736 = vmatprep.subr.mxu0 0.0
        %3737 = vmatpush1.xpose.msra.mxu0 0.0
        %3738 = vmatprep.subr.mxu0 0.0
        %3739 = vmatpush1.xpose.msra.mxu0 0.0
        %3740 = vmatprep.subr.mxu0 0.0
        %3741 = vmatpush1.xpose.msra.mxu0 0.0
        %3742 = vmatprep.subr.mxu0 0.0
        %3743 = vmatpush1.xpose.msra.mxu0 0.0
        %3744 = vmatprep.subr.mxu0 0.0
        %3745 = vmatpush1.xpose.msra.mxu0 0.0
        %3746 = vmatprep.subr.mxu0 0.0
        %3747 = vmatpush1.xpose.msra.mxu0 0.0
        %3748 = vmatprep.subr.mxu0 0.0
        %3749 = vmatpush1.xpose.msra.mxu0 0.0
        %3750 = vmatprep.subr.mxu0 0.0
        %3751 = vmatpush1.xpose.msra.mxu0 0.0
        %3752 = vmatprep.subr.mxu0 0.0
        %3753 = vmatpush1.xpose.msra.mxu0 0.0
        %3754 = vmatprep.subr.mxu0 0.0
        %3755 = vmatpush1.xpose.msra.mxu0 0.0
        %3756 = vmatprep.subr.mxu0 0.0
        %3757 = vmatpush1.xpose.msra.mxu0 0.0
        %3758 = vmatprep.subr.mxu0 0.0
        %3759 = vmatpush1.xpose.msra.mxu0 0.0
        %3760 = vmatprep.subr.mxu0 0.0
        %3761 = vmatpush1.xpose.msra.mxu0 0.0
        %3762 = vmatprep.subr.mxu0 0.0
        %3763 = vmatpush1.xpose.msra.mxu0 0.0
        %3764 = vmatprep.subr.mxu0 0.0
        %3765 = vmatpush1.xpose.msra.mxu0 0.0
        %3766 = vmatprep.subr.mxu0 0.0
        %3767 = vmatpush1.xpose.msra.mxu0 0.0
        %3768 = vmatprep.subr.mxu0 0.0
        %3769 = vmatpush1.xpose.msra.mxu0 0.0
        %3770 = vmatprep.mubr.f32.mxu0 0.0
        %3771 = vmatmul.mubr.f32.gmra.mrb[0].mxu0 %v3702
        %v3772 = vpop.f32.mrb[0].mxu0
        %v3773 = vadd.f32 0.0, %v3772
        %v3774 = vpop.f32.mrb[0].mxu0
        %3775 = vdwg.mxu0
        %v3777 = vunpack.c.l.s4 1983009808
        %v3778 = vunpack.c.0.s8 %v3777
        %v3779 = vlaneseq
        %v3780 = vshrl.u32 %v3779, 7
        %v3781 = vsub.s32 %v3778, %v3780
        %v3782 = vrot.slane %v1201, %v3781
        %3783 = vrot.lane.b32.xlu0 %v3782, 96
        %v3784 = vpop.permute.xlu0 %3783
        %v3785 = vsel %vm1211, %v1201, 0
        %v3787 = vsel %vm1211, %v3784, 0
        %3789 = vmatprep.subr.mxu0 0.0
        %3790 = vmatpush1.xpose.msra.mxu0 %v3787
        %3791 = vmatprep.subr.mxu0 0.0
        %3792 = vmatpush1.xpose.msra.mxu0 0.0
        %3793 = vmatprep.subr.mxu0 0.0
        %3794 = vmatpush1.xpose.msra.mxu0 0.0
        %3795 = vmatprep.subr.mxu0 0.0
        %3796 = vmatpush1.xpose.msra.mxu0 0.0
        %3797 = vmatprep.subr.mxu0 0.0
        %3798 = vmatpush1.xpose.msra.mxu0 0.0
        %3799 = vmatprep.subr.mxu0 0.0
        %3800 = vmatpush1.xpose.msra.mxu0 0.0
        %3801 = vmatprep.subr.mxu0 0.0
        %3802 = vmatpush1.xpose.msra.mxu0 0.0
        %3803 = vmatprep.subr.mxu0 0.0
        %3804 = vmatpush1.xpose.msra.mxu0 0.0
        %3805 = vmatprep.subr.mxu0 0.0
        %3806 = vmatpush1.xpose.msra.mxu0 0.0
        %3807 = vmatprep.subr.mxu0 0.0
        %3808 = vmatpush1.xpose.msra.mxu0 0.0
        %3809 = vmatprep.subr.mxu0 0.0
        %3810 = vmatpush1.xpose.msra.mxu0 0.0
        %3811 = vmatprep.subr.mxu0 0.0
        %3812 = vmatpush1.xpose.msra.mxu0 0.0
        %3813 = vmatprep.subr.mxu0 0.0
        %3814 = vmatpush1.xpose.msra.mxu0 0.0
        %3815 = vmatprep.subr.mxu0 0.0
        %3816 = vmatpush1.xpose.msra.mxu0 0.0
        %3817 = vmatprep.subr.mxu0 0.0
        %3818 = vmatpush1.xpose.msra.mxu0 0.0
        %3819 = vmatprep.subr.mxu0 0.0
        %3820 = vmatpush1.xpose.msra.mxu0 0.0
        %3821 = vmatprep.subr.mxu0 0.0
        %3822 = vmatpush1.xpose.msra.mxu0 0.0
        %3823 = vmatprep.subr.mxu0 0.0
        %3824 = vmatpush1.xpose.msra.mxu0 0.0
        %3825 = vmatprep.subr.mxu0 0.0
        %3826 = vmatpush1.xpose.msra.mxu0 0.0
        %3827 = vmatprep.subr.mxu0 0.0
        %3828 = vmatpush1.xpose.msra.mxu0 0.0
        %3829 = vmatprep.subr.mxu0 0.0
        %3830 = vmatpush1.xpose.msra.mxu0 0.0
        %3831 = vmatprep.subr.mxu0 0.0
        %3832 = vmatpush1.xpose.msra.mxu0 0.0
        %3833 = vmatprep.subr.mxu0 0.0
        %3834 = vmatpush1.xpose.msra.mxu0 0.0
        %3835 = vmatprep.subr.mxu0 0.0
        %3836 = vmatpush1.xpose.msra.mxu0 0.0
        %3837 = vmatprep.subr.mxu0 0.0
        %3838 = vmatpush1.xpose.msra.mxu0 0.0
        %3839 = vmatprep.subr.mxu0 0.0
        %3840 = vmatpush1.xpose.msra.mxu0 0.0
        %3841 = vmatprep.subr.mxu0 0.0
        %3842 = vmatpush1.xpose.msra.mxu0 0.0
        %3843 = vmatprep.subr.mxu0 0.0
        %3844 = vmatpush1.xpose.msra.mxu0 0.0
        %3845 = vmatprep.subr.mxu0 0.0
        %3846 = vmatpush1.xpose.msra.mxu0 0.0
        %3847 = vmatprep.subr.mxu0 0.0
        %3848 = vmatpush1.xpose.msra.mxu0 0.0
        %3849 = vmatprep.subr.mxu0 0.0
        %3850 = vmatpush1.xpose.msra.mxu0 0.0
        %3851 = vmatprep.subr.mxu0 0.0
        %3852 = vmatpush1.xpose.msra.mxu0 0.0
        %3853 = vmatprep.mubr.f32.mxu0 0.0
        %3854 = vmatmul.mubr.f32.gmra.mrb[0].mxu0 %v3785
        %v3855 = vpop.f32.mrb[0].mxu0
        %v3856 = vadd.f32 0.0, %v3855
        %v3857 = vpop.f32.mrb[0].mxu0
        %3858 = vdwg.mxu0
        %v3859 = vmul.f32 %v1283, 0.35355338
        %v3860 = vmul.f32 %v1366, 0.35355338
        %v3861 = vmul.f32 %v1449, 0.35355338
        %v3862 = vmul.f32 %v1532, 0.35355338
        %v3863 = vmul.f32 %v1615, 0.35355338
        %v3864 = vmul.f32 %v1698, 0.35355338
        %v3865 = vmul.f32 %v1781, 0.35355338
        %v3866 = vmul.f32 %v1864, 0.35355338
        %v3867 = vmul.f32 %v1947, 0.35355338
        %v3868 = vmul.f32 %v2030, 0.35355338
        %v3869 = vmul.f32 %v2113, 0.35355338
        %v3870 = vmul.f32 %v2196, 0.35355338
        %v3871 = vmul.f32 %v2279, 0.35355338
        %v3872 = vmul.f32 %v2362, 0.35355338
        %v3873 = vmul.f32 %v2445, 0.35355338
        %v3874 = vmul.f32 %v2528, 0.35355338
        %v3875 = vmul.f32 %v2611, 0.35355338
        %v3876 = vmul.f32 %v2694, 0.35355338
        %v3877 = vmul.f32 %v2777, 0.35355338
        %v3878 = vmul.f32 %v2860, 0.35355338
        %v3879 = vmul.f32 %v2943, 0.35355338
        %v3880 = vmul.f32 %v3026, 0.35355338
        %v3881 = vmul.f32 %v3109, 0.35355338
        %v3882 = vmul.f32 %v3192, 0.35355338
        %v3883 = vmul.f32 %v3275, 0.35355338
        %v3884 = vmul.f32 %v3358, 0.35355338
        %v3885 = vmul.f32 %v3441, 0.35355338
        %v3886 = vmul.f32 %v3524, 0.35355338
        %v3887 = vmul.f32 %v3607, 0.35355338
        %v3888 = vmul.f32 %v3690, 0.35355338
        %v3889 = vmul.f32 %v3773, 0.35355338
        %v3890 = vmul.f32 %v3856, 0.35355338
        %vm3891 = vcmask 9216
        %v3892 = vsel %vm3891, %v3859, -inf
        %3893 = vmax.xlane.f32.xlu0 %v3892
        %v3894 = vpop.xlane.xlu0 %3893
        %v3895 = vsel %vm3891, %v3860, -inf
        %3896 = vmax.xlane.f32.xlu0 %v3895
        %v3897 = vpop.xlane.xlu0 %3896
        %v3898 = vsel %vm3891, %v3861, -inf
        %3899 = vmax.xlane.f32.xlu0 %v3898
        %v3900 = vpop.xlane.xlu0 %3899
        %v3901 = vsel %vm3891, %v3862, -inf
        %3902 = vmax.xlane.f32.xlu0 %v3901
        %v3903 = vpop.xlane.xlu0 %3902
        %v3904 = vsel %vm3891, %v3863, -inf
        %3905 = vmax.xlane.f32.xlu0 %v3904
        %v3906 = vpop.xlane.xlu0 %3905
        %v3907 = vsel %vm3891, %v3864, -inf
        %3908 = vmax.xlane.f32.xlu0 %v3907
        %v3909 = vpop.xlane.xlu0 %3908
        %v3910 = vsel %vm3891, %v3865, -inf
        %3911 = vmax.xlane.f32.xlu0 %v3910
        %v3912 = vpop.xlane.xlu0 %3911
        %v3913 = vsel %vm3891, %v3866, -inf
        %3914 = vmax.xlane.f32.xlu0 %v3913
        %v3915 = vpop.xlane.xlu0 %3914
        %v3916 = vsel %vm3891, %v3867, -inf
        %3917 = vmax.xlane.f32.xlu0 %v3916
        %v3918 = vpop.xlane.xlu0 %3917
        %v3919 = vsel %vm3891, %v3868, -inf
        %3920 = vmax.xlane.f32.xlu0 %v3919
        %v3921 = vpop.xlane.xlu0 %3920
        %v3922 = vsel %vm3891, %v3869, -inf
        %3923 = vmax.xlane.f32.xlu0 %v3922
        %v3924 = vpop.xlane.xlu0 %3923
        %v3925 = vsel %vm3891, %v3870, -inf
        %3926 = vmax.xlane.f32.xlu0 %v3925
        %v3927 = vpop.xlane.xlu0 %3926
        %v3928 = vsel %vm3891, %v3871, -inf
        %3929 = vmax.xlane.f32.xlu0 %v3928
        %v3930 = vpop.xlane.xlu0 %3929
        %v3931 = vsel %vm3891, %v3872, -inf
        %3932 = vmax.xlane.f32.xlu0 %v3931
        %v3933 = vpop.xlane.xlu0 %3932
        %v3934 = vsel %vm3891, %v3873, -inf
        %3935 = vmax.xlane.f32.xlu0 %v3934
        %v3936 = vpop.xlane.xlu0 %3935
        %v3937 = vsel %vm3891, %v3874, -inf
        %3938 = vmax.xlane.f32.xlu0 %v3937
        %v3939 = vpop.xlane.xlu0 %3938
        %v3940 = vsel %vm3891, %v3875, -inf
        %3941 = vmax.xlane.f32.xlu0 %v3940
        %v3942 = vpop.xlane.xlu0 %3941
        %v3943 = vsel %vm3891, %v3876, -inf
        %3944 = vmax.xlane.f32.xlu0 %v3943
        %v3945 = vpop.xlane.xlu0 %3944
        %v3946 = vsel %vm3891, %v3877, -inf
        %3947 = vmax.xlane.f32.xlu0 %v3946
        %v3948 = vpop.xlane.xlu0 %3947
        %v3949 = vsel %vm3891, %v3878, -inf
        %3950 = vmax.xlane.f32.xlu0 %v3949
        %v3951 = vpop.xlane.xlu0 %3950
        %v3952 = vsel %vm3891, %v3879, -inf
        %3953 = vmax.xlane.f32.xlu0 %v3952
        %v3954 = vpop.xlane.xlu0 %3953
        %v3955 = vsel %vm3891, %v3880, -inf
        %3956 = vmax.xlane.f32.xlu0 %v3955
        %v3957 = vpop.xlane.xlu0 %3956
        %v3958 = vsel %vm3891, %v3881, -inf
        %3959 = vmax.xlane.f32.xlu0 %v3958
        %v3960 = vpop.xlane.xlu0 %3959
        %v3961 = vsel %vm3891, %v3882, -inf
        %3962 = vmax.xlane.f32.xlu0 %v3961
        %v3963 = vpop.xlane.xlu0 %3962
        %v3964 = vsel %vm3891, %v3883, -inf
        %3965 = vmax.xlane.f32.xlu0 %v3964
        %v3966 = vpop.xlane.xlu0 %3965
        %v3967 = vsel %vm3891, %v3884, -inf
        %3968 = vmax.xlane.f32.xlu0 %v3967
        %v3969 = vpop.xlane.xlu0 %3968
        %v3970 = vsel %vm3891, %v3885, -inf
        %3971 = vmax.xlane.f32.xlu0 %v3970
        %v3972 = vpop.xlane.xlu0 %3971
        %v3973 = vsel %vm3891, %v3886, -inf
        %3974 = vmax.xlane.f32.xlu0 %v3973
        %v3975 = vpop.xlane.xlu0 %3974
        %v3976 = vsel %vm3891, %v3887, -inf
        %3977 = vmax.xlane.f32.xlu0 %v3976
        %v3978 = vpop.xlane.xlu0 %3977
        %v3979 = vsel %vm3891, %v3888, -inf
        %3980 = vmax.xlane.f32.xlu0 %v3979
        %v3981 = vpop.xlane.xlu0 %3980
        %v3982 = vsel %vm3891, %v3889, -inf
        %3983 = vmax.xlane.f32.xlu0 %v3982
        %v3984 = vpop.xlane.xlu0 %3983
        %v3985 = vsel %vm3891, %v3890, -inf
        %3986 = vmax.xlane.f32.xlu0 %v3985
        %v3987 = vpop.xlane.xlu0 %3986
        %v3988 = vsub.f32 %v3859, %v3894
        %v3989 = vsub.f32 %v3860, %v3897
        %v3990 = vsub.f32 %v3861, %v3900
        %v3991 = vsub.f32 %v3862, %v3903
        %v3992 = vsub.f32 %v3863, %v3906
        %v3993 = vsub.f32 %v3864, %v3909
        %v3994 = vsub.f32 %v3865, %v3912
        %v3995 = vsub.f32 %v3866, %v3915
        %v3996 = vsub.f32 %v3867, %v3918
        %v3997 = vsub.f32 %v3868, %v3921
        %v3998 = vsub.f32 %v3869, %v3924
        %v3999 = vsub.f32 %v3870, %v3927
        %v4000 = vsub.f32 %v3871, %v3930
        %v4001 = vsub.f32 %v3872, %v3933
        %v4002 = vsub.f32 %v3873, %v3936
        %v4003 = vsub.f32 %v3874, %v3939
        %v4004 = vsub.f32 %v3875, %v3942
        %v4005 = vsub.f32 %v3876, %v3945
        %v4006 = vsub.f32 %v3877, %v3948
        %v4007 = vsub.f32 %v3878, %v3951
        %v4008 = vsub.f32 %v3879, %v3954
        %v4009 = vsub.f32 %v3880, %v3957
        %v4010 = vsub.f32 %v3881, %v3960
        %v4011 = vsub.f32 %v3882, %v3963
        %v4012 = vsub.f32 %v3883, %v3966
        %v4013 = vsub.f32 %v3884, %v3969
        %v4014 = vsub.f32 %v3885, %v3972
        %v4015 = vsub.f32 %v3886, %v3975
        %v4016 = vsub.f32 %v3887, %v3978
        %v4017 = vsub.f32 %v3888, %v3981
        %v4018 = vsub.f32 %v3889, %v3984
        %v4019 = vsub.f32 %v3890, %v3987
        %v4020 = vmul.f32 %v3988, 1.442695
        %v4021 = vpow.pop %v4020
        %v4022 = vmul.f32 %v3989, 1.442695
        %v4023 = vpow.pop %v4022
        %v4024 = vmul.f32 %v3990, 1.442695
        %v4025 = vpow.pop %v4024
        %v4026 = vmul.f32 %v3991, 1.442695
        %v4027 = vpow.pop %v4026
        %v4028 = vmul.f32 %v3992, 1.442695
        %v4029 = vpow.pop %v4028
        %v4030 = vmul.f32 %v3993, 1.442695
        %v4031 = vpow.pop %v4030
        %v4032 = vmul.f32 %v3994, 1.442695
        %v4033 = vpow.pop %v4032
        %v4034 = vmul.f32 %v3995, 1.442695
        %v4035 = vpow.pop %v4034
        %v4036 = vmul.f32 %v3996, 1.442695
        %v4037 = vpow.pop %v4036
        %v4038 = vmul.f32 %v3997, 1.442695
        %v4039 = vpow.pop %v4038
        %v4040 = vmul.f32 %v3998, 1.442695
        %v4041 = vpow.pop %v4040
        %v4042 = vmul.f32 %v3999, 1.442695
        %v4043 = vpow.pop %v4042
        %v4044 = vmul.f32 %v4000, 1.442695
        %v4045 = vpow.pop %v4044
        %v4046 = vmul.f32 %v4001, 1.442695
        %v4047 = vpow.pop %v4046
        %v4048 = vmul.f32 %v4002, 1.442695
        %v4049 = vpow.pop %v4048
        %v4050 = vmul.f32 %v4003, 1.442695
        %v4051 = vpow.pop %v4050
        %v4052 = vmul.f32 %v4004, 1.442695
        %v4053 = vpow.pop %v4052
        %v4054 = vmul.f32 %v4005, 1.442695
        %v4055 = vpow.pop %v4054
        %v4056 = vmul.f32 %v4006, 1.442695
        %v4057 = vpow.pop %v4056
        %v4058 = vmul.f32 %v4007, 1.442695
        %v4059 = vpow.pop %v4058
        %v4060 = vmul.f32 %v4008, 1.442695
        %v4061 = vpow.pop %v4060
        %v4062 = vmul.f32 %v4009, 1.442695
        %v4063 = vpow.pop %v4062
        %v4064 = vmul.f32 %v4010, 1.442695
        %v4065 = vpow.pop %v4064
        %v4066 = vmul.f32 %v4011, 1.442695
        %v4067 = vpow.pop %v4066
        %v4068 = vmul.f32 %v4012, 1.442695
        %v4069 = vpow.pop %v4068
        %v4070 = vmul.f32 %v4013, 1.442695
        %v4071 = vpow.pop %v4070
        %v4072 = vmul.f32 %v4014, 1.442695
        %v4073 = vpow.pop %v4072
        %v4074 = vmul.f32 %v4015, 1.442695
        %v4075 = vpow.pop %v4074
        %v4076 = vmul.f32 %v4016, 1.442695
        %v4077 = vpow.pop %v4076
        %v4078 = vmul.f32 %v4017, 1.442695
        %v4079 = vpow.pop %v4078
        %v4080 = vmul.f32 %v4018, 1.442695
        %v4081 = vpow.pop %v4080
        %v4082 = vmul.f32 %v4019, 1.442695
        %v4083 = vpow.pop %v4082
        %v4084 = vsel %vm3891, %v4021, 0.0
        %4085 = vadd.xlane.f32.xlu0 %v4084
        %v4086 = vpop.xlane.xlu0 %4085
        %v4087 = vsel %vm3891, %v4023, 0.0
        %4088 = vadd.xlane.f32.xlu0 %v4087
        %v4089 = vpop.xlane.xlu0 %4088
        %v4090 = vsel %vm3891, %v4025, 0.0
        %4091 = vadd.xlane.f32.xlu0 %v4090
        %v4092 = vpop.xlane.xlu0 %4091
        %v4093 = vsel %vm3891, %v4027, 0.0
        %4094 = vadd.xlane.f32.xlu0 %v4093
        %v4095 = vpop.xlane.xlu0 %4094
        %v4096 = vsel %vm3891, %v4029, 0.0
        %4097 = vadd.xlane.f32.xlu0 %v4096
        %v4098 = vpop.xlane.xlu0 %4097
        %v4099 = vsel %vm3891, %v4031, 0.0
        %4100 = vadd.xlane.f32.xlu0 %v4099
        %v4101 = vpop.xlane.xlu0 %4100
        %v4102 = vsel %vm3891, %v4033, 0.0
        %4103 = vadd.xlane.f32.xlu0 %v4102
        %v4104 = vpop.xlane.xlu0 %4103
        %v4105 = vsel %vm3891, %v4035, 0.0
        %4106 = vadd.xlane.f32.xlu0 %v4105
        %v4107 = vpop.xlane.xlu0 %4106
        %v4108 = vsel %vm3891, %v4037, 0.0
        %4109 = vadd.xlane.f32.xlu0 %v4108
        %v4110 = vpop.xlane.xlu0 %4109
        %v4111 = vsel %vm3891, %v4039, 0.0
        %4112 = vadd.xlane.f32.xlu0 %v4111
        %v4113 = vpop.xlane.xlu0 %4112
        %v4114 = vsel %vm3891, %v4041, 0.0
        %4115 = vadd.xlane.f32.xlu0 %v4114
        %v4116 = vpop.xlane.xlu0 %4115
        %v4117 = vsel %vm3891, %v4043, 0.0
        %4118 = vadd.xlane.f32.xlu0 %v4117
        %v4119 = vpop.xlane.xlu0 %4118
        %v4120 = vsel %vm3891, %v4045, 0.0
        %4121 = vadd.xlane.f32.xlu0 %v4120
        %v4122 = vpop.xlane.xlu0 %4121
        %v4123 = vsel %vm3891, %v4047, 0.0
        %4124 = vadd.xlane.f32.xlu0 %v4123
        %v4125 = vpop.xlane.xlu0 %4124
        %v4126 = vsel %vm3891, %v4049, 0.0
        %4127 = vadd.xlane.f32.xlu0 %v4126
        %v4128 = vpop.xlane.xlu0 %4127
        %v4129 = vsel %vm3891, %v4051, 0.0
        %4130 = vadd.xlane.f32.xlu0 %v4129
        %v4131 = vpop.xlane.xlu0 %4130
        %v4132 = vsel %vm3891, %v4053, 0.0
        %4133 = vadd.xlane.f32.xlu0 %v4132
        %v4134 = vpop.xlane.xlu0 %4133
        %v4135 = vsel %vm3891, %v4055, 0.0
        %4136 = vadd.xlane.f32.xlu0 %v4135
        %v4137 = vpop.xlane.xlu0 %4136
        %v4138 = vsel %vm3891, %v4057, 0.0
        %4139 = vadd.xlane.f32.xlu0 %v4138
        %v4140 = vpop.xlane.xlu0 %4139
        %v4141 = vsel %vm3891, %v4059, 0.0
        %4142 = vadd.xlane.f32.xlu0 %v4141
        %v4143 = vpop.xlane.xlu0 %4142
        %v4144 = vsel %vm3891, %v4061, 0.0
        %4145 = vadd.xlane.f32.xlu0 %v4144
        %v4146 = vpop.xlane.xlu0 %4145
        %v4147 = vsel %vm3891, %v4063, 0.0
        %4148 = vadd.xlane.f32.xlu0 %v4147
        %v4149 = vpop.xlane.xlu0 %4148
        %v4150 = vsel %vm3891, %v4065, 0.0
        %4151 = vadd.xlane.f32.xlu0 %v4150
        %v4152 = vpop.xlane.xlu0 %4151
        %v4153 = vsel %vm3891, %v4067, 0.0
        %4154 = vadd.xlane.f32.xlu0 %v4153
        %v4155 = vpop.xlane.xlu0 %4154
        %v4156 = vsel %vm3891, %v4069, 0.0
        %4157 = vadd.xlane.f32.xlu0 %v4156
        %v4158 = vpop.xlane.xlu0 %4157
        %v4159 = vsel %vm3891, %v4071, 0.0
        %4160 = vadd.xlane.f32.xlu0 %v4159
        %v4161 = vpop.xlane.xlu0 %4160
        %v4162 = vsel %vm3891, %v4073, 0.0
        %4163 = vadd.xlane.f32.xlu0 %v4162
        %v4164 = vpop.xlane.xlu0 %4163
        %v4165 = vsel %vm3891, %v4075, 0.0
        %4166 = vadd.xlane.f32.xlu0 %v4165
        %v4167 = vpop.xlane.xlu0 %4166
        %v4168 = vsel %vm3891, %v4077, 0.0
        %4169 = vadd.xlane.f32.xlu0 %v4168
        %v4170 = vpop.xlane.xlu0 %4169
        %v4171 = vsel %vm3891, %v4079, 0.0
        %4172 = vadd.xlane.f32.xlu0 %v4171
        %v4173 = vpop.xlane.xlu0 %4172
        %v4174 = vsel %vm3891, %v4081, 0.0
        %4175 = vadd.xlane.f32.xlu0 %v4174
        %v4176 = vpop.xlane.xlu0 %4175
        %v4177 = vsel %vm3891, %v4083, 0.0
        %4178 = vadd.xlane.f32.xlu0 %v4177
        %v4179 = vpop.xlane.xlu0 %4178
        %v4180 = vrcp.pop %v4086
        %v4181 = vmul.f32 %v4021, %v4180
        %v4182 = vrcp.pop %v4089
        %v4183 = vmul.f32 %v4023, %v4182
        %v4184 = vrcp.pop %v4092
        %v4185 = vmul.f32 %v4025, %v4184
        %v4186 = vrcp.pop %v4095
        %v4187 = vmul.f32 %v4027, %v4186
        %v4188 = vrcp.pop %v4098
        %v4189 = vmul.f32 %v4029, %v4188
        %v4190 = vrcp.pop %v4101
        %v4191 = vmul.f32 %v4031, %v4190
        %v4192 = vrcp.pop %v4104
        %v4193 = vmul.f32 %v4033, %v4192
        %v4194 = vrcp.pop %v4107
        %v4195 = vmul.f32 %v4035, %v4194
        %v4196 = vrcp.pop %v4110
        %v4197 = vmul.f32 %v4037, %v4196
        %v4198 = vrcp.pop %v4113
        %v4199 = vmul.f32 %v4039, %v4198
        %v4200 = vrcp.pop %v4116
        %v4201 = vmul.f32 %v4041, %v4200
        %v4202 = vrcp.pop %v4119
        %v4203 = vmul.f32 %v4043, %v4202
        %v4204 = vrcp.pop %v4122
        %v4205 = vmul.f32 %v4045, %v4204
        %v4206 = vrcp.pop %v4125
        %v4207 = vmul.f32 %v4047, %v4206
        %v4208 = vrcp.pop %v4128
        %v4209 = vmul.f32 %v4049, %v4208
        %v4210 = vrcp.pop %v4131
        %v4211 = vmul.f32 %v4051, %v4210
        %v4212 = vrcp.pop %v4134
        %v4213 = vmul.f32 %v4053, %v4212
        %v4214 = vrcp.pop %v4137
        %v4215 = vmul.f32 %v4055, %v4214
        %v4216 = vrcp.pop %v4140
        %v4217 = vmul.f32 %v4057, %v4216
        %v4218 = vrcp.pop %v4143
        %v4219 = vmul.f32 %v4059, %v4218
        %v4220 = vrcp.pop %v4146
        %v4221 = vmul.f32 %v4061, %v4220
        %v4222 = vrcp.pop %v4149
        %v4223 = vmul.f32 %v4063, %v4222
        %v4224 = vrcp.pop %v4152
        %v4225 = vmul.f32 %v4065, %v4224
        %v4226 = vrcp.pop %v4155
        %v4227 = vmul.f32 %v4067, %v4226
        %v4228 = vrcp.pop %v4158
        %v4229 = vmul.f32 %v4069, %v4228
        %v4230 = vrcp.pop %v4161
        %v4231 = vmul.f32 %v4071, %v4230
        %v4232 = vrcp.pop %v4164
        %v4233 = vmul.f32 %v4073, %v4232
        %v4234 = vrcp.pop %v4167
        %v4235 = vmul.f32 %v4075, %v4234
        %v4236 = vrcp.pop %v4170
        %v4237 = vmul.f32 %v4077, %v4236
        %v4238 = vrcp.pop %v4173
        %v4239 = vmul.f32 %v4079, %v4238
        %v4240 = vrcp.pop %v4176
        %v4241 = vmul.f32 %v4081, %v4240
        %v4242 = vrcp.pop %v4179
        %v4243 = vmul.f32 %v4083, %v4242
        %4244 = vrot.lane.b32.xlu0 %v1208, 64
        %v4245 = vpop.permute.xlu0 %4244
        %vm4246 = vcmask 15360
        %v4248 = vsel %vm4246, %v4181, 0
        %vm4250 = vcmask 1041408
        %v4251 = vsel %vm4250, %v4245, 0
        %4253 = vmatprep.subr.mxu0 0.0
        %4254 = vmatpush1.msra.mxu0 %v4251
        %4255 = vmatprep.subr.mxu0 0.0
        %4256 = vmatpush1.msra.mxu0 0.0
        %4257 = vmatprep.subr.mxu0 0.0
        %4258 = vmatpush1.msra.mxu0 0.0
        %4259 = vmatprep.subr.mxu0 0.0
        %4260 = vmatpush1.msra.mxu0 0.0
        %4261 = vmatprep.subr.mxu0 0.0
        %4262 = vmatpush1.msra.mxu0 0.0
        %4263 = vmatprep.subr.mxu0 0.0
        %4264 = vmatpush1.msra.mxu0 0.0
        %4265 = vmatprep.subr.mxu0 0.0
        %4266 = vmatpush1.msra.mxu0 0.0
        %4267 = vmatprep.subr.mxu0 0.0
        %4268 = vmatpush1.msra.mxu0 0.0
        %4269 = vmatprep.subr.mxu0 0.0
        %4270 = vmatpush1.msra.mxu0 0.0
        %4271 = vmatprep.subr.mxu0 0.0
        %4272 = vmatpush1.msra.mxu0 0.0
        %4273 = vmatprep.subr.mxu0 0.0
        %4274 = vmatpush1.msra.mxu0 0.0
        %4275 = vmatprep.subr.mxu0 0.0
        %4276 = vmatpush1.msra.mxu0 0.0
        %4277 = vmatprep.subr.mxu0 0.0
        %4278 = vmatpush1.msra.mxu0 0.0
        %4279 = vmatprep.subr.mxu0 0.0
        %4280 = vmatpush1.msra.mxu0 0.0
        %4281 = vmatprep.subr.mxu0 0.0
        %4282 = vmatpush1.msra.mxu0 0.0
        %4283 = vmatprep.subr.mxu0 0.0
        %4284 = vmatpush1.msra.mxu0 0.0
        %4285 = vmatprep.subr.mxu0 0.0
        %4286 = vmatpush1.msra.mxu0 0.0
        %4287 = vmatprep.subr.mxu0 0.0
        %4288 = vmatpush1.msra.mxu0 0.0
        %4289 = vmatprep.subr.mxu0 0.0
        %4290 = vmatpush1.msra.mxu0 0.0
        %4291 = vmatprep.subr.mxu0 0.0
        %4292 = vmatpush1.msra.mxu0 0.0
        %4293 = vmatprep.subr.mxu0 0.0
        %4294 = vmatpush1.msra.mxu0 0.0
        %4295 = vmatprep.subr.mxu0 0.0
        %4296 = vmatpush1.msra.mxu0 0.0
        %4297 = vmatprep.subr.mxu0 0.0
        %4298 = vmatpush1.msra.mxu0 0.0
        %4299 = vmatprep.subr.mxu0 0.0
        %4300 = vmatpush1.msra.mxu0 0.0
        %4301 = vmatprep.subr.mxu0 0.0
        %4302 = vmatpush1.msra.mxu0 0.0
        %4303 = vmatprep.subr.mxu0 0.0
        %4304 = vmatpush1.msra.mxu0 0.0
        %4305 = vmatprep.subr.mxu0 0.0
        %4306 = vmatpush1.msra.mxu0 0.0
        %4307 = vmatprep.subr.mxu0 0.0
        %4308 = vmatpush1.msra.mxu0 0.0
        %4309 = vmatprep.subr.mxu0 0.0
        %4310 = vmatpush1.msra.mxu0 0.0
        %4311 = vmatprep.subr.mxu0 0.0
        %4312 = vmatpush1.msra.mxu0 0.0
        %4313 = vmatprep.subr.mxu0 0.0
        %4314 = vmatpush1.msra.mxu0 0.0
        %4315 = vmatprep.subr.mxu0 0.0
        %4316 = vmatpush1.msra.mxu0 0.0
        %4317 = vmatprep.mubr.f32.mxu0 0.0
        %4318 = vmatmul.mubr.f32.gmra.mrb[0].mxu0 %v4248
        %v4319 = vpop.f32.mrb[0].mxu0
        %v4320 = vadd.f32 0.0, %v4319
        %v4321 = vpop.f32.mrb[0].mxu0
        %4322 = vdwg.mxu0
        %4323 = vrot.lane.b32.xlu0 %v1292, 64
        %v4324 = vpop.permute.xlu0 %4323
        %v4326 = vsel %vm4246, %v4183, 0
        %v4328 = vsel %vm4250, %v4324, 0
        %4330 = vmatprep.subr.mxu0 0.0
        %4331 = vmatpush1.msra.mxu0 %v4328
        %4332 = vmatprep.subr.mxu0 0.0
        %4333 = vmatpush1.msra.mxu0 0.0
        %4334 = vmatprep.subr.mxu0 0.0
        %4335 = vmatpush1.msra.mxu0 0.0
        %4336 = vmatprep.subr.mxu0 0.0
        %4337 = vmatpush1.msra.mxu0 0.0
        %4338 = vmatprep.subr.mxu0 0.0
        %4339 = vmatpush1.msra.mxu0 0.0
        %4340 = vmatprep.subr.mxu0 0.0
        %4341 = vmatpush1.msra.mxu0 0.0
        %4342 = vmatprep.subr.mxu0 0.0
        %4343 = vmatpush1.msra.mxu0 0.0
        %4344 = vmatprep.subr.mxu0 0.0
        %4345 = vmatpush1.msra.mxu0 0.0
        %4346 = vmatprep.subr.mxu0 0.0
        %4347 = vmatpush1.msra.mxu0 0.0
        %4348 = vmatprep.subr.mxu0 0.0
        %4349 = vmatpush1.msra.mxu0 0.0
        %4350 = vmatprep.subr.mxu0 0.0
        %4351 = vmatpush1.msra.mxu0 0.0
        %4352 = vmatprep.subr.mxu0 0.0
        %4353 = vmatpush1.msra.mxu0 0.0
        %4354 = vmatprep.subr.mxu0 0.0
        %4355 = vmatpush1.msra.mxu0 0.0
        %4356 = vmatprep.subr.mxu0 0.0
        %4357 = vmatpush1.msra.mxu0 0.0
        %4358 = vmatprep.subr.mxu0 0.0
        %4359 = vmatpush1.msra.mxu0 0.0
        %4360 = vmatprep.subr.mxu0 0.0
        %4361 = vmatpush1.msra.mxu0 0.0
        %4362 = vmatprep.subr.mxu0 0.0
        %4363 = vmatpush1.msra.mxu0 0.0
        %4364 = vmatprep.subr.mxu0 0.0
        %4365 = vmatpush1.msra.mxu0 0.0
        %4366 = vmatprep.subr.mxu0 0.0
        %4367 = vmatpush1.msra.mxu0 0.0
        %4368 = vmatprep.subr.mxu0 0.0
        %4369 = vmatpush1.msra.mxu0 0.0
        %4370 = vmatprep.subr.mxu0 0.0
        %4371 = vmatpush1.msra.mxu0 0.0
        %4372 = vmatprep.subr.mxu0 0.0
        %4373 = vmatpush1.msra.mxu0 0.0
        %4374 = vmatprep.subr.mxu0 0.0
        %4375 = vmatpush1.msra.mxu0 0.0
        %4376 = vmatprep.subr.mxu0 0.0
        %4377 = vmatpush1.msra.mxu0 0.0
        %4378 = vmatprep.subr.mxu0 0.0
        %4379 = vmatpush1.msra.mxu0 0.0
        %4380 = vmatprep.subr.mxu0 0.0
        %4381 = vmatpush1.msra.mxu0 0.0
        %4382 = vmatprep.subr.mxu0 0.0
        %4383 = vmatpush1.msra.mxu0 0.0
        %4384 = vmatprep.subr.mxu0 0.0
        %4385 = vmatpush1.msra.mxu0 0.0
        %4386 = vmatprep.subr.mxu0 0.0
        %4387 = vmatpush1.msra.mxu0 0.0
        %4388 = vmatprep.subr.mxu0 0.0
        %4389 = vmatpush1.msra.mxu0 0.0
        %4390 = vmatprep.subr.mxu0 0.0
        %4391 = vmatpush1.msra.mxu0 0.0
        %4392 = vmatprep.subr.mxu0 0.0
        %4393 = vmatpush1.msra.mxu0 0.0
        %4394 = vmatprep.mubr.f32.mxu0 0.0
        %4395 = vmatmul.mubr.f32.gmra.mrb[0].mxu0 %v4326
        %v4396 = vpop.f32.mrb[0].mxu0
        %v4397 = vadd.f32 0.0, %v4396
        %v4398 = vpop.f32.mrb[0].mxu0
        %4399 = vdwg.mxu0
        %4400 = vrot.lane.b32.xlu0 %v1375, 64
        %v4401 = vpop.permute.xlu0 %4400
        %v4403 = vsel %vm4246, %v4185, 0
        %v4405 = vsel %vm4250, %v4401, 0
        %4407 = vmatprep.subr.mxu0 0.0
        %4408 = vmatpush1.msra.mxu0 %v4405
        %4409 = vmatprep.subr.mxu0 0.0
        %4410 = vmatpush1.msra.mxu0 0.0
        %4411 = vmatprep.subr.mxu0 0.0
        %4412 = vmatpush1.msra.mxu0 0.0
        %4413 = vmatprep.subr.mxu0 0.0
        %4414 = vmatpush1.msra.mxu0 0.0
        %4415 = vmatprep.subr.mxu0 0.0
        %4416 = vmatpush1.msra.mxu0 0.0
        %4417 = vmatprep.subr.mxu0 0.0
        %4418 = vmatpush1.msra.mxu0 0.0
        %4419 = vmatprep.subr.mxu0 0.0
        %4420 = vmatpush1.msra.mxu0 0.0
        %4421 = vmatprep.subr.mxu0 0.0
        %4422 = vmatpush1.msra.mxu0 0.0
        %4423 = vmatprep.subr.mxu0 0.0
        %4424 = vmatpush1.msra.mxu0 0.0
        %4425 = vmatprep.subr.mxu0 0.0
        %4426 = vmatpush1.msra.mxu0 0.0
        %4427 = vmatprep.subr.mxu0 0.0
        %4428 = vmatpush1.msra.mxu0 0.0
        %4429 = vmatprep.subr.mxu0 0.0
        %4430 = vmatpush1.msra.mxu0 0.0
        %4431 = vmatprep.subr.mxu0 0.0
        %4432 = vmatpush1.msra.mxu0 0.0
        %4433 = vmatprep.subr.mxu0 0.0
        %4434 = vmatpush1.msra.mxu0 0.0
        %4435 = vmatprep.subr.mxu0 0.0
        %4436 = vmatpush1.msra.mxu0 0.0
        %4437 = vmatprep.subr.mxu0 0.0
        %4438 = vmatpush1.msra.mxu0 0.0
        %4439 = vmatprep.subr.mxu0 0.0
        %4440 = vmatpush1.msra.mxu0 0.0
        %4441 = vmatprep.subr.mxu0 0.0
        %4442 = vmatpush1.msra.mxu0 0.0
        %4443 = vmatprep.subr.mxu0 0.0
        %4444 = vmatpush1.msra.mxu0 0.0
        %4445 = vmatprep.subr.mxu0 0.0
        %4446 = vmatpush1.msra.mxu0 0.0
        %4447 = vmatprep.subr.mxu0 0.0
        %4448 = vmatpush1.msra.mxu0 0.0
        %4449 = vmatprep.subr.mxu0 0.0
        %4450 = vmatpush1.msra.mxu0 0.0
        %4451 = vmatprep.subr.mxu0 0.0
        %4452 = vmatpush1.msra.mxu0 0.0
        %4453 = vmatprep.subr.mxu0 0.0
        %4454 = vmatpush1.msra.mxu0 0.0
        %4455 = vmatprep.subr.mxu0 0.0
        %4456 = vmatpush1.msra.mxu0 0.0
        %4457 = vmatprep.subr.mxu0 0.0
        %4458 = vmatpush1.msra.mxu0 0.0
        %4459 = vmatprep.subr.mxu0 0.0
        %4460 = vmatpush1.msra.mxu0 0.0
        %4461 = vmatprep.subr.mxu0 0.0
        %4462 = vmatpush1.msra.mxu0 0.0
        %4463 = vmatprep.subr.mxu0 0.0
        %4464 = vmatpush1.msra.mxu0 0.0
        %4465 = vmatprep.subr.mxu0 0.0
        %4466 = vmatpush1.msra.mxu0 0.0
        %4467 = vmatprep.subr.mxu0 0.0
        %4468 = vmatpush1.msra.mxu0 0.0
        %4469 = vmatprep.subr.mxu0 0.0
        %4470 = vmatpush1.msra.mxu0 0.0
        %4471 = vmatprep.mubr.f32.mxu0 0.0
        %4472 = vmatmul.mubr.f32.gmra.mrb[0].mxu0 %v4403
        %v4473 = vpop.f32.mrb[0].mxu0
        %v4474 = vadd.f32 0.0, %v4473
        %v4475 = vpop.f32.mrb[0].mxu0
        %4476 = vdwg.mxu0
        %4477 = vrot.lane.b32.xlu0 %v1458, 64
        %v4478 = vpop.permute.xlu0 %4477
        %v4480 = vsel %vm4246, %v4187, 0
        %v4482 = vsel %vm4250, %v4478, 0
        %4484 = vmatprep.subr.mxu0 0.0
        %4485 = vmatpush1.msra.mxu0 %v4482
        %4486 = vmatprep.subr.mxu0 0.0
        %4487 = vmatpush1.msra.mxu0 0.0
        %4488 = vmatprep.subr.mxu0 0.0
        %4489 = vmatpush1.msra.mxu0 0.0
        %4490 = vmatprep.subr.mxu0 0.0
        %4491 = vmatpush1.msra.mxu0 0.0
        %4492 = vmatprep.subr.mxu0 0.0
        %4493 = vmatpush1.msra.mxu0 0.0
        %4494 = vmatprep.subr.mxu0 0.0
        %4495 = vmatpush1.msra.mxu0 0.0
        %4496 = vmatprep.subr.mxu0 0.0
        %4497 = vmatpush1.msra.mxu0 0.0
        %4498 = vmatprep.subr.mxu0 0.0
        %4499 = vmatpush1.msra.mxu0 0.0
        %4500 = vmatprep.subr.mxu0 0.0
        %4501 = vmatpush1.msra.mxu0 0.0
        %4502 = vmatprep.subr.mxu0 0.0
        %4503 = vmatpush1.msra.mxu0 0.0
        %4504 = vmatprep.subr.mxu0 0.0
        %4505 = vmatpush1.msra.mxu0 0.0
        %4506 = vmatprep.subr.mxu0 0.0
        %4507 = vmatpush1.msra.mxu0 0.0
        %4508 = vmatprep.subr.mxu0 0.0
        %4509 = vmatpush1.msra.mxu0 0.0
        %4510 = vmatprep.subr.mxu0 0.0
        %4511 = vmatpush1.msra.mxu0 0.0
        %4512 = vmatprep.subr.mxu0 0.0
        %4513 = vmatpush1.msra.mxu0 0.0
        %4514 = vmatprep.subr.mxu0 0.0
        %4515 = vmatpush1.msra.mxu0 0.0
        %4516 = vmatprep.subr.mxu0 0.0
        %4517 = vmatpush1.msra.mxu0 0.0
        %4518 = vmatprep.subr.mxu0 0.0
        %4519 = vmatpush1.msra.mxu0 0.0
        %4520 = vmatprep.subr.mxu0 0.0
        %4521 = vmatpush1.msra.mxu0 0.0
        %4522 = vmatprep.subr.mxu0 0.0
        %4523 = vmatpush1.msra.mxu0 0.0
        %4524 = vmatprep.subr.mxu0 0.0
        %4525 = vmatpush1.msra.mxu0 0.0
        %4526 = vmatprep.subr.mxu0 0.0
        %4527 = vmatpush1.msra.mxu0 0.0
        %4528 = vmatprep.subr.mxu0 0.0
        %4529 = vmatpush1.msra.mxu0 0.0
        %4530 = vmatprep.subr.mxu0 0.0
        %4531 = vmatpush1.msra.mxu0 0.0
        %4532 = vmatprep.subr.mxu0 0.0
        %4533 = vmatpush1.msra.mxu0 0.0
        %4534 = vmatprep.subr.mxu0 0.0
        %4535 = vmatpush1.msra.mxu0 0.0
        %4536 = vmatprep.subr.mxu0 0.0
        %4537 = vmatpush1.msra.mxu0 0.0
        %4538 = vmatprep.subr.mxu0 0.0
        %4539 = vmatpush1.msra.mxu0 0.0
        %4540 = vmatprep.subr.mxu0 0.0
        %4541 = vmatpush1.msra.mxu0 0.0
        %4542 = vmatprep.subr.mxu0 0.0
        %4543 = vmatpush1.msra.mxu0 0.0
        %4544 = vmatprep.subr.mxu0 0.0
        %4545 = vmatpush1.msra.mxu0 0.0
        %4546 = vmatprep.subr.mxu0 0.0
        %4547 = vmatpush1.msra.mxu0 0.0
        %4548 = vmatprep.mubr.f32.mxu0 0.0
        %4549 = vmatmul.mubr.f32.gmra.mrb[0].mxu0 %v4480
        %v4550 = vpop.f32.mrb[0].mxu0
        %v4551 = vadd.f32 0.0, %v4550
        %v4552 = vpop.f32.mrb[0].mxu0
        %4553 = vdwg.mxu0
        %4554 = vrot.lane.b32.xlu0 %v1541, 64
        %v4555 = vpop.permute.xlu0 %4554
        %v4557 = vsel %vm4246, %v4189, 0
        %v4559 = vsel %vm4250, %v4555, 0
        %4561 = vmatprep.subr.mxu0 0.0
        %4562 = vmatpush1.msra.mxu0 %v4559
        %4563 = vmatprep.subr.mxu0 0.0
        %4564 = vmatpush1.msra.mxu0 0.0
        %4565 = vmatprep.subr.mxu0 0.0
        %4566 = vmatpush1.msra.mxu0 0.0
        %4567 = vmatprep.subr.mxu0 0.0
        %4568 = vmatpush1.msra.mxu0 0.0
        %4569 = vmatprep.subr.mxu0 0.0
        %4570 = vmatpush1.msra.mxu0 0.0
        %4571 = vmatprep.subr.mxu0 0.0
        %4572 = vmatpush1.msra.mxu0 0.0
        %4573 = vmatprep.subr.mxu0 0.0
        %4574 = vmatpush1.msra.mxu0 0.0
        %4575 = vmatprep.subr.mxu0 0.0
        %4576 = vmatpush1.msra.mxu0 0.0
        %4577 = vmatprep.subr.mxu0 0.0
        %4578 = vmatpush1.msra.mxu0 0.0
        %4579 = vmatprep.subr.mxu0 0.0
        %4580 = vmatpush1.msra.mxu0 0.0
        %4581 = vmatprep.subr.mxu0 0.0
        %4582 = vmatpush1.msra.mxu0 0.0
        %4583 = vmatprep.subr.mxu0 0.0
        %4584 = vmatpush1.msra.mxu0 0.0
        %4585 = vmatprep.subr.mxu0 0.0
        %4586 = vmatpush1.msra.mxu0 0.0
        %4587 = vmatprep.subr.mxu0 0.0
        %4588 = vmatpush1.msra.mxu0 0.0
        %4589 = vmatprep.subr.mxu0 0.0
        %4590 = vmatpush1.msra.mxu0 0.0
        %4591 = vmatprep.subr.mxu0 0.0
        %4592 = vmatpush1.msra.mxu0 0.0
        %4593 = vmatprep.subr.mxu0 0.0
        %4594 = vmatpush1.msra.mxu0 0.0
        %4595 = vmatprep.subr.mxu0 0.0
        %4596 = vmatpush1.msra.mxu0 0.0
        %4597 = vmatprep.subr.mxu0 0.0
        %4598 = vmatpush1.msra.mxu0 0.0
        %4599 = vmatprep.subr.mxu0 0.0
        %4600 = vmatpush1.msra.mxu0 0.0
        %4601 = vmatprep.subr.mxu0 0.0
        %4602 = vmatpush1.msra.mxu0 0.0
        %4603 = vmatprep.subr.mxu0 0.0
        %4604 = vmatpush1.msra.mxu0 0.0
        %4605 = vmatprep.subr.mxu0 0.0
        %4606 = vmatpush1.msra.mxu0 0.0
        %4607 = vmatprep.subr.mxu0 0.0
        %4608 = vmatpush1.msra.mxu0 0.0
        %4609 = vmatprep.subr.mxu0 0.0
        %4610 = vmatpush1.msra.mxu0 0.0
        %4611 = vmatprep.subr.mxu0 0.0
        %4612 = vmatpush1.msra.mxu0 0.0
        %4613 = vmatprep.subr.mxu0 0.0
        %4614 = vmatpush1.msra.mxu0 0.0
        %4615 = vmatprep.subr.mxu0 0.0
        %4616 = vmatpush1.msra.mxu0 0.0
        %4617 = vmatprep.subr.mxu0 0.0
        %4618 = vmatpush1.msra.mxu0 0.0
        %4619 = vmatprep.subr.mxu0 0.0
        %4620 = vmatpush1.msra.mxu0 0.0
        %4621 = vmatprep.subr.mxu0 0.0
        %4622 = vmatpush1.msra.mxu0 0.0
        %4623 = vmatprep.subr.mxu0 0.0
        %4624 = vmatpush1.msra.mxu0 0.0
        %4625 = vmatprep.mubr.f32.mxu0 0.0
        %4626 = vmatmul.mubr.f32.gmra.mrb[0].mxu0 %v4557
        %v4627 = vpop.f32.mrb[0].mxu0
        %v4628 = vadd.f32 0.0, %v4627
        %v4629 = vpop.f32.mrb[0].mxu0
        %4630 = vdwg.mxu0
        %4631 = vrot.lane.b32.xlu0 %v1624, 64
        %v4632 = vpop.permute.xlu0 %4631
        %v4634 = vsel %vm4246, %v4191, 0
        %v4636 = vsel %vm4250, %v4632, 0
        %4638 = vmatprep.subr.mxu0 0.0
        %4639 = vmatpush1.msra.mxu0 %v4636
        %4640 = vmatprep.subr.mxu0 0.0
        %4641 = vmatpush1.msra.mxu0 0.0
        %4642 = vmatprep.subr.mxu0 0.0
        %4643 = vmatpush1.msra.mxu0 0.0
        %4644 = vmatprep.subr.mxu0 0.0
        %4645 = vmatpush1.msra.mxu0 0.0
        %4646 = vmatprep.subr.mxu0 0.0
        %4647 = vmatpush1.msra.mxu0 0.0
        %4648 = vmatprep.subr.mxu0 0.0
        %4649 = vmatpush1.msra.mxu0 0.0
        %4650 = vmatprep.subr.mxu0 0.0
        %4651 = vmatpush1.msra.mxu0 0.0
        %4652 = vmatprep.subr.mxu0 0.0
        %4653 = vmatpush1.msra.mxu0 0.0
        %4654 = vmatprep.subr.mxu0 0.0
        %4655 = vmatpush1.msra.mxu0 0.0
        %4656 = vmatprep.subr.mxu0 0.0
        %4657 = vmatpush1.msra.mxu0 0.0
        %4658 = vmatprep.subr.mxu0 0.0
        %4659 = vmatpush1.msra.mxu0 0.0
        %4660 = vmatprep.subr.mxu0 0.0
        %4661 = vmatpush1.msra.mxu0 0.0
        %4662 = vmatprep.subr.mxu0 0.0
        %4663 = vmatpush1.msra.mxu0 0.0
        %4664 = vmatprep.subr.mxu0 0.0
        %4665 = vmatpush1.msra.mxu0 0.0
        %4666 = vmatprep.subr.mxu0 0.0
        %4667 = vmatpush1.msra.mxu0 0.0
        %4668 = vmatprep.subr.mxu0 0.0
        %4669 = vmatpush1.msra.mxu0 0.0
        %4670 = vmatprep.subr.mxu0 0.0
        %4671 = vmatpush1.msra.mxu0 0.0
        %4672 = vmatprep.subr.mxu0 0.0
        %4673 = vmatpush1.msra.mxu0 0.0
        %4674 = vmatprep.subr.mxu0 0.0
        %4675 = vmatpush1.msra.mxu0 0.0
        %4676 = vmatprep.subr.mxu0 0.0
        %4677 = vmatpush1.msra.mxu0 0.0
        %4678 = vmatprep.subr.mxu0 0.0
        %4679 = vmatpush1.msra.mxu0 0.0
        %4680 = vmatprep.subr.mxu0 0.0
        %4681 = vmatpush1.msra.mxu0 0.0
        %4682 = vmatprep.subr.mxu0 0.0
        %4683 = vmatpush1.msra.mxu0 0.0
        %4684 = vmatprep.subr.mxu0 0.0
        %4685 = vmatpush1.msra.mxu0 0.0
        %4686 = vmatprep.subr.mxu0 0.0
        %4687 = vmatpush1.msra.mxu0 0.0
        %4688 = vmatprep.subr.mxu0 0.0
        %4689 = vmatpush1.msra.mxu0 0.0
        %4690 = vmatprep.subr.mxu0 0.0
        %4691 = vmatpush1.msra.mxu0 0.0
        %4692 = vmatprep.subr.mxu0 0.0
        %4693 = vmatpush1.msra.mxu0 0.0
        %4694 = vmatprep.subr.mxu0 0.0
        %4695 = vmatpush1.msra.mxu0 0.0
        %4696 = vmatprep.subr.mxu0 0.0
        %4697 = vmatpush1.msra.mxu0 0.0
        %4698 = vmatprep.subr.mxu0 0.0
        %4699 = vmatpush1.msra.mxu0 0.0
        %4700 = vmatprep.subr.mxu0 0.0
        %4701 = vmatpush1.msra.mxu0 0.0
        %4702 = vmatprep.mubr.f32.mxu0 0.0
        %4703 = vmatmul.mubr.f32.gmra.mrb[0].mxu0 %v4634
        %v4704 = vpop.f32.mrb[0].mxu0
        %v4705 = vadd.f32 0.0, %v4704
        %v4706 = vpop.f32.mrb[0].mxu0
        %4707 = vdwg.mxu0
        %4708 = vrot.lane.b32.xlu0 %v1707, 64
        %v4709 = vpop.permute.xlu0 %4708
        %v4711 = vsel %vm4246, %v4193, 0
        %v4713 = vsel %vm4250, %v4709, 0
        %4715 = vmatprep.subr.mxu0 0.0
        %4716 = vmatpush1.msra.mxu0 %v4713
        %4717 = vmatprep.subr.mxu0 0.0
        %4718 = vmatpush1.msra.mxu0 0.0
        %4719 = vmatprep.subr.mxu0 0.0
        %4720 = vmatpush1.msra.mxu0 0.0
        %4721 = vmatprep.subr.mxu0 0.0
        %4722 = vmatpush1.msra.mxu0 0.0
        %4723 = vmatprep.subr.mxu0 0.0
        %4724 = vmatpush1.msra.mxu0 0.0
        %4725 = vmatprep.subr.mxu0 0.0
        %4726 = vmatpush1.msra.mxu0 0.0
        %4727 = vmatprep.subr.mxu0 0.0
        %4728 = vmatpush1.msra.mxu0 0.0
        %4729 = vmatprep.subr.mxu0 0.0
        %4730 = vmatpush1.msra.mxu0 0.0
        %4731 = vmatprep.subr.mxu0 0.0
        %4732 = vmatpush1.msra.mxu0 0.0
        %4733 = vmatprep.subr.mxu0 0.0
        %4734 = vmatpush1.msra.mxu0 0.0
        %4735 = vmatprep.subr.mxu0 0.0
        %4736 = vmatpush1.msra.mxu0 0.0
        %4737 = vmatprep.subr.mxu0 0.0
        %4738 = vmatpush1.msra.mxu0 0.0
        %4739 = vmatprep.subr.mxu0 0.0
        %4740 = vmatpush1.msra.mxu0 0.0
        %4741 = vmatprep.subr.mxu0 0.0
        %4742 = vmatpush1.msra.mxu0 0.0
        %4743 = vmatprep.subr.mxu0 0.0
        %4744 = vmatpush1.msra.mxu0 0.0
        %4745 = vmatprep.subr.mxu0 0.0
        %4746 = vmatpush1.msra.mxu0 0.0
        %4747 = vmatprep.subr.mxu0 0.0
        %4748 = vmatpush1.msra.mxu0 0.0
        %4749 = vmatprep.subr.mxu0 0.0
        %4750 = vmatpush1.msra.mxu0 0.0
        %4751 = vmatprep.subr.mxu0 0.0
        %4752 = vmatpush1.msra.mxu0 0.0
        %4753 = vmatprep.subr.mxu0 0.0
        %4754 = vmatpush1.msra.mxu0 0.0
        %4755 = vmatprep.subr.mxu0 0.0
        %4756 = vmatpush1.msra.mxu0 0.0
        %4757 = vmatprep.subr.mxu0 0.0
        %4758 = vmatpush1.msra.mxu0 0.0
        %4759 = vmatprep.subr.mxu0 0.0
        %4760 = vmatpush1.msra.mxu0 0.0
        %4761 = vmatprep.subr.mxu0 0.0
        %4762 = vmatpush1.msra.mxu0 0.0
        %4763 = vmatprep.subr.mxu0 0.0
        %4764 = vmatpush1.msra.mxu0 0.0
        %4765 = vmatprep.subr.mxu0 0.0
        %4766 = vmatpush1.msra.mxu0 0.0
        %4767 = vmatprep.subr.mxu0 0.0
        %4768 = vmatpush1.msra.mxu0 0.0
        %4769 = vmatprep.subr.mxu0 0.0
        %4770 = vmatpush1.msra.mxu0 0.0
        %4771 = vmatprep.subr.mxu0 0.0
        %4772 = vmatpush1.msra.mxu0 0.0
        %4773 = vmatprep.subr.mxu0 0.0
        %4774 = vmatpush1.msra.mxu0 0.0
        %4775 = vmatprep.subr.mxu0 0.0
        %4776 = vmatpush1.msra.mxu0 0.0
        %4777 = vmatprep.subr.mxu0 0.0
        %4778 = vmatpush1.msra.mxu0 0.0
        %4779 = vmatprep.mubr.f32.mxu0 0.0
        %4780 = vmatmul.mubr.f32.gmra.mrb[0].mxu0 %v4711
        %v4781 = vpop.f32.mrb[0].mxu0
        %v4782 = vadd.f32 0.0, %v4781
        %v4783 = vpop.f32.mrb[0].mxu0
        %4784 = vdwg.mxu0
        %4785 = vrot.lane.b32.xlu0 %v1790, 64
        %v4786 = vpop.permute.xlu0 %4785
        %v4788 = vsel %vm4246, %v4195, 0
        %v4790 = vsel %vm4250, %v4786, 0
        %4792 = vmatprep.subr.mxu0 0.0
        %4793 = vmatpush1.msra.mxu0 %v4790
        %4794 = vmatprep.subr.mxu0 0.0
        %4795 = vmatpush1.msra.mxu0 0.0
        %4796 = vmatprep.subr.mxu0 0.0
        %4797 = vmatpush1.msra.mxu0 0.0
        %4798 = vmatprep.subr.mxu0 0.0
        %4799 = vmatpush1.msra.mxu0 0.0
        %4800 = vmatprep.subr.mxu0 0.0
        %4801 = vmatpush1.msra.mxu0 0.0
        %4802 = vmatprep.subr.mxu0 0.0
        %4803 = vmatpush1.msra.mxu0 0.0
        %4804 = vmatprep.subr.mxu0 0.0
        %4805 = vmatpush1.msra.mxu0 0.0
        %4806 = vmatprep.subr.mxu0 0.0
        %4807 = vmatpush1.msra.mxu0 0.0
        %4808 = vmatprep.subr.mxu0 0.0
        %4809 = vmatpush1.msra.mxu0 0.0
        %4810 = vmatprep.subr.mxu0 0.0
        %4811 = vmatpush1.msra.mxu0 0.0
        %4812 = vmatprep.subr.mxu0 0.0
        %4813 = vmatpush1.msra.mxu0 0.0
        %4814 = vmatprep.subr.mxu0 0.0
        %4815 = vmatpush1.msra.mxu0 0.0
        %4816 = vmatprep.subr.mxu0 0.0
        %4817 = vmatpush1.msra.mxu0 0.0
        %4818 = vmatprep.subr.mxu0 0.0
        %4819 = vmatpush1.msra.mxu0 0.0
        %4820 = vmatprep.subr.mxu0 0.0
        %4821 = vmatpush1.msra.mxu0 0.0
        %4822 = vmatprep.subr.mxu0 0.0
        %4823 = vmatpush1.msra.mxu0 0.0
        %4824 = vmatprep.subr.mxu0 0.0
        %4825 = vmatpush1.msra.mxu0 0.0
        %4826 = vmatprep.subr.mxu0 0.0
        %4827 = vmatpush1.msra.mxu0 0.0
        %4828 = vmatprep.subr.mxu0 0.0
        %4829 = vmatpush1.msra.mxu0 0.0
        %4830 = vmatprep.subr.mxu0 0.0
        %4831 = vmatpush1.msra.mxu0 0.0
        %4832 = vmatprep.subr.mxu0 0.0
        %4833 = vmatpush1.msra.mxu0 0.0
        %4834 = vmatprep.subr.mxu0 0.0
        %4835 = vmatpush1.msra.mxu0 0.0
        %4836 = vmatprep.subr.mxu0 0.0
        %4837 = vmatpush1.msra.mxu0 0.0
        %4838 = vmatprep.subr.mxu0 0.0
        %4839 = vmatpush1.msra.mxu0 0.0
        %4840 = vmatprep.subr.mxu0 0.0
        %4841 = vmatpush1.msra.mxu0 0.0
        %4842 = vmatprep.subr.mxu0 0.0
        %4843 = vmatpush1.msra.mxu0 0.0
        %4844 = vmatprep.subr.mxu0 0.0
        %4845 = vmatpush1.msra.mxu0 0.0
        %4846 = vmatprep.subr.mxu0 0.0
        %4847 = vmatpush1.msra.mxu0 0.0
        %4848 = vmatprep.subr.mxu0 0.0
        %4849 = vmatpush1.msra.mxu0 0.0
        %4850 = vmatprep.subr.mxu0 0.0
        %4851 = vmatpush1.msra.mxu0 0.0
        %4852 = vmatprep.subr.mxu0 0.0
        %4853 = vmatpush1.msra.mxu0 0.0
        %4854 = vmatprep.subr.mxu0 0.0
        %4855 = vmatpush1.msra.mxu0 0.0
        %4856 = vmatprep.mubr.f32.mxu0 0.0
        %4857 = vmatmul.mubr.f32.gmra.mrb[0].mxu0 %v4788
        %v4858 = vpop.f32.mrb[0].mxu0
        %v4859 = vadd.f32 0.0, %v4858
        %v4860 = vpop.f32.mrb[0].mxu0
        %4861 = vdwg.mxu0
        %4862 = vrot.lane.b32.xlu0 %v1873, 64
        %v4863 = vpop.permute.xlu0 %4862
        %v4865 = vsel %vm4246, %v4197, 0
        %v4867 = vsel %vm4250, %v4863, 0
        %4869 = vmatprep.subr.mxu0 0.0
        %4870 = vmatpush1.msra.mxu0 %v4867
        %4871 = vmatprep.subr.mxu0 0.0
        %4872 = vmatpush1.msra.mxu0 0.0
        %4873 = vmatprep.subr.mxu0 0.0
        %4874 = vmatpush1.msra.mxu0 0.0
        %4875 = vmatprep.subr.mxu0 0.0
        %4876 = vmatpush1.msra.mxu0 0.0
        %4877 = vmatprep.subr.mxu0 0.0
        %4878 = vmatpush1.msra.mxu0 0.0
        %4879 = vmatprep.subr.mxu0 0.0
        %4880 = vmatpush1.msra.mxu0 0.0
        %4881 = vmatprep.subr.mxu0 0.0
        %4882 = vmatpush1.msra.mxu0 0.0
        %4883 = vmatprep.subr.mxu0 0.0
        %4884 = vmatpush1.msra.mxu0 0.0
        %4885 = vmatprep.subr.mxu0 0.0
        %4886 = vmatpush1.msra.mxu0 0.0
        %4887 = vmatprep.subr.mxu0 0.0
        %4888 = vmatpush1.msra.mxu0 0.0
        %4889 = vmatprep.subr.mxu0 0.0
        %4890 = vmatpush1.msra.mxu0 0.0
        %4891 = vmatprep.subr.mxu0 0.0
        %4892 = vmatpush1.msra.mxu0 0.0
        %4893 = vmatprep.subr.mxu0 0.0
        %4894 = vmatpush1.msra.mxu0 0.0
        %4895 = vmatprep.subr.mxu0 0.0
        %4896 = vmatpush1.msra.mxu0 0.0
        %4897 = vmatprep.subr.mxu0 0.0
        %4898 = vmatpush1.msra.mxu0 0.0
        %4899 = vmatprep.subr.mxu0 0.0
        %4900 = vmatpush1.msra.mxu0 0.0
        %4901 = vmatprep.subr.mxu0 0.0
        %4902 = vmatpush1.msra.mxu0 0.0
        %4903 = vmatprep.subr.mxu0 0.0
        %4904 = vmatpush1.msra.mxu0 0.0
        %4905 = vmatprep.subr.mxu0 0.0
        %4906 = vmatpush1.msra.mxu0 0.0
        %4907 = vmatprep.subr.mxu0 0.0
        %4908 = vmatpush1.msra.mxu0 0.0
        %4909 = vmatprep.subr.mxu0 0.0
        %4910 = vmatpush1.msra.mxu0 0.0
        %4911 = vmatprep.subr.mxu0 0.0
        %4912 = vmatpush1.msra.mxu0 0.0
        %4913 = vmatprep.subr.mxu0 0.0
        %4914 = vmatpush1.msra.mxu0 0.0
        %4915 = vmatprep.subr.mxu0 0.0
        %4916 = vmatpush1.msra.mxu0 0.0
        %4917 = vmatprep.subr.mxu0 0.0
        %4918 = vmatpush1.msra.mxu0 0.0
        %4919 = vmatprep.subr.mxu0 0.0
        %4920 = vmatpush1.msra.mxu0 0.0
        %4921 = vmatprep.subr.mxu0 0.0
        %4922 = vmatpush1.msra.mxu0 0.0
        %4923 = vmatprep.subr.mxu0 0.0
        %4924 = vmatpush1.msra.mxu0 0.0
        %4925 = vmatprep.subr.mxu0 0.0
        %4926 = vmatpush1.msra.mxu0 0.0
        %4927 = vmatprep.subr.mxu0 0.0
        %4928 = vmatpush1.msra.mxu0 0.0
        %4929 = vmatprep.subr.mxu0 0.0
        %4930 = vmatpush1.msra.mxu0 0.0
        %4931 = vmatprep.subr.mxu0 0.0
        %4932 = vmatpush1.msra.mxu0 0.0
        %4933 = vmatprep.mubr.f32.mxu0 0.0
        %4934 = vmatmul.mubr.f32.gmra.mrb[0].mxu0 %v4865
        %v4935 = vpop.f32.mrb[0].mxu0
        %v4936 = vadd.f32 0.0, %v4935
        %v4937 = vpop.f32.mrb[0].mxu0
        %4938 = vdwg.mxu0
        %4939 = vrot.lane.b32.xlu0 %v1956, 64
        %v4940 = vpop.permute.xlu0 %4939
        %v4942 = vsel %vm4246, %v4199, 0
        %v4944 = vsel %vm4250, %v4940, 0
        %4946 = vmatprep.subr.mxu0 0.0
        %4947 = vmatpush1.msra.mxu0 %v4944
        %4948 = vmatprep.subr.mxu0 0.0
        %4949 = vmatpush1.msra.mxu0 0.0
        %4950 = vmatprep.subr.mxu0 0.0
        %4951 = vmatpush1.msra.mxu0 0.0
        %4952 = vmatprep.subr.mxu0 0.0
        %4953 = vmatpush1.msra.mxu0 0.0
        %4954 = vmatprep.subr.mxu0 0.0
        %4955 = vmatpush1.msra.mxu0 0.0
        %4956 = vmatprep.subr.mxu0 0.0
        %4957 = vmatpush1.msra.mxu0 0.0
        %4958 = vmatprep.subr.mxu0 0.0
        %4959 = vmatpush1.msra.mxu0 0.0
        %4960 = vmatprep.subr.mxu0 0.0
        %4961 = vmatpush1.msra.mxu0 0.0
        %4962 = vmatprep.subr.mxu0 0.0
        %4963 = vmatpush1.msra.mxu0 0.0
        %4964 = vmatprep.subr.mxu0 0.0
        %4965 = vmatpush1.msra.mxu0 0.0
        %4966 = vmatprep.subr.mxu0 0.0
        %4967 = vmatpush1.msra.mxu0 0.0
        %4968 = vmatprep.subr.mxu0 0.0
        %4969 = vmatpush1.msra.mxu0 0.0
        %4970 = vmatprep.subr.mxu0 0.0
        %4971 = vmatpush1.msra.mxu0 0.0
        %4972 = vmatprep.subr.mxu0 0.0
        %4973 = vmatpush1.msra.mxu0 0.0
        %4974 = vmatprep.subr.mxu0 0.0
        %4975 = vmatpush1.msra.mxu0 0.0
        %4976 = vmatprep.subr.mxu0 0.0
        %4977 = vmatpush1.msra.mxu0 0.0
        %4978 = vmatprep.subr.mxu0 0.0
        %4979 = vmatpush1.msra.mxu0 0.0
        %4980 = vmatprep.subr.mxu0 0.0
        %4981 = vmatpush1.msra.mxu0 0.0
        %4982 = vmatprep.subr.mxu0 0.0
        %4983 = vmatpush1.msra.mxu0 0.0
        %4984 = vmatprep.subr.mxu0 0.0
        %4985 = vmatpush1.msra.mxu0 0.0
        %4986 = vmatprep.subr.mxu0 0.0
        %4987 = vmatpush1.msra.mxu0 0.0
        %4988 = vmatprep.subr.mxu0 0.0
        %4989 = vmatpush1.msra.mxu0 0.0
        %4990 = vmatprep.subr.mxu0 0.0
        %4991 = vmatpush1.msra.mxu0 0.0
        %4992 = vmatprep.subr.mxu0 0.0
        %4993 = vmatpush1.msra.mxu0 0.0
        %4994 = vmatprep.subr.mxu0 0.0
        %4995 = vmatpush1.msra.mxu0 0.0
        %4996 = vmatprep.subr.mxu0 0.0
        %4997 = vmatpush1.msra.mxu0 0.0
        %4998 = vmatprep.subr.mxu0 0.0
        %4999 = vmatpush1.msra.mxu0 0.0
        %5000 = vmatprep.subr.mxu0 0.0
        %5001 = vmatpush1.msra.mxu0 0.0
        %5002 = vmatprep.subr.mxu0 0.0
        %5003 = vmatpush1.msra.mxu0 0.0
        %5004 = vmatprep.subr.mxu0 0.0
        %5005 = vmatpush1.msra.mxu0 0.0
        %5006 = vmatprep.subr.mxu0 0.0
        %5007 = vmatpush1.msra.mxu0 0.0
        %5008 = vmatprep.subr.mxu0 0.0
        %5009 = vmatpush1.msra.mxu0 0.0
        %5010 = vmatprep.mubr.f32.mxu0 0.0
        %5011 = vmatmul.mubr.f32.gmra.mrb[0].mxu0 %v4942
        %v5012 = vpop.f32.mrb[0].mxu0
        %v5013 = vadd.f32 0.0, %v5012
        %v5014 = vpop.f32.mrb[0].mxu0
        %5015 = vdwg.mxu0
        %5016 = vrot.lane.b32.xlu0 %v2039, 64
        %v5017 = vpop.permute.xlu0 %5016
        %v5019 = vsel %vm4246, %v4201, 0
        %v5021 = vsel %vm4250, %v5017, 0
        %5023 = vmatprep.subr.mxu0 0.0
        %5024 = vmatpush1.msra.mxu0 %v5021
        %5025 = vmatprep.subr.mxu0 0.0
        %5026 = vmatpush1.msra.mxu0 0.0
        %5027 = vmatprep.subr.mxu0 0.0
        %5028 = vmatpush1.msra.mxu0 0.0
        %5029 = vmatprep.subr.mxu0 0.0
        %5030 = vmatpush1.msra.mxu0 0.0
        %5031 = vmatprep.subr.mxu0 0.0
        %5032 = vmatpush1.msra.mxu0 0.0
        %5033 = vmatprep.subr.mxu0 0.0
        %5034 = vmatpush1.msra.mxu0 0.0
        %5035 = vmatprep.subr.mxu0 0.0
        %5036 = vmatpush1.msra.mxu0 0.0
        %5037 = vmatprep.subr.mxu0 0.0
        %5038 = vmatpush1.msra.mxu0 0.0
        %5039 = vmatprep.subr.mxu0 0.0
        %5040 = vmatpush1.msra.mxu0 0.0
        %5041 = vmatprep.subr.mxu0 0.0
        %5042 = vmatpush1.msra.mxu0 0.0
        %5043 = vmatprep.subr.mxu0 0.0
        %5044 = vmatpush1.msra.mxu0 0.0
        %5045 = vmatprep.subr.mxu0 0.0
        %5046 = vmatpush1.msra.mxu0 0.0
        %5047 = vmatprep.subr.mxu0 0.0
        %5048 = vmatpush1.msra.mxu0 0.0
        %5049 = vmatprep.subr.mxu0 0.0
        %5050 = vmatpush1.msra.mxu0 0.0
        %5051 = vmatprep.subr.mxu0 0.0
        %5052 = vmatpush1.msra.mxu0 0.0
        %5053 = vmatprep.subr.mxu0 0.0
        %5054 = vmatpush1.msra.mxu0 0.0
        %5055 = vmatprep.subr.mxu0 0.0
        %5056 = vmatpush1.msra.mxu0 0.0
        %5057 = vmatprep.subr.mxu0 0.0
        %5058 = vmatpush1.msra.mxu0 0.0
        %5059 = vmatprep.subr.mxu0 0.0
        %5060 = vmatpush1.msra.mxu0 0.0
        %5061 = vmatprep.subr.mxu0 0.0
        %5062 = vmatpush1.msra.mxu0 0.0
        %5063 = vmatprep.subr.mxu0 0.0
        %5064 = vmatpush1.msra.mxu0 0.0
        %5065 = vmatprep.subr.mxu0 0.0
        %5066 = vmatpush1.msra.mxu0 0.0
        %5067 = vmatprep.subr.mxu0 0.0
        %5068 = vmatpush1.msra.mxu0 0.0
        %5069 = vmatprep.subr.mxu0 0.0
        %5070 = vmatpush1.msra.mxu0 0.0
        %5071 = vmatprep.subr.mxu0 0.0
        %5072 = vmatpush1.msra.mxu0 0.0
        %5073 = vmatprep.subr.mxu0 0.0
        %5074 = vmatpush1.msra.mxu0 0.0
        %5075 = vmatprep.subr.mxu0 0.0
        %5076 = vmatpush1.msra.mxu0 0.0
        %5077 = vmatprep.subr.mxu0 0.0
        %5078 = vmatpush1.msra.mxu0 0.0
        %5079 = vmatprep.subr.mxu0 0.0
        %5080 = vmatpush1.msra.mxu0 0.0
        %5081 = vmatprep.subr.mxu0 0.0
        %5082 = vmatpush1.msra.mxu0 0.0
        %5083 = vmatprep.subr.mxu0 0.0
        %5084 = vmatpush1.msra.mxu0 0.0
        %5085 = vmatprep.subr.mxu0 0.0
        %5086 = vmatpush1.msra.mxu0 0.0
        %5087 = vmatprep.mubr.f32.mxu0 0.0
        %5088 = vmatmul.mubr.f32.gmra.mrb[0].mxu0 %v5019
        %v5089 = vpop.f32.mrb[0].mxu0
        %v5090 = vadd.f32 0.0, %v5089
        %v5091 = vpop.f32.mrb[0].mxu0
        %5092 = vdwg.mxu0
        %5093 = vrot.lane.b32.xlu0 %v2122, 64
        %v5094 = vpop.permute.xlu0 %5093
        %v5096 = vsel %vm4246, %v4203, 0
        %v5098 = vsel %vm4250, %v5094, 0
        %5100 = vmatprep.subr.mxu0 0.0
        %5101 = vmatpush1.msra.mxu0 %v5098
        %5102 = vmatprep.subr.mxu0 0.0
        %5103 = vmatpush1.msra.mxu0 0.0
        %5104 = vmatprep.subr.mxu0 0.0
        %5105 = vmatpush1.msra.mxu0 0.0
        %5106 = vmatprep.subr.mxu0 0.0
        %5107 = vmatpush1.msra.mxu0 0.0
        %5108 = vmatprep.subr.mxu0 0.0
        %5109 = vmatpush1.msra.mxu0 0.0
        %5110 = vmatprep.subr.mxu0 0.0
        %5111 = vmatpush1.msra.mxu0 0.0
        %5112 = vmatprep.subr.mxu0 0.0
        %5113 = vmatpush1.msra.mxu0 0.0
        %5114 = vmatprep.subr.mxu0 0.0
        %5115 = vmatpush1.msra.mxu0 0.0
        %5116 = vmatprep.subr.mxu0 0.0
        %5117 = vmatpush1.msra.mxu0 0.0
        %5118 = vmatprep.subr.mxu0 0.0
        %5119 = vmatpush1.msra.mxu0 0.0
        %5120 = vmatprep.subr.mxu0 0.0
        %5121 = vmatpush1.msra.mxu0 0.0
        %5122 = vmatprep.subr.mxu0 0.0
        %5123 = vmatpush1.msra.mxu0 0.0
        %5124 = vmatprep.subr.mxu0 0.0
        %5125 = vmatpush1.msra.mxu0 0.0
        %5126 = vmatprep.subr.mxu0 0.0
        %5127 = vmatpush1.msra.mxu0 0.0
        %5128 = vmatprep.subr.mxu0 0.0
        %5129 = vmatpush1.msra.mxu0 0.0
        %5130 = vmatprep.subr.mxu0 0.0
        %5131 = vmatpush1.msra.mxu0 0.0
        %5132 = vmatprep.subr.mxu0 0.0
        %5133 = vmatpush1.msra.mxu0 0.0
        %5134 = vmatprep.subr.mxu0 0.0
        %5135 = vmatpush1.msra.mxu0 0.0
        %5136 = vmatprep.subr.mxu0 0.0
        %5137 = vmatpush1.msra.mxu0 0.0
        %5138 = vmatprep.subr.mxu0 0.0
        %5139 = vmatpush1.msra.mxu0 0.0
        %5140 = vmatprep.subr.mxu0 0.0
        %5141 = vmatpush1.msra.mxu0 0.0
        %5142 = vmatprep.subr.mxu0 0.0
        %5143 = vmatpush1.msra.mxu0 0.0
        %5144 = vmatprep.subr.mxu0 0.0
        %5145 = vmatpush1.msra.mxu0 0.0
        %5146 = vmatprep.subr.mxu0 0.0
        %5147 = vmatpush1.msra.mxu0 0.0
        %5148 = vmatprep.subr.mxu0 0.0
        %5149 = vmatpush1.msra.mxu0 0.0
        %5150 = vmatprep.subr.mxu0 0.0
        %5151 = vmatpush1.msra.mxu0 0.0
        %5152 = vmatprep.subr.mxu0 0.0
        %5153 = vmatpush1.msra.mxu0 0.0
        %5154 = vmatprep.subr.mxu0 0.0
        %5155 = vmatpush1.msra.mxu0 0.0
        %5156 = vmatprep.subr.mxu0 0.0
        %5157 = vmatpush1.msra.mxu0 0.0
        %5158 = vmatprep.subr.mxu0 0.0
        %5159 = vmatpush1.msra.mxu0 0.0
        %5160 = vmatprep.subr.mxu0 0.0
        %5161 = vmatpush1.msra.mxu0 0.0
        %5162 = vmatprep.subr.mxu0 0.0
        %5163 = vmatpush1.msra.mxu0 0.0
        %5164 = vmatprep.mubr.f32.mxu0 0.0
        %5165 = vmatmul.mubr.f32.gmra.mrb[0].mxu0 %v5096
        %v5166 = vpop.f32.mrb[0].mxu0
        %v5167 = vadd.f32 0.0, %v5166
        %v5168 = vpop.f32.mrb[0].mxu0
        %5169 = vdwg.mxu0
        %5170 = vrot.lane.b32.xlu0 %v2205, 64
        %v5171 = vpop.permute.xlu0 %5170
        %v5173 = vsel %vm4246, %v4205, 0
        %v5175 = vsel %vm4250, %v5171, 0
        %5177 = vmatprep.subr.mxu0 0.0
        %5178 = vmatpush1.msra.mxu0 %v5175
        %5179 = vmatprep.subr.mxu0 0.0
        %5180 = vmatpush1.msra.mxu0 0.0
        %5181 = vmatprep.subr.mxu0 0.0
        %5182 = vmatpush1.msra.mxu0 0.0
        %5183 = vmatprep.subr.mxu0 0.0
        %5184 = vmatpush1.msra.mxu0 0.0
        %5185 = vmatprep.subr.mxu0 0.0
        %5186 = vmatpush1.msra.mxu0 0.0
        %5187 = vmatprep.subr.mxu0 0.0
        %5188 = vmatpush1.msra.mxu0 0.0
        %5189 = vmatprep.subr.mxu0 0.0
        %5190 = vmatpush1.msra.mxu0 0.0
        %5191 = vmatprep.subr.mxu0 0.0
        %5192 = vmatpush1.msra.mxu0 0.0
        %5193 = vmatprep.subr.mxu0 0.0
        %5194 = vmatpush1.msra.mxu0 0.0
        %5195 = vmatprep.subr.mxu0 0.0
        %5196 = vmatpush1.msra.mxu0 0.0
        %5197 = vmatprep.subr.mxu0 0.0
        %5198 = vmatpush1.msra.mxu0 0.0
        %5199 = vmatprep.subr.mxu0 0.0
        %5200 = vmatpush1.msra.mxu0 0.0
        %5201 = vmatprep.subr.mxu0 0.0
        %5202 = vmatpush1.msra.mxu0 0.0
        %5203 = vmatprep.subr.mxu0 0.0
        %5204 = vmatpush1.msra.mxu0 0.0
        %5205 = vmatprep.subr.mxu0 0.0
        %5206 = vmatpush1.msra.mxu0 0.0
        %5207 = vmatprep.subr.mxu0 0.0
        %5208 = vmatpush1.msra.mxu0 0.0
        %5209 = vmatprep.subr.mxu0 0.0
        %5210 = vmatpush1.msra.mxu0 0.0
        %5211 = vmatprep.subr.mxu0 0.0
        %5212 = vmatpush1.msra.mxu0 0.0
        %5213 = vmatprep.subr.mxu0 0.0
        %5214 = vmatpush1.msra.mxu0 0.0
        %5215 = vmatprep.subr.mxu0 0.0
        %5216 = vmatpush1.msra.mxu0 0.0
        %5217 = vmatprep.subr.mxu0 0.0
        %5218 = vmatpush1.msra.mxu0 0.0
        %5219 = vmatprep.subr.mxu0 0.0
        %5220 = vmatpush1.msra.mxu0 0.0
        %5221 = vmatprep.subr.mxu0 0.0
        %5222 = vmatpush1.msra.mxu0 0.0
        %5223 = vmatprep.subr.mxu0 0.0
        %5224 = vmatpush1.msra.mxu0 0.0
        %5225 = vmatprep.subr.mxu0 0.0
        %5226 = vmatpush1.msra.mxu0 0.0
        %5227 = vmatprep.subr.mxu0 0.0
        %5228 = vmatpush1.msra.mxu0 0.0
        %5229 = vmatprep.subr.mxu0 0.0
        %5230 = vmatpush1.msra.mxu0 0.0
        %5231 = vmatprep.subr.mxu0 0.0
        %5232 = vmatpush1.msra.mxu0 0.0
        %5233 = vmatprep.subr.mxu0 0.0
        %5234 = vmatpush1.msra.mxu0 0.0
        %5235 = vmatprep.subr.mxu0 0.0
        %5236 = vmatpush1.msra.mxu0 0.0
        %5237 = vmatprep.subr.mxu0 0.0
        %5238 = vmatpush1.msra.mxu0 0.0
        %5239 = vmatprep.subr.mxu0 0.0
        %5240 = vmatpush1.msra.mxu0 0.0
        %5241 = vmatprep.mubr.f32.mxu0 0.0
        %5242 = vmatmul.mubr.f32.gmra.mrb[0].mxu0 %v5173
        %v5243 = vpop.f32.mrb[0].mxu0
        %v5244 = vadd.f32 0.0, %v5243
        %v5245 = vpop.f32.mrb[0].mxu0
        %5246 = vdwg.mxu0
        %5247 = vrot.lane.b32.xlu0 %v2288, 64
        %v5248 = vpop.permute.xlu0 %5247
        %v5250 = vsel %vm4246, %v4207, 0
        %v5252 = vsel %vm4250, %v5248, 0
        %5254 = vmatprep.subr.mxu0 0.0
        %5255 = vmatpush1.msra.mxu0 %v5252
        %5256 = vmatprep.subr.mxu0 0.0
        %5257 = vmatpush1.msra.mxu0 0.0
        %5258 = vmatprep.subr.mxu0 0.0
        %5259 = vmatpush1.msra.mxu0 0.0
        %5260 = vmatprep.subr.mxu0 0.0
        %5261 = vmatpush1.msra.mxu0 0.0
        %5262 = vmatprep.subr.mxu0 0.0
        %5263 = vmatpush1.msra.mxu0 0.0
        %5264 = vmatprep.subr.mxu0 0.0
        %5265 = vmatpush1.msra.mxu0 0.0
        %5266 = vmatprep.subr.mxu0 0.0
        %5267 = vmatpush1.msra.mxu0 0.0
        %5268 = vmatprep.subr.mxu0 0.0
        %5269 = vmatpush1.msra.mxu0 0.0
        %5270 = vmatprep.subr.mxu0 0.0
        %5271 = vmatpush1.msra.mxu0 0.0
        %5272 = vmatprep.subr.mxu0 0.0
        %5273 = vmatpush1.msra.mxu0 0.0
        %5274 = vmatprep.subr.mxu0 0.0
        %5275 = vmatpush1.msra.mxu0 0.0
        %5276 = vmatprep.subr.mxu0 0.0
        %5277 = vmatpush1.msra.mxu0 0.0
        %5278 = vmatprep.subr.mxu0 0.0
        %5279 = vmatpush1.msra.mxu0 0.0
        %5280 = vmatprep.subr.mxu0 0.0
        %5281 = vmatpush1.msra.mxu0 0.0
        %5282 = vmatprep.subr.mxu0 0.0
        %5283 = vmatpush1.msra.mxu0 0.0
        %5284 = vmatprep.subr.mxu0 0.0
        %5285 = vmatpush1.msra.mxu0 0.0
        %5286 = vmatprep.subr.mxu0 0.0
        %5287 = vmatpush1.msra.mxu0 0.0
        %5288 = vmatprep.subr.mxu0 0.0
        %5289 = vmatpush1.msra.mxu0 0.0
        %5290 = vmatprep.subr.mxu0 0.0
        %5291 = vmatpush1.msra.mxu0 0.0
        %5292 = vmatprep.subr.mxu0 0.0
        %5293 = vmatpush1.msra.mxu0 0.0
        %5294 = vmatprep.subr.mxu0 0.0
        %5295 = vmatpush1.msra.mxu0 0.0
        %5296 = vmatprep.subr.mxu0 0.0
        %5297 = vmatpush1.msra.mxu0 0.0
        %5298 = vmatprep.subr.mxu0 0.0
        %5299 = vmatpush1.msra.mxu0 0.0
        %5300 = vmatprep.subr.mxu0 0.0
        %5301 = vmatpush1.msra.mxu0 0.0
        %5302 = vmatprep.subr.mxu0 0.0
        %5303 = vmatpush1.msra.mxu0 0.0
        %5304 = vmatprep.subr.mxu0 0.0
        %5305 = vmatpush1.msra.mxu0 0.0
        %5306 = vmatprep.subr.mxu0 0.0
        %5307 = vmatpush1.msra.mxu0 0.0
        %5308 = vmatprep.subr.mxu0 0.0
        %5309 = vmatpush1.msra.mxu0 0.0
        %5310 = vmatprep.subr.mxu0 0.0
        %5311 = vmatpush1.msra.mxu0 0.0
        %5312 = vmatprep.subr.mxu0 0.0
        %5313 = vmatpush1.msra.mxu0 0.0
        %5314 = vmatprep.subr.mxu0 0.0
        %5315 = vmatpush1.msra.mxu0 0.0
        %5316 = vmatprep.subr.mxu0 0.0
        %5317 = vmatpush1.msra.mxu0 0.0
        %5318 = vmatprep.mubr.f32.mxu0 0.0
        %5319 = vmatmul.mubr.f32.gmra.mrb[0].mxu0 %v5250
        %v5320 = vpop.f32.mrb[0].mxu0
        %v5321 = vadd.f32 0.0, %v5320
        %v5322 = vpop.f32.mrb[0].mxu0
        %5323 = vdwg.mxu0
        %5324 = vrot.lane.b32.xlu0 %v2371, 64
        %v5325 = vpop.permute.xlu0 %5324
        %v5327 = vsel %vm4246, %v4209, 0
        %v5329 = vsel %vm4250, %v5325, 0
        %5331 = vmatprep.subr.mxu0 0.0
        %5332 = vmatpush1.msra.mxu0 %v5329
        %5333 = vmatprep.subr.mxu0 0.0
        %5334 = vmatpush1.msra.mxu0 0.0
        %5335 = vmatprep.subr.mxu0 0.0
        %5336 = vmatpush1.msra.mxu0 0.0
        %5337 = vmatprep.subr.mxu0 0.0
        %5338 = vmatpush1.msra.mxu0 0.0
        %5339 = vmatprep.subr.mxu0 0.0
        %5340 = vmatpush1.msra.mxu0 0.0
        %5341 = vmatprep.subr.mxu0 0.0
        %5342 = vmatpush1.msra.mxu0 0.0
        %5343 = vmatprep.subr.mxu0 0.0
        %5344 = vmatpush1.msra.mxu0 0.0
        %5345 = vmatprep.subr.mxu0 0.0
        %5346 = vmatpush1.msra.mxu0 0.0
        %5347 = vmatprep.subr.mxu0 0.0
        %5348 = vmatpush1.msra.mxu0 0.0
        %5349 = vmatprep.subr.mxu0 0.0
        %5350 = vmatpush1.msra.mxu0 0.0
        %5351 = vmatprep.subr.mxu0 0.0
        %5352 = vmatpush1.msra.mxu0 0.0
        %5353 = vmatprep.subr.mxu0 0.0
        %5354 = vmatpush1.msra.mxu0 0.0
        %5355 = vmatprep.subr.mxu0 0.0
        %5356 = vmatpush1.msra.mxu0 0.0
        %5357 = vmatprep.subr.mxu0 0.0
        %5358 = vmatpush1.msra.mxu0 0.0
        %5359 = vmatprep.subr.mxu0 0.0
        %5360 = vmatpush1.msra.mxu0 0.0
        %5361 = vmatprep.subr.mxu0 0.0
        %5362 = vmatpush1.msra.mxu0 0.0
        %5363 = vmatprep.subr.mxu0 0.0
        %5364 = vmatpush1.msra.mxu0 0.0
        %5365 = vmatprep.subr.mxu0 0.0
        %5366 = vmatpush1.msra.mxu0 0.0
        %5367 = vmatprep.subr.mxu0 0.0
        %5368 = vmatpush1.msra.mxu0 0.0
        %5369 = vmatprep.subr.mxu0 0.0
        %5370 = vmatpush1.msra.mxu0 0.0
        %5371 = vmatprep.subr.mxu0 0.0
        %5372 = vmatpush1.msra.mxu0 0.0
        %5373 = vmatprep.subr.mxu0 0.0
        %5374 = vmatpush1.msra.mxu0 0.0
        %5375 = vmatprep.subr.mxu0 0.0
        %5376 = vmatpush1.msra.mxu0 0.0
        %5377 = vmatprep.subr.mxu0 0.0
        %5378 = vmatpush1.msra.mxu0 0.0
        %5379 = vmatprep.subr.mxu0 0.0
        %5380 = vmatpush1.msra.mxu0 0.0
        %5381 = vmatprep.subr.mxu0 0.0
        %5382 = vmatpush1.msra.mxu0 0.0
        %5383 = vmatprep.subr.mxu0 0.0
        %5384 = vmatpush1.msra.mxu0 0.0
        %5385 = vmatprep.subr.mxu0 0.0
        %5386 = vmatpush1.msra.mxu0 0.0
        %5387 = vmatprep.subr.mxu0 0.0
        %5388 = vmatpush1.msra.mxu0 0.0
        %5389 = vmatprep.subr.mxu0 0.0
        %5390 = vmatpush1.msra.mxu0 0.0
        %5391 = vmatprep.subr.mxu0 0.0
        %5392 = vmatpush1.msra.mxu0 0.0
        %5393 = vmatprep.subr.mxu0 0.0
        %5394 = vmatpush1.msra.mxu0 0.0
        %5395 = vmatprep.mubr.f32.mxu0 0.0
        %5396 = vmatmul.mubr.f32.gmra.mrb[0].mxu0 %v5327
        %v5397 = vpop.f32.mrb[0].mxu0
        %v5398 = vadd.f32 0.0, %v5397
        %v5399 = vpop.f32.mrb[0].mxu0
        %5400 = vdwg.mxu0
        %5401 = vrot.lane.b32.xlu0 %v2454, 64
        %v5402 = vpop.permute.xlu0 %5401
        %v5404 = vsel %vm4246, %v4211, 0
        %v5406 = vsel %vm4250, %v5402, 0
        %5408 = vmatprep.subr.mxu0 0.0
        %5409 = vmatpush1.msra.mxu0 %v5406
        %5410 = vmatprep.subr.mxu0 0.0
        %5411 = vmatpush1.msra.mxu0 0.0
        %5412 = vmatprep.subr.mxu0 0.0
        %5413 = vmatpush1.msra.mxu0 0.0
        %5414 = vmatprep.subr.mxu0 0.0
        %5415 = vmatpush1.msra.mxu0 0.0
        %5416 = vmatprep.subr.mxu0 0.0
        %5417 = vmatpush1.msra.mxu0 0.0
        %5418 = vmatprep.subr.mxu0 0.0
        %5419 = vmatpush1.msra.mxu0 0.0
        %5420 = vmatprep.subr.mxu0 0.0
        %5421 = vmatpush1.msra.mxu0 0.0
        %5422 = vmatprep.subr.mxu0 0.0
        %5423 = vmatpush1.msra.mxu0 0.0
        %5424 = vmatprep.subr.mxu0 0.0
        %5425 = vmatpush1.msra.mxu0 0.0
        %5426 = vmatprep.subr.mxu0 0.0
        %5427 = vmatpush1.msra.mxu0 0.0
        %5428 = vmatprep.subr.mxu0 0.0
        %5429 = vmatpush1.msra.mxu0 0.0
        %5430 = vmatprep.subr.mxu0 0.0
        %5431 = vmatpush1.msra.mxu0 0.0
        %5432 = vmatprep.subr.mxu0 0.0
        %5433 = vmatpush1.msra.mxu0 0.0
        %5434 = vmatprep.subr.mxu0 0.0
        %5435 = vmatpush1.msra.mxu0 0.0
        %5436 = vmatprep.subr.mxu0 0.0
        %5437 = vmatpush1.msra.mxu0 0.0
        %5438 = vmatprep.subr.mxu0 0.0
        %5439 = vmatpush1.msra.mxu0 0.0
        %5440 = vmatprep.subr.mxu0 0.0
        %5441 = vmatpush1.msra.mxu0 0.0
        %5442 = vmatprep.subr.mxu0 0.0
        %5443 = vmatpush1.msra.mxu0 0.0
        %5444 = vmatprep.subr.mxu0 0.0
        %5445 = vmatpush1.msra.mxu0 0.0
        %5446 = vmatprep.subr.mxu0 0.0
        %5447 = vmatpush1.msra.mxu0 0.0
        %5448 = vmatprep.subr.mxu0 0.0
        %5449 = vmatpush1.msra.mxu0 0.0
        %5450 = vmatprep.subr.mxu0 0.0
        %5451 = vmatpush1.msra.mxu0 0.0
        %5452 = vmatprep.subr.mxu0 0.0
        %5453 = vmatpush1.msra.mxu0 0.0
        %5454 = vmatprep.subr.mxu0 0.0
        %5455 = vmatpush1.msra.mxu0 0.0
        %5456 = vmatprep.subr.mxu0 0.0
        %5457 = vmatpush1.msra.mxu0 0.0
        %5458 = vmatprep.subr.mxu0 0.0
        %5459 = vmatpush1.msra.mxu0 0.0
        %5460 = vmatprep.subr.mxu0 0.0
        %5461 = vmatpush1.msra.mxu0 0.0
        %5462 = vmatprep.subr.mxu0 0.0
        %5463 = vmatpush1.msra.mxu0 0.0
        %5464 = vmatprep.subr.mxu0 0.0
        %5465 = vmatpush1.msra.mxu0 0.0
        %5466 = vmatprep.subr.mxu0 0.0
        %5467 = vmatpush1.msra.mxu0 0.0
        %5468 = vmatprep.subr.mxu0 0.0
        %5469 = vmatpush1.msra.mxu0 0.0
        %5470 = vmatprep.subr.mxu0 0.0
        %5471 = vmatpush1.msra.mxu0 0.0
        %5472 = vmatprep.mubr.f32.mxu0 0.0
        %5473 = vmatmul.mubr.f32.gmra.mrb[0].mxu0 %v5404
        %v5474 = vpop.f32.mrb[0].mxu0
        %v5475 = vadd.f32 0.0, %v5474
        %v5476 = vpop.f32.mrb[0].mxu0
        %5477 = vdwg.mxu0
        %5478 = vrot.lane.b32.xlu0 %v2537, 64
        %v5479 = vpop.permute.xlu0 %5478
        %v5481 = vsel %vm4246, %v4213, 0
        %v5483 = vsel %vm4250, %v5479, 0
        %5485 = vmatprep.subr.mxu0 0.0
        %5486 = vmatpush1.msra.mxu0 %v5483
        %5487 = vmatprep.subr.mxu0 0.0
        %5488 = vmatpush1.msra.mxu0 0.0
        %5489 = vmatprep.subr.mxu0 0.0
        %5490 = vmatpush1.msra.mxu0 0.0
        %5491 = vmatprep.subr.mxu0 0.0
        %5492 = vmatpush1.msra.mxu0 0.0
        %5493 = vmatprep.subr.mxu0 0.0
        %5494 = vmatpush1.msra.mxu0 0.0
        %5495 = vmatprep.subr.mxu0 0.0
        %5496 = vmatpush1.msra.mxu0 0.0
        %5497 = vmatprep.subr.mxu0 0.0
        %5498 = vmatpush1.msra.mxu0 0.0
        %5499 = vmatprep.subr.mxu0 0.0
        %5500 = vmatpush1.msra.mxu0 0.0
        %5501 = vmatprep.subr.mxu0 0.0
        %5502 = vmatpush1.msra.mxu0 0.0
        %5503 = vmatprep.subr.mxu0 0.0
        %5504 = vmatpush1.msra.mxu0 0.0
        %5505 = vmatprep.subr.mxu0 0.0
        %5506 = vmatpush1.msra.mxu0 0.0
        %5507 = vmatprep.subr.mxu0 0.0
        %5508 = vmatpush1.msra.mxu0 0.0
        %5509 = vmatprep.subr.mxu0 0.0
        %5510 = vmatpush1.msra.mxu0 0.0
        %5511 = vmatprep.subr.mxu0 0.0
        %5512 = vmatpush1.msra.mxu0 0.0
        %5513 = vmatprep.subr.mxu0 0.0
        %5514 = vmatpush1.msra.mxu0 0.0
        %5515 = vmatprep.subr.mxu0 0.0
        %5516 = vmatpush1.msra.mxu0 0.0
        %5517 = vmatprep.subr.mxu0 0.0
        %5518 = vmatpush1.msra.mxu0 0.0
        %5519 = vmatprep.subr.mxu0 0.0
        %5520 = vmatpush1.msra.mxu0 0.0
        %5521 = vmatprep.subr.mxu0 0.0
        %5522 = vmatpush1.msra.mxu0 0.0
        %5523 = vmatprep.subr.mxu0 0.0
        %5524 = vmatpush1.msra.mxu0 0.0
        %5525 = vmatprep.subr.mxu0 0.0
        %5526 = vmatpush1.msra.mxu0 0.0
        %5527 = vmatprep.subr.mxu0 0.0
        %5528 = vmatpush1.msra.mxu0 0.0
        %5529 = vmatprep.subr.mxu0 0.0
        %5530 = vmatpush1.msra.mxu0 0.0
        %5531 = vmatprep.subr.mxu0 0.0
        %5532 = vmatpush1.msra.mxu0 0.0
        %5533 = vmatprep.subr.mxu0 0.0
        %5534 = vmatpush1.msra.mxu0 0.0
        %5535 = vmatprep.subr.mxu0 0.0
        %5536 = vmatpush1.msra.mxu0 0.0
        %5537 = vmatprep.subr.mxu0 0.0
        %5538 = vmatpush1.msra.mxu0 0.0
        %5539 = vmatprep.subr.mxu0 0.0
        %5540 = vmatpush1.msra.mxu0 0.0
        %5541 = vmatprep.subr.mxu0 0.0
        %5542 = vmatpush1.msra.mxu0 0.0
        %5543 = vmatprep.subr.mxu0 0.0
        %5544 = vmatpush1.msra.mxu0 0.0
        %5545 = vmatprep.subr.mxu0 0.0
        %5546 = vmatpush1.msra.mxu0 0.0
        %5547 = vmatprep.subr.mxu0 0.0
        %5548 = vmatpush1.msra.mxu0 0.0
        %5549 = vmatprep.mubr.f32.mxu0 0.0
        %5550 = vmatmul.mubr.f32.gmra.mrb[0].mxu0 %v5481
        %v5551 = vpop.f32.mrb[0].mxu0
        %v5552 = vadd.f32 0.0, %v5551
        %v5553 = vpop.f32.mrb[0].mxu0
        %5554 = vdwg.mxu0
        %5555 = vrot.lane.b32.xlu0 %v2620, 64
        %v5556 = vpop.permute.xlu0 %5555
        %v5558 = vsel %vm4246, %v4215, 0
        %v5560 = vsel %vm4250, %v5556, 0
        %5562 = vmatprep.subr.mxu0 0.0
        %5563 = vmatpush1.msra.mxu0 %v5560
        %5564 = vmatprep.subr.mxu0 0.0
        %5565 = vmatpush1.msra.mxu0 0.0
        %5566 = vmatprep.subr.mxu0 0.0
        %5567 = vmatpush1.msra.mxu0 0.0
        %5568 = vmatprep.subr.mxu0 0.0
        %5569 = vmatpush1.msra.mxu0 0.0
        %5570 = vmatprep.subr.mxu0 0.0
        %5571 = vmatpush1.msra.mxu0 0.0
        %5572 = vmatprep.subr.mxu0 0.0
        %5573 = vmatpush1.msra.mxu0 0.0
        %5574 = vmatprep.subr.mxu0 0.0
        %5575 = vmatpush1.msra.mxu0 0.0
        %5576 = vmatprep.subr.mxu0 0.0
        %5577 = vmatpush1.msra.mxu0 0.0
        %5578 = vmatprep.subr.mxu0 0.0
        %5579 = vmatpush1.msra.mxu0 0.0
        %5580 = vmatprep.subr.mxu0 0.0
        %5581 = vmatpush1.msra.mxu0 0.0
        %5582 = vmatprep.subr.mxu0 0.0
        %5583 = vmatpush1.msra.mxu0 0.0
        %5584 = vmatprep.subr.mxu0 0.0
        %5585 = vmatpush1.msra.mxu0 0.0
        %5586 = vmatprep.subr.mxu0 0.0
        %5587 = vmatpush1.msra.mxu0 0.0
        %5588 = vmatprep.subr.mxu0 0.0
        %5589 = vmatpush1.msra.mxu0 0.0
        %5590 = vmatprep.subr.mxu0 0.0
        %5591 = vmatpush1.msra.mxu0 0.0
        %5592 = vmatprep.subr.mxu0 0.0
        %5593 = vmatpush1.msra.mxu0 0.0
        %5594 = vmatprep.subr.mxu0 0.0
        %5595 = vmatpush1.msra.mxu0 0.0
        %5596 = vmatprep.subr.mxu0 0.0
        %5597 = vmatpush1.msra.mxu0 0.0
        %5598 = vmatprep.subr.mxu0 0.0
        %5599 = vmatpush1.msra.mxu0 0.0
        %5600 = vmatprep.subr.mxu0 0.0
        %5601 = vmatpush1.msra.mxu0 0.0
        %5602 = vmatprep.subr.mxu0 0.0
        %5603 = vmatpush1.msra.mxu0 0.0
        %5604 = vmatprep.subr.mxu0 0.0
        %5605 = vmatpush1.msra.mxu0 0.0
        %5606 = vmatprep.subr.mxu0 0.0
        %5607 = vmatpush1.msra.mxu0 0.0
        %5608 = vmatprep.subr.mxu0 0.0
        %5609 = vmatpush1.msra.mxu0 0.0
        %5610 = vmatprep.subr.mxu0 0.0
        %5611 = vmatpush1.msra.mxu0 0.0
        %5612 = vmatprep.subr.mxu0 0.0
        %5613 = vmatpush1.msra.mxu0 0.0
        %5614 = vmatprep.subr.mxu0 0.0
        %5615 = vmatpush1.msra.mxu0 0.0
        %5616 = vmatprep.subr.mxu0 0.0
        %5617 = vmatpush1.msra.mxu0 0.0
        %5618 = vmatprep.subr.mxu0 0.0
        %5619 = vmatpush1.msra.mxu0 0.0
        %5620 = vmatprep.subr.mxu0 0.0
        %5621 = vmatpush1.msra.mxu0 0.0
        %5622 = vmatprep.subr.mxu0 0.0
        %5623 = vmatpush1.msra.mxu0 0.0
        %5624 = vmatprep.subr.mxu0 0.0
        %5625 = vmatpush1.msra.mxu0 0.0
        %5626 = vmatprep.mubr.f32.mxu0 0.0
        %5627 = vmatmul.mubr.f32.gmra.mrb[0].mxu0 %v5558
        %v5628 = vpop.f32.mrb[0].mxu0
        %v5629 = vadd.f32 0.0, %v5628
        %v5630 = vpop.f32.mrb[0].mxu0
        %5631 = vdwg.mxu0
        %5632 = vrot.lane.b32.xlu0 %v2703, 64
        %v5633 = vpop.permute.xlu0 %5632
        %v5635 = vsel %vm4246, %v4217, 0
        %v5637 = vsel %vm4250, %v5633, 0
        %5639 = vmatprep.subr.mxu0 0.0
        %5640 = vmatpush1.msra.mxu0 %v5637
        %5641 = vmatprep.subr.mxu0 0.0
        %5642 = vmatpush1.msra.mxu0 0.0
        %5643 = vmatprep.subr.mxu0 0.0
        %5644 = vmatpush1.msra.mxu0 0.0
        %5645 = vmatprep.subr.mxu0 0.0
        %5646 = vmatpush1.msra.mxu0 0.0
        %5647 = vmatprep.subr.mxu0 0.0
        %5648 = vmatpush1.msra.mxu0 0.0
        %5649 = vmatprep.subr.mxu0 0.0
        %5650 = vmatpush1.msra.mxu0 0.0
        %5651 = vmatprep.subr.mxu0 0.0
        %5652 = vmatpush1.msra.mxu0 0.0
        %5653 = vmatprep.subr.mxu0 0.0
        %5654 = vmatpush1.msra.mxu0 0.0
        %5655 = vmatprep.subr.mxu0 0.0
        %5656 = vmatpush1.msra.mxu0 0.0
        %5657 = vmatprep.subr.mxu0 0.0
        %5658 = vmatpush1.msra.mxu0 0.0
        %5659 = vmatprep.subr.mxu0 0.0
        %5660 = vmatpush1.msra.mxu0 0.0
        %5661 = vmatprep.subr.mxu0 0.0
        %5662 = vmatpush1.msra.mxu0 0.0
        %5663 = vmatprep.subr.mxu0 0.0
        %5664 = vmatpush1.msra.mxu0 0.0
        %5665 = vmatprep.subr.mxu0 0.0
        %5666 = vmatpush1.msra.mxu0 0.0
        %5667 = vmatprep.subr.mxu0 0.0
        %5668 = vmatpush1.msra.mxu0 0.0
        %5669 = vmatprep.subr.mxu0 0.0
        %5670 = vmatpush1.msra.mxu0 0.0
        %5671 = vmatprep.subr.mxu0 0.0
        %5672 = vmatpush1.msra.mxu0 0.0
        %5673 = vmatprep.subr.mxu0 0.0
        %5674 = vmatpush1.msra.mxu0 0.0
        %5675 = vmatprep.subr.mxu0 0.0
        %5676 = vmatpush1.msra.mxu0 0.0
        %5677 = vmatprep.subr.mxu0 0.0
        %5678 = vmatpush1.msra.mxu0 0.0
        %5679 = vmatprep.subr.mxu0 0.0
        %5680 = vmatpush1.msra.mxu0 0.0
        %5681 = vmatprep.subr.mxu0 0.0
        %5682 = vmatpush1.msra.mxu0 0.0
        %5683 = vmatprep.subr.mxu0 0.0
        %5684 = vmatpush1.msra.mxu0 0.0
        %5685 = vmatprep.subr.mxu0 0.0
        %5686 = vmatpush1.msra.mxu0 0.0
        %5687 = vmatprep.subr.mxu0 0.0
        %5688 = vmatpush1.msra.mxu0 0.0
        %5689 = vmatprep.subr.mxu0 0.0
        %5690 = vmatpush1.msra.mxu0 0.0
        %5691 = vmatprep.subr.mxu0 0.0
        %5692 = vmatpush1.msra.mxu0 0.0
        %5693 = vmatprep.subr.mxu0 0.0
        %5694 = vmatpush1.msra.mxu0 0.0
        %5695 = vmatprep.subr.mxu0 0.0
        %5696 = vmatpush1.msra.mxu0 0.0
        %5697 = vmatprep.subr.mxu0 0.0
        %5698 = vmatpush1.msra.mxu0 0.0
        %5699 = vmatprep.subr.mxu0 0.0
        %5700 = vmatpush1.msra.mxu0 0.0
        %5701 = vmatprep.subr.mxu0 0.0
        %5702 = vmatpush1.msra.mxu0 0.0
        %5703 = vmatprep.mubr.f32.mxu0 0.0
        %5704 = vmatmul.mubr.f32.gmra.mrb[0].mxu0 %v5635
        %v5705 = vpop.f32.mrb[0].mxu0
        %v5706 = vadd.f32 0.0, %v5705
        %v5707 = vpop.f32.mrb[0].mxu0
        %5708 = vdwg.mxu0
        %5709 = vrot.lane.b32.xlu0 %v2786, 64
        %v5710 = vpop.permute.xlu0 %5709
        %v5712 = vsel %vm4246, %v4219, 0
        %v5714 = vsel %vm4250, %v5710, 0
        %5716 = vmatprep.subr.mxu0 0.0
        %5717 = vmatpush1.msra.mxu0 %v5714
        %5718 = vmatprep.subr.mxu0 0.0
        %5719 = vmatpush1.msra.mxu0 0.0
        %5720 = vmatprep.subr.mxu0 0.0
        %5721 = vmatpush1.msra.mxu0 0.0
        %5722 = vmatprep.subr.mxu0 0.0
        %5723 = vmatpush1.msra.mxu0 0.0
        %5724 = vmatprep.subr.mxu0 0.0
        %5725 = vmatpush1.msra.mxu0 0.0
        %5726 = vmatprep.subr.mxu0 0.0
        %5727 = vmatpush1.msra.mxu0 0.0
        %5728 = vmatprep.subr.mxu0 0.0
        %5729 = vmatpush1.msra.mxu0 0.0
        %5730 = vmatprep.subr.mxu0 0.0
        %5731 = vmatpush1.msra.mxu0 0.0
        %5732 = vmatprep.subr.mxu0 0.0
        %5733 = vmatpush1.msra.mxu0 0.0
        %5734 = vmatprep.subr.mxu0 0.0
        %5735 = vmatpush1.msra.mxu0 0.0
        %5736 = vmatprep.subr.mxu0 0.0
        %5737 = vmatpush1.msra.mxu0 0.0
        %5738 = vmatprep.subr.mxu0 0.0
        %5739 = vmatpush1.msra.mxu0 0.0
        %5740 = vmatprep.subr.mxu0 0.0
        %5741 = vmatpush1.msra.mxu0 0.0
        %5742 = vmatprep.subr.mxu0 0.0
        %5743 = vmatpush1.msra.mxu0 0.0
        %5744 = vmatprep.subr.mxu0 0.0
        %5745 = vmatpush1.msra.mxu0 0.0
        %5746 = vmatprep.subr.mxu0 0.0
        %5747 = vmatpush1.msra.mxu0 0.0
        %5748 = vmatprep.subr.mxu0 0.0
        %5749 = vmatpush1.msra.mxu0 0.0
        %5750 = vmatprep.subr.mxu0 0.0
        %5751 = vmatpush1.msra.mxu0 0.0
        %5752 = vmatprep.subr.mxu0 0.0
        %5753 = vmatpush1.msra.mxu0 0.0
        %5754 = vmatprep.subr.mxu0 0.0
        %5755 = vmatpush1.msra.mxu0 0.0
        %5756 = vmatprep.subr.mxu0 0.0
        %5757 = vmatpush1.msra.mxu0 0.0
        %5758 = vmatprep.subr.mxu0 0.0
        %5759 = vmatpush1.msra.mxu0 0.0
        %5760 = vmatprep.subr.mxu0 0.0
        %5761 = vmatpush1.msra.mxu0 0.0
        %5762 = vmatprep.subr.mxu0 0.0
        %5763 = vmatpush1.msra.mxu0 0.0
        %5764 = vmatprep.subr.mxu0 0.0
        %5765 = vmatpush1.msra.mxu0 0.0
        %5766 = vmatprep.subr.mxu0 0.0
        %5767 = vmatpush1.msra.mxu0 0.0
        %5768 = vmatprep.subr.mxu0 0.0
        %5769 = vmatpush1.msra.mxu0 0.0
        %5770 = vmatprep.subr.mxu0 0.0
        %5771 = vmatpush1.msra.mxu0 0.0
        %5772 = vmatprep.subr.mxu0 0.0
        %5773 = vmatpush1.msra.mxu0 0.0
        %5774 = vmatprep.subr.mxu0 0.0
        %5775 = vmatpush1.msra.mxu0 0.0
        %5776 = vmatprep.subr.mxu0 0.0
        %5777 = vmatpush1.msra.mxu0 0.0
        %5778 = vmatprep.subr.mxu0 0.0
        %5779 = vmatpush1.msra.mxu0 0.0
        %5780 = vmatprep.mubr.f32.mxu0 0.0
        %5781 = vmatmul.mubr.f32.gmra.mrb[0].mxu0 %v5712
        %v5782 = vpop.f32.mrb[0].mxu0
        %v5783 = vadd.f32 0.0, %v5782
        %v5784 = vpop.f32.mrb[0].mxu0
        %5785 = vdwg.mxu0
        %5786 = vrot.lane.b32.xlu0 %v2869, 64
        %v5787 = vpop.permute.xlu0 %5786
        %v5789 = vsel %vm4246, %v4221, 0
        %v5791 = vsel %vm4250, %v5787, 0
        %5793 = vmatprep.subr.mxu0 0.0
        %5794 = vmatpush1.msra.mxu0 %v5791
        %5795 = vmatprep.subr.mxu0 0.0
        %5796 = vmatpush1.msra.mxu0 0.0
        %5797 = vmatprep.subr.mxu0 0.0
        %5798 = vmatpush1.msra.mxu0 0.0
        %5799 = vmatprep.subr.mxu0 0.0
        %5800 = vmatpush1.msra.mxu0 0.0
        %5801 = vmatprep.subr.mxu0 0.0
        %5802 = vmatpush1.msra.mxu0 0.0
        %5803 = vmatprep.subr.mxu0 0.0
        %5804 = vmatpush1.msra.mxu0 0.0
        %5805 = vmatprep.subr.mxu0 0.0
        %5806 = vmatpush1.msra.mxu0 0.0
        %5807 = vmatprep.subr.mxu0 0.0
        %5808 = vmatpush1.msra.mxu0 0.0
        %5809 = vmatprep.subr.mxu0 0.0
        %5810 = vmatpush1.msra.mxu0 0.0
        %5811 = vmatprep.subr.mxu0 0.0
        %5812 = vmatpush1.msra.mxu0 0.0
        %5813 = vmatprep.subr.mxu0 0.0
        %5814 = vmatpush1.msra.mxu0 0.0
        %5815 = vmatprep.subr.mxu0 0.0
        %5816 = vmatpush1.msra.mxu0 0.0
        %5817 = vmatprep.subr.mxu0 0.0
        %5818 = vmatpush1.msra.mxu0 0.0
        %5819 = vmatprep.subr.mxu0 0.0
        %5820 = vmatpush1.msra.mxu0 0.0
        %5821 = vmatprep.subr.mxu0 0.0
        %5822 = vmatpush1.msra.mxu0 0.0
        %5823 = vmatprep.subr.mxu0 0.0
        %5824 = vmatpush1.msra.mxu0 0.0
        %5825 = vmatprep.subr.mxu0 0.0
        %5826 = vmatpush1.msra.mxu0 0.0
        %5827 = vmatprep.subr.mxu0 0.0
        %5828 = vmatpush1.msra.mxu0 0.0
        %5829 = vmatprep.subr.mxu0 0.0
        %5830 = vmatpush1.msra.mxu0 0.0
        %5831 = vmatprep.subr.mxu0 0.0
        %5832 = vmatpush1.msra.mxu0 0.0
        %5833 = vmatprep.subr.mxu0 0.0
        %5834 = vmatpush1.msra.mxu0 0.0
        %5835 = vmatprep.subr.mxu0 0.0
        %5836 = vmatpush1.msra.mxu0 0.0
        %5837 = vmatprep.subr.mxu0 0.0
        %5838 = vmatpush1.msra.mxu0 0.0
        %5839 = vmatprep.subr.mxu0 0.0
        %5840 = vmatpush1.msra.mxu0 0.0
        %5841 = vmatprep.subr.mxu0 0.0
        %5842 = vmatpush1.msra.mxu0 0.0
        %5843 = vmatprep.subr.mxu0 0.0
        %5844 = vmatpush1.msra.mxu0 0.0
        %5845 = vmatprep.subr.mxu0 0.0
        %5846 = vmatpush1.msra.mxu0 0.0
        %5847 = vmatprep.subr.mxu0 0.0
        %5848 = vmatpush1.msra.mxu0 0.0
        %5849 = vmatprep.subr.mxu0 0.0
        %5850 = vmatpush1.msra.mxu0 0.0
        %5851 = vmatprep.subr.mxu0 0.0
        %5852 = vmatpush1.msra.mxu0 0.0
        %5853 = vmatprep.subr.mxu0 0.0
        %5854 = vmatpush1.msra.mxu0 0.0
        %5855 = vmatprep.subr.mxu0 0.0
        %5856 = vmatpush1.msra.mxu0 0.0
        %5857 = vmatprep.mubr.f32.mxu0 0.0
        %5858 = vmatmul.mubr.f32.gmra.mrb[0].mxu0 %v5789
        %v5859 = vpop.f32.mrb[0].mxu0
        %v5860 = vadd.f32 0.0, %v5859
        %v5861 = vpop.f32.mrb[0].mxu0
        %5862 = vdwg.mxu0
        %5863 = vrot.lane.b32.xlu0 %v2952, 64
        %v5864 = vpop.permute.xlu0 %5863
        %v5866 = vsel %vm4246, %v4223, 0
        %v5868 = vsel %vm4250, %v5864, 0
        %5870 = vmatprep.subr.mxu0 0.0
        %5871 = vmatpush1.msra.mxu0 %v5868
        %5872 = vmatprep.subr.mxu0 0.0
        %5873 = vmatpush1.msra.mxu0 0.0
        %5874 = vmatprep.subr.mxu0 0.0
        %5875 = vmatpush1.msra.mxu0 0.0
        %5876 = vmatprep.subr.mxu0 0.0
        %5877 = vmatpush1.msra.mxu0 0.0
        %5878 = vmatprep.subr.mxu0 0.0
        %5879 = vmatpush1.msra.mxu0 0.0
        %5880 = vmatprep.subr.mxu0 0.0
        %5881 = vmatpush1.msra.mxu0 0.0
        %5882 = vmatprep.subr.mxu0 0.0
        %5883 = vmatpush1.msra.mxu0 0.0
        %5884 = vmatprep.subr.mxu0 0.0
        %5885 = vmatpush1.msra.mxu0 0.0
        %5886 = vmatprep.subr.mxu0 0.0
        %5887 = vmatpush1.msra.mxu0 0.0
        %5888 = vmatprep.subr.mxu0 0.0
        %5889 = vmatpush1.msra.mxu0 0.0
        %5890 = vmatprep.subr.mxu0 0.0
        %5891 = vmatpush1.msra.mxu0 0.0
        %5892 = vmatprep.subr.mxu0 0.0
        %5893 = vmatpush1.msra.mxu0 0.0
        %5894 = vmatprep.subr.mxu0 0.0
        %5895 = vmatpush1.msra.mxu0 0.0
        %5896 = vmatprep.subr.mxu0 0.0
        %5897 = vmatpush1.msra.mxu0 0.0
        %5898 = vmatprep.subr.mxu0 0.0
        %5899 = vmatpush1.msra.mxu0 0.0
        %5900 = vmatprep.subr.mxu0 0.0
        %5901 = vmatpush1.msra.mxu0 0.0
        %5902 = vmatprep.subr.mxu0 0.0
        %5903 = vmatpush1.msra.mxu0 0.0
        %5904 = vmatprep.subr.mxu0 0.0
        %5905 = vmatpush1.msra.mxu0 0.0
        %5906 = vmatprep.subr.mxu0 0.0
        %5907 = vmatpush1.msra.mxu0 0.0
        %5908 = vmatprep.subr.mxu0 0.0
        %5909 = vmatpush1.msra.mxu0 0.0
        %5910 = vmatprep.subr.mxu0 0.0
        %5911 = vmatpush1.msra.mxu0 0.0
        %5912 = vmatprep.subr.mxu0 0.0
        %5913 = vmatpush1.msra.mxu0 0.0
        %5914 = vmatprep.subr.mxu0 0.0
        %5915 = vmatpush1.msra.mxu0 0.0
        %5916 = vmatprep.subr.mxu0 0.0
        %5917 = vmatpush1.msra.mxu0 0.0
        %5918 = vmatprep.subr.mxu0 0.0
        %5919 = vmatpush1.msra.mxu0 0.0
        %5920 = vmatprep.subr.mxu0 0.0
        %5921 = vmatpush1.msra.mxu0 0.0
        %5922 = vmatprep.subr.mxu0 0.0
        %5923 = vmatpush1.msra.mxu0 0.0
        %5924 = vmatprep.subr.mxu0 0.0
        %5925 = vmatpush1.msra.mxu0 0.0
        %5926 = vmatprep.subr.mxu0 0.0
        %5927 = vmatpush1.msra.mxu0 0.0
        %5928 = vmatprep.subr.mxu0 0.0
        %5929 = vmatpush1.msra.mxu0 0.0
        %5930 = vmatprep.subr.mxu0 0.0
        %5931 = vmatpush1.msra.mxu0 0.0
        %5932 = vmatprep.subr.mxu0 0.0
        %5933 = vmatpush1.msra.mxu0 0.0
        %5934 = vmatprep.mubr.f32.mxu0 0.0
        %5935 = vmatmul.mubr.f32.gmra.mrb[0].mxu0 %v5866
        %v5936 = vpop.f32.mrb[0].mxu0
        %v5937 = vadd.f32 0.0, %v5936
        %v5938 = vpop.f32.mrb[0].mxu0
        %5939 = vdwg.mxu0
        %5940 = vrot.lane.b32.xlu0 %v3035, 64
        %v5941 = vpop.permute.xlu0 %5940
        %v5943 = vsel %vm4246, %v4225, 0
        %v5945 = vsel %vm4250, %v5941, 0
        %5947 = vmatprep.subr.mxu0 0.0
        %5948 = vmatpush1.msra.mxu0 %v5945
        %5949 = vmatprep.subr.mxu0 0.0
        %5950 = vmatpush1.msra.mxu0 0.0
        %5951 = vmatprep.subr.mxu0 0.0
        %5952 = vmatpush1.msra.mxu0 0.0
        %5953 = vmatprep.subr.mxu0 0.0
        %5954 = vmatpush1.msra.mxu0 0.0
        %5955 = vmatprep.subr.mxu0 0.0
        %5956 = vmatpush1.msra.mxu0 0.0
        %5957 = vmatprep.subr.mxu0 0.0
        %5958 = vmatpush1.msra.mxu0 0.0
        %5959 = vmatprep.subr.mxu0 0.0
        %5960 = vmatpush1.msra.mxu0 0.0
        %5961 = vmatprep.subr.mxu0 0.0
        %5962 = vmatpush1.msra.mxu0 0.0
        %5963 = vmatprep.subr.mxu0 0.0
        %5964 = vmatpush1.msra.mxu0 0.0
        %5965 = vmatprep.subr.mxu0 0.0
        %5966 = vmatpush1.msra.mxu0 0.0
        %5967 = vmatprep.subr.mxu0 0.0
        %5968 = vmatpush1.msra.mxu0 0.0
        %5969 = vmatprep.subr.mxu0 0.0
        %5970 = vmatpush1.msra.mxu0 0.0
        %5971 = vmatprep.subr.mxu0 0.0
        %5972 = vmatpush1.msra.mxu0 0.0
        %5973 = vmatprep.subr.mxu0 0.0
        %5974 = vmatpush1.msra.mxu0 0.0
        %5975 = vmatprep.subr.mxu0 0.0
        %5976 = vmatpush1.msra.mxu0 0.0
        %5977 = vmatprep.subr.mxu0 0.0
        %5978 = vmatpush1.msra.mxu0 0.0
        %5979 = vmatprep.subr.mxu0 0.0
        %5980 = vmatpush1.msra.mxu0 0.0
        %5981 = vmatprep.subr.mxu0 0.0
        %5982 = vmatpush1.msra.mxu0 0.0
        %5983 = vmatprep.subr.mxu0 0.0
        %5984 = vmatpush1.msra.mxu0 0.0
        %5985 = vmatprep.subr.mxu0 0.0
        %5986 = vmatpush1.msra.mxu0 0.0
        %5987 = vmatprep.subr.mxu0 0.0
        %5988 = vmatpush1.msra.mxu0 0.0
        %5989 = vmatprep.subr.mxu0 0.0
        %5990 = vmatpush1.msra.mxu0 0.0
        %5991 = vmatprep.subr.mxu0 0.0
        %5992 = vmatpush1.msra.mxu0 0.0
        %5993 = vmatprep.subr.mxu0 0.0
        %5994 = vmatpush1.msra.mxu0 0.0
        %5995 = vmatprep.subr.mxu0 0.0
        %5996 = vmatpush1.msra.mxu0 0.0
        %5997 = vmatprep.subr.mxu0 0.0
        %5998 = vmatpush1.msra.mxu0 0.0
        %5999 = vmatprep.subr.mxu0 0.0
        %6000 = vmatpush1.msra.mxu0 0.0
        %6001 = vmatprep.subr.mxu0 0.0
        %6002 = vmatpush1.msra.mxu0 0.0
        %6003 = vmatprep.subr.mxu0 0.0
        %6004 = vmatpush1.msra.mxu0 0.0
        %6005 = vmatprep.subr.mxu0 0.0
        %6006 = vmatpush1.msra.mxu0 0.0
        %6007 = vmatprep.subr.mxu0 0.0
        %6008 = vmatpush1.msra.mxu0 0.0
        %6009 = vmatprep.subr.mxu0 0.0
        %6010 = vmatpush1.msra.mxu0 0.0
        %6011 = vmatprep.mubr.f32.mxu0 0.0
        %6012 = vmatmul.mubr.f32.gmra.mrb[0].mxu0 %v5943
        %v6013 = vpop.f32.mrb[0].mxu0
        %v6014 = vadd.f32 0.0, %v6013
        %v6015 = vpop.f32.mrb[0].mxu0
        %6016 = vdwg.mxu0
        %6017 = vrot.lane.b32.xlu0 %v3118, 64
        %v6018 = vpop.permute.xlu0 %6017
        %v6020 = vsel %vm4246, %v4227, 0
        %v6022 = vsel %vm4250, %v6018, 0
        %6024 = vmatprep.subr.mxu0 0.0
        %6025 = vmatpush1.msra.mxu0 %v6022
        %6026 = vmatprep.subr.mxu0 0.0
        %6027 = vmatpush1.msra.mxu0 0.0
        %6028 = vmatprep.subr.mxu0 0.0
        %6029 = vmatpush1.msra.mxu0 0.0
        %6030 = vmatprep.subr.mxu0 0.0
        %6031 = vmatpush1.msra.mxu0 0.0
        %6032 = vmatprep.subr.mxu0 0.0
        %6033 = vmatpush1.msra.mxu0 0.0
        %6034 = vmatprep.subr.mxu0 0.0
        %6035 = vmatpush1.msra.mxu0 0.0
        %6036 = vmatprep.subr.mxu0 0.0
        %6037 = vmatpush1.msra.mxu0 0.0
        %6038 = vmatprep.subr.mxu0 0.0
        %6039 = vmatpush1.msra.mxu0 0.0
        %6040 = vmatprep.subr.mxu0 0.0
        %6041 = vmatpush1.msra.mxu0 0.0
        %6042 = vmatprep.subr.mxu0 0.0
        %6043 = vmatpush1.msra.mxu0 0.0
        %6044 = vmatprep.subr.mxu0 0.0
        %6045 = vmatpush1.msra.mxu0 0.0
        %6046 = vmatprep.subr.mxu0 0.0
        %6047 = vmatpush1.msra.mxu0 0.0
        %6048 = vmatprep.subr.mxu0 0.0
        %6049 = vmatpush1.msra.mxu0 0.0
        %6050 = vmatprep.subr.mxu0 0.0
        %6051 = vmatpush1.msra.mxu0 0.0
        %6052 = vmatprep.subr.mxu0 0.0
        %6053 = vmatpush1.msra.mxu0 0.0
        %6054 = vmatprep.subr.mxu0 0.0
        %6055 = vmatpush1.msra.mxu0 0.0
        %6056 = vmatprep.subr.mxu0 0.0
        %6057 = vmatpush1.msra.mxu0 0.0
        %6058 = vmatprep.subr.mxu0 0.0
        %6059 = vmatpush1.msra.mxu0 0.0
        %6060 = vmatprep.subr.mxu0 0.0
        %6061 = vmatpush1.msra.mxu0 0.0
        %6062 = vmatprep.subr.mxu0 0.0
        %6063 = vmatpush1.msra.mxu0 0.0
        %6064 = vmatprep.subr.mxu0 0.0
        %6065 = vmatpush1.msra.mxu0 0.0
        %6066 = vmatprep.subr.mxu0 0.0
        %6067 = vmatpush1.msra.mxu0 0.0
        %6068 = vmatprep.subr.mxu0 0.0
        %6069 = vmatpush1.msra.mxu0 0.0
        %6070 = vmatprep.subr.mxu0 0.0
        %6071 = vmatpush1.msra.mxu0 0.0
        %6072 = vmatprep.subr.mxu0 0.0
        %6073 = vmatpush1.msra.mxu0 0.0
        %6074 = vmatprep.subr.mxu0 0.0
        %6075 = vmatpush1.msra.mxu0 0.0
        %6076 = vmatprep.subr.mxu0 0.0
        %6077 = vmatpush1.msra.mxu0 0.0
        %6078 = vmatprep.subr.mxu0 0.0
        %6079 = vmatpush1.msra.mxu0 0.0
        %6080 = vmatprep.subr.mxu0 0.0
        %6081 = vmatpush1.msra.mxu0 0.0
        %6082 = vmatprep.subr.mxu0 0.0
        %6083 = vmatpush1.msra.mxu0 0.0
        %6084 = vmatprep.subr.mxu0 0.0
        %6085 = vmatpush1.msra.mxu0 0.0
        %6086 = vmatprep.subr.mxu0 0.0
        %6087 = vmatpush1.msra.mxu0 0.0
        %6088 = vmatprep.mubr.f32.mxu0 0.0
        %6089 = vmatmul.mubr.f32.gmra.mrb[0].mxu0 %v6020
        %v6090 = vpop.f32.mrb[0].mxu0
        %v6091 = vadd.f32 0.0, %v6090
        %v6092 = vpop.f32.mrb[0].mxu0
        %6093 = vdwg.mxu0
        %6094 = vrot.lane.b32.xlu0 %v3201, 64
        %v6095 = vpop.permute.xlu0 %6094
        %v6097 = vsel %vm4246, %v4229, 0
        %v6099 = vsel %vm4250, %v6095, 0
        %6101 = vmatprep.subr.mxu0 0.0
        %6102 = vmatpush1.msra.mxu0 %v6099
        %6103 = vmatprep.subr.mxu0 0.0
        %6104 = vmatpush1.msra.mxu0 0.0
        %6105 = vmatprep.subr.mxu0 0.0
        %6106 = vmatpush1.msra.mxu0 0.0
        %6107 = vmatprep.subr.mxu0 0.0
        %6108 = vmatpush1.msra.mxu0 0.0
        %6109 = vmatprep.subr.mxu0 0.0
        %6110 = vmatpush1.msra.mxu0 0.0
        %6111 = vmatprep.subr.mxu0 0.0
        %6112 = vmatpush1.msra.mxu0 0.0
        %6113 = vmatprep.subr.mxu0 0.0
        %6114 = vmatpush1.msra.mxu0 0.0
        %6115 = vmatprep.subr.mxu0 0.0
        %6116 = vmatpush1.msra.mxu0 0.0
        %6117 = vmatprep.subr.mxu0 0.0
        %6118 = vmatpush1.msra.mxu0 0.0
        %6119 = vmatprep.subr.mxu0 0.0
        %6120 = vmatpush1.msra.mxu0 0.0
        %6121 = vmatprep.subr.mxu0 0.0
        %6122 = vmatpush1.msra.mxu0 0.0
        %6123 = vmatprep.subr.mxu0 0.0
        %6124 = vmatpush1.msra.mxu0 0.0
        %6125 = vmatprep.subr.mxu0 0.0
        %6126 = vmatpush1.msra.mxu0 0.0
        %6127 = vmatprep.subr.mxu0 0.0
        %6128 = vmatpush1.msra.mxu0 0.0
        %6129 = vmatprep.subr.mxu0 0.0
        %6130 = vmatpush1.msra.mxu0 0.0
        %6131 = vmatprep.subr.mxu0 0.0
        %6132 = vmatpush1.msra.mxu0 0.0
        %6133 = vmatprep.subr.mxu0 0.0
        %6134 = vmatpush1.msra.mxu0 0.0
        %6135 = vmatprep.subr.mxu0 0.0
        %6136 = vmatpush1.msra.mxu0 0.0
        %6137 = vmatprep.subr.mxu0 0.0
        %6138 = vmatpush1.msra.mxu0 0.0
        %6139 = vmatprep.subr.mxu0 0.0
        %6140 = vmatpush1.msra.mxu0 0.0
        %6141 = vmatprep.subr.mxu0 0.0
        %6142 = vmatpush1.msra.mxu0 0.0
        %6143 = vmatprep.subr.mxu0 0.0
        %6144 = vmatpush1.msra.mxu0 0.0
        %6145 = vmatprep.subr.mxu0 0.0
        %6146 = vmatpush1.msra.mxu0 0.0
        %6147 = vmatprep.subr.mxu0 0.0
        %6148 = vmatpush1.msra.mxu0 0.0
        %6149 = vmatprep.subr.mxu0 0.0
        %6150 = vmatpush1.msra.mxu0 0.0
        %6151 = vmatprep.subr.mxu0 0.0
        %6152 = vmatpush1.msra.mxu0 0.0
        %6153 = vmatprep.subr.mxu0 0.0
        %6154 = vmatpush1.msra.mxu0 0.0
        %6155 = vmatprep.subr.mxu0 0.0
        %6156 = vmatpush1.msra.mxu0 0.0
        %6157 = vmatprep.subr.mxu0 0.0
        %6158 = vmatpush1.msra.mxu0 0.0
        %6159 = vmatprep.subr.mxu0 0.0
        %6160 = vmatpush1.msra.mxu0 0.0
        %6161 = vmatprep.subr.mxu0 0.0
        %6162 = vmatpush1.msra.mxu0 0.0
        %6163 = vmatprep.subr.mxu0 0.0
        %6164 = vmatpush1.msra.mxu0 0.0
        %6165 = vmatprep.mubr.f32.mxu0 0.0
        %6166 = vmatmul.mubr.f32.gmra.mrb[0].mxu0 %v6097
        %v6167 = vpop.f32.mrb[0].mxu0
        %v6168 = vadd.f32 0.0, %v6167
        %v6169 = vpop.f32.mrb[0].mxu0
        %6170 = vdwg.mxu0
        %6171 = vrot.lane.b32.xlu0 %v3284, 64
        %v6172 = vpop.permute.xlu0 %6171
        %v6174 = vsel %vm4246, %v4231, 0
        %v6176 = vsel %vm4250, %v6172, 0
        %6178 = vmatprep.subr.mxu0 0.0
        %6179 = vmatpush1.msra.mxu0 %v6176
        %6180 = vmatprep.subr.mxu0 0.0
        %6181 = vmatpush1.msra.mxu0 0.0
        %6182 = vmatprep.subr.mxu0 0.0
        %6183 = vmatpush1.msra.mxu0 0.0
        %6184 = vmatprep.subr.mxu0 0.0
        %6185 = vmatpush1.msra.mxu0 0.0
        %6186 = vmatprep.subr.mxu0 0.0
        %6187 = vmatpush1.msra.mxu0 0.0
        %6188 = vmatprep.subr.mxu0 0.0
        %6189 = vmatpush1.msra.mxu0 0.0
        %6190 = vmatprep.subr.mxu0 0.0
        %6191 = vmatpush1.msra.mxu0 0.0
        %6192 = vmatprep.subr.mxu0 0.0
        %6193 = vmatpush1.msra.mxu0 0.0
        %6194 = vmatprep.subr.mxu0 0.0
        %6195 = vmatpush1.msra.mxu0 0.0
        %6196 = vmatprep.subr.mxu0 0.0
        %6197 = vmatpush1.msra.mxu0 0.0
        %6198 = vmatprep.subr.mxu0 0.0
        %6199 = vmatpush1.msra.mxu0 0.0
        %6200 = vmatprep.subr.mxu0 0.0
        %6201 = vmatpush1.msra.mxu0 0.0
        %6202 = vmatprep.subr.mxu0 0.0
        %6203 = vmatpush1.msra.mxu0 0.0
        %6204 = vmatprep.subr.mxu0 0.0
        %6205 = vmatpush1.msra.mxu0 0.0
        %6206 = vmatprep.subr.mxu0 0.0
        %6207 = vmatpush1.msra.mxu0 0.0
        %6208 = vmatprep.subr.mxu0 0.0
        %6209 = vmatpush1.msra.mxu0 0.0
        %6210 = vmatprep.subr.mxu0 0.0
        %6211 = vmatpush1.msra.mxu0 0.0
        %6212 = vmatprep.subr.mxu0 0.0
        %6213 = vmatpush1.msra.mxu0 0.0
        %6214 = vmatprep.subr.mxu0 0.0
        %6215 = vmatpush1.msra.mxu0 0.0
        %6216 = vmatprep.subr.mxu0 0.0
        %6217 = vmatpush1.msra.mxu0 0.0
        %6218 = vmatprep.subr.mxu0 0.0
        %6219 = vmatpush1.msra.mxu0 0.0
        %6220 = vmatprep.subr.mxu0 0.0
        %6221 = vmatpush1.msra.mxu0 0.0
        %6222 = vmatprep.subr.mxu0 0.0
        %6223 = vmatpush1.msra.mxu0 0.0
        %6224 = vmatprep.subr.mxu0 0.0
        %6225 = vmatpush1.msra.mxu0 0.0
        %6226 = vmatprep.subr.mxu0 0.0
        %6227 = vmatpush1.msra.mxu0 0.0
        %6228 = vmatprep.subr.mxu0 0.0
        %6229 = vmatpush1.msra.mxu0 0.0
        %6230 = vmatprep.subr.mxu0 0.0
        %6231 = vmatpush1.msra.mxu0 0.0
        %6232 = vmatprep.subr.mxu0 0.0
        %6233 = vmatpush1.msra.mxu0 0.0
        %6234 = vmatprep.subr.mxu0 0.0
        %6235 = vmatpush1.msra.mxu0 0.0
        %6236 = vmatprep.subr.mxu0 0.0
        %6237 = vmatpush1.msra.mxu0 0.0
        %6238 = vmatprep.subr.mxu0 0.0
        %6239 = vmatpush1.msra.mxu0 0.0
        %6240 = vmatprep.subr.mxu0 0.0
        %6241 = vmatpush1.msra.mxu0 0.0
        %6242 = vmatprep.mubr.f32.mxu0 0.0
        %6243 = vmatmul.mubr.f32.gmra.mrb[0].mxu0 %v6174
        %v6244 = vpop.f32.mrb[0].mxu0
        %v6245 = vadd.f32 0.0, %v6244
        %v6246 = vpop.f32.mrb[0].mxu0
        %6247 = vdwg.mxu0
        %6248 = vrot.lane.b32.xlu0 %v3367, 64
        %v6249 = vpop.permute.xlu0 %6248
        %v6251 = vsel %vm4246, %v4233, 0
        %v6253 = vsel %vm4250, %v6249, 0
        %6255 = vmatprep.subr.mxu0 0.0
        %6256 = vmatpush1.msra.mxu0 %v6253
        %6257 = vmatprep.subr.mxu0 0.0
        %6258 = vmatpush1.msra.mxu0 0.0
        %6259 = vmatprep.subr.mxu0 0.0
        %6260 = vmatpush1.msra.mxu0 0.0
        %6261 = vmatprep.subr.mxu0 0.0
        %6262 = vmatpush1.msra.mxu0 0.0
        %6263 = vmatprep.subr.mxu0 0.0
        %6264 = vmatpush1.msra.mxu0 0.0
        %6265 = vmatprep.subr.mxu0 0.0
        %6266 = vmatpush1.msra.mxu0 0.0
        %6267 = vmatprep.subr.mxu0 0.0
        %6268 = vmatpush1.msra.mxu0 0.0
        %6269 = vmatprep.subr.mxu0 0.0
        %6270 = vmatpush1.msra.mxu0 0.0
        %6271 = vmatprep.subr.mxu0 0.0
        %6272 = vmatpush1.msra.mxu0 0.0
        %6273 = vmatprep.subr.mxu0 0.0
        %6274 = vmatpush1.msra.mxu0 0.0
        %6275 = vmatprep.subr.mxu0 0.0
        %6276 = vmatpush1.msra.mxu0 0.0
        %6277 = vmatprep.subr.mxu0 0.0
        %6278 = vmatpush1.msra.mxu0 0.0
        %6279 = vmatprep.subr.mxu0 0.0
        %6280 = vmatpush1.msra.mxu0 0.0
        %6281 = vmatprep.subr.mxu0 0.0
        %6282 = vmatpush1.msra.mxu0 0.0
        %6283 = vmatprep.subr.mxu0 0.0
        %6284 = vmatpush1.msra.mxu0 0.0
        %6285 = vmatprep.subr.mxu0 0.0
        %6286 = vmatpush1.msra.mxu0 0.0
        %6287 = vmatprep.subr.mxu0 0.0
        %6288 = vmatpush1.msra.mxu0 0.0
        %6289 = vmatprep.subr.mxu0 0.0
        %6290 = vmatpush1.msra.mxu0 0.0
        %6291 = vmatprep.subr.mxu0 0.0
        %6292 = vmatpush1.msra.mxu0 0.0
        %6293 = vmatprep.subr.mxu0 0.0
        %6294 = vmatpush1.msra.mxu0 0.0
        %6295 = vmatprep.subr.mxu0 0.0
        %6296 = vmatpush1.msra.mxu0 0.0
        %6297 = vmatprep.subr.mxu0 0.0
        %6298 = vmatpush1.msra.mxu0 0.0
        %6299 = vmatprep.subr.mxu0 0.0
        %6300 = vmatpush1.msra.mxu0 0.0
        %6301 = vmatprep.subr.mxu0 0.0
        %6302 = vmatpush1.msra.mxu0 0.0
        %6303 = vmatprep.subr.mxu0 0.0
        %6304 = vmatpush1.msra.mxu0 0.0
        %6305 = vmatprep.subr.mxu0 0.0
        %6306 = vmatpush1.msra.mxu0 0.0
        %6307 = vmatprep.subr.mxu0 0.0
        %6308 = vmatpush1.msra.mxu0 0.0
        %6309 = vmatprep.subr.mxu0 0.0
        %6310 = vmatpush1.msra.mxu0 0.0
        %6311 = vmatprep.subr.mxu0 0.0
        %6312 = vmatpush1.msra.mxu0 0.0
        %6313 = vmatprep.subr.mxu0 0.0
        %6314 = vmatpush1.msra.mxu0 0.0
        %6315 = vmatprep.subr.mxu0 0.0
        %6316 = vmatpush1.msra.mxu0 0.0
        %6317 = vmatprep.subr.mxu0 0.0
        %6318 = vmatpush1.msra.mxu0 0.0
        %6319 = vmatprep.mubr.f32.mxu0 0.0
        %6320 = vmatmul.mubr.f32.gmra.mrb[0].mxu0 %v6251
        %v6321 = vpop.f32.mrb[0].mxu0
        %v6322 = vadd.f32 0.0, %v6321
        %v6323 = vpop.f32.mrb[0].mxu0
        %6324 = vdwg.mxu0
        %6325 = vrot.lane.b32.xlu0 %v3450, 64
        %v6326 = vpop.permute.xlu0 %6325
        %v6328 = vsel %vm4246, %v4235, 0
        %v6330 = vsel %vm4250, %v6326, 0
        %6332 = vmatprep.subr.mxu0 0.0
        %6333 = vmatpush1.msra.mxu0 %v6330
        %6334 = vmatprep.subr.mxu0 0.0
        %6335 = vmatpush1.msra.mxu0 0.0
        %6336 = vmatprep.subr.mxu0 0.0
        %6337 = vmatpush1.msra.mxu0 0.0
        %6338 = vmatprep.subr.mxu0 0.0
        %6339 = vmatpush1.msra.mxu0 0.0
        %6340 = vmatprep.subr.mxu0 0.0
        %6341 = vmatpush1.msra.mxu0 0.0
        %6342 = vmatprep.subr.mxu0 0.0
        %6343 = vmatpush1.msra.mxu0 0.0
        %6344 = vmatprep.subr.mxu0 0.0
        %6345 = vmatpush1.msra.mxu0 0.0
        %6346 = vmatprep.subr.mxu0 0.0
        %6347 = vmatpush1.msra.mxu0 0.0
        %6348 = vmatprep.subr.mxu0 0.0
        %6349 = vmatpush1.msra.mxu0 0.0
        %6350 = vmatprep.subr.mxu0 0.0
        %6351 = vmatpush1.msra.mxu0 0.0
        %6352 = vmatprep.subr.mxu0 0.0
        %6353 = vmatpush1.msra.mxu0 0.0
        %6354 = vmatprep.subr.mxu0 0.0
        %6355 = vmatpush1.msra.mxu0 0.0
        %6356 = vmatprep.subr.mxu0 0.0
        %6357 = vmatpush1.msra.mxu0 0.0
        %6358 = vmatprep.subr.mxu0 0.0
        %6359 = vmatpush1.msra.mxu0 0.0
        %6360 = vmatprep.subr.mxu0 0.0
        %6361 = vmatpush1.msra.mxu0 0.0
        %6362 = vmatprep.subr.mxu0 0.0
        %6363 = vmatpush1.msra.mxu0 0.0
        %6364 = vmatprep.subr.mxu0 0.0
        %6365 = vmatpush1.msra.mxu0 0.0
        %6366 = vmatprep.subr.mxu0 0.0
        %6367 = vmatpush1.msra.mxu0 0.0
        %6368 = vmatprep.subr.mxu0 0.0
        %6369 = vmatpush1.msra.mxu0 0.0
        %6370 = vmatprep.subr.mxu0 0.0
        %6371 = vmatpush1.msra.mxu0 0.0
        %6372 = vmatprep.subr.mxu0 0.0
        %6373 = vmatpush1.msra.mxu0 0.0
        %6374 = vmatprep.subr.mxu0 0.0
        %6375 = vmatpush1.msra.mxu0 0.0
        %6376 = vmatprep.subr.mxu0 0.0
        %6377 = vmatpush1.msra.mxu0 0.0
        %6378 = vmatprep.subr.mxu0 0.0
        %6379 = vmatpush1.msra.mxu0 0.0
        %6380 = vmatprep.subr.mxu0 0.0
        %6381 = vmatpush1.msra.mxu0 0.0
        %6382 = vmatprep.subr.mxu0 0.0
        %6383 = vmatpush1.msra.mxu0 0.0
        %6384 = vmatprep.subr.mxu0 0.0
        %6385 = vmatpush1.msra.mxu0 0.0
        %6386 = vmatprep.subr.mxu0 0.0
        %6387 = vmatpush1.msra.mxu0 0.0
        %6388 = vmatprep.subr.mxu0 0.0
        %6389 = vmatpush1.msra.mxu0 0.0
        %6390 = vmatprep.subr.mxu0 0.0
        %6391 = vmatpush1.msra.mxu0 0.0
        %6392 = vmatprep.subr.mxu0 0.0
        %6393 = vmatpush1.msra.mxu0 0.0
        %6394 = vmatprep.subr.mxu0 0.0
        %6395 = vmatpush1.msra.mxu0 0.0
        %6396 = vmatprep.mubr.f32.mxu0 0.0
        %6397 = vmatmul.mubr.f32.gmra.mrb[0].mxu0 %v6328
        %v6398 = vpop.f32.mrb[0].mxu0
        %v6399 = vadd.f32 0.0, %v6398
        %v6400 = vpop.f32.mrb[0].mxu0
        %6401 = vdwg.mxu0
        %6402 = vrot.lane.b32.xlu0 %v3533, 64
        %v6403 = vpop.permute.xlu0 %6402
        %v6405 = vsel %vm4246, %v4237, 0
        %v6407 = vsel %vm4250, %v6403, 0
        %6409 = vmatprep.subr.mxu0 0.0
        %6410 = vmatpush1.msra.mxu0 %v6407
        %6411 = vmatprep.subr.mxu0 0.0
        %6412 = vmatpush1.msra.mxu0 0.0
        %6413 = vmatprep.subr.mxu0 0.0
        %6414 = vmatpush1.msra.mxu0 0.0
        %6415 = vmatprep.subr.mxu0 0.0
        %6416 = vmatpush1.msra.mxu0 0.0
        %6417 = vmatprep.subr.mxu0 0.0
        %6418 = vmatpush1.msra.mxu0 0.0
        %6419 = vmatprep.subr.mxu0 0.0
        %6420 = vmatpush1.msra.mxu0 0.0
        %6421 = vmatprep.subr.mxu0 0.0
        %6422 = vmatpush1.msra.mxu0 0.0
        %6423 = vmatprep.subr.mxu0 0.0
        %6424 = vmatpush1.msra.mxu0 0.0
        %6425 = vmatprep.subr.mxu0 0.0
        %6426 = vmatpush1.msra.mxu0 0.0
        %6427 = vmatprep.subr.mxu0 0.0
        %6428 = vmatpush1.msra.mxu0 0.0
        %6429 = vmatprep.subr.mxu0 0.0
        %6430 = vmatpush1.msra.mxu0 0.0
        %6431 = vmatprep.subr.mxu0 0.0
        %6432 = vmatpush1.msra.mxu0 0.0
        %6433 = vmatprep.subr.mxu0 0.0
        %6434 = vmatpush1.msra.mxu0 0.0
        %6435 = vmatprep.subr.mxu0 0.0
        %6436 = vmatpush1.msra.mxu0 0.0
        %6437 = vmatprep.subr.mxu0 0.0
        %6438 = vmatpush1.msra.mxu0 0.0
        %6439 = vmatprep.subr.mxu0 0.0
        %6440 = vmatpush1.msra.mxu0 0.0
        %6441 = vmatprep.subr.mxu0 0.0
        %6442 = vmatpush1.msra.mxu0 0.0
        %6443 = vmatprep.subr.mxu0 0.0
        %6444 = vmatpush1.msra.mxu0 0.0
        %6445 = vmatprep.subr.mxu0 0.0
        %6446 = vmatpush1.msra.mxu0 0.0
        %6447 = vmatprep.subr.mxu0 0.0
        %6448 = vmatpush1.msra.mxu0 0.0
        %6449 = vmatprep.subr.mxu0 0.0
        %6450 = vmatpush1.msra.mxu0 0.0
        %6451 = vmatprep.subr.mxu0 0.0
        %6452 = vmatpush1.msra.mxu0 0.0
        %6453 = vmatprep.subr.mxu0 0.0
        %6454 = vmatpush1.msra.mxu0 0.0
        %6455 = vmatprep.subr.mxu0 0.0
        %6456 = vmatpush1.msra.mxu0 0.0
        %6457 = vmatprep.subr.mxu0 0.0
        %6458 = vmatpush1.msra.mxu0 0.0
        %6459 = vmatprep.subr.mxu0 0.0
        %6460 = vmatpush1.msra.mxu0 0.0
        %6461 = vmatprep.subr.mxu0 0.0
        %6462 = vmatpush1.msra.mxu0 0.0
        %6463 = vmatprep.subr.mxu0 0.0
        %6464 = vmatpush1.msra.mxu0 0.0
        %6465 = vmatprep.subr.mxu0 0.0
        %6466 = vmatpush1.msra.mxu0 0.0
        %6467 = vmatprep.subr.mxu0 0.0
        %6468 = vmatpush1.msra.mxu0 0.0
        %6469 = vmatprep.subr.mxu0 0.0
        %6470 = vmatpush1.msra.mxu0 0.0
        %6471 = vmatprep.subr.mxu0 0.0
        %6472 = vmatpush1.msra.mxu0 0.0
        %6473 = vmatprep.mubr.f32.mxu0 0.0
        %6474 = vmatmul.mubr.f32.gmra.mrb[0].mxu0 %v6405
        %v6475 = vpop.f32.mrb[0].mxu0
        %v6476 = vadd.f32 0.0, %v6475
        %v6477 = vpop.f32.mrb[0].mxu0
        %6478 = vdwg.mxu0
        %6479 = vrot.lane.b32.xlu0 %v3616, 64
        %v6480 = vpop.permute.xlu0 %6479
        %v6482 = vsel %vm4246, %v4239, 0
        %v6484 = vsel %vm4250, %v6480, 0
        %6486 = vmatprep.subr.mxu0 0.0
        %6487 = vmatpush1.msra.mxu0 %v6484
        %6488 = vmatprep.subr.mxu0 0.0
        %6489 = vmatpush1.msra.mxu0 0.0
        %6490 = vmatprep.subr.mxu0 0.0
        %6491 = vmatpush1.msra.mxu0 0.0
        %6492 = vmatprep.subr.mxu0 0.0
        %6493 = vmatpush1.msra.mxu0 0.0
        %6494 = vmatprep.subr.mxu0 0.0
        %6495 = vmatpush1.msra.mxu0 0.0
        %6496 = vmatprep.subr.mxu0 0.0
        %6497 = vmatpush1.msra.mxu0 0.0
        %6498 = vmatprep.subr.mxu0 0.0
        %6499 = vmatpush1.msra.mxu0 0.0
        %6500 = vmatprep.subr.mxu0 0.0
        %6501 = vmatpush1.msra.mxu0 0.0
        %6502 = vmatprep.subr.mxu0 0.0
        %6503 = vmatpush1.msra.mxu0 0.0
        %6504 = vmatprep.subr.mxu0 0.0
        %6505 = vmatpush1.msra.mxu0 0.0
        %6506 = vmatprep.subr.mxu0 0.0
        %6507 = vmatpush1.msra.mxu0 0.0
        %6508 = vmatprep.subr.mxu0 0.0
        %6509 = vmatpush1.msra.mxu0 0.0
        %6510 = vmatprep.subr.mxu0 0.0
        %6511 = vmatpush1.msra.mxu0 0.0
        %6512 = vmatprep.subr.mxu0 0.0
        %6513 = vmatpush1.msra.mxu0 0.0
        %6514 = vmatprep.subr.mxu0 0.0
        %6515 = vmatpush1.msra.mxu0 0.0
        %6516 = vmatprep.subr.mxu0 0.0
        %6517 = vmatpush1.msra.mxu0 0.0
        %6518 = vmatprep.subr.mxu0 0.0
        %6519 = vmatpush1.msra.mxu0 0.0
        %6520 = vmatprep.subr.mxu0 0.0
        %6521 = vmatpush1.msra.mxu0 0.0
        %6522 = vmatprep.subr.mxu0 0.0
        %6523 = vmatpush1.msra.mxu0 0.0
        %6524 = vmatprep.subr.mxu0 0.0
        %6525 = vmatpush1.msra.mxu0 0.0
        %6526 = vmatprep.subr.mxu0 0.0
        %6527 = vmatpush1.msra.mxu0 0.0
        %6528 = vmatprep.subr.mxu0 0.0
        %6529 = vmatpush1.msra.mxu0 0.0
        %6530 = vmatprep.subr.mxu0 0.0
        %6531 = vmatpush1.msra.mxu0 0.0
        %6532 = vmatprep.subr.mxu0 0.0
        %6533 = vmatpush1.msra.mxu0 0.0
        %6534 = vmatprep.subr.mxu0 0.0
        %6535 = vmatpush1.msra.mxu0 0.0
        %6536 = vmatprep.subr.mxu0 0.0
        %6537 = vmatpush1.msra.mxu0 0.0
        %6538 = vmatprep.subr.mxu0 0.0
        %6539 = vmatpush1.msra.mxu0 0.0
        %6540 = vmatprep.subr.mxu0 0.0
        %6541 = vmatpush1.msra.mxu0 0.0
        %6542 = vmatprep.subr.mxu0 0.0
        %6543 = vmatpush1.msra.mxu0 0.0
        %6544 = vmatprep.subr.mxu0 0.0
        %6545 = vmatpush1.msra.mxu0 0.0
        %6546 = vmatprep.subr.mxu0 0.0
        %6547 = vmatpush1.msra.mxu0 0.0
        %6548 = vmatprep.subr.mxu0 0.0
        %6549 = vmatpush1.msra.mxu0 0.0
        %6550 = vmatprep.mubr.f32.mxu0 0.0
        %6551 = vmatmul.mubr.f32.gmra.mrb[0].mxu0 %v6482
        %v6552 = vpop.f32.mrb[0].mxu0
        %v6553 = vadd.f32 0.0, %v6552
        %v6554 = vpop.f32.mrb[0].mxu0
        %6555 = vdwg.mxu0
        %6556 = vrot.lane.b32.xlu0 %v3699, 64
        %v6557 = vpop.permute.xlu0 %6556
        %v6559 = vsel %vm4246, %v4241, 0
        %v6561 = vsel %vm4250, %v6557, 0
        %6563 = vmatprep.subr.mxu0 0.0
        %6564 = vmatpush1.msra.mxu0 %v6561
        %6565 = vmatprep.subr.mxu0 0.0
        %6566 = vmatpush1.msra.mxu0 0.0
        %6567 = vmatprep.subr.mxu0 0.0
        %6568 = vmatpush1.msra.mxu0 0.0
        %6569 = vmatprep.subr.mxu0 0.0
        %6570 = vmatpush1.msra.mxu0 0.0
        %6571 = vmatprep.subr.mxu0 0.0
        %6572 = vmatpush1.msra.mxu0 0.0
        %6573 = vmatprep.subr.mxu0 0.0
        %6574 = vmatpush1.msra.mxu0 0.0
        %6575 = vmatprep.subr.mxu0 0.0
        %6576 = vmatpush1.msra.mxu0 0.0
        %6577 = vmatprep.subr.mxu0 0.0
        %6578 = vmatpush1.msra.mxu0 0.0
        %6579 = vmatprep.subr.mxu0 0.0
        %6580 = vmatpush1.msra.mxu0 0.0
        %6581 = vmatprep.subr.mxu0 0.0
        %6582 = vmatpush1.msra.mxu0 0.0
        %6583 = vmatprep.subr.mxu0 0.0
        %6584 = vmatpush1.msra.mxu0 0.0
        %6585 = vmatprep.subr.mxu0 0.0
        %6586 = vmatpush1.msra.mxu0 0.0
        %6587 = vmatprep.subr.mxu0 0.0
        %6588 = vmatpush1.msra.mxu0 0.0
        %6589 = vmatprep.subr.mxu0 0.0
        %6590 = vmatpush1.msra.mxu0 0.0
        %6591 = vmatprep.subr.mxu0 0.0
        %6592 = vmatpush1.msra.mxu0 0.0
        %6593 = vmatprep.subr.mxu0 0.0
        %6594 = vmatpush1.msra.mxu0 0.0
        %6595 = vmatprep.subr.mxu0 0.0
        %6596 = vmatpush1.msra.mxu0 0.0
        %6597 = vmatprep.subr.mxu0 0.0
        %6598 = vmatpush1.msra.mxu0 0.0
        %6599 = vmatprep.subr.mxu0 0.0
        %6600 = vmatpush1.msra.mxu0 0.0
        %6601 = vmatprep.subr.mxu0 0.0
        %6602 = vmatpush1.msra.mxu0 0.0
        %6603 = vmatprep.subr.mxu0 0.0
        %6604 = vmatpush1.msra.mxu0 0.0
        %6605 = vmatprep.subr.mxu0 0.0
        %6606 = vmatpush1.msra.mxu0 0.0
        %6607 = vmatprep.subr.mxu0 0.0
        %6608 = vmatpush1.msra.mxu0 0.0
        %6609 = vmatprep.subr.mxu0 0.0
        %6610 = vmatpush1.msra.mxu0 0.0
        %6611 = vmatprep.subr.mxu0 0.0
        %6612 = vmatpush1.msra.mxu0 0.0
        %6613 = vmatprep.subr.mxu0 0.0
        %6614 = vmatpush1.msra.mxu0 0.0
        %6615 = vmatprep.subr.mxu0 0.0
        %6616 = vmatpush1.msra.mxu0 0.0
        %6617 = vmatprep.subr.mxu0 0.0
        %6618 = vmatpush1.msra.mxu0 0.0
        %6619 = vmatprep.subr.mxu0 0.0
        %6620 = vmatpush1.msra.mxu0 0.0
        %6621 = vmatprep.subr.mxu0 0.0
        %6622 = vmatpush1.msra.mxu0 0.0
        %6623 = vmatprep.subr.mxu0 0.0
        %6624 = vmatpush1.msra.mxu0 0.0
        %6625 = vmatprep.subr.mxu0 0.0
        %6626 = vmatpush1.msra.mxu0 0.0
        %6627 = vmatprep.mubr.f32.mxu0 0.0
        %6628 = vmatmul.mubr.f32.gmra.mrb[0].mxu0 %v6559
        %v6629 = vpop.f32.mrb[0].mxu0
        %v6630 = vadd.f32 0.0, %v6629
        %v6631 = vpop.f32.mrb[0].mxu0
        %6632 = vdwg.mxu0
        %6633 = vrot.lane.b32.xlu0 %v3782, 64
        %v6634 = vpop.permute.xlu0 %6633
        %v6636 = vsel %vm4246, %v4243, 0
        %v6638 = vsel %vm4250, %v6634, 0
        %6640 = vmatprep.subr.mxu0 0.0
        %6641 = vmatpush1.msra.mxu0 %v6638
        %6642 = vmatprep.subr.mxu0 0.0
        %6643 = vmatpush1.msra.mxu0 0.0
        %6644 = vmatprep.subr.mxu0 0.0
        %6645 = vmatpush1.msra.mxu0 0.0
        %6646 = vmatprep.subr.mxu0 0.0
        %6647 = vmatpush1.msra.mxu0 0.0
        %6648 = vmatprep.subr.mxu0 0.0
        %6649 = vmatpush1.msra.mxu0 0.0
        %6650 = vmatprep.subr.mxu0 0.0
        %6651 = vmatpush1.msra.mxu0 0.0
        %6652 = vmatprep.subr.mxu0 0.0
        %6653 = vmatpush1.msra.mxu0 0.0
        %6654 = vmatprep.subr.mxu0 0.0
        %6655 = vmatpush1.msra.mxu0 0.0
        %6656 = vmatprep.subr.mxu0 0.0
        %6657 = vmatpush1.msra.mxu0 0.0
        %6658 = vmatprep.subr.mxu0 0.0
        %6659 = vmatpush1.msra.mxu0 0.0
        %6660 = vmatprep.subr.mxu0 0.0
        %6661 = vmatpush1.msra.mxu0 0.0
        %6662 = vmatprep.subr.mxu0 0.0
        %6663 = vmatpush1.msra.mxu0 0.0
        %6664 = vmatprep.subr.mxu0 0.0
        %6665 = vmatpush1.msra.mxu0 0.0
        %6666 = vmatprep.subr.mxu0 0.0
        %6667 = vmatpush1.msra.mxu0 0.0
        %6668 = vmatprep.subr.mxu0 0.0
        %6669 = vmatpush1.msra.mxu0 0.0
        %6670 = vmatprep.subr.mxu0 0.0
        %6671 = vmatpush1.msra.mxu0 0.0
        %6672 = vmatprep.subr.mxu0 0.0
        %6673 = vmatpush1.msra.mxu0 0.0
        %6674 = vmatprep.subr.mxu0 0.0
        %6675 = vmatpush1.msra.mxu0 0.0
        %6676 = vmatprep.subr.mxu0 0.0
        %6677 = vmatpush1.msra.mxu0 0.0
        %6678 = vmatprep.subr.mxu0 0.0
        %6679 = vmatpush1.msra.mxu0 0.0
        %6680 = vmatprep.subr.mxu0 0.0
        %6681 = vmatpush1.msra.mxu0 0.0
        %6682 = vmatprep.subr.mxu0 0.0
        %6683 = vmatpush1.msra.mxu0 0.0
        %6684 = vmatprep.subr.mxu0 0.0
        %6685 = vmatpush1.msra.mxu0 0.0
        %6686 = vmatprep.subr.mxu0 0.0
        %6687 = vmatpush1.msra.mxu0 0.0
        %6688 = vmatprep.subr.mxu0 0.0
        %6689 = vmatpush1.msra.mxu0 0.0
        %6690 = vmatprep.subr.mxu0 0.0
        %6691 = vmatpush1.msra.mxu0 0.0
        %6692 = vmatprep.subr.mxu0 0.0
        %6693 = vmatpush1.msra.mxu0 0.0
        %6694 = vmatprep.subr.mxu0 0.0
        %6695 = vmatpush1.msra.mxu0 0.0
        %6696 = vmatprep.subr.mxu0 0.0
        %6697 = vmatpush1.msra.mxu0 0.0
        %6698 = vmatprep.subr.mxu0 0.0
        %6699 = vmatpush1.msra.mxu0 0.0
        %6700 = vmatprep.subr.mxu0 0.0
        %6701 = vmatpush1.msra.mxu0 0.0
        %6702 = vmatprep.subr.mxu0 0.0
        %6703 = vmatpush1.msra.mxu0 0.0
        %6704 = vmatprep.mubr.f32.mxu0 0.0
        %6705 = vmatmul.mubr.f32.gmra.mrb[0].mxu0 %v6636
        %v6706 = vpop.f32.mrb[0].mxu0
        %v6707 = vadd.f32 0.0, %v6706
        %v6708 = vpop.f32.mrb[0].mxu0
        %6709 = vdwg.mxu0
        %v6718 = vcombine.low %v4320, %v4397
        %v6719 = vcombine.low %v4474, %v4551
        %v6721 = vunpack.c.l.s4 1983009808
        %v6722 = vunpack.c.0.s8 %v6721
        %v6723 = vlaneseq
        %v6724 = vshrl.u32 %v6723, 7
        %v6725 = vsub.s32 %v6722, %v6724
        %v6726 = vrot.slane %v6718, %v6725
        %v6728 = vunpack.c.l.s4 1983009808
        %v6729 = vunpack.c.0.s8 %v6728
        %v6730 = vlaneseq
        %v6731 = vshrl.u32 %v6730, 7
        %v6732 = vsub.s32 %v6729, %v6731
        %v6733 = vrot.slane %v6719, %v6732
        %v6734 = vcombine.low %v6726, %v6733
        %v6735 = vcombine.low %v4628, %v4705
        %v6736 = vcombine.low %v4782, %v4859
        %v6738 = vunpack.c.l.s4 1983009808
        %v6739 = vunpack.c.0.s8 %v6738
        %v6740 = vlaneseq
        %v6741 = vshrl.u32 %v6740, 7
        %v6742 = vsub.s32 %v6739, %v6741
        %v6743 = vrot.slane %v6735, %v6742
        %v6745 = vunpack.c.l.s4 1983009808
        %v6746 = vunpack.c.0.s8 %v6745
        %v6747 = vlaneseq
        %v6748 = vshrl.u32 %v6747, 7
        %v6749 = vsub.s32 %v6746, %v6748
        %v6750 = vrot.slane %v6736, %v6749
        %v6751 = vcombine.low %v6743, %v6750
        %v6762 = vcombine.low %v4936, %v5013
        %v6763 = vcombine.low %v5090, %v5167
        %v6765 = vunpack.c.l.s4 1983009808
        %v6766 = vunpack.c.0.s8 %v6765
        %v6767 = vlaneseq
        %v6768 = vshrl.u32 %v6767, 7
        %v6769 = vsub.s32 %v6766, %v6768
        %v6770 = vrot.slane %v6762, %v6769
        %v6772 = vunpack.c.l.s4 1983009808
        %v6773 = vunpack.c.0.s8 %v6772
        %v6774 = vlaneseq
        %v6775 = vshrl.u32 %v6774, 7
        %v6776 = vsub.s32 %v6773, %v6775
        %v6777 = vrot.slane %v6763, %v6776
        %v6778 = vcombine.low %v6770, %v6777
        %v6779 = vcombine.low %v5244, %v5321
        %v6780 = vcombine.low %v5398, %v5475
        %v6782 = vunpack.c.l.s4 1983009808
        %v6783 = vunpack.c.0.s8 %v6782
        %v6784 = vlaneseq
        %v6785 = vshrl.u32 %v6784, 7
        %v6786 = vsub.s32 %v6783, %v6785
        %v6787 = vrot.slane %v6779, %v6786
        %v6789 = vunpack.c.l.s4 1983009808
        %v6790 = vunpack.c.0.s8 %v6789
        %v6791 = vlaneseq
        %v6792 = vshrl.u32 %v6791, 7
        %v6793 = vsub.s32 %v6790, %v6792
        %v6794 = vrot.slane %v6780, %v6793
        %v6795 = vcombine.low %v6787, %v6794
        %6796 = vrot.lane.b32.xlu0 %v6778, 8
        %v6797 = vpop.permute.xlu0 %6796
        %6798 = vrot.lane.b32.xlu0 %v6795, 8
        %v6799 = vpop.permute.xlu0 %6798
        %v6810 = vcombine.low %v5552, %v5629
        %v6811 = vcombine.low %v5706, %v5783
        %v6813 = vunpack.c.l.s4 1983009808
        %v6814 = vunpack.c.0.s8 %v6813
        %v6815 = vlaneseq
        %v6816 = vshrl.u32 %v6815, 7
        %v6817 = vsub.s32 %v6814, %v6816
        %v6818 = vrot.slane %v6810, %v6817
        %v6820 = vunpack.c.l.s4 1983009808
        %v6821 = vunpack.c.0.s8 %v6820
        %v6822 = vlaneseq
        %v6823 = vshrl.u32 %v6822, 7
        %v6824 = vsub.s32 %v6821, %v6823
        %v6825 = vrot.slane %v6811, %v6824
        %v6826 = vcombine.low %v6818, %v6825
        %v6827 = vcombine.low %v5860, %v5937
        %v6828 = vcombine.low %v6014, %v6091
        %v6830 = vunpack.c.l.s4 1983009808
        %v6831 = vunpack.c.0.s8 %v6830
        %v6832 = vlaneseq
        %v6833 = vshrl.u32 %v6832, 7
        %v6834 = vsub.s32 %v6831, %v6833
        %v6835 = vrot.slane %v6827, %v6834
        %v6837 = vunpack.c.l.s4 1983009808
        %v6838 = vunpack.c.0.s8 %v6837
        %v6839 = vlaneseq
        %v6840 = vshrl.u32 %v6839, 7
        %v6841 = vsub.s32 %v6838, %v6840
        %v6842 = vrot.slane %v6828, %v6841
        %v6843 = vcombine.low %v6835, %v6842
        %6844 = vrot.lane.b32.xlu0 %v6826, 16
        %v6845 = vpop.permute.xlu0 %6844
        %6846 = vrot.lane.b32.xlu0 %v6843, 16
        %v6847 = vpop.permute.xlu0 %6846
        %v6858 = vcombine.low %v6168, %v6245
        %v6859 = vcombine.low %v6322, %v6399
        %v6861 = vunpack.c.l.s4 1983009808
        %v6862 = vunpack.c.0.s8 %v6861
        %v6863 = vlaneseq
        %v6864 = vshrl.u32 %v6863, 7
        %v6865 = vsub.s32 %v6862, %v6864
        %v6866 = vrot.slane %v6858, %v6865
        %v6868 = vunpack.c.l.s4 1983009808
        %v6869 = vunpack.c.0.s8 %v6868
        %v6870 = vlaneseq
        %v6871 = vshrl.u32 %v6870, 7
        %v6872 = vsub.s32 %v6869, %v6871
        %v6873 = vrot.slane %v6859, %v6872
        %v6874 = vcombine.low %v6866, %v6873
        %v6875 = vcombine.low %v6476, %v6553
        %v6876 = vcombine.low %v6630, %v6707
        %v6878 = vunpack.c.l.s4 1983009808
        %v6879 = vunpack.c.0.s8 %v6878
        %v6880 = vlaneseq
        %v6881 = vshrl.u32 %v6880, 7
        %v6882 = vsub.s32 %v6879, %v6881
        %v6883 = vrot.slane %v6875, %v6882
        %v6885 = vunpack.c.l.s4 1983009808
        %v6886 = vunpack.c.0.s8 %v6885
        %v6887 = vlaneseq
        %v6888 = vshrl.u32 %v6887, 7
        %v6889 = vsub.s32 %v6886, %v6888
        %v6890 = vrot.slane %v6876, %v6889
        %v6891 = vcombine.low %v6883, %v6890
        %6892 = vrot.lane.b32.xlu0 %v6874, 24
        %v6893 = vpop.permute.xlu0 %6892
        %6894 = vrot.lane.b32.xlu0 %v6891, 24
        %v6895 = vpop.permute.xlu0 %6894
        %v6898 = vsel %vm1211, %v6734, %v6797
        %v6899 = vsel %vm1211, %v6751, %v6799
        %vm6900 = vcmask 130048
        %v6901 = vsel %vm6900, %v6898, %v6845
        %v6902 = vsel %vm6900, %v6899, %v6847
        %vm6903 = vcmask 195584
        %v6904 = vsel %vm6903, %v6901, %v6893
        %v6905 = vsel %vm6903, %v6902, %v6895
        %v6906 = vld [vmem:[%s704] sm:$0xff]
        %v6907 = vld [vmem:[%s704 + $0x8] sm:$0xff]
        %v6908 = vld [vmem:[%s704 + $0x10] sm:$0xff]
        %v6909 = vld [vmem:[%s704 + $0x18] sm:$0xff]
        %v6910 = vld [vmem:[%s707] sm:$0x1]
        %v6912 = vlaneseq
        %v6913 = vshrl.u32 %v6912, 7
        %v6914 = vsub.s32 0, %v6913
        %v6915 = vrot.slane %v6910, %v6914
        %v6918 = vsel %vm1036, %v6904, 0
        %v6921 = vsel %vm1036, %v6905, 0
        %6923 = vmatprep.subr.mxu0 0.0
        %6924 = vmatpush1.msra.mxu0 %v6906
        %6925 = vmatprep.subr.mxu0 0.0
        %6926 = vmatpush1.msra.mxu0 %v6907
        %6927 = vmatprep.subr.mxu0 0.0
        %6928 = vmatpush1.msra.mxu0 %v6908
        %6929 = vmatprep.subr.mxu0 0.0
        %6930 = vmatpush1.msra.mxu0 %v6909
        %6931 = vmatprep.subr.mxu0 0.0
        %6932 = vmatpush1.msra.mxu0 0.0
        %6933 = vmatprep.subr.mxu0 0.0
        %6934 = vmatpush1.msra.mxu0 0.0
        %6935 = vmatprep.subr.mxu0 0.0
        %6936 = vmatpush1.msra.mxu0 0.0
        %6937 = vmatprep.subr.mxu0 0.0
        %6938 = vmatpush1.msra.mxu0 0.0
        %6939 = vmatprep.subr.mxu0 0.0
        %6940 = vmatpush1.msra.mxu0 0.0
        %6941 = vmatprep.subr.mxu0 0.0
        %6942 = vmatpush1.msra.mxu0 0.0
        %6943 = vmatprep.subr.mxu0 0.0
        %6944 = vmatpush1.msra.mxu0 0.0
        %6945 = vmatprep.subr.mxu0 0.0
        %6946 = vmatpush1.msra.mxu0 0.0
        %6947 = vmatprep.subr.mxu0 0.0
        %6948 = vmatpush1.msra.mxu0 0.0
        %6949 = vmatprep.subr.mxu0 0.0
        %6950 = vmatpush1.msra.mxu0 0.0
        %6951 = vmatprep.subr.mxu0 0.0
        %6952 = vmatpush1.msra.mxu0 0.0
        %6953 = vmatprep.subr.mxu0 0.0
        %6954 = vmatpush1.msra.mxu0 0.0
        %6955 = vmatprep.subr.mxu0 0.0
        %6956 = vmatpush1.msra.mxu0 0.0
        %6957 = vmatprep.subr.mxu0 0.0
        %6958 = vmatpush1.msra.mxu0 0.0
        %6959 = vmatprep.subr.mxu0 0.0
        %6960 = vmatpush1.msra.mxu0 0.0
        %6961 = vmatprep.subr.mxu0 0.0
        %6962 = vmatpush1.msra.mxu0 0.0
        %6963 = vmatprep.subr.mxu0 0.0
        %6964 = vmatpush1.msra.mxu0 0.0
        %6965 = vmatprep.subr.mxu0 0.0
        %6966 = vmatpush1.msra.mxu0 0.0
        %6967 = vmatprep.subr.mxu0 0.0
        %6968 = vmatpush1.msra.mxu0 0.0
        %6969 = vmatprep.subr.mxu0 0.0
        %6970 = vmatpush1.msra.mxu0 0.0
        %6971 = vmatprep.subr.mxu0 0.0
        %6972 = vmatpush1.msra.mxu0 0.0
        %6973 = vmatprep.subr.mxu0 0.0
        %6974 = vmatpush1.msra.mxu0 0.0
        %6975 = vmatprep.subr.mxu0 0.0
        %6976 = vmatpush1.msra.mxu0 0.0
        %6977 = vmatprep.subr.mxu0 0.0
        %6978 = vmatpush1.msra.mxu0 0.0
        %6979 = vmatprep.subr.mxu0 0.0
        %6980 = vmatpush1.msra.mxu0 0.0
        %6981 = vmatprep.subr.mxu0 0.0
        %6982 = vmatpush1.msra.mxu0 0.0
        %6983 = vmatprep.subr.mxu0 0.0
        %6984 = vmatpush1.msra.mxu0 0.0
        %6985 = vmatprep.subr.mxu0 0.0
        %6986 = vmatpush1.msra.mxu0 0.0
        %6987 = vmatprep.mubr.f32.mxu0 0.0
        %6988 = vmatmul.mubr.f32.gmra.mrb[0].mxu0 %v6918
        %v6989 = vpop.f32.mrb[0].mxu0
        %v6990 = vadd.f32 %v6915, %v6989
        %v6991 = vpop.f32.mrb[0].mxu0
        %6992 = vmatprep.mubr.f32.mxu0 0.0
        %6993 = vmatmul.mubr.f32.gmra.mrb[0].mxu0 %v6921
        %v6994 = vpop.f32.mrb[0].mxu0
        %v6995 = vadd.f32 %v6915, %v6994
        %v6996 = vpop.f32.mrb[0].mxu0
        %6997 = vdwg.mxu0
        %v6998 = vadd.f32 %v1023, %v6990
        %v6999 = vadd.f32 %v1024, %v6995
        %v7000 = vld [vmem:[%s727] sm:$0x1]
        %v7001 = vld [vmem:[%s730] sm:$0x1]
        %v7002 = vsel %vm1036, %v6998, 0.0
        %7003 = vadd.xlane.f32.xlu0 %v7002
        %v7004 = vpop.xlane.xlu0 %7003
        %v7005 = vsel %vm1036, %v6999, 0.0
        %7006 = vadd.xlane.f32.xlu0 %v7005
        %v7007 = vpop.xlane.xlu0 %7006
        %v7008 = vrcp.pop 32.0
        %v7009 = vmul.f32 %v7004, %v7008
        %v7010 = vmul.f32 %v7007, %v7008
        %v7011 = vsub.f32 %v6998, %v7009
        %v7012 = vsub.f32 %v6999, %v7010
        %v7013 = vmul.f32 %v7011, %v7011
        %v7014 = vmul.f32 %v7012, %v7012
        %v7015 = vsel %vm1036, %v7013, 0.0
        %7016 = vadd.xlane.f32.xlu0 %v7015
        %v7017 = vpop.xlane.xlu0 %7016
        %v7018 = vsel %vm1036, %v7014, 0.0
        %7019 = vadd.xlane.f32.xlu0 %v7018
        %v7020 = vpop.xlane.xlu0 %7019
        %v7021 = vmul.f32 %v7017, %v7008
        %v7022 = vmul.f32 %v7020, %v7008
        %v7023 = vadd.f32 %v7021, 1e-05
        %v7024 = vadd.f32 %v7022, 1e-05
        %v7025 = vrsqrt.pop %v7023
        %v7026 = vrsqrt.pop %v7024
        %v7027 = vmul.f32 %v7011, %v7025
        %v7028 = vmul.f32 %v7012, %v7026
        %v7030 = vlaneseq
        %v7031 = vshrl.u32 %v7030, 7
        %v7032 = vsub.s32 0, %v7031
        %v7033 = vrot.slane %v7000, %v7032
        %v7035 = vmul.f32 %v7027, %v7033
        %v7036 = vmul.f32 %v7028, %v7033
        %v7038 = vlaneseq
        %v7039 = vshrl.u32 %v7038, 7
        %v7040 = vsub.s32 0, %v7039
        %v7041 = vrot.slane %v7001, %v7040
        %v7043 = vadd.f32 %v7035, %v7041
        %v7044 = vadd.f32 %v7036, %v7041
        %v7045 = vld [vmem:[%s712] sm:$0xff]
        %v7046 = vld [vmem:[%s712 + $0x8] sm:$0xff]
        %v7047 = vld [vmem:[%s712 + $0x10] sm:$0xff]
        %v7048 = vld [vmem:[%s712 + $0x18] sm:$0xff]
        %v7049 = vld [vmem:[%s712 + $0x20] sm:$0xff]
        %v7050 = vld [vmem:[%s712 + $0x28] sm:$0xff]
        %v7051 = vld [vmem:[%s712 + $0x30] sm:$0xff]
        %v7052 = vld [vmem:[%s712 + $0x38] sm:$0xff]
        %v7053 = vld [vmem:[%s712 + $0x40] sm:$0xff]
        %v7054 = vld [vmem:[%s712 + $0x48] sm:$0xff]
        %v7055 = vld [vmem:[%s712 + $0x50] sm:$0xff]
        %v7056 = vld [vmem:[%s712 + $0x58] sm:$0xff]
        %v7057 = vld [vmem:[%s712 + $0x60] sm:$0xff]
        %v7058 = vld [vmem:[%s712 + $0x68] sm:$0xff]
        %v7059 = vld [vmem:[%s712 + $0x70] sm:$0xff]
        %v7060 = vld [vmem:[%s712 + $0x78] sm:$0xff]
        %v7061 = vld [vmem:[%s712 + $0x80] sm:$0xff]
        %v7062 = vld [vmem:[%s712 + $0x88] sm:$0xff]
        %v7063 = vld [vmem:[%s712 + $0x90] sm:$0xff]
        %v7064 = vld [vmem:[%s712 + $0x98] sm:$0xff]
        %v7065 = vld [vmem:[%s712 + $0xa0] sm:$0xff]
        %v7066 = vld [vmem:[%s712 + $0xa8] sm:$0xff]
        %v7067 = vld [vmem:[%s712 + $0xb0] sm:$0xff]
        %v7068 = vld [vmem:[%s712 + $0xb8] sm:$0xff]
        %v7069 = vld [vmem:[%s712 + $0xc0] sm:$0xff]
        %v7070 = vld [vmem:[%s712 + $0xc8] sm:$0xff]
        %v7071 = vld [vmem:[%s712 + $0xd0] sm:$0xff]
        %v7072 = vld [vmem:[%s712 + $0xd8] sm:$0xff]
        %v7073 = vld [vmem:[%s712 + $0xe0] sm:$0xff]
        %v7074 = vld [vmem:[%s712 + $0xe8] sm:$0xff]
        %v7075 = vld [vmem:[%s712 + $0xf0] sm:$0xff]
        %v7076 = vld [vmem:[%s712 + $0xf8] sm:$0xff]
        %v7077 = vld [vmem:[%s712 + $0x100] sm:$0xff]
        %v7078 = vld [vmem:[%s712 + $0x108] sm:$0xff]
        %v7079 = vld [vmem:[%s712 + $0x110] sm:$0xff]
        %v7080 = vld [vmem:[%s712 + $0x118] sm:$0xff]
        %v7081 = vld [vmem:[%s712 + $0x120] sm:$0xff]
        %v7082 = vld [vmem:[%s712 + $0x128] sm:$0xff]
        %v7083 = vld [vmem:[%s712 + $0x130] sm:$0xff]
        %v7084 = vld [vmem:[%s712 + $0x138] sm:$0xff]
        %v7085 = vld [vmem:[%s712 + $0x140] sm:$0xff]
        %v7086 = vld [vmem:[%s712 + $0x148] sm:$0xff]
        %v7087 = vld [vmem:[%s712 + $0x150] sm:$0xff]
        %v7088 = vld [vmem:[%s712 + $0x158] sm:$0xff]
        %v7089 = vld [vmem:[%s712 + $0x160] sm:$0xff]
        %v7090 = vld [vmem:[%s712 + $0x168] sm:$0xff]
        %v7091 = vld [vmem:[%s712 + $0x170] sm:$0xff]
        %v7092 = vld [vmem:[%s712 + $0x178] sm:$0xff]
        %v7093 = vld [vmem:[%s712 + $0x180] sm:$0xff]
        %v7094 = vld [vmem:[%s712 + $0x188] sm:$0xff]
        %v7095 = vld [vmem:[%s712 + $0x190] sm:$0xff]
        %v7096 = vld [vmem:[%s712 + $0x198] sm:$0xff]
        %v7097 = vld [vmem:[%s712 + $0x1a0] sm:$0xff]
        %v7098 = vld [vmem:[%s712 + $0x1a8] sm:$0xff]
        %v7099 = vld [vmem:[%s712 + $0x1b0] sm:$0xff]
        %v7100 = vld [vmem:[%s712 + $0x1b8] sm:$0xff]
        %v7101 = vld [vmem:[%s712 + $0x1c0] sm:$0xff]
        %v7102 = vld [vmem:[%s712 + $0x1c8] sm:$0xff]
        %v7103 = vld [vmem:[%s712 + $0x1d0] sm:$0xff]
        %v7104 = vld [vmem:[%s712 + $0x1d8] sm:$0xff]
        %v7105 = vld [vmem:[%s712 + $0x1e0] sm:$0xff]
        %v7106 = vld [vmem:[%s712 + $0x1e8] sm:$0xff]
        %v7107 = vld [vmem:[%s712 + $0x1f0] sm:$0xff]
        %v7108 = vld [vmem:[%s712 + $0x1f8] sm:$0xff]
        %v7109 = vld [vmem:[%s716] sm:$0xff]
        %v7110 = vld [vmem:[%s716 + $0x8] sm:$0xff]
        %v7113 = vlaneseq
        %v7114 = vshrl.u32 %v7113, 7
        %v7115 = vsub.s32 0, %v7114
        %v7116 = vrot.slane %v7109, %v7115
        %v7117 = vlaneseq
        %v7118 = vshrl.u32 %v7117, 7
        %v7119 = vsub.s32 1, %v7118
        %v7120 = vrot.slane %v7109, %v7119
        %v7121 = vlaneseq
        %v7122 = vshrl.u32 %v7121, 7
        %v7123 = vsub.s32 2, %v7122
        %v7124 = vrot.slane %v7109, %v7123
        %v7125 = vlaneseq
        %v7126 = vshrl.u32 %v7125, 7
        %v7127 = vsub.s32 3, %v7126
        %v7128 = vrot.slane %v7109, %v7127
        %v7129 = vlaneseq
        %v7130 = vshrl.u32 %v7129, 7
        %v7131 = vsub.s32 4, %v7130
        %v7132 = vrot.slane %v7109, %v7131
        %v7133 = vlaneseq
        %v7134 = vshrl.u32 %v7133, 7
        %v7135 = vsub.s32 5, %v7134
        %v7136 = vrot.slane %v7109, %v7135
        %v7137 = vlaneseq
        %v7138 = vshrl.u32 %v7137, 7
        %v7139 = vsub.s32 6, %v7138
        %v7140 = vrot.slane %v7109, %v7139
        %v7141 = vlaneseq
        %v7142 = vshrl.u32 %v7141, 7
        %v7143 = vsub.s32 7, %v7142
        %v7144 = vrot.slane %v7109, %v7143
        %v7145 = vlaneseq
        %v7146 = vshrl.u32 %v7145, 7
        %v7147 = vsub.s32 0, %v7146
        %v7148 = vrot.slane %v7110, %v7147
        %v7149 = vlaneseq
        %v7150 = vshrl.u32 %v7149, 7
        %v7151 = vsub.s32 1, %v7150
        %v7152 = vrot.slane %v7110, %v7151
        %v7153 = vlaneseq
        %v7154 = vshrl.u32 %v7153, 7
        %v7155 = vsub.s32 2, %v7154
        %v7156 = vrot.slane %v7110, %v7155
        %v7157 = vlaneseq
        %v7158 = vshrl.u32 %v7157, 7
        %v7159 = vsub.s32 3, %v7158
        %v7160 = vrot.slane %v7110, %v7159
        %v7161 = vlaneseq
        %v7162 = vshrl.u32 %v7161, 7
        %v7163 = vsub.s32 4, %v7162
        %v7164 = vrot.slane %v7110, %v7163
        %v7165 = vlaneseq
        %v7166 = vshrl.u32 %v7165, 7
        %v7167 = vsub.s32 5, %v7166
        %v7168 = vrot.slane %v7110, %v7167
        %v7169 = vlaneseq
        %v7170 = vshrl.u32 %v7169, 7
        %v7171 = vsub.s32 6, %v7170
        %v7172 = vrot.slane %v7110, %v7171
        %v7173 = vlaneseq
        %v7174 = vshrl.u32 %v7173, 7
        %v7175 = vsub.s32 7, %v7174
        %v7176 = vrot.slane %v7110, %v7175
        %v7194 = vsel %vm1036, %v7043, 0
        %v7197 = vsel %vm1036, %v7044, 0
        %7199 = vmatprep.subr.mxu0 %v7046
        %7200 = vmatpush1.msra.mxu0 %v7045
        %7201 = vmatprep.subr.mxu0 %v7062
        %7202 = vmatpush1.msra.mxu0 %v7061
        %7203 = vmatprep.subr.mxu0 %v7078
        %7204 = vmatpush1.msra.mxu0 %v7077
        %7205 = vmatprep.subr.mxu0 %v7094
        %7206 = vmatpush1.msra.mxu0 %v7093
        %7207 = vmatprep.subr.mxu0 0.0
        %7208 = vmatpush1.msra.mxu0 0.0
        %7209 = vmatprep.subr.mxu0 0.0
        %7210 = vmatpush1.msra.mxu0 0.0
        %7211 = vmatprep.subr.mxu0 0.0
        %7212 = vmatpush1.msra.mxu0 0.0
        %7213 = vmatprep.subr.mxu0 0.0
        %7214 = vmatpush1.msra.mxu0 0.0
        %7215 = vmatprep.subr.mxu0 0.0
        %7216 = vmatpush1.msra.mxu0 0.0
        %7217 = vmatprep.subr.mxu0 0.0
        %7218 = vmatpush1.msra.mxu0 0.0
        %7219 = vmatprep.subr.mxu0 0.0
        %7220 = vmatpush1.msra.mxu0 0.0
        %7221 = vmatprep.subr.mxu0 0.0
        %7222 = vmatpush1.msra.mxu0 0.0
        %7223 = vmatprep.subr.mxu0 0.0
        %7224 = vmatpush1.msra.mxu0 0.0
        %7225 = vmatprep.subr.mxu0 0.0
        %7226 = vmatpush1.msra.mxu0 0.0
        %7227 = vmatprep.subr.mxu0 0.0
        %7228 = vmatpush1.msra.mxu0 0.0
        %7229 = vmatprep.subr.mxu0 0.0
        %7230 = vmatpush1.msra.mxu0 0.0
        %7231 = vmatprep.subr.mxu0 0.0
        %7232 = vmatpush1.msra.mxu0 0.0
        %7233 = vmatprep.subr.mxu0 0.0
        %7234 = vmatpush1.msra.mxu0 0.0
        %7235 = vmatprep.subr.mxu0 0.0
        %7236 = vmatpush1.msra.mxu0 0.0
        %7237 = vmatprep.subr.mxu0 0.0
        %7238 = vmatpush1.msra.mxu0 0.0
        %7239 = vmatprep.subr.mxu0 0.0
        %7240 = vmatpush1.msra.mxu0 0.0
        %7241 = vmatprep.subr.mxu0 0.0
        %7242 = vmatpush1.msra.mxu0 0.0
        %7243 = vmatprep.subr.mxu0 0.0
        %7244 = vmatpush1.msra.mxu0 0.0
        %7245 = vmatprep.subr.mxu0 0.0
        %7246 = vmatpush1.msra.mxu0 0.0
        %7247 = vmatprep.subr.mxu0 0.0
        %7248 = vmatpush1.msra.mxu0 0.0
        %7249 = vmatprep.subr.mxu0 0.0
        %7250 = vmatpush1.msra.mxu0 0.0
        %7251 = vmatprep.subr.mxu0 0.0
        %7252 = vmatpush1.msra.mxu0 0.0
        %7253 = vmatprep.subr.mxu0 0.0
        %7254 = vmatpush1.msra.mxu0 0.0
        %7255 = vmatprep.subr.mxu0 0.0
        %7256 = vmatpush1.msra.mxu0 0.0
        %7257 = vmatprep.subr.mxu0 0.0
        %7258 = vmatpush1.msra.mxu0 0.0
        %7259 = vmatprep.subr.mxu0 0.0
        %7260 = vmatpush1.msra.mxu0 0.0
        %7261 = vmatprep.subr.mxu0 0.0
        %7262 = vmatpush1.msra.mxu0 0.0
        %7263 = vmatprep.mubr.f32.mxu0 0.0
        %7264 = vmatmul.mubr.f32.gmra.mrb[0].mxu0 %v7194
        %v7265 = vpop.f32.mrb[0].mxu0
        %v7266 = vadd.f32 %v7116, %v7265
        %v7267 = vpop.f32.mrb[0].mxu0
        %v7268 = vadd.f32 %v7120, %v7267
        %7269 = vmatprep.mubr.f32.mxu0 0.0
        %7270 = vmatmul.mubr.f32.gmra.mrb[0].mxu0 %v7197
        %v7271 = vpop.f32.mrb[0].mxu0
        %v7272 = vadd.f32 %v7116, %v7271
        %v7273 = vpop.f32.mrb[0].mxu0
        %v7274 = vadd.f32 %v7120, %v7273
        %7275 = vdwg.mxu0
        %7276 = vmatprep.subr.mxu0 %v7048
        %7277 = vmatpush1.msra.mxu0 %v7047
        %7278 = vmatprep.subr.mxu0 %v7064
        %7279 = vmatpush1.msra.mxu0 %v7063
        %7280 = vmatprep.subr.mxu0 %v7080
        %7281 = vmatpush1.msra.mxu0 %v7079
        %7282 = vmatprep.subr.mxu0 %v7096
        %7283 = vmatpush1.msra.mxu0 %v7095
        %7284 = vmatprep.subr.mxu0 0.0
        %7285 = vmatpush1.msra.mxu0 0.0
        %7286 = vmatprep.subr.mxu0 0.0
        %7287 = vmatpush1.msra.mxu0 0.0
        %7288 = vmatprep.subr.mxu0 0.0
        %7289 = vmatpush1.msra.mxu0 0.0
        %7290 = vmatprep.subr.mxu0 0.0
        %7291 = vmatpush1.msra.mxu0 0.0
        %7292 = vmatprep.subr.mxu0 0.0
        %7293 = vmatpush1.msra.mxu0 0.0
        %7294 = vmatprep.subr.mxu0 0.0
        %7295 = vmatpush1.msra.mxu0 0.0
        %7296 = vmatprep.subr.mxu0 0.0
        %7297 = vmatpush1.msra.mxu0 0.0
        %7298 = vmatprep.subr.mxu0 0.0
        %7299 = vmatpush1.msra.mxu0 0.0
        %7300 = vmatprep.subr.mxu0 0.0
        %7301 = vmatpush1.msra.mxu0 0.0
        %7302 = vmatprep.subr.mxu0 0.0
        %7303 = vmatpush1.msra.mxu0 0.0
        %7304 = vmatprep.subr.mxu0 0.0
        %7305 = vmatpush1.msra.mxu0 0.0
        %7306 = vmatprep.subr.mxu0 0.0
        %7307 = vmatpush1.msra.mxu0 0.0
        %7308 = vmatprep.subr.mxu0 0.0
        %7309 = vmatpush1.msra.mxu0 0.0
        %7310 = vmatprep.subr.mxu0 0.0
        %7311 = vmatpush1.msra.mxu0 0.0
        %7312 = vmatprep.subr.mxu0 0.0
        %7313 = vmatpush1.msra.mxu0 0.0
        %7314 = vmatprep.subr.mxu0 0.0
        %7315 = vmatpush1.msra.mxu0 0.0
        %7316 = vmatprep.subr.mxu0 0.0
        %7317 = vmatpush1.msra.mxu0 0.0
        %7318 = vmatprep.subr.mxu0 0.0
        %7319 = vmatpush1.msra.mxu0 0.0
        %7320 = vmatprep.subr.mxu0 0.0
        %7321 = vmatpush1.msra.mxu0 0.0
        %7322 = vmatprep.subr.mxu0 0.0
        %7323 = vmatpush1.msra.mxu0 0.0
        %7324 = vmatprep.subr.mxu0 0.0
        %7325 = vmatpush1.msra.mxu0 0.0
        %7326 = vmatprep.subr.mxu0 0.0
        %7327 = vmatpush1.msra.mxu0 0.0
        %7328 = vmatprep.subr.mxu0 0.0
        %7329 = vmatpush1.msra.mxu0 0.0
        %7330 = vmatprep.subr.mxu0 0.0
        %7331 = vmatpush1.msra.mxu0 0.0
        %7332 = vmatprep.subr.mxu0 0.0
        %7333 = vmatpush1.msra.mxu0 0.0
        %7334 = vmatprep.subr.mxu0 0.0
        %7335 = vmatpush1.msra.mxu0 0.0
        %7336 = vmatprep.subr.mxu0 0.0
        %7337 = vmatpush1.msra.mxu0 0.0
        %7338 = vmatprep.subr.mxu0 0.0
        %7339 = vmatpush1.msra.mxu0 0.0
        %7340 = vmatprep.mubr.f32.mxu0 0.0
        %7341 = vmatmul.mubr.f32.gmra.mrb[0].mxu0 %v7194
        %v7342 = vpop.f32.mrb[0].mxu0
        %v7343 = vadd.f32 %v7124, %v7342
        %v7344 = vpop.f32.mrb[0].mxu0
        %v7345 = vadd.f32 %v7128, %v7344
        %7346 = vmatprep.mubr.f32.mxu0 0.0
        %7347 = vmatmul.mubr.f32.gmra.mrb[0].mxu0 %v7197
        %v7348 = vpop.f32.mrb[0].mxu0
        %v7349 = vadd.f32 %v7124, %v7348
        %v7350 = vpop.f32.mrb[0].mxu0
        %v7351 = vadd.f32 %v7128, %v7350
        %7352 = vdwg.mxu0
        %7353 = vmatprep.subr.mxu0 %v7050
        %7354 = vmatpush1.msra.mxu0 %v7049
        %7355 = vmatprep.subr.mxu0 %v7066
        %7356 = vmatpush1.msra.mxu0 %v7065
        %7357 = vmatprep.subr.mxu0 %v7082
        %7358 = vmatpush1.msra.mxu0 %v7081
        %7359 = vmatprep.subr.mxu0 %v7098
        %7360 = vmatpush1.msra.mxu0 %v7097
        %7361 = vmatprep.subr.mxu0 0.0
        %7362 = vmatpush1.msra.mxu0 0.0
        %7363 = vmatprep.subr.mxu0 0.0
        %7364 = vmatpush1.msra.mxu0 0.0
        %7365 = vmatprep.subr.mxu0 0.0
        %7366 = vmatpush1.msra.mxu0 0.0
        %7367 = vmatprep.subr.mxu0 0.0
        %7368 = vmatpush1.msra.mxu0 0.0
        %7369 = vmatprep.subr.mxu0 0.0
        %7370 = vmatpush1.msra.mxu0 0.0
        %7371 = vmatprep.subr.mxu0 0.0
        %7372 = vmatpush1.msra.mxu0 0.0
        %7373 = vmatprep.subr.mxu0 0.0
        %7374 = vmatpush1.msra.mxu0 0.0
        %7375 = vmatprep.subr.mxu0 0.0
        %7376 = vmatpush1.msra.mxu0 0.0
        %7377 = vmatprep.subr.mxu0 0.0
        %7378 = vmatpush1.msra.mxu0 0.0
        %7379 = vmatprep.subr.mxu0 0.0
        %7380 = vmatpush1.msra.mxu0 0.0
        %7381 = vmatprep.subr.mxu0 0.0
        %7382 = vmatpush1.msra.mxu0 0.0
        %7383 = vmatprep.subr.mxu0 0.0
        %7384 = vmatpush1.msra.mxu0 0.0
        %7385 = vmatprep.subr.mxu0 0.0
        %7386 = vmatpush1.msra.mxu0 0.0
        %7387 = vmatprep.subr.mxu0 0.0
        %7388 = vmatpush1.msra.mxu0 0.0
        %7389 = vmatprep.subr.mxu0 0.0
        %7390 = vmatpush1.msra.mxu0 0.0
        %7391 = vmatprep.subr.mxu0 0.0
        %7392 = vmatpush1.msra.mxu0 0.0
        %7393 = vmatprep.subr.mxu0 0.0
        %7394 = vmatpush1.msra.mxu0 0.0
        %7395 = vmatprep.subr.mxu0 0.0
        %7396 = vmatpush1.msra.mxu0 0.0
        %7397 = vmatprep.subr.mxu0 0.0
        %7398 = vmatpush1.msra.mxu0 0.0
        %7399 = vmatprep.subr.mxu0 0.0
        %7400 = vmatpush1.msra.mxu0 0.0
        %7401 = vmatprep.subr.mxu0 0.0
        %7402 = vmatpush1.msra.mxu0 0.0
        %7403 = vmatprep.subr.mxu0 0.0
        %7404 = vmatpush1.msra.mxu0 0.0
        %7405 = vmatprep.subr.mxu0 0.0
        %7406 = vmatpush1.msra.mxu0 0.0
        %7407 = vmatprep.subr.mxu0 0.0
        %7408 = vmatpush1.msra.mxu0 0.0
        %7409 = vmatprep.subr.mxu0 0.0
        %7410 = vmatpush1.msra.mxu0 0.0
        %7411 = vmatprep.subr.mxu0 0.0
        %7412 = vmatpush1.msra.mxu0 0.0
        %7413 = vmatprep.subr.mxu0 0.0
        %7414 = vmatpush1.msra.mxu0 0.0
        %7415 = vmatprep.subr.mxu0 0.0
        %7416 = vmatpush1.msra.mxu0 0.0
        %7417 = vmatprep.mubr.f32.mxu0 0.0
        %7418 = vmatmul.mubr.f32.gmra.mrb[0].mxu0 %v7194
        %v7419 = vpop.f32.mrb[0].mxu0
        %v7420 = vadd.f32 %v7132, %v7419
        %v7421 = vpop.f32.mrb[0].mxu0
        %v7422 = vadd.f32 %v7136, %v7421
        %7423 = vmatprep.mubr.f32.mxu0 0.0
        %7424 = vmatmul.mubr.f32.gmra.mrb[0].mxu0 %v7197
        %v7425 = vpop.f32.mrb[0].mxu0
        %v7426 = vadd.f32 %v7132, %v7425
        %v7427 = vpop.f32.mrb[0].mxu0
        %v7428 = vadd.f32 %v7136, %v7427
        %7429 = vdwg.mxu0
        %7430 = vmatprep.subr.mxu0 %v7052
        %7431 = vmatpush1.msra.mxu0 %v7051
        %7432 = vmatprep.subr.mxu0 %v7068
        %7433 = vmatpush1.msra.mxu0 %v7067
        %7434 = vmatprep.subr.mxu0 %v7084
        %7435 = vmatpush1.msra.mxu0 %v7083
        %7436 = vmatprep.subr.mxu0 %v7100
        %7437 = vmatpush1.msra.mxu0 %v7099
        %7438 = vmatprep.subr.mxu0 0.0
        %7439 = vmatpush1.msra.mxu0 0.0
        %7440 = vmatprep.subr.mxu0 0.0
        %7441 = vmatpush1.msra.mxu0 0.0
        %7442 = vmatprep.subr.mxu0 0.0
        %7443 = vmatpush1.msra.mxu0 0.0
        %7444 = vmatprep.subr.mxu0 0.0
        %7445 = vmatpush1.msra.mxu0 0.0
        %7446 = vmatprep.subr.mxu0 0.0
        %7447 = vmatpush1.msra.mxu0 0.0
        %7448 = vmatprep.subr.mxu0 0.0
        %7449 = vmatpush1.msra.mxu0 0.0
        %7450 = vmatprep.subr.mxu0 0.0
        %7451 = vmatpush1.msra.mxu0 0.0
        %7452 = vmatprep.subr.mxu0 0.0
        %7453 = vmatpush1.msra.mxu0 0.0
        %7454 = vmatprep.subr.mxu0 0.0
        %7455 = vmatpush1.msra.mxu0 0.0
        %7456 = vmatprep.subr.mxu0 0.0
        %7457 = vmatpush1.msra.mxu0 0.0
        %7458 = vmatprep.subr.mxu0 0.0
        %7459 = vmatpush1.msra.mxu0 0.0
        %7460 = vmatprep.subr.mxu0 0.0
        %7461 = vmatpush1.msra.mxu0 0.0
        %7462 = vmatprep.subr.mxu0 0.0
        %7463 = vmatpush1.msra.mxu0 0.0
        %7464 = vmatprep.subr.mxu0 0.0
        %7465 = vmatpush1.msra.mxu0 0.0
        %7466 = vmatprep.subr.mxu0 0.0
        %7467 = vmatpush1.msra.mxu0 0.0
        %7468 = vmatprep.subr.mxu0 0.0
        %7469 = vmatpush1.msra.mxu0 0.0
        %7470 = vmatprep.subr.mxu0 0.0
        %7471 = vmatpush1.msra.mxu0 0.0
        %7472 = vmatprep.subr.mxu0 0.0
        %7473 = vmatpush1.msra.mxu0 0.0
        %7474 = vmatprep.subr.mxu0 0.0
        %7475 = vmatpush1.msra.mxu0 0.0
        %7476 = vmatprep.subr.mxu0 0.0
        %7477 = vmatpush1.msra.mxu0 0.0
        %7478 = vmatprep.subr.mxu0 0.0
        %7479 = vmatpush1.msra.mxu0 0.0
        %7480 = vmatprep.subr.mxu0 0.0
        %7481 = vmatpush1.msra.mxu0 0.0
        %7482 = vmatprep.subr.mxu0 0.0
        %7483 = vmatpush1.msra.mxu0 0.0
        %7484 = vmatprep.subr.mxu0 0.0
        %7485 = vmatpush1.msra.mxu0 0.0
        %7486 = vmatprep.subr.mxu0 0.0
        %7487 = vmatpush1.msra.mxu0 0.0
        %7488 = vmatprep.subr.mxu0 0.0
        %7489 = vmatpush1.msra.mxu0 0.0
        %7490 = vmatprep.subr.mxu0 0.0
        %7491 = vmatpush1.msra.mxu0 0.0
        %7492 = vmatprep.subr.mxu0 0.0
        %7493 = vmatpush1.msra.mxu0 0.0
        %7494 = vmatprep.mubr.f32.mxu0 0.0
        %7495 = vmatmul.mubr.f32.gmra.mrb[0].mxu0 %v7194
        %v7496 = vpop.f32.mrb[0].mxu0
        %v7497 = vadd.f32 %v7140, %v7496
        %v7498 = vpop.f32.mrb[0].mxu0
        %v7499 = vadd.f32 %v7144, %v7498
        %7500 = vmatprep.mubr.f32.mxu0 0.0
        %7501 = vmatmul.mubr.f32.gmra.mrb[0].mxu0 %v7197
        %v7502 = vpop.f32.mrb[0].mxu0
        %v7503 = vadd.f32 %v7140, %v7502
        %v7504 = vpop.f32.mrb[0].mxu0
        %v7505 = vadd.f32 %v7144, %v7504
        %7506 = vdwg.mxu0
        %7507 = vmatprep.subr.mxu0 %v7054
        %7508 = vmatpush1.msra.mxu0 %v7053
        %7509 = vmatprep.subr.mxu0 %v7070
        %7510 = vmatpush1.msra.mxu0 %v7069
        %7511 = vmatprep.subr.mxu0 %v7086
        %7512 = vmatpush1.msra.mxu0 %v7085
        %7513 = vmatprep.subr.mxu0 %v7102
        %7514 = vmatpush1.msra.mxu0 %v7101
        %7515 = vmatprep.subr.mxu0 0.0
        %7516 = vmatpush1.msra.mxu0 0.0
        %7517 = vmatprep.subr.mxu0 0.0
        %7518 = vmatpush1.msra.mxu0 0.0
        %7519 = vmatprep.subr.mxu0 0.0
        %7520 = vmatpush1.msra.mxu0 0.0
        %7521 = vmatprep.subr.mxu0 0.0
        %7522 = vmatpush1.msra.mxu0 0.0
        %7523 = vmatprep.subr.mxu0 0.0
        %7524 = vmatpush1.msra.mxu0 0.0
        %7525 = vmatprep.subr.mxu0 0.0
        %7526 = vmatpush1.msra.mxu0 0.0
        %7527 = vmatprep.subr.mxu0 0.0
        %7528 = vmatpush1.msra.mxu0 0.0
        %7529 = vmatprep.subr.mxu0 0.0
        %7530 = vmatpush1.msra.mxu0 0.0
        %7531 = vmatprep.subr.mxu0 0.0
        %7532 = vmatpush1.msra.mxu0 0.0
        %7533 = vmatprep.subr.mxu0 0.0
        %7534 = vmatpush1.msra.mxu0 0.0
        %7535 = vmatprep.subr.mxu0 0.0
        %7536 = vmatpush1.msra.mxu0 0.0
        %7537 = vmatprep.subr.mxu0 0.0
        %7538 = vmatpush1.msra.mxu0 0.0
        %7539 = vmatprep.subr.mxu0 0.0
        %7540 = vmatpush1.msra.mxu0 0.0
        %7541 = vmatprep.subr.mxu0 0.0
        %7542 = vmatpush1.msra.mxu0 0.0
        %7543 = vmatprep.subr.mxu0 0.0
        %7544 = vmatpush1.msra.mxu0 0.0
        %7545 = vmatprep.subr.mxu0 0.0
        %7546 = vmatpush1.msra.mxu0 0.0
        %7547 = vmatprep.subr.mxu0 0.0
        %7548 = vmatpush1.msra.mxu0 0.0
        %7549 = vmatprep.subr.mxu0 0.0
        %7550 = vmatpush1.msra.mxu0 0.0
        %7551 = vmatprep.subr.mxu0 0.0
        %7552 = vmatpush1.msra.mxu0 0.0
        %7553 = vmatprep.subr.mxu0 0.0
        %7554 = vmatpush1.msra.mxu0 0.0
        %7555 = vmatprep.subr.mxu0 0.0
        %7556 = vmatpush1.msra.mxu0 0.0
        %7557 = vmatprep.subr.mxu0 0.0
        %7558 = vmatpush1.msra.mxu0 0.0
        %7559 = vmatprep.subr.mxu0 0.0
        %7560 = vmatpush1.msra.mxu0 0.0
        %7561 = vmatprep.subr.mxu0 0.0
        %7562 = vmatpush1.msra.mxu0 0.0
        %7563 = vmatprep.subr.mxu0 0.0
        %7564 = vmatpush1.msra.mxu0 0.0
        %7565 = vmatprep.subr.mxu0 0.0
        %7566 = vmatpush1.msra.mxu0 0.0
        %7567 = vmatprep.subr.mxu0 0.0
        %7568 = vmatpush1.msra.mxu0 0.0
        %7569 = vmatprep.subr.mxu0 0.0
        %7570 = vmatpush1.msra.mxu0 0.0
        %7571 = vmatprep.mubr.f32.mxu0 0.0
        %7572 = vmatmul.mubr.f32.gmra.mrb[0].mxu0 %v7194
        %v7573 = vpop.f32.mrb[0].mxu0
        %v7574 = vadd.f32 %v7148, %v7573
        %v7575 = vpop.f32.mrb[0].mxu0
        %v7576 = vadd.f32 %v7152, %v7575
        %7577 = vmatprep.mubr.f32.mxu0 0.0
        %7578 = vmatmul.mubr.f32.gmra.mrb[0].mxu0 %v7197
        %v7579 = vpop.f32.mrb[0].mxu0
        %v7580 = vadd.f32 %v7148, %v7579
        %v7581 = vpop.f32.mrb[0].mxu0
        %v7582 = vadd.f32 %v7152, %v7581
        %7583 = vdwg.mxu0
        %7584 = vmatprep.subr.mxu0 %v7056
        %7585 = vmatpush1.msra.mxu0 %v7055
        %7586 = vmatprep.subr.mxu0 %v7072
        %7587 = vmatpush1.msra.mxu0 %v7071
        %7588 = vmatprep.subr.mxu0 %v7088
        %7589 = vmatpush1.msra.mxu0 %v7087
        %7590 = vmatprep.subr.mxu0 %v7104
        %7591 = vmatpush1.msra.mxu0 %v7103
        %7592 = vmatprep.subr.mxu0 0.0
        %7593 = vmatpush1.msra.mxu0 0.0
        %7594 = vmatprep.subr.mxu0 0.0
        %7595 = vmatpush1.msra.mxu0 0.0
        %7596 = vmatprep.subr.mxu0 0.0
        %7597 = vmatpush1.msra.mxu0 0.0
        %7598 = vmatprep.subr.mxu0 0.0
        %7599 = vmatpush1.msra.mxu0 0.0
        %7600 = vmatprep.subr.mxu0 0.0
        %7601 = vmatpush1.msra.mxu0 0.0
        %7602 = vmatprep.subr.mxu0 0.0
        %7603 = vmatpush1.msra.mxu0 0.0
        %7604 = vmatprep.subr.mxu0 0.0
        %7605 = vmatpush1.msra.mxu0 0.0
        %7606 = vmatprep.subr.mxu0 0.0
        %7607 = vmatpush1.msra.mxu0 0.0
        %7608 = vmatprep.subr.mxu0 0.0
        %7609 = vmatpush1.msra.mxu0 0.0
        %7610 = vmatprep.subr.mxu0 0.0
        %7611 = vmatpush1.msra.mxu0 0.0
        %7612 = vmatprep.subr.mxu0 0.0
        %7613 = vmatpush1.msra.mxu0 0.0
        %7614 = vmatprep.subr.mxu0 0.0
        %7615 = vmatpush1.msra.mxu0 0.0
        %7616 = vmatprep.subr.mxu0 0.0
        %7617 = vmatpush1.msra.mxu0 0.0
        %7618 = vmatprep.subr.mxu0 0.0
        %7619 = vmatpush1.msra.mxu0 0.0
        %7620 = vmatprep.subr.mxu0 0.0
        %7621 = vmatpush1.msra.mxu0 0.0
        %7622 = vmatprep.subr.mxu0 0.0
        %7623 = vmatpush1.msra.mxu0 0.0
        %7624 = vmatprep.subr.mxu0 0.0
        %7625 = vmatpush1.msra.mxu0 0.0
        %7626 = vmatprep.subr.mxu0 0.0
        %7627 = vmatpush1.msra.mxu0 0.0
        %7628 = vmatprep.subr.mxu0 0.0
        %7629 = vmatpush1.msra.mxu0 0.0
        %7630 = vmatprep.subr.mxu0 0.0
        %7631 = vmatpush1.msra.mxu0 0.0
        %7632 = vmatprep.subr.mxu0 0.0
        %7633 = vmatpush1.msra.mxu0 0.0
        %7634 = vmatprep.subr.mxu0 0.0
        %7635 = vmatpush1.msra.mxu0 0.0
        %7636 = vmatprep.subr.mxu0 0.0
        %7637 = vmatpush1.msra.mxu0 0.0
        %7638 = vmatprep.subr.mxu0 0.0
        %7639 = vmatpush1.msra.mxu0 0.0
        %7640 = vmatprep.subr.mxu0 0.0
        %7641 = vmatpush1.msra.mxu0 0.0
        %7642 = vmatprep.subr.mxu0 0.0
        %7643 = vmatpush1.msra.mxu0 0.0
        %7644 = vmatprep.subr.mxu0 0.0
        %7645 = vmatpush1.msra.mxu0 0.0
        %7646 = vmatprep.subr.mxu0 0.0
        %7647 = vmatpush1.msra.mxu0 0.0
        %7648 = vmatprep.mubr.f32.mxu0 0.0
        %7649 = vmatmul.mubr.f32.gmra.mrb[0].mxu0 %v7194
        %v7650 = vpop.f32.mrb[0].mxu0
        %v7651 = vadd.f32 %v7156, %v7650
        %v7652 = vpop.f32.mrb[0].mxu0
        %v7653 = vadd.f32 %v7160, %v7652
        %7654 = vmatprep.mubr.f32.mxu0 0.0
        %7655 = vmatmul.mubr.f32.gmra.mrb[0].mxu0 %v7197
        %v7656 = vpop.f32.mrb[0].mxu0
        %v7657 = vadd.f32 %v7156, %v7656
        %v7658 = vpop.f32.mrb[0].mxu0
        %v7659 = vadd.f32 %v7160, %v7658
        %7660 = vdwg.mxu0
        %7661 = vmatprep.subr.mxu0 %v7058
        %7662 = vmatpush1.msra.mxu0 %v7057
        %7663 = vmatprep.subr.mxu0 %v7074
        %7664 = vmatpush1.msra.mxu0 %v7073
        %7665 = vmatprep.subr.mxu0 %v7090
        %7666 = vmatpush1.msra.mxu0 %v7089
        %7667 = vmatprep.subr.mxu0 %v7106
        %7668 = vmatpush1.msra.mxu0 %v7105
        %7669 = vmatprep.subr.mxu0 0.0
        %7670 = vmatpush1.msra.mxu0 0.0
        %7671 = vmatprep.subr.mxu0 0.0
        %7672 = vmatpush1.msra.mxu0 0.0
        %7673 = vmatprep.subr.mxu0 0.0
        %7674 = vmatpush1.msra.mxu0 0.0
        %7675 = vmatprep.subr.mxu0 0.0
        %7676 = vmatpush1.msra.mxu0 0.0
        %7677 = vmatprep.subr.mxu0 0.0
        %7678 = vmatpush1.msra.mxu0 0.0
        %7679 = vmatprep.subr.mxu0 0.0
        %7680 = vmatpush1.msra.mxu0 0.0
        %7681 = vmatprep.subr.mxu0 0.0
        %7682 = vmatpush1.msra.mxu0 0.0
        %7683 = vmatprep.subr.mxu0 0.0
        %7684 = vmatpush1.msra.mxu0 0.0
        %7685 = vmatprep.subr.mxu0 0.0
        %7686 = vmatpush1.msra.mxu0 0.0
        %7687 = vmatprep.subr.mxu0 0.0
        %7688 = vmatpush1.msra.mxu0 0.0
        %7689 = vmatprep.subr.mxu0 0.0
        %7690 = vmatpush1.msra.mxu0 0.0
        %7691 = vmatprep.subr.mxu0 0.0
        %7692 = vmatpush1.msra.mxu0 0.0
        %7693 = vmatprep.subr.mxu0 0.0
        %7694 = vmatpush1.msra.mxu0 0.0
        %7695 = vmatprep.subr.mxu0 0.0
        %7696 = vmatpush1.msra.mxu0 0.0
        %7697 = vmatprep.subr.mxu0 0.0
        %7698 = vmatpush1.msra.mxu0 0.0
        %7699 = vmatprep.subr.mxu0 0.0
        %7700 = vmatpush1.msra.mxu0 0.0
        %7701 = vmatprep.subr.mxu0 0.0
        %7702 = vmatpush1.msra.mxu0 0.0
        %7703 = vmatprep.subr.mxu0 0.0
        %7704 = vmatpush1.msra.mxu0 0.0
        %7705 = vmatprep.subr.mxu0 0.0
        %7706 = vmatpush1.msra.mxu0 0.0
        %7707 = vmatprep.subr.mxu0 0.0
        %7708 = vmatpush1.msra.mxu0 0.0
        %7709 = vmatprep.subr.mxu0 0.0
        %7710 = vmatpush1.msra.mxu0 0.0
        %7711 = vmatprep.subr.mxu0 0.0
        %7712 = vmatpush1.msra.mxu0 0.0
        %7713 = vmatprep.subr.mxu0 0.0
        %7714 = vmatpush1.msra.mxu0 0.0
        %7715 = vmatprep.subr.mxu0 0.0
        %7716 = vmatpush1.msra.mxu0 0.0
        %7717 = vmatprep.subr.mxu0 0.0
        %7718 = vmatpush1.msra.mxu0 0.0
        %7719 = vmatprep.subr.mxu0 0.0
        %7720 = vmatpush1.msra.mxu0 0.0
        %7721 = vmatprep.subr.mxu0 0.0
        %7722 = vmatpush1.msra.mxu0 0.0
        %7723 = vmatprep.subr.mxu0 0.0
        %7724 = vmatpush1.msra.mxu0 0.0
        %7725 = vmatprep.mubr.f32.mxu0 0.0
        %7726 = vmatmul.mubr.f32.gmra.mrb[0].mxu0 %v7194
        %v7727 = vpop.f32.mrb[0].mxu0
        %v7728 = vadd.f32 %v7164, %v7727
        %v7729 = vpop.f32.mrb[0].mxu0
        %v7730 = vadd.f32 %v7168, %v7729
        %7731 = vmatprep.mubr.f32.mxu0 0.0
        %7732 = vmatmul.mubr.f32.gmra.mrb[0].mxu0 %v7197
        %v7733 = vpop.f32.mrb[0].mxu0
        %v7734 = vadd.f32 %v7164, %v7733
        %v7735 = vpop.f32.mrb[0].mxu0
        %v7736 = vadd.f32 %v7168, %v7735
        %7737 = vdwg.mxu0
        %7738 = vmatprep.subr.mxu0 %v7060
        %7739 = vmatpush1.msra.mxu0 %v7059
        %7740 = vmatprep.subr.mxu0 %v7076
        %7741 = vmatpush1.msra.mxu0 %v7075
        %7742 = vmatprep.subr.mxu0 %v7092
        %7743 = vmatpush1.msra.mxu0 %v7091
        %7744 = vmatprep.subr.mxu0 %v7108
        %7745 = vmatpush1.msra.mxu0 %v7107
        %7746 = vmatprep.subr.mxu0 0.0
        %7747 = vmatpush1.msra.mxu0 0.0
        %7748 = vmatprep.subr.mxu0 0.0
        %7749 = vmatpush1.msra.mxu0 0.0
        %7750 = vmatprep.subr.mxu0 0.0
        %7751 = vmatpush1.msra.mxu0 0.0
        %7752 = vmatprep.subr.mxu0 0.0
        %7753 = vmatpush1.msra.mxu0 0.0
        %7754 = vmatprep.subr.mxu0 0.0
        %7755 = vmatpush1.msra.mxu0 0.0
        %7756 = vmatprep.subr.mxu0 0.0
        %7757 = vmatpush1.msra.mxu0 0.0
        %7758 = vmatprep.subr.mxu0 0.0
        %7759 = vmatpush1.msra.mxu0 0.0
        %7760 = vmatprep.subr.mxu0 0.0
        %7761 = vmatpush1.msra.mxu0 0.0
        %7762 = vmatprep.subr.mxu0 0.0
        %7763 = vmatpush1.msra.mxu0 0.0
        %7764 = vmatprep.subr.mxu0 0.0
        %7765 = vmatpush1.msra.mxu0 0.0
        %7766 = vmatprep.subr.mxu0 0.0
        %7767 = vmatpush1.msra.mxu0 0.0
        %7768 = vmatprep.subr.mxu0 0.0
        %7769 = vmatpush1.msra.mxu0 0.0
        %7770 = vmatprep.subr.mxu0 0.0
        %7771 = vmatpush1.msra.mxu0 0.0
        %7772 = vmatprep.subr.mxu0 0.0
        %7773 = vmatpush1.msra.mxu0 0.0
        %7774 = vmatprep.subr.mxu0 0.0
        %7775 = vmatpush1.msra.mxu0 0.0
        %7776 = vmatprep.subr.mxu0 0.0
        %7777 = vmatpush1.msra.mxu0 0.0
        %7778 = vmatprep.subr.mxu0 0.0
        %7779 = vmatpush1.msra.mxu0 0.0
        %7780 = vmatprep.subr.mxu0 0.0
        %7781 = vmatpush1.msra.mxu0 0.0
        %7782 = vmatprep.subr.mxu0 0.0
        %7783 = vmatpush1.msra.mxu0 0.0
        %7784 = vmatprep.subr.mxu0 0.0
        %7785 = vmatpush1.msra.mxu0 0.0
        %7786 = vmatprep.subr.mxu0 0.0
        %7787 = vmatpush1.msra.mxu0 0.0
        %7788 = vmatprep.subr.mxu0 0.0
        %7789 = vmatpush1.msra.mxu0 0.0
        %7790 = vmatprep.subr.mxu0 0.0
        %7791 = vmatpush1.msra.mxu0 0.0
        %7792 = vmatprep.subr.mxu0 0.0
        %7793 = vmatpush1.msra.mxu0 0.0
        %7794 = vmatprep.subr.mxu0 0.0
        %7795 = vmatpush1.msra.mxu0 0.0
        %7796 = vmatprep.subr.mxu0 0.0
        %7797 = vmatpush1.msra.mxu0 0.0
        %7798 = vmatprep.subr.mxu0 0.0
        %7799 = vmatpush1.msra.mxu0 0.0
        %7800 = vmatprep.subr.mxu0 0.0
        %7801 = vmatpush1.msra.mxu0 0.0
        %7802 = vmatprep.mubr.f32.mxu0 0.0
        %7803 = vmatmul.mubr.f32.gmra.mrb[0].mxu0 %v7194
        %v7804 = vpop.f32.mrb[0].mxu0
        %v7805 = vadd.f32 %v7172, %v7804
        %v7806 = vpop.f32.mrb[0].mxu0
        %v7807 = vadd.f32 %v7176, %v7806
        %7808 = vmatprep.mubr.f32.mxu0 0.0
        %7809 = vmatmul.mubr.f32.gmra.mrb[0].mxu0 %v7197
        %v7810 = vpop.f32.mrb[0].mxu0
        %v7811 = vadd.f32 %v7172, %v7810
        %v7812 = vpop.f32.mrb[0].mxu0
        %v7813 = vadd.f32 %v7176, %v7812
        %7814 = vdwg.mxu0
        %v7815 = vmax.f32 %v7266, 0.0
        %v7816 = vmax.f32 %v7268, 0.0
        %v7817 = vmax.f32 %v7343, 0.0
        %v7818 = vmax.f32 %v7345, 0.0
        %v7819 = vmax.f32 %v7420, 0.0
        %v7820 = vmax.f32 %v7422, 0.0
        %v7821 = vmax.f32 %v7497, 0.0
        %v7822 = vmax.f32 %v7499, 0.0
        %v7823 = vmax.f32 %v7574, 0.0
        %v7824 = vmax.f32 %v7576, 0.0
        %v7825 = vmax.f32 %v7651, 0.0
        %v7826 = vmax.f32 %v7653, 0.0
        %v7827 = vmax.f32 %v7728, 0.0
        %v7828 = vmax.f32 %v7730, 0.0
        %v7829 = vmax.f32 %v7805, 0.0
        %v7830 = vmax.f32 %v7807, 0.0
        %v7831 = vmax.f32 %v7272, 0.0
        %v7832 = vmax.f32 %v7274, 0.0
        %v7833 = vmax.f32 %v7349, 0.0
        %v7834 = vmax.f32 %v7351, 0.0
        %v7835 = vmax.f32 %v7426, 0.0
        %v7836 = vmax.f32 %v7428, 0.0
        %v7837 = vmax.f32 %v7503, 0.0
        %v7838 = vmax.f32 %v7505, 0.0
        %v7839 = vmax.f32 %v7580, 0.0
        %v7840 = vmax.f32 %v7582, 0.0
        %v7841 = vmax.f32 %v7657, 0.0
        %v7842 = vmax.f32 %v7659, 0.0
        %v7843 = vmax.f32 %v7734, 0.0
        %v7844 = vmax.f32 %v7736, 0.0
        %v7845 = vmax.f32 %v7811, 0.0
        %v7846 = vmax.f32 %v7813, 0.0
        %v7847 = vld [vmem:[%s721] sm:$0xff]
        %v7848 = vld [vmem:[%s721 + $0x8] sm:$0xff]
        %v7849 = vld [vmem:[%s721 + $0x10] sm:$0xff]
        %v7850 = vld [vmem:[%s721 + $0x18] sm:$0xff]
        %v7851 = vld [vmem:[%s721 + $0x20] sm:$0xff]
        %v7852 = vld [vmem:[%s721 + $0x28] sm:$0xff]
        %v7853 = vld [vmem:[%s721 + $0x30] sm:$0xff]
        %v7854 = vld [vmem:[%s721 + $0x38] sm:$0xff]
        %v7855 = vld [vmem:[%s721 + $0x40] sm:$0xff]
        %v7856 = vld [vmem:[%s721 + $0x48] sm:$0xff]
        %v7857 = vld [vmem:[%s721 + $0x50] sm:$0xff]
        %v7858 = vld [vmem:[%s721 + $0x58] sm:$0xff]
        %v7859 = vld [vmem:[%s721 + $0x60] sm:$0xff]
        %v7860 = vld [vmem:[%s721 + $0x68] sm:$0xff]
        %v7861 = vld [vmem:[%s721 + $0x70] sm:$0xff]
        %v7862 = vld [vmem:[%s721 + $0x78] sm:$0xff]
        %v7863 = vld [vmem:[%s721 + $0x80] sm:$0xff]
        %v7864 = vld [vmem:[%s721 + $0x88] sm:$0xff]
        %v7865 = vld [vmem:[%s721 + $0x90] sm:$0xff]
        %v7866 = vld [vmem:[%s721 + $0x98] sm:$0xff]
        %v7867 = vld [vmem:[%s721 + $0xa0] sm:$0xff]
        %v7868 = vld [vmem:[%s721 + $0xa8] sm:$0xff]
        %v7869 = vld [vmem:[%s721 + $0xb0] sm:$0xff]
        %v7870 = vld [vmem:[%s721 + $0xb8] sm:$0xff]
        %v7871 = vld [vmem:[%s721 + $0xc0] sm:$0xff]
        %v7872 = vld [vmem:[%s721 + $0xc8] sm:$0xff]
        %v7873 = vld [vmem:[%s721 + $0xd0] sm:$0xff]
        %v7874 = vld [vmem:[%s721 + $0xd8] sm:$0xff]
        %v7875 = vld [vmem:[%s721 + $0xe0] sm:$0xff]
        %v7876 = vld [vmem:[%s721 + $0xe8] sm:$0xff]
        %v7877 = vld [vmem:[%s721 + $0xf0] sm:$0xff]
        %v7878 = vld [vmem:[%s721 + $0xf8] sm:$0xff]
        %v7879 = vld [vmem:[%s721 + $0x100] sm:$0xff]
        %v7880 = vld [vmem:[%s721 + $0x108] sm:$0xff]
        %v7881 = vld [vmem:[%s721 + $0x110] sm:$0xff]
        %v7882 = vld [vmem:[%s721 + $0x118] sm:$0xff]
        %v7883 = vld [vmem:[%s721 + $0x120] sm:$0xff]
        %v7884 = vld [vmem:[%s721 + $0x128] sm:$0xff]
        %v7885 = vld [vmem:[%s721 + $0x130] sm:$0xff]
        %v7886 = vld [vmem:[%s721 + $0x138] sm:$0xff]
        %v7887 = vld [vmem:[%s721 + $0x140] sm:$0xff]
        %v7888 = vld [vmem:[%s721 + $0x148] sm:$0xff]
        %v7889 = vld [vmem:[%s721 + $0x150] sm:$0xff]
        %v7890 = vld [vmem:[%s721 + $0x158] sm:$0xff]
        %v7891 = vld [vmem:[%s721 + $0x160] sm:$0xff]
        %v7892 = vld [vmem:[%s721 + $0x168] sm:$0xff]
        %v7893 = vld [vmem:[%s721 + $0x170] sm:$0xff]
        %v7894 = vld [vmem:[%s721 + $0x178] sm:$0xff]
        %v7895 = vld [vmem:[%s721 + $0x180] sm:$0xff]
        %v7896 = vld [vmem:[%s721 + $0x188] sm:$0xff]
        %v7897 = vld [vmem:[%s721 + $0x190] sm:$0xff]
        %v7898 = vld [vmem:[%s721 + $0x198] sm:$0xff]
        %v7899 = vld [vmem:[%s721 + $0x1a0] sm:$0xff]
        %v7900 = vld [vmem:[%s721 + $0x1a8] sm:$0xff]
        %v7901 = vld [vmem:[%s721 + $0x1b0] sm:$0xff]
        %v7902 = vld [vmem:[%s721 + $0x1b8] sm:$0xff]
        %v7903 = vld [vmem:[%s721 + $0x1c0] sm:$0xff]
        %v7904 = vld [vmem:[%s721 + $0x1c8] sm:$0xff]
        %v7905 = vld [vmem:[%s721 + $0x1d0] sm:$0xff]
        %v7906 = vld [vmem:[%s721 + $0x1d8] sm:$0xff]
        %v7907 = vld [vmem:[%s721 + $0x1e0] sm:$0xff]
        %v7908 = vld [vmem:[%s721 + $0x1e8] sm:$0xff]
        %v7909 = vld [vmem:[%s721 + $0x1f0] sm:$0xff]
        %v7910 = vld [vmem:[%s721 + $0x1f8] sm:$0xff]
        %v7911 = vld [vmem:[%s721 + $0x200] sm:$0xff]
        %v7912 = vld [vmem:[%s721 + $0x208] sm:$0xff]
        %v7913 = vld [vmem:[%s721 + $0x210] sm:$0xff]
        %v7914 = vld [vmem:[%s721 + $0x218] sm:$0xff]
        %v7915 = vld [vmem:[%s721 + $0x220] sm:$0xff]
        %v7916 = vld [vmem:[%s721 + $0x228] sm:$0xff]
        %v7917 = vld [vmem:[%s721 + $0x230] sm:$0xff]
        %v7918 = vld [vmem:[%s721 + $0x238] sm:$0xff]
        %v7919 = vld [vmem:[%s721 + $0x240] sm:$0xff]
        %v7920 = vld [vmem:[%s721 + $0x248] sm:$0xff]
        %v7921 = vld [vmem:[%s721 + $0x250] sm:$0xff]
        %v7922 = vld [vmem:[%s721 + $0x258] sm:$0xff]
        %v7923 = vld [vmem:[%s721 + $0x260] sm:$0xff]
        %v7924 = vld [vmem:[%s721 + $0x268] sm:$0xff]
        %v7925 = vld [vmem:[%s721 + $0x270] sm:$0xff]
        %v7926 = vld [vmem:[%s721 + $0x278] sm:$0xff]
        %v7927 = vld [vmem:[%s721 + $0x280] sm:$0xff]
        %v7928 = vld [vmem:[%s721 + $0x288] sm:$0xff]
        %v7929 = vld [vmem:[%s721 + $0x290] sm:$0xff]
        %v7930 = vld [vmem:[%s721 + $0x298] sm:$0xff]
        %v7931 = vld [vmem:[%s721 + $0x2a0] sm:$0xff]
        %v7932 = vld [vmem:[%s721 + $0x2a8] sm:$0xff]
        %v7933 = vld [vmem:[%s721 + $0x2b0] sm:$0xff]
        %v7934 = vld [vmem:[%s721 + $0x2b8] sm:$0xff]
        %v7935 = vld [vmem:[%s721 + $0x2c0] sm:$0xff]
        %v7936 = vld [vmem:[%s721 + $0x2c8] sm:$0xff]
        %v7937 = vld [vmem:[%s721 + $0x2d0] sm:$0xff]
        %v7938 = vld [vmem:[%s721 + $0x2d8] sm:$0xff]
        %v7939 = vld [vmem:[%s721 + $0x2e0] sm:$0xff]
        %v7940 = vld [vmem:[%s721 + $0x2e8] sm:$0xff]
        %v7941 = vld [vmem:[%s721 + $0x2f0] sm:$0xff]
        %v7942 = vld [vmem:[%s721 + $0x2f8] sm:$0xff]
        %v7943 = vld [vmem:[%s721 + $0x300] sm:$0xff]
        %v7944 = vld [vmem:[%s721 + $0x308] sm:$0xff]
        %v7945 = vld [vmem:[%s721 + $0x310] sm:$0xff]
        %v7946 = vld [vmem:[%s721 + $0x318] sm:$0xff]
        %v7947 = vld [vmem:[%s721 + $0x320] sm:$0xff]
        %v7948 = vld [vmem:[%s721 + $0x328] sm:$0xff]
        %v7949 = vld [vmem:[%s721 + $0x330] sm:$0xff]
        %v7950 = vld [vmem:[%s721 + $0x338] sm:$0xff]
        %v7951 = vld [vmem:[%s721 + $0x340] sm:$0xff]
        %v7952 = vld [vmem:[%s721 + $0x348] sm:$0xff]
        %v7953 = vld [vmem:[%s721 + $0x350] sm:$0xff]
        %v7954 = vld [vmem:[%s721 + $0x358] sm:$0xff]
        %v7955 = vld [vmem:[%s721 + $0x360] sm:$0xff]
        %v7956 = vld [vmem:[%s721 + $0x368] sm:$0xff]
        %v7957 = vld [vmem:[%s721 + $0x370] sm:$0xff]
        %v7958 = vld [vmem:[%s721 + $0x378] sm:$0xff]
        %v7959 = vld [vmem:[%s721 + $0x380] sm:$0xff]
        %v7960 = vld [vmem:[%s721 + $0x388] sm:$0xff]
        %v7961 = vld [vmem:[%s721 + $0x390] sm:$0xff]
        %v7962 = vld [vmem:[%s721 + $0x398] sm:$0xff]
        %v7963 = vld [vmem:[%s721 + $0x3a0] sm:$0xff]
        %v7964 = vld [vmem:[%s721 + $0x3a8] sm:$0xff]
        %v7965 = vld [vmem:[%s721 + $0x3b0] sm:$0xff]
        %v7966 = vld [vmem:[%s721 + $0x3b8] sm:$0xff]
        %v7967 = vld [vmem:[%s721 + $0x3c0] sm:$0xff]
        %v7968 = vld [vmem:[%s721 + $0x3c8] sm:$0xff]
        %v7969 = vld [vmem:[%s721 + $0x3d0] sm:$0xff]
        %v7970 = vld [vmem:[%s721 + $0x3d8] sm:$0xff]
        %v7971 = vld [vmem:[%s721 + $0x3e0] sm:$0xff]
        %v7972 = vld [vmem:[%s721 + $0x3e8] sm:$0xff]
        %v7973 = vld [vmem:[%s721 + $0x3f0] sm:$0xff]
        %v7974 = vld [vmem:[%s721 + $0x3f8] sm:$0xff]
        %v7975 = vld [vmem:[%s721 + $0x400] sm:$0xff]
        %v7976 = vld [vmem:[%s721 + $0x408] sm:$0xff]
        %v7977 = vld [vmem:[%s721 + $0x410] sm:$0xff]
        %v7978 = vld [vmem:[%s721 + $0x418] sm:$0xff]
        %v7979 = vld [vmem:[%s721 + $0x420] sm:$0xff]
        %v7980 = vld [vmem:[%s721 + $0x428] sm:$0xff]
        %v7981 = vld [vmem:[%s721 + $0x430] sm:$0xff]
        %v7982 = vld [vmem:[%s721 + $0x438] sm:$0xff]
        %v7983 = vld [vmem:[%s721 + $0x440] sm:$0xff]
        %v7984 = vld [vmem:[%s721 + $0x448] sm:$0xff]
        %v7985 = vld [vmem:[%s721 + $0x450] sm:$0xff]
        %v7986 = vld [vmem:[%s721 + $0x458] sm:$0xff]
        %v7987 = vld [vmem:[%s721 + $0x460] sm:$0xff]
        %v7988 = vld [vmem:[%s721 + $0x468] sm:$0xff]
        %v7989 = vld [vmem:[%s721 + $0x470] sm:$0xff]
        %v7990 = vld [vmem:[%s721 + $0x478] sm:$0xff]
        %v7991 = vld [vmem:[%s721 + $0x480] sm:$0xff]
        %v7992 = vld [vmem:[%s721 + $0x488] sm:$0xff]
        %v7993 = vld [vmem:[%s721 + $0x490] sm:$0xff]
        %v7994 = vld [vmem:[%s721 + $0x498] sm:$0xff]
        %v7995 = vld [vmem:[%s721 + $0x4a0] sm:$0xff]
        %v7996 = vld [vmem:[%s721 + $0x4a8] sm:$0xff]
        %v7997 = vld [vmem:[%s721 + $0x4b0] sm:$0xff]
        %v7998 = vld [vmem:[%s721 + $0x4b8] sm:$0xff]
        %v7999 = vld [vmem:[%s721 + $0x4c0] sm:$0xff]
        %v8000 = vld [vmem:[%s721 + $0x4c8] sm:$0xff]
        %v8001 = vld [vmem:[%s721 + $0x4d0] sm:$0xff]
        %v8002 = vld [vmem:[%s721 + $0x4d8] sm:$0xff]
        %v8003 = vld [vmem:[%s721 + $0x4e0] sm:$0xff]
        %v8004 = vld [vmem:[%s721 + $0x4e8] sm:$0xff]
        %v8005 = vld [vmem:[%s721 + $0x4f0] sm:$0xff]
        %v8006 = vld [vmem:[%s721 + $0x4f8] sm:$0xff]
        %v8007 = vld [vmem:[%s721 + $0x500] sm:$0xff]
        %v8008 = vld [vmem:[%s721 + $0x508] sm:$0xff]
        %v8009 = vld [vmem:[%s721 + $0x510] sm:$0xff]
        %v8010 = vld [vmem:[%s721 + $0x518] sm:$0xff]
        %v8011 = vld [vmem:[%s721 + $0x520] sm:$0xff]
        %v8012 = vld [vmem:[%s721 + $0x528] sm:$0xff]
        %v8013 = vld [vmem:[%s721 + $0x530] sm:$0xff]
        %v8014 = vld [vmem:[%s721 + $0x538] sm:$0xff]
        %v8015 = vld [vmem:[%s721 + $0x540] sm:$0xff]
        %v8016 = vld [vmem:[%s721 + $0x548] sm:$0xff]
        %v8017 = vld [vmem:[%s721 + $0x550] sm:$0xff]
        %v8018 = vld [vmem:[%s721 + $0x558] sm:$0xff]
        %v8019 = vld [vmem:[%s721 + $0x560] sm:$0xff]
        %v8020 = vld [vmem:[%s721 + $0x568] sm:$0xff]
        %v8021 = vld [vmem:[%s721 + $0x570] sm:$0xff]
        %v8022 = vld [vmem:[%s721 + $0x578] sm:$0xff]
        %v8023 = vld [vmem:[%s721 + $0x580] sm:$0xff]
        %v8024 = vld [vmem:[%s721 + $0x588] sm:$0xff]
        %v8025 = vld [vmem:[%s721 + $0x590] sm:$0xff]
        %v8026 = vld [vmem:[%s721 + $0x598] sm:$0xff]
        %v8027 = vld [vmem:[%s721 + $0x5a0] sm:$0xff]
        %v8028 = vld [vmem:[%s721 + $0x5a8] sm:$0xff]
        %v8029 = vld [vmem:[%s721 + $0x5b0] sm:$0xff]
        %v8030 = vld [vmem:[%s721 + $0x5b8] sm:$0xff]
        %v8031 = vld [vmem:[%s721 + $0x5c0] sm:$0xff]
        %v8032 = vld [vmem:[%s721 + $0x5c8] sm:$0xff]
        %v8033 = vld [vmem:[%s721 + $0x5d0] sm:$0xff]
        %v8034 = vld [vmem:[%s721 + $0x5d8] sm:$0xff]
        %v8035 = vld [vmem:[%s721 + $0x5e0] sm:$0xff]
        %v8036 = vld [vmem:[%s721 + $0x5e8] sm:$0xff]
        %v8037 = vld [vmem:[%s721 + $0x5f0] sm:$0xff]
        %v8038 = vld [vmem:[%s721 + $0x5f8] sm:$0xff]
        %v8039 = vld [vmem:[%s721 + $0x600] sm:$0xff]
        %v8040 = vld [vmem:[%s721 + $0x608] sm:$0xff]
        %v8041 = vld [vmem:[%s721 + $0x610] sm:$0xff]
        %v8042 = vld [vmem:[%s721 + $0x618] sm:$0xff]
        %v8043 = vld [vmem:[%s721 + $0x620] sm:$0xff]
        %v8044 = vld [vmem:[%s721 + $0x628] sm:$0xff]
        %v8045 = vld [vmem:[%s721 + $0x630] sm:$0xff]
        %v8046 = vld [vmem:[%s721 + $0x638] sm:$0xff]
        %v8047 = vld [vmem:[%s721 + $0x640] sm:$0xff]
        %v8048 = vld [vmem:[%s721 + $0x648] sm:$0xff]
        %v8049 = vld [vmem:[%s721 + $0x650] sm:$0xff]
        %v8050 = vld [vmem:[%s721 + $0x658] sm:$0xff]
        %v8051 = vld [vmem:[%s721 + $0x660] sm:$0xff]
        %v8052 = vld [vmem:[%s721 + $0x668] sm:$0xff]
        %v8053 = vld [vmem:[%s721 + $0x670] sm:$0xff]
        %v8054 = vld [vmem:[%s721 + $0x678] sm:$0xff]
        %v8055 = vld [vmem:[%s721 + $0x680] sm:$0xff]
        %v8056 = vld [vmem:[%s721 + $0x688] sm:$0xff]
        %v8057 = vld [vmem:[%s721 + $0x690] sm:$0xff]
        %v8058 = vld [vmem:[%s721 + $0x698] sm:$0xff]
        %v8059 = vld [vmem:[%s721 + $0x6a0] sm:$0xff]
        %v8060 = vld [vmem:[%s721 + $0x6a8] sm:$0xff]
        %v8061 = vld [vmem:[%s721 + $0x6b0] sm:$0xff]
        %v8062 = vld [vmem:[%s721 + $0x6b8] sm:$0xff]
        %v8063 = vld [vmem:[%s721 + $0x6c0] sm:$0xff]
        %v8064 = vld [vmem:[%s721 + $0x6c8] sm:$0xff]
        %v8065 = vld [vmem:[%s721 + $0x6d0] sm:$0xff]
        %v8066 = vld [vmem:[%s721 + $0x6d8] sm:$0xff]
        %v8067 = vld [vmem:[%s721 + $0x6e0] sm:$0xff]
        %v8068 = vld [vmem:[%s721 + $0x6e8] sm:$0xff]
        %v8069 = vld [vmem:[%s721 + $0x6f0] sm:$0xff]
        %v8070 = vld [vmem:[%s721 + $0x6f8] sm:$0xff]
        %v8071 = vld [vmem:[%s721 + $0x700] sm:$0xff]
        %v8072 = vld [vmem:[%s721 + $0x708] sm:$0xff]
        %v8073 = vld [vmem:[%s721 + $0x710] sm:$0xff]
        %v8074 = vld [vmem:[%s721 + $0x718] sm:$0xff]
        %v8075 = vld [vmem:[%s721 + $0x720] sm:$0xff]
        %v8076 = vld [vmem:[%s721 + $0x728] sm:$0xff]
        %v8077 = vld [vmem:[%s721 + $0x730] sm:$0xff]
        %v8078 = vld [vmem:[%s721 + $0x738] sm:$0xff]
        %v8079 = vld [vmem:[%s721 + $0x740] sm:$0xff]
        %v8080 = vld [vmem:[%s721 + $0x748] sm:$0xff]
        %v8081 = vld [vmem:[%s721 + $0x750] sm:$0xff]
        %v8082 = vld [vmem:[%s721 + $0x758] sm:$0xff]
        %v8083 = vld [vmem:[%s721 + $0x760] sm:$0xff]
        %v8084 = vld [vmem:[%s721 + $0x768] sm:$0xff]
        %v8085 = vld [vmem:[%s721 + $0x770] sm:$0xff]
        %v8086 = vld [vmem:[%s721 + $0x778] sm:$0xff]
        %v8087 = vld [vmem:[%s721 + $0x780] sm:$0xff]
        %v8088 = vld [vmem:[%s721 + $0x788] sm:$0xff]
        %v8089 = vld [vmem:[%s721 + $0x790] sm:$0xff]
        %v8090 = vld [vmem:[%s721 + $0x798] sm:$0xff]
        %v8091 = vld [vmem:[%s721 + $0x7a0] sm:$0xff]
        %v8092 = vld [vmem:[%s721 + $0x7a8] sm:$0xff]
        %v8093 = vld [vmem:[%s721 + $0x7b0] sm:$0xff]
        %v8094 = vld [vmem:[%s721 + $0x7b8] sm:$0xff]
        %v8095 = vld [vmem:[%s721 + $0x7c0] sm:$0xff]
        %v8096 = vld [vmem:[%s721 + $0x7c8] sm:$0xff]
        %v8097 = vld [vmem:[%s721 + $0x7d0] sm:$0xff]
        %v8098 = vld [vmem:[%s721 + $0x7d8] sm:$0xff]
        %v8099 = vld [vmem:[%s721 + $0x7e0] sm:$0xff]
        %v8100 = vld [vmem:[%s721 + $0x7e8] sm:$0xff]
        %v8101 = vld [vmem:[%s721 + $0x7f0] sm:$0xff]
        %v8102 = vld [vmem:[%s721 + $0x7f8] sm:$0xff]
        %v8103 = vld [vmem:[%s724] sm:$0x1]
        %v8105 = vlaneseq
        %v8106 = vshrl.u32 %v8105, 7
        %v8107 = vsub.s32 0, %v8106
        %v8108 = vrot.slane %v8103, %v8107
        %8110 = vmatprep.subr.mxu0 0.0
        %8111 = vmatpush1.msra.mxu0 %v7847
        %8112 = vmatprep.subr.mxu0 0.0
        %8113 = vmatpush1.msra.mxu0 %v7848
        %8114 = vmatprep.subr.mxu0 0.0
        %8115 = vmatpush1.msra.mxu0 %v7849
        %8116 = vmatprep.subr.mxu0 0.0
        %8117 = vmatpush1.msra.mxu0 %v7850
        %8118 = vmatprep.subr.mxu0 0.0
        %8119 = vmatpush1.msra.mxu0 %v7851
        %8120 = vmatprep.subr.mxu0 0.0
        %8121 = vmatpush1.msra.mxu0 %v7852
        %8122 = vmatprep.subr.mxu0 0.0
        %8123 = vmatpush1.msra.mxu0 %v7853
        %8124 = vmatprep.subr.mxu0 0.0
        %8125 = vmatpush1.msra.mxu0 %v7854
        %8126 = vmatprep.subr.mxu0 0.0
        %8127 = vmatpush1.msra.mxu0 %v7855
        %8128 = vmatprep.subr.mxu0 0.0
        %8129 = vmatpush1.msra.mxu0 %v7856
        %8130 = vmatprep.subr.mxu0 0.0
        %8131 = vmatpush1.msra.mxu0 %v7857
        %8132 = vmatprep.subr.mxu0 0.0
        %8133 = vmatpush1.msra.mxu0 %v7858
        %8134 = vmatprep.subr.mxu0 0.0
        %8135 = vmatpush1.msra.mxu0 %v7859
        %8136 = vmatprep.subr.mxu0 0.0
        %8137 = vmatpush1.msra.mxu0 %v7860
        %8138 = vmatprep.subr.mxu0 0.0
        %8139 = vmatpush1.msra.mxu0 %v7861
        %8140 = vmatprep.subr.mxu0 0.0
        %8141 = vmatpush1.msra.mxu0 %v7862
        %8142 = vmatprep.subr.mxu0 0.0
        %8143 = vmatpush1.msra.mxu0 %v7863
        %8144 = vmatprep.subr.mxu0 0.0
        %8145 = vmatpush1.msra.mxu0 %v7864
        %8146 = vmatprep.subr.mxu0 0.0
        %8147 = vmatpush1.msra.mxu0 %v7865
        %8148 = vmatprep.subr.mxu0 0.0
        %8149 = vmatpush1.msra.mxu0 %v7866
        %8150 = vmatprep.subr.mxu0 0.0
        %8151 = vmatpush1.msra.mxu0 %v7867
        %8152 = vmatprep.subr.mxu0 0.0
        %8153 = vmatpush1.msra.mxu0 %v7868
        %8154 = vmatprep.subr.mxu0 0.0
        %8155 = vmatpush1.msra.mxu0 %v7869
        %8156 = vmatprep.subr.mxu0 0.0
        %8157 = vmatpush1.msra.mxu0 %v7870
        %8158 = vmatprep.subr.mxu0 0.0
        %8159 = vmatpush1.msra.mxu0 %v7871
        %8160 = vmatprep.subr.mxu0 0.0
        %8161 = vmatpush1.msra.mxu0 %v7872
        %8162 = vmatprep.subr.mxu0 0.0
        %8163 = vmatpush1.msra.mxu0 %v7873
        %8164 = vmatprep.subr.mxu0 0.0
        %8165 = vmatpush1.msra.mxu0 %v7874
        %8166 = vmatprep.subr.mxu0 0.0
        %8167 = vmatpush1.msra.mxu0 %v7875
        %8168 = vmatprep.subr.mxu0 0.0
        %8169 = vmatpush1.msra.mxu0 %v7876
        %8170 = vmatprep.subr.mxu0 0.0
        %8171 = vmatpush1.msra.mxu0 %v7877
        %8172 = vmatprep.subr.mxu0 0.0
        %8173 = vmatpush1.msra.mxu0 %v7878
        %8174 = vmatprep.mubr.f32.mxu0 %v7816
        %8175 = vmatmul.mubr.f32.gmra.mrb[0].mxu0 %v7815
        %v8176 = vpop.f32.mrb[0].mxu0
        %v8177 = vadd.f32 %v8108, %v8176
        %v8178 = vpop.f32.mrb[0].mxu0
        %8179 = vmatprep.mubr.f32.mxu0 %v7832
        %8180 = vmatmul.mubr.f32.gmra.mrb[0].mxu0 %v7831
        %v8181 = vpop.f32.mrb[0].mxu0
        %v8182 = vadd.f32 %v8108, %v8181
        %v8183 = vpop.f32.mrb[0].mxu0
        %8184 = vdwg.mxu0
        %8185 = vmatprep.subr.mxu0 0.0
        %8186 = vmatpush1.msra.mxu0 %v7879
        %8187 = vmatprep.subr.mxu0 0.0
        %8188 = vmatpush1.msra.mxu0 %v7880
        %8189 = vmatprep.subr.mxu0 0.0
        %8190 = vmatpush1.msra.mxu0 %v7881
        %8191 = vmatprep.subr.mxu0 0.0
        %8192 = vmatpush1.msra.mxu0 %v7882
        %8193 = vmatprep.subr.mxu0 0.0
        %8194 = vmatpush1.msra.mxu0 %v7883
        %8195 = vmatprep.subr.mxu0 0.0
        %8196 = vmatpush1.msra.mxu0 %v7884
        %8197 = vmatprep.subr.mxu0 0.0
        %8198 = vmatpush1.msra.mxu0 %v7885
        %8199 = vmatprep.subr.mxu0 0.0
        %8200 = vmatpush1.msra.mxu0 %v7886
        %8201 = vmatprep.subr.mxu0 0.0
        %8202 = vmatpush1.msra.mxu0 %v7887
        %8203 = vmatprep.subr.mxu0 0.0
        %8204 = vmatpush1.msra.mxu0 %v7888
        %8205 = vmatprep.subr.mxu0 0.0
        %8206 = vmatpush1.msra.mxu0 %v7889
        %8207 = vmatprep.subr.mxu0 0.0
        %8208 = vmatpush1.msra.mxu0 %v7890
        %8209 = vmatprep.subr.mxu0 0.0
        %8210 = vmatpush1.msra.mxu0 %v7891
        %8211 = vmatprep.subr.mxu0 0.0
        %8212 = vmatpush1.msra.mxu0 %v7892
        %8213 = vmatprep.subr.mxu0 0.0
        %8214 = vmatpush1.msra.mxu0 %v7893
        %8215 = vmatprep.subr.mxu0 0.0
        %8216 = vmatpush1.msra.mxu0 %v7894
        %8217 = vmatprep.subr.mxu0 0.0
        %8218 = vmatpush1.msra.mxu0 %v7895
        %8219 = vmatprep.subr.mxu0 0.0
        %8220 = vmatpush1.msra.mxu0 %v7896
        %8221 = vmatprep.subr.mxu0 0.0
        %8222 = vmatpush1.msra.mxu0 %v7897
        %8223 = vmatprep.subr.mxu0 0.0
        %8224 = vmatpush1.msra.mxu0 %v7898
        %8225 = vmatprep.subr.mxu0 0.0
        %8226 = vmatpush1.msra.mxu0 %v7899
        %8227 = vmatprep.subr.mxu0 0.0
        %8228 = vmatpush1.msra.mxu0 %v7900
        %8229 = vmatprep.subr.mxu0 0.0
        %8230 = vmatpush1.msra.mxu0 %v7901
        %8231 = vmatprep.subr.mxu0 0.0
        %8232 = vmatpush1.msra.mxu0 %v7902
        %8233 = vmatprep.subr.mxu0 0.0
        %8234 = vmatpush1.msra.mxu0 %v7903
        %8235 = vmatprep.subr.mxu0 0.0
        %8236 = vmatpush1.msra.mxu0 %v7904
        %8237 = vmatprep.subr.mxu0 0.0
        %8238 = vmatpush1.msra.mxu0 %v7905
        %8239 = vmatprep.subr.mxu0 0.0
        %8240 = vmatpush1.msra.mxu0 %v7906
        %8241 = vmatprep.subr.mxu0 0.0
        %8242 = vmatpush1.msra.mxu0 %v7907
        %8243 = vmatprep.subr.mxu0 0.0
        %8244 = vmatpush1.msra.mxu0 %v7908
        %8245 = vmatprep.subr.mxu0 0.0
        %8246 = vmatpush1.msra.mxu0 %v7909
        %8247 = vmatprep.subr.mxu0 0.0
        %8248 = vmatpush1.msra.mxu0 %v7910
        %8249 = vmatprep.mubr.f32.mxu0 %v7818
        %8250 = vmatmul.mubr.f32.gmra.mrb[0].mxu0 %v7817
        %v8251 = vpop.f32.mrb[0].mxu0
        %v8252 = vadd.f32 %v8177, %v8251
        %v8253 = vpop.f32.mrb[0].mxu0
        %8254 = vmatprep.mubr.f32.mxu0 %v7834
        %8255 = vmatmul.mubr.f32.gmra.mrb[0].mxu0 %v7833
        %v8256 = vpop.f32.mrb[0].mxu0
        %v8257 = vadd.f32 %v8182, %v8256
        %v8258 = vpop.f32.mrb[0].mxu0
        %8259 = vdwg.mxu0
        %8260 = vmatprep.subr.mxu0 0.0
        %8261 = vmatpush1.msra.mxu0 %v7911
        %8262 = vmatprep.subr.mxu0 0.0
        %8263 = vmatpush1.msra.mxu0 %v7912
        %8264 = vmatprep.subr.mxu0 0.0
        %8265 = vmatpush1.msra.mxu0 %v7913
        %8266 = vmatprep.subr.mxu0 0.0
        %8267 = vmatpush1.msra.mxu0 %v7914
        %8268 = vmatprep.subr.mxu0 0.0
        %8269 = vmatpush1.msra.mxu0 %v7915
        %8270 = vmatprep.subr.mxu0 0.0
        %8271 = vmatpush1.msra.mxu0 %v7916
        %8272 = vmatprep.subr.mxu0 0.0
        %8273 = vmatpush1.msra.mxu0 %v7917
        %8274 = vmatprep.subr.mxu0 0.0
        %8275 = vmatpush1.msra.mxu0 %v7918
        %8276 = vmatprep.subr.mxu0 0.0
        %8277 = vmatpush1.msra.mxu0 %v7919
        %8278 = vmatprep.subr.mxu0 0.0
        %8279 = vmatpush1.msra.mxu0 %v7920
        %8280 = vmatprep.subr.mxu0 0.0
        %8281 = vmatpush1.msra.mxu0 %v7921
        %8282 = vmatprep.subr.mxu0 0.0
        %8283 = vmatpush1.msra.mxu0 %v7922
        %8284 = vmatprep.subr.mxu0 0.0
        %8285 = vmatpush1.msra.mxu0 %v7923
        %8286 = vmatprep.subr.mxu0 0.0
        %8287 = vmatpush1.msra.mxu0 %v7924
        %8288 = vmatprep.subr.mxu0 0.0
        %8289 = vmatpush1.msra.mxu0 %v7925
        %8290 = vmatprep.subr.mxu0 0.0
        %8291 = vmatpush1.msra.mxu0 %v7926
        %8292 = vmatprep.subr.mxu0 0.0
        %8293 = vmatpush1.msra.mxu0 %v7927
        %8294 = vmatprep.subr.mxu0 0.0
        %8295 = vmatpush1.msra.mxu0 %v7928
        %8296 = vmatprep.subr.mxu0 0.0
        %8297 = vmatpush1.msra.mxu0 %v7929
        %8298 = vmatprep.subr.mxu0 0.0
        %8299 = vmatpush1.msra.mxu0 %v7930
        %8300 = vmatprep.subr.mxu0 0.0
        %8301 = vmatpush1.msra.mxu0 %v7931
        %8302 = vmatprep.subr.mxu0 0.0
        %8303 = vmatpush1.msra.mxu0 %v7932
        %8304 = vmatprep.subr.mxu0 0.0
        %8305 = vmatpush1.msra.mxu0 %v7933
        %8306 = vmatprep.subr.mxu0 0.0
        %8307 = vmatpush1.msra.mxu0 %v7934
        %8308 = vmatprep.subr.mxu0 0.0
        %8309 = vmatpush1.msra.mxu0 %v7935
        %8310 = vmatprep.subr.mxu0 0.0
        %8311 = vmatpush1.msra.mxu0 %v7936
        %8312 = vmatprep.subr.mxu0 0.0
        %8313 = vmatpush1.msra.mxu0 %v7937
        %8314 = vmatprep.subr.mxu0 0.0
        %8315 = vmatpush1.msra.mxu0 %v7938
        %8316 = vmatprep.subr.mxu0 0.0
        %8317 = vmatpush1.msra.mxu0 %v7939
        %8318 = vmatprep.subr.mxu0 0.0
        %8319 = vmatpush1.msra.mxu0 %v7940
        %8320 = vmatprep.subr.mxu0 0.0
        %8321 = vmatpush1.msra.mxu0 %v7941
        %8322 = vmatprep.subr.mxu0 0.0
        %8323 = vmatpush1.msra.mxu0 %v7942
        %8324 = vmatprep.mubr.f32.mxu0 %v7820
        %8325 = vmatmul.mubr.f32.gmra.mrb[0].mxu0 %v7819
        %v8326 = vpop.f32.mrb[0].mxu0
        %v8327 = vadd.f32 %v8252, %v8326
        %v8328 = vpop.f32.mrb[0].mxu0
        %8329 = vmatprep.mubr.f32.mxu0 %v7836
        %8330 = vmatmul.mubr.f32.gmra.mrb[0].mxu0 %v7835
        %v8331 = vpop.f32.mrb[0].mxu0
        %v8332 = vadd.f32 %v8257, %v8331
        %v8333 = vpop.f32.mrb[0].mxu0
        %8334 = vdwg.mxu0
        %8335 = vmatprep.subr.mxu0 0.0
        %8336 = vmatpush1.msra.mxu0 %v7943
        %8337 = vmatprep.subr.mxu0 0.0
        %8338 = vmatpush1.msra.mxu0 %v7944
        %8339 = vmatprep.subr.mxu0 0.0
        %8340 = vmatpush1.msra.mxu0 %v7945
        %8341 = vmatprep.subr.mxu0 0.0
        %8342 = vmatpush1.msra.mxu0 %v7946
        %8343 = vmatprep.subr.mxu0 0.0
        %8344 = vmatpush1.msra.mxu0 %v7947
        %8345 = vmatprep.subr.mxu0 0.0
        %8346 = vmatpush1.msra.mxu0 %v7948
        %8347 = vmatprep.subr.mxu0 0.0
        %8348 = vmatpush1.msra.mxu0 %v7949
        %8349 = vmatprep.subr.mxu0 0.0
        %8350 = vmatpush1.msra.mxu0 %v7950
        %8351 = vmatprep.subr.mxu0 0.0
        %8352 = vmatpush1.msra.mxu0 %v7951
        %8353 = vmatprep.subr.mxu0 0.0
        %8354 = vmatpush1.msra.mxu0 %v7952
        %8355 = vmatprep.subr.mxu0 0.0
        %8356 = vmatpush1.msra.mxu0 %v7953
        %8357 = vmatprep.subr.mxu0 0.0
        %8358 = vmatpush1.msra.mxu0 %v7954
        %8359 = vmatprep.subr.mxu0 0.0
        %8360 = vmatpush1.msra.mxu0 %v7955
        %8361 = vmatprep.subr.mxu0 0.0
        %8362 = vmatpush1.msra.mxu0 %v7956
        %8363 = vmatprep.subr.mxu0 0.0
        %8364 = vmatpush1.msra.mxu0 %v7957
        %8365 = vmatprep.subr.mxu0 0.0
        %8366 = vmatpush1.msra.mxu0 %v7958
        %8367 = vmatprep.subr.mxu0 0.0
        %8368 = vmatpush1.msra.mxu0 %v7959
        %8369 = vmatprep.subr.mxu0 0.0
        %8370 = vmatpush1.msra.mxu0 %v7960
        %8371 = vmatprep.subr.mxu0 0.0
        %8372 = vmatpush1.msra.mxu0 %v7961
        %8373 = vmatprep.subr.mxu0 0.0
        %8374 = vmatpush1.msra.mxu0 %v7962
        %8375 = vmatprep.subr.mxu0 0.0
        %8376 = vmatpush1.msra.mxu0 %v7963
        %8377 = vmatprep.subr.mxu0 0.0
        %8378 = vmatpush1.msra.mxu0 %v7964
        %8379 = vmatprep.subr.mxu0 0.0
        %8380 = vmatpush1.msra.mxu0 %v7965
        %8381 = vmatprep.subr.mxu0 0.0
        %8382 = vmatpush1.msra.mxu0 %v7966
        %8383 = vmatprep.subr.mxu0 0.0
        %8384 = vmatpush1.msra.mxu0 %v7967
        %8385 = vmatprep.subr.mxu0 0.0
        %8386 = vmatpush1.msra.mxu0 %v7968
        %8387 = vmatprep.subr.mxu0 0.0
        %8388 = vmatpush1.msra.mxu0 %v7969
        %8389 = vmatprep.subr.mxu0 0.0
        %8390 = vmatpush1.msra.mxu0 %v7970
        %8391 = vmatprep.subr.mxu0 0.0
        %8392 = vmatpush1.msra.mxu0 %v7971
        %8393 = vmatprep.subr.mxu0 0.0
        %8394 = vmatpush1.msra.mxu0 %v7972
        %8395 = vmatprep.subr.mxu0 0.0
        %8396 = vmatpush1.msra.mxu0 %v7973
        %8397 = vmatprep.subr.mxu0 0.0
        %8398 = vmatpush1.msra.mxu0 %v7974
        %8399 = vmatprep.mubr.f32.mxu0 %v7822
        %8400 = vmatmul.mubr.f32.gmra.mrb[0].mxu0 %v7821
        %v8401 = vpop.f32.mrb[0].mxu0
        %v8402 = vadd.f32 %v8327, %v8401
        %v8403 = vpop.f32.mrb[0].mxu0
        %8404 = vmatprep.mubr.f32.mxu0 %v7838
        %8405 = vmatmul.mubr.f32.gmra.mrb[0].mxu0 %v7837
        %v8406 = vpop.f32.mrb[0].mxu0
        %v8407 = vadd.f32 %v8332, %v8406
        %v8408 = vpop.f32.mrb[0].mxu0
        %8409 = vdwg.mxu0
        %8410 = vmatprep.subr.mxu0 0.0
        %8411 = vmatpush1.msra.mxu0 %v7975
        %8412 = vmatprep.subr.mxu0 0.0
        %8413 = vmatpush1.msra.mxu0 %v7976
        %8414 = vmatprep.subr.mxu0 0.0
        %8415 = vmatpush1.msra.mxu0 %v7977
        %8416 = vmatprep.subr.mxu0 0.0
        %8417 = vmatpush1.msra.mxu0 %v7978
        %8418 = vmatprep.subr.mxu0 0.0
        %8419 = vmatpush1.msra.mxu0 %v7979
        %8420 = vmatprep.subr.mxu0 0.0
        %8421 = vmatpush1.msra.mxu0 %v7980
        %8422 = vmatprep.subr.mxu0 0.0
        %8423 = vmatpush1.msra.mxu0 %v7981
        %8424 = vmatprep.subr.mxu0 0.0
        %8425 = vmatpush1.msra.mxu0 %v7982
        %8426 = vmatprep.subr.mxu0 0.0
        %8427 = vmatpush1.msra.mxu0 %v7983
        %8428 = vmatprep.subr.mxu0 0.0
        %8429 = vmatpush1.msra.mxu0 %v7984
        %8430 = vmatprep.subr.mxu0 0.0
        %8431 = vmatpush1.msra.mxu0 %v7985
        %8432 = vmatprep.subr.mxu0 0.0
        %8433 = vmatpush1.msra.mxu0 %v7986
        %8434 = vmatprep.subr.mxu0 0.0
        %8435 = vmatpush1.msra.mxu0 %v7987
        %8436 = vmatprep.subr.mxu0 0.0
        %8437 = vmatpush1.msra.mxu0 %v7988
        %8438 = vmatprep.subr.mxu0 0.0
        %8439 = vmatpush1.msra.mxu0 %v7989
        %8440 = vmatprep.subr.mxu0 0.0
        %8441 = vmatpush1.msra.mxu0 %v7990
        %8442 = vmatprep.subr.mxu0 0.0
        %8443 = vmatpush1.msra.mxu0 %v7991
        %8444 = vmatprep.subr.mxu0 0.0
        %8445 = vmatpush1.msra.mxu0 %v7992
        %8446 = vmatprep.subr.mxu0 0.0
        %8447 = vmatpush1.msra.mxu0 %v7993
        %8448 = vmatprep.subr.mxu0 0.0
        %8449 = vmatpush1.msra.mxu0 %v7994
        %8450 = vmatprep.subr.mxu0 0.0
        %8451 = vmatpush1.msra.mxu0 %v7995
        %8452 = vmatprep.subr.mxu0 0.0
        %8453 = vmatpush1.msra.mxu0 %v7996
        %8454 = vmatprep.subr.mxu0 0.0
        %8455 = vmatpush1.msra.mxu0 %v7997
        %8456 = vmatprep.subr.mxu0 0.0
        %8457 = vmatpush1.msra.mxu0 %v7998
        %8458 = vmatprep.subr.mxu0 0.0
        %8459 = vmatpush1.msra.mxu0 %v7999
        %8460 = vmatprep.subr.mxu0 0.0
        %8461 = vmatpush1.msra.mxu0 %v8000
        %8462 = vmatprep.subr.mxu0 0.0
        %8463 = vmatpush1.msra.mxu0 %v8001
        %8464 = vmatprep.subr.mxu0 0.0
        %8465 = vmatpush1.msra.mxu0 %v8002
        %8466 = vmatprep.subr.mxu0 0.0
        %8467 = vmatpush1.msra.mxu0 %v8003
        %8468 = vmatprep.subr.mxu0 0.0
        %8469 = vmatpush1.msra.mxu0 %v8004
        %8470 = vmatprep.subr.mxu0 0.0
        %8471 = vmatpush1.msra.mxu0 %v8005
        %8472 = vmatprep.subr.mxu0 0.0
        %8473 = vmatpush1.msra.mxu0 %v8006
        %8474 = vmatprep.mubr.f32.mxu0 %v7824
        %8475 = vmatmul.mubr.f32.gmra.mrb[0].mxu0 %v7823
        %v8476 = vpop.f32.mrb[0].mxu0
        %v8477 = vadd.f32 %v8402, %v8476
        %v8478 = vpop.f32.mrb[0].mxu0
        %8479 = vmatprep.mubr.f32.mxu0 %v7840
        %8480 = vmatmul.mubr.f32.gmra.mrb[0].mxu0 %v7839
        %v8481 = vpop.f32.mrb[0].mxu0
        %v8482 = vadd.f32 %v8407, %v8481
        %v8483 = vpop.f32.mrb[0].mxu0
        %8484 = vdwg.mxu0
        %8485 = vmatprep.subr.mxu0 0.0
        %8486 = vmatpush1.msra.mxu0 %v8007
        %8487 = vmatprep.subr.mxu0 0.0
        %8488 = vmatpush1.msra.mxu0 %v8008
        %8489 = vmatprep.subr.mxu0 0.0
        %8490 = vmatpush1.msra.mxu0 %v8009
        %8491 = vmatprep.subr.mxu0 0.0
        %8492 = vmatpush1.msra.mxu0 %v8010
        %8493 = vmatprep.subr.mxu0 0.0
        %8494 = vmatpush1.msra.mxu0 %v8011
        %8495 = vmatprep.subr.mxu0 0.0
        %8496 = vmatpush1.msra.mxu0 %v8012
        %8497 = vmatprep.subr.mxu0 0.0
        %8498 = vmatpush1.msra.mxu0 %v8013
        %8499 = vmatprep.subr.mxu0 0.0
        %8500 = vmatpush1.msra.mxu0 %v8014
        %8501 = vmatprep.subr.mxu0 0.0
        %8502 = vmatpush1.msra.mxu0 %v8015
        %8503 = vmatprep.subr.mxu0 0.0
        %8504 = vmatpush1.msra.mxu0 %v8016
        %8505 = vmatprep.subr.mxu0 0.0
        %8506 = vmatpush1.msra.mxu0 %v8017
        %8507 = vmatprep.subr.mxu0 0.0
        %8508 = vmatpush1.msra.mxu0 %v8018
        %8509 = vmatprep.subr.mxu0 0.0
        %8510 = vmatpush1.msra.mxu0 %v8019
        %8511 = vmatprep.subr.mxu0 0.0
        %8512 = vmatpush1.msra.mxu0 %v8020
        %8513 = vmatprep.subr.mxu0 0.0
        %8514 = vmatpush1.msra.mxu0 %v8021
        %8515 = vmatprep.subr.mxu0 0.0
        %8516 = vmatpush1.msra.mxu0 %v8022
        %8517 = vmatprep.subr.mxu0 0.0
        %8518 = vmatpush1.msra.mxu0 %v8023
        %8519 = vmatprep.subr.mxu0 0.0
        %8520 = vmatpush1.msra.mxu0 %v8024
        %8521 = vmatprep.subr.mxu0 0.0
        %8522 = vmatpush1.msra.mxu0 %v8025
        %8523 = vmatprep.subr.mxu0 0.0
        %8524 = vmatpush1.msra.mxu0 %v8026
        %8525 = vmatprep.subr.mxu0 0.0
        %8526 = vmatpush1.msra.mxu0 %v8027
        %8527 = vmatprep.subr.mxu0 0.0
        %8528 = vmatpush1.msra.mxu0 %v8028
        %8529 = vmatprep.subr.mxu0 0.0
        %8530 = vmatpush1.msra.mxu0 %v8029
        %8531 = vmatprep.subr.mxu0 0.0
        %8532 = vmatpush1.msra.mxu0 %v8030
        %8533 = vmatprep.subr.mxu0 0.0
        %8534 = vmatpush1.msra.mxu0 %v8031
        %8535 = vmatprep.subr.mxu0 0.0
        %8536 = vmatpush1.msra.mxu0 %v8032
        %8537 = vmatprep.subr.mxu0 0.0
        %8538 = vmatpush1.msra.mxu0 %v8033
        %8539 = vmatprep.subr.mxu0 0.0
        %8540 = vmatpush1.msra.mxu0 %v8034
        %8541 = vmatprep.subr.mxu0 0.0
        %8542 = vmatpush1.msra.mxu0 %v8035
        %8543 = vmatprep.subr.mxu0 0.0
        %8544 = vmatpush1.msra.mxu0 %v8036
        %8545 = vmatprep.subr.mxu0 0.0
        %8546 = vmatpush1.msra.mxu0 %v8037
        %8547 = vmatprep.subr.mxu0 0.0
        %8548 = vmatpush1.msra.mxu0 %v8038
        %8549 = vmatprep.mubr.f32.mxu0 %v7826
        %8550 = vmatmul.mubr.f32.gmra.mrb[0].mxu0 %v7825
        %v8551 = vpop.f32.mrb[0].mxu0
        %v8552 = vadd.f32 %v8477, %v8551
        %v8553 = vpop.f32.mrb[0].mxu0
        %8554 = vmatprep.mubr.f32.mxu0 %v7842
        %8555 = vmatmul.mubr.f32.gmra.mrb[0].mxu0 %v7841
        %v8556 = vpop.f32.mrb[0].mxu0
        %v8557 = vadd.f32 %v8482, %v8556
        %v8558 = vpop.f32.mrb[0].mxu0
        %8559 = vdwg.mxu0
        %8560 = vmatprep.subr.mxu0 0.0
        %8561 = vmatpush1.msra.mxu0 %v8039
        %8562 = vmatprep.subr.mxu0 0.0
        %8563 = vmatpush1.msra.mxu0 %v8040
        %8564 = vmatprep.subr.mxu0 0.0
        %8565 = vmatpush1.msra.mxu0 %v8041
        %8566 = vmatprep.subr.mxu0 0.0
        %8567 = vmatpush1.msra.mxu0 %v8042
        %8568 = vmatprep.subr.mxu0 0.0
        %8569 = vmatpush1.msra.mxu0 %v8043
        %8570 = vmatprep.subr.mxu0 0.0
        %8571 = vmatpush1.msra.mxu0 %v8044
        %8572 = vmatprep.subr.mxu0 0.0
        %8573 = vmatpush1.msra.mxu0 %v8045
        %8574 = vmatprep.subr.mxu0 0.0
        %8575 = vmatpush1.msra.mxu0 %v8046
        %8576 = vmatprep.subr.mxu0 0.0
        %8577 = vmatpush1.msra.mxu0 %v8047
        %8578 = vmatprep.subr.mxu0 0.0
        %8579 = vmatpush1.msra.mxu0 %v8048
        %8580 = vmatprep.subr.mxu0 0.0
        %8581 = vmatpush1.msra.mxu0 %v8049
        %8582 = vmatprep.subr.mxu0 0.0
        %8583 = vmatpush1.msra.mxu0 %v8050
        %8584 = vmatprep.subr.mxu0 0.0
        %8585 = vmatpush1.msra.mxu0 %v8051
        %8586 = vmatprep.subr.mxu0 0.0
        %8587 = vmatpush1.msra.mxu0 %v8052
        %8588 = vmatprep.subr.mxu0 0.0
        %8589 = vmatpush1.msra.mxu0 %v8053
        %8590 = vmatprep.subr.mxu0 0.0
        %8591 = vmatpush1.msra.mxu0 %v8054
        %8592 = vmatprep.subr.mxu0 0.0
        %8593 = vmatpush1.msra.mxu0 %v8055
        %8594 = vmatprep.subr.mxu0 0.0
        %8595 = vmatpush1.msra.mxu0 %v8056
        %8596 = vmatprep.subr.mxu0 0.0
        %8597 = vmatpush1.msra.mxu0 %v8057
        %8598 = vmatprep.subr.mxu0 0.0
        %8599 = vmatpush1.msra.mxu0 %v8058
        %8600 = vmatprep.subr.mxu0 0.0
        %8601 = vmatpush1.msra.mxu0 %v8059
        %8602 = vmatprep.subr.mxu0 0.0
        %8603 = vmatpush1.msra.mxu0 %v8060
        %8604 = vmatprep.subr.mxu0 0.0
        %8605 = vmatpush1.msra.mxu0 %v8061
        %8606 = vmatprep.subr.mxu0 0.0
        %8607 = vmatpush1.msra.mxu0 %v8062
        %8608 = vmatprep.subr.mxu0 0.0
        %8609 = vmatpush1.msra.mxu0 %v8063
        %8610 = vmatprep.subr.mxu0 0.0
        %8611 = vmatpush1.msra.mxu0 %v8064
        %8612 = vmatprep.subr.mxu0 0.0
        %8613 = vmatpush1.msra.mxu0 %v8065
        %8614 = vmatprep.subr.mxu0 0.0
        %8615 = vmatpush1.msra.mxu0 %v8066
        %8616 = vmatprep.subr.mxu0 0.0
        %8617 = vmatpush1.msra.mxu0 %v8067
        %8618 = vmatprep.subr.mxu0 0.0
        %8619 = vmatpush1.msra.mxu0 %v8068
        %8620 = vmatprep.subr.mxu0 0.0
        %8621 = vmatpush1.msra.mxu0 %v8069
        %8622 = vmatprep.subr.mxu0 0.0
        %8623 = vmatpush1.msra.mxu0 %v8070
        %8624 = vmatprep.mubr.f32.mxu0 %v7828
        %8625 = vmatmul.mubr.f32.gmra.mrb[0].mxu0 %v7827
        %v8626 = vpop.f32.mrb[0].mxu0
        %v8627 = vadd.f32 %v8552, %v8626
        %v8628 = vpop.f32.mrb[0].mxu0
        %8629 = vmatprep.mubr.f32.mxu0 %v7844
        %8630 = vmatmul.mubr.f32.gmra.mrb[0].mxu0 %v7843
        %v8631 = vpop.f32.mrb[0].mxu0
        %v8632 = vadd.f32 %v8557, %v8631
        %v8633 = vpop.f32.mrb[0].mxu0
        %8634 = vdwg.mxu0
        %8635 = vmatprep.subr.mxu0 0.0
        %8636 = vmatpush1.msra.mxu0 %v8071
        %8637 = vmatprep.subr.mxu0 0.0
        %8638 = vmatpush1.msra.mxu0 %v8072
        %8639 = vmatprep.subr.mxu0 0.0
        %8640 = vmatpush1.msra.mxu0 %v8073
        %8641 = vmatprep.subr.mxu0 0.0
        %8642 = vmatpush1.msra.mxu0 %v8074
        %8643 = vmatprep.subr.mxu0 0.0
        %8644 = vmatpush1.msra.mxu0 %v8075
        %8645 = vmatprep.subr.mxu0 0.0
        %8646 = vmatpush1.msra.mxu0 %v8076
        %8647 = vmatprep.subr.mxu0 0.0
        %8648 = vmatpush1.msra.mxu0 %v8077
        %8649 = vmatprep.subr.mxu0 0.0
        %8650 = vmatpush1.msra.mxu0 %v8078
        %8651 = vmatprep.subr.mxu0 0.0
        %8652 = vmatpush1.msra.mxu0 %v8079
        %8653 = vmatprep.subr.mxu0 0.0
        %8654 = vmatpush1.msra.mxu0 %v8080
        %8655 = vmatprep.subr.mxu0 0.0
        %8656 = vmatpush1.msra.mxu0 %v8081
        %8657 = vmatprep.subr.mxu0 0.0
        %8658 = vmatpush1.msra.mxu0 %v8082
        %8659 = vmatprep.subr.mxu0 0.0
        %8660 = vmatpush1.msra.mxu0 %v8083
        %8661 = vmatprep.subr.mxu0 0.0
        %8662 = vmatpush1.msra.mxu0 %v8084
        %8663 = vmatprep.subr.mxu0 0.0
        %8664 = vmatpush1.msra.mxu0 %v8085
        %8665 = vmatprep.subr.mxu0 0.0
        %8666 = vmatpush1.msra.mxu0 %v8086
        %8667 = vmatprep.subr.mxu0 0.0
        %8668 = vmatpush1.msra.mxu0 %v8087
        %8669 = vmatprep.subr.mxu0 0.0
        %8670 = vmatpush1.msra.mxu0 %v8088
        %8671 = vmatprep.subr.mxu0 0.0
        %8672 = vmatpush1.msra.mxu0 %v8089
        %8673 = vmatprep.subr.mxu0 0.0
        %8674 = vmatpush1.msra.mxu0 %v8090
        %8675 = vmatprep.subr.mxu0 0.0
        %8676 = vmatpush1.msra.mxu0 %v8091
        %8677 = vmatprep.subr.mxu0 0.0
        %8678 = vmatpush1.msra.mxu0 %v8092
        %8679 = vmatprep.subr.mxu0 0.0
        %8680 = vmatpush1.msra.mxu0 %v8093
        %8681 = vmatprep.subr.mxu0 0.0
        %8682 = vmatpush1.msra.mxu0 %v8094
        %8683 = vmatprep.subr.mxu0 0.0
        %8684 = vmatpush1.msra.mxu0 %v8095
        %8685 = vmatprep.subr.mxu0 0.0
        %8686 = vmatpush1.msra.mxu0 %v8096
        %8687 = vmatprep.subr.mxu0 0.0
        %8688 = vmatpush1.msra.mxu0 %v8097
        %8689 = vmatprep.subr.mxu0 0.0
        %8690 = vmatpush1.msra.mxu0 %v8098
        %8691 = vmatprep.subr.mxu0 0.0
        %8692 = vmatpush1.msra.mxu0 %v8099
        %8693 = vmatprep.subr.mxu0 0.0
        %8694 = vmatpush1.msra.mxu0 %v8100
        %8695 = vmatprep.subr.mxu0 0.0
        %8696 = vmatpush1.msra.mxu0 %v8101
        %8697 = vmatprep.subr.mxu0 0.0
        %8698 = vmatpush1.msra.mxu0 %v8102
        %8699 = vmatprep.mubr.f32.mxu0 %v7830
        %8700 = vmatmul.mubr.f32.gmra.mrb[0].mxu0 %v7829
        %v8701 = vpop.f32.mrb[0].mxu0
        %v8702 = vadd.f32 %v8627, %v8701
        %v8703 = vpop.f32.mrb[0].mxu0
        %8704 = vmatprep.mubr.f32.mxu0 %v7846
        %8705 = vmatmul.mubr.f32.gmra.mrb[0].mxu0 %v7845
        %v8706 = vpop.f32.mrb[0].mxu0
        %v8707 = vadd.f32 %v8632, %v8706
        %v8708 = vpop.f32.mrb[0].mxu0
        %8709 = vdwg.mxu0
        %v8710 = vadd.f32 %v7043, %v8702
        %v8711 = vadd.f32 %v7044, %v8707
        %v8712 = vld [vmem:[%s733] sm:$0x1]
        %v8713 = vld [vmem:[%s736] sm:$0x1]
        %v8714 = vsel %vm1036, %v8710, 0.0
        %8715 = vadd.xlane.f32.xlu0 %v8714
        %v8716 = vpop.xlane.xlu0 %8715
        %v8717 = vsel %vm1036, %v8711, 0.0
        %8718 = vadd.xlane.f32.xlu0 %v8717
        %v8719 = vpop.xlane.xlu0 %8718
        %v8720 = vmul.f32 %v8716, %v7008
        %v8721 = vmul.f32 %v8719, %v7008
        %v8722 = vsub.f32 %v8710, %v8720
        %v8723 = vsub.f32 %v8711, %v8721
        %v8724 = vmul.f32 %v8722, %v8722
        %v8725 = vmul.f32 %v8723, %v8723
        %v8726 = vsel %vm1036, %v8724, 0.0
        %8727 = vadd.xlane.f32.xlu0 %v8726
        %v8728 = vpop.xlane.xlu0 %8727
        %v8729 = vsel %vm1036, %v8725, 0.0
        %8730 = vadd.xlane.f32.xlu0 %v8729
        %v8731 = vpop.xlane.xlu0 %8730
        %v8732 = vmul.f32 %v8728, %v7008
        %v8733 = vmul.f32 %v8731, %v7008
        %v8734 = vadd.f32 %v8732, 1e-05
        %v8735 = vadd.f32 %v8733, 1e-05
        %v8736 = vrsqrt.pop %v8734
        %v8737 = vrsqrt.pop %v8735
        %v8738 = vmul.f32 %v8722, %v8736
        %v8739 = vmul.f32 %v8723, %v8737
        %v8741 = vlaneseq
        %v8742 = vshrl.u32 %v8741, 7
        %v8743 = vsub.s32 0, %v8742
        %v8744 = vrot.slane %v8712, %v8743
        %v8746 = vmul.f32 %v8738, %v8744
        %v8747 = vmul.f32 %v8739, %v8744
        %v8749 = vlaneseq
        %v8750 = vshrl.u32 %v8749, 7
        %v8751 = vsub.s32 0, %v8750
        %v8752 = vrot.slane %v8713, %v8751
        %v8754 = vadd.f32 %v8746, %v8752
        %v8755 = vadd.f32 %v8747, %v8752
        %8756 = vst.msk [vmem:[#allocation2] sm:$0xff] %vm1036, %v8754
        %8757 = vst.msk [vmem:[#allocation2 + $0x8] sm:$0xff] %vm1036, %v8755
        %p8758 = scmp.eq.s32.totalorder %s30, 1
        // Predicated region
        $region97: #{transformer_forward.1} parent=91 // pred_check
          %p8759 = pneg %p8758
        $region98: #{transformer_forward.1} parent=91 // pred_check_branch
          %8761 = sbr.rel (%p8759) target = $region100
        $region99: #{transformer_forward.1} parent=91 // pred_region
          %v8762 = vld [vmem:[%s16] sm:$0xff]
          %v8763 = vld [vmem:[%s16 + $0x8] sm:$0xff]
          %v8764 = vld [vmem:[%s16 + $0x10] sm:$0xff]
          %v8765 = vld [vmem:[%s16 + $0x18] sm:$0xff]
          %v8766 = vld [vmem:[%s17] sm:$0x1]
          %v8768 = vlaneseq
          %v8769 = vshrl.u32 %v8768, 7
          %v8770 = vsub.s32 0, %v8769
          %v8771 = vrot.slane %v8766, %v8770
          %v8774 = vrot.slane %v8755, 6
          %v8775 = vsel %vm1036, %v8774, 0
          %8777 = vmatprep.subr.mxu0 0.0
          %8778 = vmatpush1.msra.mxu0 %v8762
          %8779 = vmatprep.subr.mxu0 0.0
          %8780 = vmatpush1.msra.mxu0 %v8763
          %8781 = vmatprep.subr.mxu0 0.0
          %8782 = vmatpush1.msra.mxu0 %v8764
          %8783 = vmatprep.subr.mxu0 0.0
          %8784 = vmatpush1.msra.mxu0 %v8765
          %8785 = vmatprep.subr.mxu0 0.0
          %8786 = vmatpush1.msra.mxu0 0.0
          %8787 = vmatprep.subr.mxu0 0.0
          %8788 = vmatpush1.msra.mxu0 0.0
          %8789 = vmatprep.subr.mxu0 0.0
          %8790 = vmatpush1.msra.mxu0 0.0
          %8791 = vmatprep.subr.mxu0 0.0
          %8792 = vmatpush1.msra.mxu0 0.0
          %8793 = vmatprep.subr.mxu0 0.0
          %8794 = vmatpush1.msra.mxu0 0.0
          %8795 = vmatprep.subr.mxu0 0.0
          %8796 = vmatpush1.msra.mxu0 0.0
          %8797 = vmatprep.subr.mxu0 0.0
          %8798 = vmatpush1.msra.mxu0 0.0
          %8799 = vmatprep.subr.mxu0 0.0
          %8800 = vmatpush1.msra.mxu0 0.0
          %8801 = vmatprep.subr.mxu0 0.0
          %8802 = vmatpush1.msra.mxu0 0.0
          %8803 = vmatprep.subr.mxu0 0.0
          %8804 = vmatpush1.msra.mxu0 0.0
          %8805 = vmatprep.subr.mxu0 0.0
          %8806 = vmatpush1.msra.mxu0 0.0
          %8807 = vmatprep.subr.mxu0 0.0
          %8808 = vmatpush1.msra.mxu0 0.0
          %8809 = vmatprep.subr.mxu0 0.0
          %8810 = vmatpush1.msra.mxu0 0.0
          %8811 = vmatprep.subr.mxu0 0.0
          %8812 = vmatpush1.msra.mxu0 0.0
          %8813 = vmatprep.subr.mxu0 0.0
          %8814 = vmatpush1.msra.mxu0 0.0
          %8815 = vmatprep.subr.mxu0 0.0
          %8816 = vmatpush1.msra.mxu0 0.0
          %8817 = vmatprep.subr.mxu0 0.0
          %8818 = vmatpush1.msra.mxu0 0.0
          %8819 = vmatprep.subr.mxu0 0.0
          %8820 = vmatpush1.msra.mxu0 0.0
          %8821 = vmatprep.subr.mxu0 0.0
          %8822 = vmatpush1.msra.mxu0 0.0
          %8823 = vmatprep.subr.mxu0 0.0
          %8824 = vmatpush1.msra.mxu0 0.0
          %8825 = vmatprep.subr.mxu0 0.0
          %8826 = vmatpush1.msra.mxu0 0.0
          %8827 = vmatprep.subr.mxu0 0.0
          %8828 = vmatpush1.msra.mxu0 0.0
          %8829 = vmatprep.subr.mxu0 0.0
          %8830 = vmatpush1.msra.mxu0 0.0
          %8831 = vmatprep.subr.mxu0 0.0
          %8832 = vmatpush1.msra.mxu0 0.0
          %8833 = vmatprep.subr.mxu0 0.0
          %8834 = vmatpush1.msra.mxu0 0.0
          %8835 = vmatprep.subr.mxu0 0.0
          %8836 = vmatpush1.msra.mxu0 0.0
          %8837 = vmatprep.subr.mxu0 0.0
          %8838 = vmatpush1.msra.mxu0 0.0
          %8839 = vmatprep.subr.mxu0 0.0
          %8840 = vmatpush1.msra.mxu0 0.0
          %8841 = vmatprep.mubr.f32.mxu0 0.0
          %8842 = vmatmul.mubr.f32.gmra.mrb[0].mxu0 %v8775
          %v8843 = vpop.f32.mrb[0].mxu0
          %v8844 = vadd.f32 %v8771, %v8843
          %v8845 = vpop.f32.mrb[0].mxu0
          %8846 = vdwg.mxu0
          %vm8847 = vcmask 58368
          %8848 = vst.msk [vmem:[#allocation3] sm:$0x3] %vm8847, %v8844
        $region100: #{transformer_forward.1} parent=91 // pred_fallthru
          _
        // Predicated region
        $region101: #{transformer_forward.1} parent=91 // pred_check
          %p8849 = pneg %p481
        $region102: #{transformer_forward.1} parent=91 // pred_check_branch
          %8851 = sbr.rel (%p8849) target = $region104
        $region103: #{transformer_forward.1} parent=91 // pred_region
          %s8853 = ssub.s32 32, 32
          %8854 = vsyncadd [#allocation4], %s8853
          %s8856 = sshll.u32 [#allocation3], 4
          %s8857 = int_to_ptr.vmem [resolvable:$true] %s8856
          %8859 = dma.vmem_to_hbm [thread:$0]  %s8857, 32, %s18, [#allocation4]
        $region104: #{transformer_forward.1} parent=91 // pred_fallthru
          _
        // Predicated region
        $region105: #{transformer_forward.1} parent=91 // pred_check
          %p8860 = pneg %p481
        $region106: #{transformer_forward.1} parent=91 // pred_check_branch
          %8862 = sbr.rel (%p8860) target = $region108
        $region107: #{transformer_forward.1} parent=91 // pred_region
          %8863 = dma.done [#allocation4], 32
        $region108: #{transformer_forward.1} parent=91 // pred_fallthru
          _
      $region92: #{transformer_forward.1} parent=5 // pred_fallthru
        _
      %p8864 = scmp.le.s32.totalorder 2, %s25
      // Predicated region
      $region109: #{transformer_forward.1} parent=5 // pred_check
        %p8865 = pneg %p8864
      $region110: #{transformer_forward.1} parent=5 // pred_check_branch
        %8867 = sbr.rel (%p8865) target = $region112
      $region111: #{transformer_forward.1} parent=5 // pred_region
        %s8868 = ssub.s32 %s25, 2
      $region112: #{transformer_forward.1} parent=5 // pred_fallthru
        _
    $region6: #{transformer_forward.1} parent=1 // loop_footer
      %s29 = sadd.s32 1, %s25
    $region7: #{transformer_forward.1} parent=1 // loop_footer_branch
      %24 = sbr.rel target = $region3
    $region8: #{transformer_forward.1} parent=1 // loop_exit
      _
    %8869 = vsyncpa [#allocation4], 1
    %s8870 = scalar_lea.sflag [#allocation4], 1
    %8871 = vsyncpa %s8870, 1

</llo_original>
